<compile_context>
chip_gen: v6e
topology: v6e:2x2x1
jax: 0.10.0
libtpu: 0.0.40
codegen_flags: <defaults>
</compile_context>

<pallas_src>
import jax
import jax.numpy as jnp
from jax.experimental import pallas as pl
from jax.experimental.pallas import tpu as pltpu


def _mlp3_kernel(x_ref, w1_ref, b1_ref, w2_ref, b2_ref, w3_ref, b3_ref, o_ref):
    # bf16 inputs -> MXU with f32 accumulation.
    x = x_ref[...].astype(jnp.bfloat16)
    h1 = jnp.dot(x, w1_ref[...], preferred_element_type=jnp.float32) + b1_ref[...]
    h2 = jnp.dot(h1.astype(jnp.bfloat16), w2_ref[...],
                 preferred_element_type=jnp.float32) + b2_ref[...]
    y = jnp.dot(h2.astype(jnp.bfloat16), w3_ref[...],
                preferred_element_type=jnp.float32) + b3_ref[...]
    o_ref[...] = y.astype(o_ref.dtype)


def _pick_out_tile(out_dim, max_tile):
    """Largest multiple-of-128 divisor of out_dim that is <= max_tile
    (falls back to the full out_dim if none exists or it already fits)."""
    if out_dim <= max_tile:
        return out_dim
    for k in range(max_tile // 128, 0, -1):
        t = 128 * k
        if out_dim % t == 0:
            return t
    return out_dim


def _vmem_limit_bytes():
    try:
        cap = pltpu.get_tpu_info().vmem_capacity_bytes
    except Exception:
        cap = 64 << 20  # conservative (v7x per-TC)
    # leave ~25% headroom for compiler scratch / double buffers, cap at 96 MiB.
    return max(32 << 20, min((cap * 3) // 4, 96 << 20))


def reconstruct_model_forward(x, params, *, max_out_tile=2048):
    """x: (B, feat_dim) f32.  params: w1,b1,w2,b2,w3,b3 (weights bf16, biases f32)."""
    w1, b1 = params["w1"], params["b1"]
    w2, b2 = params["w2"], params["b2"]
    w3, b3 = params["w3"], params["b3"]

    B, feat_dim = x.shape
    h1_dim = w1.shape[1]
    h2_dim = w2.shape[1]
    out_dim = w3.shape[1]

    # Pad batch to a sublane multiple (8) so blocks stay layout-friendly.
    B_pad = ((B + 7) // 8) * 8
    if B_pad != B:
        x = jnp.pad(x, ((0, B_pad - B), (0, 0)))

    tn = _pick_out_tile(out_dim, max_out_tile)
    num_tiles = pl.cdiv(out_dim, tn)

    resident = lambda shape: pl.BlockSpec(shape, lambda j: (0, 0))

    flops = (2 * B_pad * (feat_dim * h1_dim + h1_dim * h2_dim) * num_tiles
             + 2 * B_pad * h2_dim * out_dim)
    bytes_accessed = (
        x.size * x.dtype.itemsize
        + sum(int(p.size) * p.dtype.itemsize for p in (w1, b1, w2, b2, w3, b3))
        + B_pad * out_dim * 4)

    out = pl.pallas_call(
        _mlp3_kernel,
        out_shape=jax.ShapeDtypeStruct((B_pad, out_dim), jnp.float32),
        grid=(num_tiles,),
        in_specs=[
            resident((B_pad, feat_dim)),
            resident((feat_dim, h1_dim)), resident((1, h1_dim)),
            resident((h1_dim, h2_dim)), resident((1, h2_dim)),
            pl.BlockSpec((h2_dim, tn), lambda j: (0, j)),
            pl.BlockSpec((1, tn), lambda j: (0, j)),
        ],
        out_specs=pl.BlockSpec((B_pad, tn), lambda j: (0, j)),
        compiler_params=pltpu.CompilerParams(
            dimension_semantics=("parallel",),
            vmem_limit_bytes=_vmem_limit_bytes(),
        ),
        cost_estimate=pl.CostEstimate(
            flops=flops, transcendentals=0, bytes_accessed=bytes_accessed),
    )(x, w1, b1, w2, b2, w3, b3)

    return out[:B] if B_pad != B else out


def init_params(key, feat_dim, image_size):
    """Synthetic init mirroring nn.Linear shapes (weights stored transposed,
    then cast to bf16 for streaming; biases kept f32)."""
    out_dim = image_size * image_size * 3
    dims = [(feat_dim, 1024), (1024, 2048), (2048, out_dim)]
    params = {}
    for i, (fin, fout) in enumerate(dims, start=1):
        key, kw, kb = jax.random.split(key, 3)
        bound = 1.0 / jnp.sqrt(fin)
        w = jax.random.uniform(kw, (fin, fout), jnp.float32,
                               minval=-bound, maxval=bound)
        b = jax.random.uniform(kb, (1, fout), jnp.float32,
                               minval=-bound, maxval=bound)
        params[f"w{i}"] = w.astype(jnp.bfloat16)
        params[f"b{i}"] = b
    return params


if __name__ == "__main__":
    # Small shapes consistent with the module's forward:
    #   feat_dim=512 (default), image_size=16 -> out_dim = 16*16*3 = 768.
    B = 8
    FEAT_DIM = 512
    IMAGE_SIZE = 16

    key = jax.random.PRNGKey(0)
    key, kx = jax.random.split(key)
    params = init_params(key, FEAT_DIM, IMAGE_SIZE)
    x = jax.random.normal(kx, (B, FEAT_DIM), jnp.float32)

    # max_out_tile=256 -> 3 grid steps at out_dim=768, exercising the pipeline.
    out = reconstruct_model_forward(x, params, max_out_tile=256)
    out = jax.block_until_ready(out)

    # Pure-JAX reference with identical mixed-precision arithmetic
    # (bf16 MXU inputs, f32 accumulation, f32 bias add).
    ref = x
    for i in (1, 2, 3):
        ref = jnp.dot(ref.astype(jnp.bfloat16), params[f"w{i}"],
                      preferred_element_type=jnp.float32) + params[f"b{i}"]

    assert out.shape == (B, IMAGE_SIZE * IMAGE_SIZE * 3)
    assert jnp.allclose(out, ref, atol=5e-2, rtol=5e-2), \
        float(jnp.max(jnp.abs(out - ref)))

    print("KERNEL_OK")
</pallas_src>

<mosaic_0001>
module attributes {stable_mosaic.version = 11 : i64} {
  func.func @_mlp3_kernel(%arg0: i32, %arg1: memref<8x512xf32, #tpu.memory_space<vmem>>, %arg2: memref<512x1024xbf16, #tpu.memory_space<vmem>>, %arg3: memref<1x1024xf32, #tpu.memory_space<vmem>>, %arg4: memref<1024x2048xbf16, #tpu.memory_space<vmem>>, %arg5: memref<1x2048xf32, #tpu.memory_space<vmem>>, %arg6: memref<2048x256xbf16, #tpu.memory_space<vmem>>, %arg7: memref<1x256xf32, #tpu.memory_space<vmem>>, %arg8: memref<8x256xf32, #tpu.memory_space<vmem>>) attributes {dimension_semantics = [#tpu.dimension_semantics<parallel>], iteration_bounds = array<i64: 3>, scalar_prefetch = 0 : i64, scratch_operands = 0 : i64, tpu.core_type = #tpu.core_type<tc>, window_params = [{pipeline_mode = #tpu.pipeline_mode<synchronous>, transform_indices = @transform_0, window_bounds = array<i64: 8, 512>}, {pipeline_mode = #tpu.pipeline_mode<synchronous>, transform_indices = @transform_1, window_bounds = array<i64: 512, 1024>}, {pipeline_mode = #tpu.pipeline_mode<synchronous>, transform_indices = @transform_2, window_bounds = array<i64: 1, 1024>}, {pipeline_mode = #tpu.pipeline_mode<synchronous>, transform_indices = @transform_3, window_bounds = array<i64: 1024, 2048>}, {pipeline_mode = #tpu.pipeline_mode<synchronous>, transform_indices = @transform_4, window_bounds = array<i64: 1, 2048>}, {transform_indices = @transform_5, window_bounds = array<i64: 2048, 256>}, {transform_indices = @transform_6, window_bounds = array<i64: 1, 256>}, {transform_indices = @transform_7, window_bounds = array<i64: 8, 256>}]} {
    %c0 = arith.constant 0 : index
    %c0_0 = arith.constant 0 : index
    %0 = vector.load %arg1[%c0, %c0_0] : memref<8x512xf32, #tpu.memory_space<vmem>>, vector<8x512xf32>
    %1 = arith.truncf %0 : vector<8x512xf32> to vector<8x512xbf16>
    %c0_1 = arith.constant 0 : index
    %c0_2 = arith.constant 0 : index
    %2 = vector.load %arg2[%c0_1, %c0_2] : memref<512x1024xbf16, #tpu.memory_space<vmem>>, vector<512x1024xbf16>
    %cst = arith.constant dense<0.000000e+00> : vector<8x1024xf32>
    %3 = tpu.matmul %1, %2, %cst {dimension_numbers = #tpu.dot_dimension_numbers<[1], [0], [0], [1], [0, 0, 1, 1], [], []>} : vector<8x512xbf16>, vector<512x1024xbf16>, vector<8x1024xf32> -> vector<8x1024xf32>
    %c0_3 = arith.constant 0 : index
    %c0_4 = arith.constant 0 : index
    %4 = vector.load %arg3[%c0_3, %c0_4] : memref<1x1024xf32, #tpu.memory_space<vmem>>, vector<1x1024xf32>
    %5 = vector.broadcast %4 : vector<1x1024xf32> to vector<8x1024xf32>
    %6 = arith.addf %3, %5 : vector<8x1024xf32>
    %7 = arith.truncf %6 : vector<8x1024xf32> to vector<8x1024xbf16>
    %c0_5 = arith.constant 0 : index
    %c0_6 = arith.constant 0 : index
    %8 = vector.load %arg4[%c0_5, %c0_6] : memref<1024x2048xbf16, #tpu.memory_space<vmem>>, vector<1024x2048xbf16>
    %cst_7 = arith.constant dense<0.000000e+00> : vector<8x2048xf32>
    %9 = tpu.matmul %7, %8, %cst_7 {dimension_numbers = #tpu.dot_dimension_numbers<[1], [0], [0], [1], [0, 0, 1, 1], [], []>} : vector<8x1024xbf16>, vector<1024x2048xbf16>, vector<8x2048xf32> -> vector<8x2048xf32>
    %c0_8 = arith.constant 0 : index
    %c0_9 = arith.constant 0 : index
    %10 = vector.load %arg5[%c0_8, %c0_9] : memref<1x2048xf32, #tpu.memory_space<vmem>>, vector<1x2048xf32>
    %11 = vector.broadcast %10 : vector<1x2048xf32> to vector<8x2048xf32>
    %12 = arith.addf %9, %11 : vector<8x2048xf32>
    %13 = arith.truncf %12 : vector<8x2048xf32> to vector<8x2048xbf16>
    %c0_10 = arith.constant 0 : index
    %c0_11 = arith.constant 0 : index
    %14 = vector.load %arg6[%c0_10, %c0_11] : memref<2048x256xbf16, #tpu.memory_space<vmem>>, vector<2048x256xbf16>
    %cst_12 = arith.constant dense<0.000000e+00> : vector<8x256xf32>
    %15 = tpu.matmul %13, %14, %cst_12 {dimension_numbers = #tpu.dot_dimension_numbers<[1], [0], [0], [1], [0, 0, 1, 1], [], []>} : vector<8x2048xbf16>, vector<2048x256xbf16>, vector<8x256xf32> -> vector<8x256xf32>
    %c0_13 = arith.constant 0 : index
    %c0_14 = arith.constant 0 : index
    %16 = vector.load %arg7[%c0_13, %c0_14] : memref<1x256xf32, #tpu.memory_space<vmem>>, vector<1x256xf32>
    %17 = vector.broadcast %16 : vector<1x256xf32> to vector<8x256xf32>
    %18 = arith.addf %15, %17 : vector<8x256xf32>
    %c0_15 = arith.constant 0 : index
    %c0_16 = arith.constant 0 : index
    %19 = vector.load %arg8[%c0_15, %c0_16] : memref<8x256xf32, #tpu.memory_space<vmem>>, vector<8x256xf32>
    tpu.vector_store %arg8[%c0_15, %c0_16], %18 {strides = array<i32>} : memref<8x256xf32, #tpu.memory_space<vmem>>, vector<8x256xf32>,
    return
  }
  func.func @transform_0(%arg0: i32) -> (i32, i32) {
    %c0_i32 = arith.constant 0 : i32
    %c0_i32_0 = arith.constant 0 : i32
    %c0_i32_1 = arith.constant 0 : i32
    return %c0_i32, %c0_i32_0 : i32, i32
  }
  func.func @transform_1(%arg0: i32) -> (i32, i32) {
    %c0_i32 = arith.constant 0 : i32
    %c0_i32_0 = arith.constant 0 : i32
    %c0_i32_1 = arith.constant 0 : i32
    return %c0_i32, %c0_i32_0 : i32, i32
  }
  func.func @transform_2(%arg0: i32) -> (i32, i32) {
    %c0_i32 = arith.constant 0 : i32
    %c0_i32_0 = arith.constant 0 : i32
    %c0_i32_1 = arith.constant 0 : i32
    return %c0_i32, %c0_i32_0 : i32, i32
  }
  func.func @transform_3(%arg0: i32) -> (i32, i32) {
    %c0_i32 = arith.constant 0 : i32
    %c0_i32_0 = arith.constant 0 : i32
    %c0_i32_1 = arith.constant 0 : i32
    return %c0_i32, %c0_i32_0 : i32, i32
  }
  func.func @transform_4(%arg0: i32) -> (i32, i32) {
    %c0_i32 = arith.constant 0 : i32
    %c0_i32_0 = arith.constant 0 : i32
    %c0_i32_1 = arith.constant 0 : i32
    return %c0_i32, %c0_i32_0 : i32, i32
  }
  func.func @transform_5(%arg0: i32) -> (i32, i32) {
    %c0_i32 = arith.constant 0 : i32
    %c0_i32_0 = arith.constant 0 : i32
    return %c0_i32, %arg0 : i32, i32
  }
  func.func @transform_6(%arg0: i32) -> (i32, i32) {
    %c0_i32 = arith.constant 0 : i32
    %c0_i32_0 = arith.constant 0 : i32
    return %c0_i32, %arg0 : i32, i32
  }
  func.func @transform_7(%arg0: i32) -> (i32, i32) {
    %c0_i32 = arith.constant 0 : i32
    %c0_i32_0 = arith.constant 0 : i32
    return %c0_i32, %arg0 : i32, i32
  }
}

</mosaic_0001>

<llo_original>
// kernel: tpu_custom_call.1
$region0: #{tpu_custom_call.1}
  #allocation0 [shape = 'u32[]', space=smem, size = 0x4, offset = 0x4, fixed_abs, tag = 'smem constant byte address 0x4 - core index']
  #allocation1 [shape = 'u32[144,128]{1,0:T(1,128)}', space=vmem, size = 0x12000, scoped, tag = 'internal scratch']
  %s0 = inlined_call_operand.hbm [shape: f32[8,512], index: 0, kind: input, shape index: {}]
  %s1 = inlined_call_operand.hbm [shape: bf16[512,1024], index: 1, kind: input, shape index: {}]
  %s2 = inlined_call_operand.hbm [shape: f32[1,1024], index: 2, kind: input, shape index: {}]
  %s3 = inlined_call_operand.hbm [shape: bf16[1024,2048], index: 3, kind: input, shape index: {}]
  %s4 = inlined_call_operand.hbm [shape: f32[1,2048], index: 4, kind: input, shape index: {}]
  %s5 = inlined_call_operand.hbm [shape: bf16[2048,768], index: 5, kind: input, shape index: {}]
  %s6 = inlined_call_operand.hbm [shape: f32[1,768], index: 6, kind: input, shape index: {}]
  %s7 = inlined_call_operand.hbm [shape: f32[8,768], index: 7, kind: output, shape index: {}]
  %s8 = sld [smem:[#allocation0]]
  $region89: #{tpu_custom_call.1} parent=0
    _
  %s10 = ssub.s32 1, %s8
  %s11 = scalar_select 0, %s10, %s8
  $region1: #{tpu_custom_call.1} parent=0
    #allocation2 [shape = 'u8[16384]{0}', space=vmem, size = 0x4000, scoped, tag = 'input window, operand 0, single buffered']
    #allocation3 [shape = 's32[2]{0}', space=sflag, size = 0x8, scoped, tag = 'scoped memory for tpu_custom_call.1']
    #allocation4 [shape = 's32[2]{0}', space=sflag, size = 0x8, scoped, tag = 'scoped memory for tpu_custom_call.1']
    #allocation5 [shape = 'u8[1048576]{0}', space=vmem, size = 0x100000, scoped, tag = 'input window, operand 1, single buffered']
    #allocation6 [shape = 's32[1]{0}', space=sflag, size = 0x4, scoped, tag = 'scoped memory for tpu_custom_call.1']
    #allocation7 [shape = 'u8[4096]{0}', space=vmem, size = 0x1000, scoped, tag = 'input window, operand 2, single buffered']
    #allocation8 [shape = 'u8[4194304]{0}', space=vmem, size = 0x400000, scoped, tag = 'input window, operand 3, single buffered']
    #allocation9 [shape = 's32[1]{0}', space=sflag, size = 0x4, scoped, tag = 'scoped memory for tpu_custom_call.1']
    #allocation10 [shape = 'u8[8192]{0}', space=vmem, size = 0x2000, scoped, tag = 'input window, operand 4, single buffered']
    #allocation11 [shape = 'u8[2097152]{0}', space=vmem, size = 0x200000, scoped, tag = 'input window, operand 5']
    #allocation12 [shape = 's32[2]{0}', space=sflag, size = 0x8, scoped, tag = 'scoped memory for tpu_custom_call.1']
    #allocation13 [shape = 'u8[2048]{0}', space=vmem, size = 0x800, scoped, tag = 'input window, operand 6']
    #allocation14 [shape = 'u8[16384]{0}', space=vmem, size = 0x4000, scoped, tag = 'output window, operand 0']
    %12 = vsyncpa [#allocation3], 0
    %13 = vsyncpa [#allocation6], 0
    %14 = vsyncpa [#allocation9], 0
    %15 = vsyncpa [#allocation12], 0
    %s16 = scalar_lea.sflag [#allocation12], 1
    %17 = vsyncpa %s16, 0
    %18 = vsyncpa [#allocation4], 0
    %s19 = scalar_lea.sflag [#allocation4], 1
    %20 = vsyncpa %s19, 0
    loop: start=0, step=1, limit=5
    $region2: #{tpu_custom_call.1} parent=1 // loop_pre_header
      _
    $region3: #{tpu_custom_call.1} parent=1 // loop_header
      %s22 = sphi 0, %s26
      %p23 = scmp.ge.s32.totalorder %s22, 5
      %s30 = sphi 0, %s30
      %s32 = sphi 0, %s30
      %s33 = sphi 0, %s32
      %s47 = sphi 0, %s33
      %s51 = sphi 0, %s51
      %s53 = sphi 0, %s51
      %s54 = sphi 0, %s53
      %s68 = sphi 0, %s54
      %s72 = sphi 0, %s72
      %s74 = sphi 0, %s72
      %s75 = sphi 0, %s74
      %s89 = sphi 0, %s75
      %s93 = sphi 0, %s93
      %s95 = sphi 0, %s93
      %s96 = sphi 0, %s95
      %s110 = sphi 0, %s96
      %s114 = sphi 0, %s114
      %s116 = sphi 0, %s114
      %s117 = sphi 0, %s116
      %s131 = sphi 0, %s117
      %s137 = sphi 0, %s139
      %s140 = sphi 0, %s137
      %s141 = sphi 0, %s140
      %s157 = sphi 0, %s141
      %s163 = sphi 0, %s165
      %s166 = sphi 0, %s163
      %s167 = sphi 0, %s166
      %s183 = sphi 0, %s167
      %s189 = sphi 0, %s191
      %s192 = sphi 0, %s189
      %s193 = sphi 0, %s192
      %s209 = sphi 0, %s193
    $region4: #{tpu_custom_call.1} parent=1 // loop_header_branch
      %25 = sbr.rel (%p23) target = $region8
    $region5: #{tpu_custom_call.1} parent=1 // loop_body
      %s27 = ssub.s32 %s22, 1
      %s28 = ssub.s32 %s22, 2
      %s29 = sadd.s32 %s22, 1
      %s31 = sadd.s32 %s30, 1
      %p34 = scmp.eq.s32.totalorder %s22, 2
      %p35 = scmp.ne.s32.totalorder %s30, %s32
      %p36 = scmp.eq.s32.totalorder %s22, 0
      %p37 = por %p35, %p36
      %p38 = scmp.ne.s32.totalorder %s30, %s32
      %p39 = scmp.eq.s32.totalorder %s27, 2
      %p40 = por %p38, %p39
      %p41 = scmp.ne.s32.totalorder %s32, %s33
      %p42 = scmp.eq.s32.totalorder %s27, 0
      %p43 = por %p41, %p42
      %p44 = scmp.ne.s32.totalorder %s32, %s33
      %p45 = scmp.eq.s32.totalorder %s28, 2
      %p46 = por %p44, %p45
      %p48 = scmp.ne.s32.totalorder %s33, %s47
      %p49 = scmp.eq.s32.totalorder %s28, 0
      %p50 = por %p48, %p49
      %s52 = sadd.s32 %s51, 1
      %p55 = scmp.eq.s32.totalorder %s22, 2
      %p56 = scmp.ne.s32.totalorder %s51, %s53
      %p57 = scmp.eq.s32.totalorder %s22, 0
      %p58 = por %p56, %p57
      %p59 = scmp.ne.s32.totalorder %s51, %s53
      %p60 = scmp.eq.s32.totalorder %s27, 2
      %p61 = por %p59, %p60
      %p62 = scmp.ne.s32.totalorder %s53, %s54
      %p63 = scmp.eq.s32.totalorder %s27, 0
      %p64 = por %p62, %p63
      %p65 = scmp.ne.s32.totalorder %s53, %s54
      %p66 = scmp.eq.s32.totalorder %s28, 2
      %p67 = por %p65, %p66
      %p69 = scmp.ne.s32.totalorder %s54, %s68
      %p70 = scmp.eq.s32.totalorder %s28, 0
      %p71 = por %p69, %p70
      %s73 = sadd.s32 %s72, 1
      %p76 = scmp.eq.s32.totalorder %s22, 2
      %p77 = scmp.ne.s32.totalorder %s72, %s74
      %p78 = scmp.eq.s32.totalorder %s22, 0
      %p79 = por %p77, %p78
      %p80 = scmp.ne.s32.totalorder %s72, %s74
      %p81 = scmp.eq.s32.totalorder %s27, 2
      %p82 = por %p80, %p81
      %p83 = scmp.ne.s32.totalorder %s74, %s75
      %p84 = scmp.eq.s32.totalorder %s27, 0
      %p85 = por %p83, %p84
      %p86 = scmp.ne.s32.totalorder %s74, %s75
      %p87 = scmp.eq.s32.totalorder %s28, 2
      %p88 = por %p86, %p87
      %p90 = scmp.ne.s32.totalorder %s75, %s89
      %p91 = scmp.eq.s32.totalorder %s28, 0
      %p92 = por %p90, %p91
      %s94 = sadd.s32 %s93, 1
      %p97 = scmp.eq.s32.totalorder %s22, 2
      %p98 = scmp.ne.s32.totalorder %s93, %s95
      %p99 = scmp.eq.s32.totalorder %s22, 0
      %p100 = por %p98, %p99
      %p101 = scmp.ne.s32.totalorder %s93, %s95
      %p102 = scmp.eq.s32.totalorder %s27, 2
      %p103 = por %p101, %p102
      %p104 = scmp.ne.s32.totalorder %s95, %s96
      %p105 = scmp.eq.s32.totalorder %s27, 0
      %p106 = por %p104, %p105
      %p107 = scmp.ne.s32.totalorder %s95, %s96
      %p108 = scmp.eq.s32.totalorder %s28, 2
      %p109 = por %p107, %p108
      %p111 = scmp.ne.s32.totalorder %s96, %s110
      %p112 = scmp.eq.s32.totalorder %s28, 0
      %p113 = por %p111, %p112
      %s115 = sadd.s32 %s114, 1
      %p118 = scmp.eq.s32.totalorder %s22, 2
      %p119 = scmp.ne.s32.totalorder %s114, %s116
      %p120 = scmp.eq.s32.totalorder %s22, 0
      %p121 = por %p119, %p120
      %p122 = scmp.ne.s32.totalorder %s114, %s116
      %p123 = scmp.eq.s32.totalorder %s27, 2
      %p124 = por %p122, %p123
      %p125 = scmp.ne.s32.totalorder %s116, %s117
      %p126 = scmp.eq.s32.totalorder %s27, 0
      %p127 = por %p125, %p126
      %p128 = scmp.ne.s32.totalorder %s116, %s117
      %p129 = scmp.eq.s32.totalorder %s28, 2
      %p130 = por %p128, %p129
      %p132 = scmp.ne.s32.totalorder %s117, %s131
      %p133 = scmp.eq.s32.totalorder %s28, 0
      %p134 = por %p132, %p133
      %s135 = ssub.s32 %s22, %s29
      %p136 = scmp.eq.s32.totalorder %s135, 0
      %s138 = sadd.s32 %s137, 1
      %s139 = scalar_select %p136, %s137, %s138
      %p142 = pneg %p136
      %p143 = scmp.eq.s32.totalorder %s22, 2
      %p144 = por %p142, %p143
      %p145 = scmp.ne.s32.totalorder %s137, %s140
      %p146 = scmp.eq.s32.totalorder %s22, 0
      %p147 = por %p145, %p146
      %p148 = scmp.ne.s32.totalorder %s137, %s140
      %p149 = scmp.eq.s32.totalorder %s27, 2
      %p150 = por %p148, %p149
      %p151 = scmp.ne.s32.totalorder %s140, %s141
      %p152 = scmp.eq.s32.totalorder %s27, 0
      %p153 = por %p151, %p152
      %p154 = scmp.ne.s32.totalorder %s140, %s141
      %p155 = scmp.eq.s32.totalorder %s28, 2
      %p156 = por %p154, %p155
      %p158 = scmp.ne.s32.totalorder %s141, %s157
      %p159 = scmp.eq.s32.totalorder %s28, 0
      %p160 = por %p158, %p159
      %s161 = ssub.s32 %s22, %s29
      %p162 = scmp.eq.s32.totalorder %s161, 0
      %s164 = sadd.s32 %s163, 1
      %s165 = scalar_select %p162, %s163, %s164
      %p168 = pneg %p162
      %p169 = scmp.eq.s32.totalorder %s22, 2
      %p170 = por %p168, %p169
      %p171 = scmp.ne.s32.totalorder %s163, %s166
      %p172 = scmp.eq.s32.totalorder %s22, 0
      %p173 = por %p171, %p172
      %p174 = scmp.ne.s32.totalorder %s163, %s166
      %p175 = scmp.eq.s32.totalorder %s27, 2
      %p176 = por %p174, %p175
      %p177 = scmp.ne.s32.totalorder %s166, %s167
      %p178 = scmp.eq.s32.totalorder %s27, 0
      %p179 = por %p177, %p178
      %p180 = scmp.ne.s32.totalorder %s166, %s167
      %p181 = scmp.eq.s32.totalorder %s28, 2
      %p182 = por %p180, %p181
      %p184 = scmp.ne.s32.totalorder %s167, %s183
      %p185 = scmp.eq.s32.totalorder %s28, 0
      %p186 = por %p184, %p185
      %s187 = ssub.s32 %s22, %s29
      %p188 = scmp.eq.s32.totalorder %s187, 0
      %s190 = sadd.s32 %s189, 1
      %s191 = scalar_select %p188, %s189, %s190
      %p194 = pneg %p188
      %p195 = scmp.eq.s32.totalorder %s22, 2
      %p196 = por %p194, %p195
      %p197 = scmp.ne.s32.totalorder %s189, %s192
      %p198 = scmp.eq.s32.totalorder %s22, 0
      %p199 = por %p197, %p198
      %p200 = scmp.ne.s32.totalorder %s189, %s192
      %p201 = scmp.eq.s32.totalorder %s27, 2
      %p202 = por %p200, %p201
      %p203 = scmp.ne.s32.totalorder %s192, %s193
      %p204 = scmp.eq.s32.totalorder %s27, 0
      %p205 = por %p203, %p204
      %p206 = scmp.ne.s32.totalorder %s192, %s193
      %p207 = scmp.eq.s32.totalorder %s28, 2
      %p208 = por %p206, %p207
      %p210 = scmp.ne.s32.totalorder %s193, %s209
      %p211 = scmp.eq.s32.totalorder %s28, 0
      %p212 = por %p210, %p211
      %p213 = scmp.le.s32.totalorder 1, %s22
      %p214 = scmp.lt.s32.totalorder %s22, 4
      %p215 = pnand %p213, %p214
      %p216 = pneg %p215
      // Predicated region
      $region9: #{tpu_custom_call.1} parent=5 // pred_check
        _
      $region10: #{tpu_custom_call.1} parent=5 // pred_check_branch
        %218 = sbr.rel (%p215) target = $region12
      $region11: #{tpu_custom_call.1} parent=5 // pred_region
        %s219 = ssub.s32 %s22, 1
        // Predicated region
        $region13: #{tpu_custom_call.1} parent=11 // pred_check
          %p220 = pneg %p43
        $region14: #{tpu_custom_call.1} parent=11 // pred_check_branch
          %222 = sbr.rel (%p220) target = $region16
        $region15: #{tpu_custom_call.1} parent=11 // pred_region
          %s224 = ssub.s32 512, 512
          %225 = vsyncadd [#allocation3], %s224
          %s227 = sshll.u32 [#allocation2], 4
          %s228 = int_to_ptr.vmem [resolvable:$true] %s227
          %230 = dma.hbm_to_vmem [thread:$0]  %s0, 512, %s228, [#allocation3]
        $region16: #{tpu_custom_call.1} parent=11 // pred_fallthru
          _
        // Predicated region
        $region17: #{tpu_custom_call.1} parent=11 // pred_check
          %p231 = pneg %p64
        $region18: #{tpu_custom_call.1} parent=11 // pred_check_branch
          %233 = sbr.rel (%p231) target = $region20
        $region19: #{tpu_custom_call.1} parent=11 // pred_region
          %s235 = ssub.s32 32768, 32768
          %236 = vsyncadd [#allocation6], %s235
          %s237 = sshll.u32 [#allocation5], 4
          %s238 = int_to_ptr.vmem [resolvable:$true] %s237
          %243 = dma.hbm_to_vmem [thread:$0]  %s1, 32768, %s238, [#allocation6], 512, 512, 32
        $region20: #{tpu_custom_call.1} parent=11 // pred_fallthru
          _
        // Predicated region
        $region21: #{tpu_custom_call.1} parent=11 // pred_check
          %p244 = pneg %p85
        $region22: #{tpu_custom_call.1} parent=11 // pred_check_branch
          %246 = sbr.rel (%p244) target = $region24
        $region23: #{tpu_custom_call.1} parent=11 // pred_region
          %s248 = ssub.s32 128, 128
          %249 = vsyncadd [#allocation6], %s248
          %s251 = sshll.u32 [#allocation7], 4
          %s252 = int_to_ptr.vmem [resolvable:$true] %s251
          %254 = dma.hbm_to_vmem [thread:$0]  %s2, 128, %s252, [#allocation6]
        $region24: #{tpu_custom_call.1} parent=11 // pred_fallthru
          _
        // Predicated region
        $region25: #{tpu_custom_call.1} parent=11 // pred_check
          %p255 = pneg %p106
        $region26: #{tpu_custom_call.1} parent=11 // pred_check_branch
          %257 = sbr.rel (%p255) target = $region28
        $region27: #{tpu_custom_call.1} parent=11 // pred_region
          %s259 = ssub.s32 131072, 131072
          %260 = vsyncadd [#allocation9], %s259
          %s261 = sshll.u32 [#allocation8], 4
          %s262 = int_to_ptr.vmem [resolvable:$true] %s261
          %267 = dma.hbm_to_vmem [thread:$0]  %s3, 131072, %s262, [#allocation9], 1024, 1024, 64
        $region28: #{tpu_custom_call.1} parent=11 // pred_fallthru
          _
        // Predicated region
        $region29: #{tpu_custom_call.1} parent=11 // pred_check
          %p268 = pneg %p127
        $region30: #{tpu_custom_call.1} parent=11 // pred_check_branch
          %270 = sbr.rel (%p268) target = $region32
        $region31: #{tpu_custom_call.1} parent=11 // pred_region
          %s272 = ssub.s32 256, 256
          %273 = vsyncadd [#allocation9], %s272
          %s275 = sshll.u32 [#allocation10], 4
          %s276 = int_to_ptr.vmem [resolvable:$true] %s275
          %278 = dma.hbm_to_vmem [thread:$0]  %s4, 256, %s276, [#allocation9]
        $region32: #{tpu_custom_call.1} parent=11 // pred_fallthru
          _
      $region12: #{tpu_custom_call.1} parent=5 // pred_fallthru
        _
      %p279 = scmp.lt.s32.totalorder %s22, 3
      // Predicated region
      $region33: #{tpu_custom_call.1} parent=5 // pred_check
        %p280 = pneg %p279
      $region34: #{tpu_custom_call.1} parent=5 // pred_check_branch
        %282 = sbr.rel (%p280) target = $region36
      $region35: #{tpu_custom_call.1} parent=5 // pred_region
        // Predicated region
        $region37: #{tpu_custom_call.1} parent=35 // pred_check
          %p283 = pneg %p147
        $region38: #{tpu_custom_call.1} parent=35 // pred_check_branch
          %285 = sbr.rel (%p283) target = $region40
        $region39: #{tpu_custom_call.1} parent=35 // pred_region
          %s286 = sand.u32 %s22, 1
          %s287 = scalar_lea.sflag [#allocation12], %s286
          %s288 = sand.u32 %s137, 1
          %s289 = smul.addr %s288, 2048
          %s290 = scalar_lea.vmem [#allocation11], %s289
          %s291 = smul.u32 2, %s22
          %s293 = ssub.s32 32768, 32768
          %294 = vsyncadd %s287, %s293
          %s295 = smul.addr %s291, 64
          %s296 = scalar_lea.hbm %s5, %s295
          %s297 = sshll.u32 %s290, 4
          %s298 = int_to_ptr.vmem [resolvable:$true] %s297
          %303 = dma.hbm_to_vmem [thread:$0]  %s296, 32768, %s298, %s287, 384, 128, 8
        $region40: #{tpu_custom_call.1} parent=35 // pred_fallthru
          _
        // Predicated region
        $region41: #{tpu_custom_call.1} parent=35 // pred_check
          %p304 = pneg %p173
        $region42: #{tpu_custom_call.1} parent=35 // pred_check_branch
          %306 = sbr.rel (%p304) target = $region44
        $region43: #{tpu_custom_call.1} parent=35 // pred_region
          %s307 = sand.u32 %s22, 1
          %s308 = scalar_lea.sflag [#allocation12], %s307
          %s309 = sand.u32 %s163, 1
          %s310 = smul.addr %s309, 2
          %s311 = scalar_lea.vmem [#allocation13], %s310
          %s312 = smul.u32 2, %s22
          %s314 = ssub.s32 32, 32
          %315 = vsyncadd %s308, %s314
          %s316 = smul.addr %s312, 16
          %s317 = scalar_lea.hbm %s6, %s316
          %s319 = sshll.u32 %s311, 4
          %s320 = int_to_ptr.vmem [resolvable:$true] %s319
          %322 = dma.hbm_to_vmem [thread:$0]  %s317, 32, %s320, %s308
        $region44: #{tpu_custom_call.1} parent=35 // pred_fallthru
          _
      $region36: #{tpu_custom_call.1} parent=5 // pred_fallthru
        _
      %p323 = scmp.le.s32.totalorder 1, %s22
      %p324 = scmp.lt.s32.totalorder %s22, 4
      %p325 = pnand %p323, %p324
      %p326 = pneg %p325
      // Predicated region
      $region45: #{tpu_custom_call.1} parent=5 // pred_check
        _
      $region46: #{tpu_custom_call.1} parent=5 // pred_check_branch
        %328 = sbr.rel (%p325) target = $region48
      $region47: #{tpu_custom_call.1} parent=5 // pred_region
        %s329 = ssub.s32 %s22, 1
        // Predicated region
        $region49: #{tpu_custom_call.1} parent=47 // pred_check
          %p330 = pneg %p43
        $region50: #{tpu_custom_call.1} parent=47 // pred_check_branch
          %332 = sbr.rel (%p330) target = $region52
        $region51: #{tpu_custom_call.1} parent=47 // pred_region
          %333 = dma.done [#allocation3], 512
        $region52: #{tpu_custom_call.1} parent=47 // pred_fallthru
          _
        // Predicated region
        $region53: #{tpu_custom_call.1} parent=47 // pred_check
          %p334 = pneg %p64
        $region54: #{tpu_custom_call.1} parent=47 // pred_check_branch
          %336 = sbr.rel (%p334) target = $region56
        $region55: #{tpu_custom_call.1} parent=47 // pred_region
          %337 = dma.done [#allocation6], 32768
        $region56: #{tpu_custom_call.1} parent=47 // pred_fallthru
          _
        // Predicated region
        $region57: #{tpu_custom_call.1} parent=47 // pred_check
          %p338 = pneg %p85
        $region58: #{tpu_custom_call.1} parent=47 // pred_check_branch
          %340 = sbr.rel (%p338) target = $region60
        $region59: #{tpu_custom_call.1} parent=47 // pred_region
          %341 = dma.done [#allocation6], 128
        $region60: #{tpu_custom_call.1} parent=47 // pred_fallthru
          _
        // Predicated region
        $region61: #{tpu_custom_call.1} parent=47 // pred_check
          %p342 = pneg %p106
        $region62: #{tpu_custom_call.1} parent=47 // pred_check_branch
          %344 = sbr.rel (%p342) target = $region64
        $region63: #{tpu_custom_call.1} parent=47 // pred_region
          %345 = dma.done [#allocation9], 131072
        $region64: #{tpu_custom_call.1} parent=47 // pred_fallthru
          _
        // Predicated region
        $region65: #{tpu_custom_call.1} parent=47 // pred_check
          %p346 = pneg %p127
        $region66: #{tpu_custom_call.1} parent=47 // pred_check_branch
          %348 = sbr.rel (%p346) target = $region68
        $region67: #{tpu_custom_call.1} parent=47 // pred_region
          %349 = dma.done [#allocation9], 256
        $region68: #{tpu_custom_call.1} parent=47 // pred_fallthru
          _
        %s350 = sand.u32 %s27, 1
        %s351 = scalar_lea.sflag [#allocation12], %s350
        %s352 = sand.u32 %s140, 1
        %s353 = smul.addr %s352, 2048
        %s354 = scalar_lea.vmem [#allocation11], %s353
        // Predicated region
        $region69: #{tpu_custom_call.1} parent=47 // pred_check
          %p355 = pneg %p153
        $region70: #{tpu_custom_call.1} parent=47 // pred_check_branch
          %357 = sbr.rel (%p355) target = $region72
        $region71: #{tpu_custom_call.1} parent=47 // pred_region
          %358 = dma.done %s351, 32768
        $region72: #{tpu_custom_call.1} parent=47 // pred_fallthru
          _
        %s359 = sand.u32 %s27, 1
        %s360 = scalar_lea.sflag [#allocation12], %s359
        %s361 = sand.u32 %s166, 1
        %s362 = smul.addr %s361, 2
        %s363 = scalar_lea.vmem [#allocation13], %s362
        // Predicated region
        $region73: #{tpu_custom_call.1} parent=47 // pred_check
          %p364 = pneg %p179
        $region74: #{tpu_custom_call.1} parent=47 // pred_check_branch
          %366 = sbr.rel (%p364) target = $region76
        $region75: #{tpu_custom_call.1} parent=47 // pred_region
          %367 = dma.done %s360, 32
        $region76: #{tpu_custom_call.1} parent=47 // pred_fallthru
          _
        %p368 = pneg %p43
        %p369 = pneg %p40
        %p370 = pneg %p64
        %p371 = pneg %p61
        %p372 = pneg %p85
        %p373 = pneg %p82
        %p374 = pneg %p106
        %p375 = pneg %p103
        %p376 = pneg %p127
        %p377 = pneg %p124
        %s378 = sand.u32 %s27, 1
        %s379 = scalar_lea.sflag [#allocation12], %s378
        %s380 = sand.u32 %s140, 1
        %s381 = smul.addr %s380, 2048
        %s382 = scalar_lea.vmem [#allocation11], %s381
        %p383 = pneg %p153
        %p384 = pneg %p150
        %s385 = sand.u32 %s27, 1
        %s386 = scalar_lea.sflag [#allocation12], %s385
        %s387 = sand.u32 %s166, 1
        %s388 = smul.addr %s387, 2
        %s389 = scalar_lea.vmem [#allocation13], %s388
        %p390 = pneg %p179
        %p391 = pneg %p176
        %p392 = pneg %p205
        %p393 = pneg %p202
        %s394 = sand.u32 %s192, 1
        %s395 = scalar_lea.sflag [#allocation4], %s394
        %s396 = sand.u32 %s192, 1
        %s397 = smul.addr %s396, 16
        %s398 = scalar_lea.vmem [#allocation14], %s397
        %s399 = smul.u32 2, %s27
        %s400 = smul.u32 2, %s27
        %s401 = smul.u32 2, %s27
        %v402 = vld [vmem:[#allocation2] sm:$0xff]
        %v403 = vld [vmem:[#allocation2 + $0x8] sm:$0xff]
        %v404 = vld [vmem:[#allocation2 + $0x10] sm:$0xff]
        %v405 = vld [vmem:[#allocation2 + $0x18] sm:$0xff]
        %v406 = vpack.c.bf16 %v402, %v402
        %v407 = vpack.c.bf16 %v403, %v403
        %v408 = vpack.c.bf16 %v404, %v404
        %v409 = vpack.c.bf16 %v405, %v405
        %v410 = vld [vmem:[#allocation5] sm:$0xff]
        %v411 = vld [vmem:[#allocation5 + $0x8] sm:$0xff]
        %v412 = vld [vmem:[#allocation5 + $0x10] sm:$0xff]
        %v413 = vld [vmem:[#allocation5 + $0x18] sm:$0xff]
        %v414 = vld [vmem:[#allocation5 + $0x20] sm:$0xff]
        %v415 = vld [vmem:[#allocation5 + $0x28] sm:$0xff]
        %v416 = vld [vmem:[#allocation5 + $0x30] sm:$0xff]
        %v417 = vld [vmem:[#allocation5 + $0x38] sm:$0xff]
        %v418 = vld [vmem:[#allocation5 + $0x40] sm:$0xff]
        %v419 = vld [vmem:[#allocation5 + $0x48] sm:$0xff]
        %v420 = vld [vmem:[#allocation5 + $0x50] sm:$0xff]
        %v421 = vld [vmem:[#allocation5 + $0x58] sm:$0xff]
        %v422 = vld [vmem:[#allocation5 + $0x60] sm:$0xff]
        %v423 = vld [vmem:[#allocation5 + $0x68] sm:$0xff]
        %v424 = vld [vmem:[#allocation5 + $0x70] sm:$0xff]
        %v425 = vld [vmem:[#allocation5 + $0x78] sm:$0xff]
        %v426 = vld [vmem:[#allocation5 + $0x80] sm:$0xff]
        %v427 = vld [vmem:[#allocation5 + $0x88] sm:$0xff]
        %v428 = vld [vmem:[#allocation5 + $0x90] sm:$0xff]
        %v429 = vld [vmem:[#allocation5 + $0x98] sm:$0xff]
        %v430 = vld [vmem:[#allocation5 + $0xa0] sm:$0xff]
        %v431 = vld [vmem:[#allocation5 + $0xa8] sm:$0xff]
        %v432 = vld [vmem:[#allocation5 + $0xb0] sm:$0xff]
        %v433 = vld [vmem:[#allocation5 + $0xb8] sm:$0xff]
        %v434 = vld [vmem:[#allocation5 + $0xc0] sm:$0xff]
        %v435 = vld [vmem:[#allocation5 + $0xc8] sm:$0xff]
        %v436 = vld [vmem:[#allocation5 + $0xd0] sm:$0xff]
        %v437 = vld [vmem:[#allocation5 + $0xd8] sm:$0xff]
        %v438 = vld [vmem:[#allocation5 + $0xe0] sm:$0xff]
        %v439 = vld [vmem:[#allocation5 + $0xe8] sm:$0xff]
        %v440 = vld [vmem:[#allocation5 + $0xf0] sm:$0xff]
        %v441 = vld [vmem:[#allocation5 + $0xf8] sm:$0xff]
        %v442 = vld [vmem:[#allocation5 + $0x100] sm:$0xff]
        %v443 = vld [vmem:[#allocation5 + $0x108] sm:$0xff]
        %v444 = vld [vmem:[#allocation5 + $0x110] sm:$0xff]
        %v445 = vld [vmem:[#allocation5 + $0x118] sm:$0xff]
        %v446 = vld [vmem:[#allocation5 + $0x120] sm:$0xff]
        %v447 = vld [vmem:[#allocation5 + $0x128] sm:$0xff]
        %v448 = vld [vmem:[#allocation5 + $0x130] sm:$0xff]
        %v449 = vld [vmem:[#allocation5 + $0x138] sm:$0xff]
        %v450 = vld [vmem:[#allocation5 + $0x140] sm:$0xff]
        %v451 = vld [vmem:[#allocation5 + $0x148] sm:$0xff]
        %v452 = vld [vmem:[#allocation5 + $0x150] sm:$0xff]
        %v453 = vld [vmem:[#allocation5 + $0x158] sm:$0xff]
        %v454 = vld [vmem:[#allocation5 + $0x160] sm:$0xff]
        %v455 = vld [vmem:[#allocation5 + $0x168] sm:$0xff]
        %v456 = vld [vmem:[#allocation5 + $0x170] sm:$0xff]
        %v457 = vld [vmem:[#allocation5 + $0x178] sm:$0xff]
        %v458 = vld [vmem:[#allocation5 + $0x180] sm:$0xff]
        %v459 = vld [vmem:[#allocation5 + $0x188] sm:$0xff]
        %v460 = vld [vmem:[#allocation5 + $0x190] sm:$0xff]
        %v461 = vld [vmem:[#allocation5 + $0x198] sm:$0xff]
        %v462 = vld [vmem:[#allocation5 + $0x1a0] sm:$0xff]
        %v463 = vld [vmem:[#allocation5 + $0x1a8] sm:$0xff]
        %v464 = vld [vmem:[#allocation5 + $0x1b0] sm:$0xff]
        %v465 = vld [vmem:[#allocation5 + $0x1b8] sm:$0xff]
        %v466 = vld [vmem:[#allocation5 + $0x1c0] sm:$0xff]
        %v467 = vld [vmem:[#allocation5 + $0x1c8] sm:$0xff]
        %v468 = vld [vmem:[#allocation5 + $0x1d0] sm:$0xff]
        %v469 = vld [vmem:[#allocation5 + $0x1d8] sm:$0xff]
        %v470 = vld [vmem:[#allocation5 + $0x1e0] sm:$0xff]
        %v471 = vld [vmem:[#allocation5 + $0x1e8] sm:$0xff]
        %v472 = vld [vmem:[#allocation5 + $0x1f0] sm:$0xff]
        %v473 = vld [vmem:[#allocation5 + $0x1f8] sm:$0xff]
        %v474 = vld [vmem:[#allocation5 + $0x200] sm:$0xff]
        %v475 = vld [vmem:[#allocation5 + $0x208] sm:$0xff]
        %v476 = vld [vmem:[#allocation5 + $0x210] sm:$0xff]
        %v477 = vld [vmem:[#allocation5 + $0x218] sm:$0xff]
        %v478 = vld [vmem:[#allocation5 + $0x220] sm:$0xff]
        %v479 = vld [vmem:[#allocation5 + $0x228] sm:$0xff]
        %v480 = vld [vmem:[#allocation5 + $0x230] sm:$0xff]
        %v481 = vld [vmem:[#allocation5 + $0x238] sm:$0xff]
        %v482 = vld [vmem:[#allocation5 + $0x240] sm:$0xff]
        %v483 = vld [vmem:[#allocation5 + $0x248] sm:$0xff]
        %v484 = vld [vmem:[#allocation5 + $0x250] sm:$0xff]
        %v485 = vld [vmem:[#allocation5 + $0x258] sm:$0xff]
        %v486 = vld [vmem:[#allocation5 + $0x260] sm:$0xff]
        %v487 = vld [vmem:[#allocation5 + $0x268] sm:$0xff]
        %v488 = vld [vmem:[#allocation5 + $0x270] sm:$0xff]
        %v489 = vld [vmem:[#allocation5 + $0x278] sm:$0xff]
        %v490 = vld [vmem:[#allocation5 + $0x280] sm:$0xff]
        %v491 = vld [vmem:[#allocation5 + $0x288] sm:$0xff]
        %v492 = vld [vmem:[#allocation5 + $0x290] sm:$0xff]
        %v493 = vld [vmem:[#allocation5 + $0x298] sm:$0xff]
        %v494 = vld [vmem:[#allocation5 + $0x2a0] sm:$0xff]
        %v495 = vld [vmem:[#allocation5 + $0x2a8] sm:$0xff]
        %v496 = vld [vmem:[#allocation5 + $0x2b0] sm:$0xff]
        %v497 = vld [vmem:[#allocation5 + $0x2b8] sm:$0xff]
        %v498 = vld [vmem:[#allocation5 + $0x2c0] sm:$0xff]
        %v499 = vld [vmem:[#allocation5 + $0x2c8] sm:$0xff]
        %v500 = vld [vmem:[#allocation5 + $0x2d0] sm:$0xff]
        %v501 = vld [vmem:[#allocation5 + $0x2d8] sm:$0xff]
        %v502 = vld [vmem:[#allocation5 + $0x2e0] sm:$0xff]
        %v503 = vld [vmem:[#allocation5 + $0x2e8] sm:$0xff]
        %v504 = vld [vmem:[#allocation5 + $0x2f0] sm:$0xff]
        %v505 = vld [vmem:[#allocation5 + $0x2f8] sm:$0xff]
        %v506 = vld [vmem:[#allocation5 + $0x300] sm:$0xff]
        %v507 = vld [vmem:[#allocation5 + $0x308] sm:$0xff]
        %v508 = vld [vmem:[#allocation5 + $0x310] sm:$0xff]
        %v509 = vld [vmem:[#allocation5 + $0x318] sm:$0xff]
        %v510 = vld [vmem:[#allocation5 + $0x320] sm:$0xff]
        %v511 = vld [vmem:[#allocation5 + $0x328] sm:$0xff]
        %v512 = vld [vmem:[#allocation5 + $0x330] sm:$0xff]
        %v513 = vld [vmem:[#allocation5 + $0x338] sm:$0xff]
        %v514 = vld [vmem:[#allocation5 + $0x340] sm:$0xff]
        %v515 = vld [vmem:[#allocation5 + $0x348] sm:$0xff]
        %v516 = vld [vmem:[#allocation5 + $0x350] sm:$0xff]
        %v517 = vld [vmem:[#allocation5 + $0x358] sm:$0xff]
        %v518 = vld [vmem:[#allocation5 + $0x360] sm:$0xff]
        %v519 = vld [vmem:[#allocation5 + $0x368] sm:$0xff]
        %v520 = vld [vmem:[#allocation5 + $0x370] sm:$0xff]
        %v521 = vld [vmem:[#allocation5 + $0x378] sm:$0xff]
        %v522 = vld [vmem:[#allocation5 + $0x380] sm:$0xff]
        %v523 = vld [vmem:[#allocation5 + $0x388] sm:$0xff]
        %v524 = vld [vmem:[#allocation5 + $0x390] sm:$0xff]
        %v525 = vld [vmem:[#allocation5 + $0x398] sm:$0xff]
        %v526 = vld [vmem:[#allocation5 + $0x3a0] sm:$0xff]
        %v527 = vld [vmem:[#allocation5 + $0x3a8] sm:$0xff]
        %v528 = vld [vmem:[#allocation5 + $0x3b0] sm:$0xff]
        %v529 = vld [vmem:[#allocation5 + $0x3b8] sm:$0xff]
        %v530 = vld [vmem:[#allocation5 + $0x3c0] sm:$0xff]
        %v531 = vld [vmem:[#allocation5 + $0x3c8] sm:$0xff]
        %v532 = vld [vmem:[#allocation5 + $0x3d0] sm:$0xff]
        %v533 = vld [vmem:[#allocation5 + $0x3d8] sm:$0xff]
        %v534 = vld [vmem:[#allocation5 + $0x3e0] sm:$0xff]
        %v535 = vld [vmem:[#allocation5 + $0x3e8] sm:$0xff]
        %v536 = vld [vmem:[#allocation5 + $0x3f0] sm:$0xff]
        %v537 = vld [vmem:[#allocation5 + $0x3f8] sm:$0xff]
        %v538 = vld [vmem:[#allocation5 + $0x400] sm:$0xff]
        %v539 = vld [vmem:[#allocation5 + $0x408] sm:$0xff]
        %v540 = vld [vmem:[#allocation5 + $0x410] sm:$0xff]
        %v541 = vld [vmem:[#allocation5 + $0x418] sm:$0xff]
        %v542 = vld [vmem:[#allocation5 + $0x420] sm:$0xff]
        %v543 = vld [vmem:[#allocation5 + $0x428] sm:$0xff]
        %v544 = vld [vmem:[#allocation5 + $0x430] sm:$0xff]
        %v545 = vld [vmem:[#allocation5 + $0x438] sm:$0xff]
        %v546 = vld [vmem:[#allocation5 + $0x440] sm:$0xff]
        %v547 = vld [vmem:[#allocation5 + $0x448] sm:$0xff]
        %v548 = vld [vmem:[#allocation5 + $0x450] sm:$0xff]
        %v549 = vld [vmem:[#allocation5 + $0x458] sm:$0xff]
        %v550 = vld [vmem:[#allocation5 + $0x460] sm:$0xff]
        %v551 = vld [vmem:[#allocation5 + $0x468] sm:$0xff]
        %v552 = vld [vmem:[#allocation5 + $0x470] sm:$0xff]
        %v553 = vld [vmem:[#allocation5 + $0x478] sm:$0xff]
        %v554 = vld [vmem:[#allocation5 + $0x480] sm:$0xff]
        %v555 = vld [vmem:[#allocation5 + $0x488] sm:$0xff]
        %v556 = vld [vmem:[#allocation5 + $0x490] sm:$0xff]
        %v557 = vld [vmem:[#allocation5 + $0x498] sm:$0xff]
        %v558 = vld [vmem:[#allocation5 + $0x4a0] sm:$0xff]
        %v559 = vld [vmem:[#allocation5 + $0x4a8] sm:$0xff]
        %v560 = vld [vmem:[#allocation5 + $0x4b0] sm:$0xff]
        %v561 = vld [vmem:[#allocation5 + $0x4b8] sm:$0xff]
        %v562 = vld [vmem:[#allocation5 + $0x4c0] sm:$0xff]
        %v563 = vld [vmem:[#allocation5 + $0x4c8] sm:$0xff]
        %v564 = vld [vmem:[#allocation5 + $0x4d0] sm:$0xff]
        %v565 = vld [vmem:[#allocation5 + $0x4d8] sm:$0xff]
        %v566 = vld [vmem:[#allocation5 + $0x4e0] sm:$0xff]
        %v567 = vld [vmem:[#allocation5 + $0x4e8] sm:$0xff]
        %v568 = vld [vmem:[#allocation5 + $0x4f0] sm:$0xff]
        %v569 = vld [vmem:[#allocation5 + $0x4f8] sm:$0xff]
        %v570 = vld [vmem:[#allocation5 + $0x500] sm:$0xff]
        %v571 = vld [vmem:[#allocation5 + $0x508] sm:$0xff]
        %v572 = vld [vmem:[#allocation5 + $0x510] sm:$0xff]
        %v573 = vld [vmem:[#allocation5 + $0x518] sm:$0xff]
        %v574 = vld [vmem:[#allocation5 + $0x520] sm:$0xff]
        %v575 = vld [vmem:[#allocation5 + $0x528] sm:$0xff]
        %v576 = vld [vmem:[#allocation5 + $0x530] sm:$0xff]
        %v577 = vld [vmem:[#allocation5 + $0x538] sm:$0xff]
        %v578 = vld [vmem:[#allocation5 + $0x540] sm:$0xff]
        %v579 = vld [vmem:[#allocation5 + $0x548] sm:$0xff]
        %v580 = vld [vmem:[#allocation5 + $0x550] sm:$0xff]
        %v581 = vld [vmem:[#allocation5 + $0x558] sm:$0xff]
        %v582 = vld [vmem:[#allocation5 + $0x560] sm:$0xff]
        %v583 = vld [vmem:[#allocation5 + $0x568] sm:$0xff]
        %v584 = vld [vmem:[#allocation5 + $0x570] sm:$0xff]
        %v585 = vld [vmem:[#allocation5 + $0x578] sm:$0xff]
        %v586 = vld [vmem:[#allocation5 + $0x580] sm:$0xff]
        %v587 = vld [vmem:[#allocation5 + $0x588] sm:$0xff]
        %v588 = vld [vmem:[#allocation5 + $0x590] sm:$0xff]
        %v589 = vld [vmem:[#allocation5 + $0x598] sm:$0xff]
        %v590 = vld [vmem:[#allocation5 + $0x5a0] sm:$0xff]
        %v591 = vld [vmem:[#allocation5 + $0x5a8] sm:$0xff]
        %v592 = vld [vmem:[#allocation5 + $0x5b0] sm:$0xff]
        %v593 = vld [vmem:[#allocation5 + $0x5b8] sm:$0xff]
        %v594 = vld [vmem:[#allocation5 + $0x5c0] sm:$0xff]
        %v595 = vld [vmem:[#allocation5 + $0x5c8] sm:$0xff]
        %v596 = vld [vmem:[#allocation5 + $0x5d0] sm:$0xff]
        %v597 = vld [vmem:[#allocation5 + $0x5d8] sm:$0xff]
        %v598 = vld [vmem:[#allocation5 + $0x5e0] sm:$0xff]
        %v599 = vld [vmem:[#allocation5 + $0x5e8] sm:$0xff]
        %v600 = vld [vmem:[#allocation5 + $0x5f0] sm:$0xff]
        %v601 = vld [vmem:[#allocation5 + $0x5f8] sm:$0xff]
        %v602 = vld [vmem:[#allocation5 + $0x600] sm:$0xff]
        %v603 = vld [vmem:[#allocation5 + $0x608] sm:$0xff]
        %v604 = vld [vmem:[#allocation5 + $0x610] sm:$0xff]
        %v605 = vld [vmem:[#allocation5 + $0x618] sm:$0xff]
        %v606 = vld [vmem:[#allocation5 + $0x620] sm:$0xff]
        %v607 = vld [vmem:[#allocation5 + $0x628] sm:$0xff]
        %v608 = vld [vmem:[#allocation5 + $0x630] sm:$0xff]
        %v609 = vld [vmem:[#allocation5 + $0x638] sm:$0xff]
        %v610 = vld [vmem:[#allocation5 + $0x640] sm:$0xff]
        %v611 = vld [vmem:[#allocation5 + $0x648] sm:$0xff]
        %v612 = vld [vmem:[#allocation5 + $0x650] sm:$0xff]
        %v613 = vld [vmem:[#allocation5 + $0x658] sm:$0xff]
        %v614 = vld [vmem:[#allocation5 + $0x660] sm:$0xff]
        %v615 = vld [vmem:[#allocation5 + $0x668] sm:$0xff]
        %v616 = vld [vmem:[#allocation5 + $0x670] sm:$0xff]
        %v617 = vld [vmem:[#allocation5 + $0x678] sm:$0xff]
        %v618 = vld [vmem:[#allocation5 + $0x680] sm:$0xff]
        %v619 = vld [vmem:[#allocation5 + $0x688] sm:$0xff]
        %v620 = vld [vmem:[#allocation5 + $0x690] sm:$0xff]
        %v621 = vld [vmem:[#allocation5 + $0x698] sm:$0xff]
        %v622 = vld [vmem:[#allocation5 + $0x6a0] sm:$0xff]
        %v623 = vld [vmem:[#allocation5 + $0x6a8] sm:$0xff]
        %v624 = vld [vmem:[#allocation5 + $0x6b0] sm:$0xff]
        %v625 = vld [vmem:[#allocation5 + $0x6b8] sm:$0xff]
        %v626 = vld [vmem:[#allocation5 + $0x6c0] sm:$0xff]
        %v627 = vld [vmem:[#allocation5 + $0x6c8] sm:$0xff]
        %v628 = vld [vmem:[#allocation5 + $0x6d0] sm:$0xff]
        %v629 = vld [vmem:[#allocation5 + $0x6d8] sm:$0xff]
        %v630 = vld [vmem:[#allocation5 + $0x6e0] sm:$0xff]
        %v631 = vld [vmem:[#allocation5 + $0x6e8] sm:$0xff]
        %v632 = vld [vmem:[#allocation5 + $0x6f0] sm:$0xff]
        %v633 = vld [vmem:[#allocation5 + $0x6f8] sm:$0xff]
        %v634 = vld [vmem:[#allocation5 + $0x700] sm:$0xff]
        %v635 = vld [vmem:[#allocation5 + $0x708] sm:$0xff]
        %v636 = vld [vmem:[#allocation5 + $0x710] sm:$0xff]
        %v637 = vld [vmem:[#allocation5 + $0x718] sm:$0xff]
        %v638 = vld [vmem:[#allocation5 + $0x720] sm:$0xff]
        %v639 = vld [vmem:[#allocation5 + $0x728] sm:$0xff]
        %v640 = vld [vmem:[#allocation5 + $0x730] sm:$0xff]
        %v641 = vld [vmem:[#allocation5 + $0x738] sm:$0xff]
        %v642 = vld [vmem:[#allocation5 + $0x740] sm:$0xff]
        %v643 = vld [vmem:[#allocation5 + $0x748] sm:$0xff]
        %v644 = vld [vmem:[#allocation5 + $0x750] sm:$0xff]
        %v645 = vld [vmem:[#allocation5 + $0x758] sm:$0xff]
        %v646 = vld [vmem:[#allocation5 + $0x760] sm:$0xff]
        %v647 = vld [vmem:[#allocation5 + $0x768] sm:$0xff]
        %v648 = vld [vmem:[#allocation5 + $0x770] sm:$0xff]
        %v649 = vld [vmem:[#allocation5 + $0x778] sm:$0xff]
        %v650 = vld [vmem:[#allocation5 + $0x780] sm:$0xff]
        %v651 = vld [vmem:[#allocation5 + $0x788] sm:$0xff]
        %v652 = vld [vmem:[#allocation5 + $0x790] sm:$0xff]
        %v653 = vld [vmem:[#allocation5 + $0x798] sm:$0xff]
        %v654 = vld [vmem:[#allocation5 + $0x7a0] sm:$0xff]
        %v655 = vld [vmem:[#allocation5 + $0x7a8] sm:$0xff]
        %v656 = vld [vmem:[#allocation5 + $0x7b0] sm:$0xff]
        %v657 = vld [vmem:[#allocation5 + $0x7b8] sm:$0xff]
        %v658 = vld [vmem:[#allocation5 + $0x7c0] sm:$0xff]
        %v659 = vld [vmem:[#allocation5 + $0x7c8] sm:$0xff]
        %v660 = vld [vmem:[#allocation5 + $0x7d0] sm:$0xff]
        %v661 = vld [vmem:[#allocation5 + $0x7d8] sm:$0xff]
        %v662 = vld [vmem:[#allocation5 + $0x7e0] sm:$0xff]
        %v663 = vld [vmem:[#allocation5 + $0x7e8] sm:$0xff]
        %v664 = vld [vmem:[#allocation5 + $0x7f0] sm:$0xff]
        %v665 = vld [vmem:[#allocation5 + $0x7f8] sm:$0xff]
        %v666 = vld [vmem:[#allocation7] sm:$0xff]
        %v668 = vlaneseq
        %v669 = vshrl.u32 %v668, 7
        %v670 = vsub.s32 0, %v669
        %v671 = vrot.slane %v666, %v670
        %v672 = vlaneseq
        %v673 = vshrl.u32 %v672, 7
        %v674 = vsub.s32 1, %v673
        %v675 = vrot.slane %v666, %v674
        %v676 = vlaneseq
        %v677 = vshrl.u32 %v676, 7
        %v678 = vsub.s32 2, %v677
        %v679 = vrot.slane %v666, %v678
        %v680 = vlaneseq
        %v681 = vshrl.u32 %v680, 7
        %v682 = vsub.s32 3, %v681
        %v683 = vrot.slane %v666, %v682
        %v684 = vlaneseq
        %v685 = vshrl.u32 %v684, 7
        %v686 = vsub.s32 4, %v685
        %v687 = vrot.slane %v666, %v686
        %v688 = vlaneseq
        %v689 = vshrl.u32 %v688, 7
        %v690 = vsub.s32 5, %v689
        %v691 = vrot.slane %v666, %v690
        %v692 = vlaneseq
        %v693 = vshrl.u32 %v692, 7
        %v694 = vsub.s32 6, %v693
        %v695 = vrot.slane %v666, %v694
        %v696 = vlaneseq
        %v697 = vshrl.u32 %v696, 7
        %v698 = vsub.s32 7, %v697
        %v699 = vrot.slane %v666, %v698
        %v964 = vunpack.c.l.b16 %v410
        %v965 = vunpack.c.h.b16 %v410
        %v966 = vunpack.c.l.b16 %v411
        %v967 = vunpack.c.h.b16 %v411
        %v968 = vunpack.c.l.b16 %v412
        %v969 = vunpack.c.h.b16 %v412
        %v970 = vunpack.c.l.b16 %v413
        %v971 = vunpack.c.h.b16 %v413
        %v972 = vunpack.c.l.b16 %v414
        %v973 = vunpack.c.h.b16 %v414
        %v974 = vunpack.c.l.b16 %v415
        %v975 = vunpack.c.h.b16 %v415
        %v976 = vunpack.c.l.b16 %v416
        %v977 = vunpack.c.h.b16 %v416
        %v978 = vunpack.c.l.b16 %v417
        %v979 = vunpack.c.h.b16 %v417
        %v980 = vunpack.c.l.b16 %v418
        %v981 = vunpack.c.h.b16 %v418
        %v982 = vunpack.c.l.b16 %v419
        %v983 = vunpack.c.h.b16 %v419
        %v984 = vunpack.c.l.b16 %v420
        %v985 = vunpack.c.h.b16 %v420
        %v986 = vunpack.c.l.b16 %v421
        %v987 = vunpack.c.h.b16 %v421
        %v988 = vunpack.c.l.b16 %v422
        %v989 = vunpack.c.h.b16 %v422
        %v990 = vunpack.c.l.b16 %v423
        %v991 = vunpack.c.h.b16 %v423
        %v992 = vunpack.c.l.b16 %v424
        %v993 = vunpack.c.h.b16 %v424
        %v994 = vunpack.c.l.b16 %v425
        %v995 = vunpack.c.h.b16 %v425
        %v996 = vunpack.c.l.b16 %v426
        %v997 = vunpack.c.h.b16 %v426
        %v998 = vunpack.c.l.b16 %v427
        %v999 = vunpack.c.h.b16 %v427
        %v1000 = vunpack.c.l.b16 %v428
        %v1001 = vunpack.c.h.b16 %v428
        %v1002 = vunpack.c.l.b16 %v429
        %v1003 = vunpack.c.h.b16 %v429
        %v1004 = vunpack.c.l.b16 %v430
        %v1005 = vunpack.c.h.b16 %v430
        %v1006 = vunpack.c.l.b16 %v431
        %v1007 = vunpack.c.h.b16 %v431
        %v1008 = vunpack.c.l.b16 %v432
        %v1009 = vunpack.c.h.b16 %v432
        %v1010 = vunpack.c.l.b16 %v433
        %v1011 = vunpack.c.h.b16 %v433
        %v1012 = vunpack.c.l.b16 %v434
        %v1013 = vunpack.c.h.b16 %v434
        %v1014 = vunpack.c.l.b16 %v435
        %v1015 = vunpack.c.h.b16 %v435
        %v1016 = vunpack.c.l.b16 %v436
        %v1017 = vunpack.c.h.b16 %v436
        %v1018 = vunpack.c.l.b16 %v437
        %v1019 = vunpack.c.h.b16 %v437
        %v1020 = vunpack.c.l.b16 %v438
        %v1021 = vunpack.c.h.b16 %v438
        %v1022 = vunpack.c.l.b16 %v439
        %v1023 = vunpack.c.h.b16 %v439
        %v1024 = vunpack.c.l.b16 %v440
        %v1025 = vunpack.c.h.b16 %v440
        %v1026 = vunpack.c.l.b16 %v441
        %v1027 = vunpack.c.h.b16 %v441
        %v1028 = vunpack.c.l.b16 %v442
        %v1029 = vunpack.c.h.b16 %v442
        %v1030 = vunpack.c.l.b16 %v443
        %v1031 = vunpack.c.h.b16 %v443
        %v1032 = vunpack.c.l.b16 %v444
        %v1033 = vunpack.c.h.b16 %v444
        %v1034 = vunpack.c.l.b16 %v445
        %v1035 = vunpack.c.h.b16 %v445
        %v1036 = vunpack.c.l.b16 %v446
        %v1037 = vunpack.c.h.b16 %v446
        %v1038 = vunpack.c.l.b16 %v447
        %v1039 = vunpack.c.h.b16 %v447
        %v1040 = vunpack.c.l.b16 %v448
        %v1041 = vunpack.c.h.b16 %v448
        %v1042 = vunpack.c.l.b16 %v449
        %v1043 = vunpack.c.h.b16 %v449
        %v1044 = vunpack.c.l.b16 %v450
        %v1045 = vunpack.c.h.b16 %v450
        %v1046 = vunpack.c.l.b16 %v451
        %v1047 = vunpack.c.h.b16 %v451
        %v1048 = vunpack.c.l.b16 %v452
        %v1049 = vunpack.c.h.b16 %v452
        %v1050 = vunpack.c.l.b16 %v453
        %v1051 = vunpack.c.h.b16 %v453
        %v1052 = vunpack.c.l.b16 %v454
        %v1053 = vunpack.c.h.b16 %v454
        %v1054 = vunpack.c.l.b16 %v455
        %v1055 = vunpack.c.h.b16 %v455
        %v1056 = vunpack.c.l.b16 %v456
        %v1057 = vunpack.c.h.b16 %v456
        %v1058 = vunpack.c.l.b16 %v457
        %v1059 = vunpack.c.h.b16 %v457
        %v1060 = vunpack.c.l.b16 %v458
        %v1061 = vunpack.c.h.b16 %v458
        %v1062 = vunpack.c.l.b16 %v459
        %v1063 = vunpack.c.h.b16 %v459
        %v1064 = vunpack.c.l.b16 %v460
        %v1065 = vunpack.c.h.b16 %v460
        %v1066 = vunpack.c.l.b16 %v461
        %v1067 = vunpack.c.h.b16 %v461
        %v1068 = vunpack.c.l.b16 %v462
        %v1069 = vunpack.c.h.b16 %v462
        %v1070 = vunpack.c.l.b16 %v463
        %v1071 = vunpack.c.h.b16 %v463
        %v1072 = vunpack.c.l.b16 %v464
        %v1073 = vunpack.c.h.b16 %v464
        %v1074 = vunpack.c.l.b16 %v465
        %v1075 = vunpack.c.h.b16 %v465
        %v1076 = vunpack.c.l.b16 %v466
        %v1077 = vunpack.c.h.b16 %v466
        %v1078 = vunpack.c.l.b16 %v467
        %v1079 = vunpack.c.h.b16 %v467
        %v1080 = vunpack.c.l.b16 %v468
        %v1081 = vunpack.c.h.b16 %v468
        %v1082 = vunpack.c.l.b16 %v469
        %v1083 = vunpack.c.h.b16 %v469
        %v1084 = vunpack.c.l.b16 %v470
        %v1085 = vunpack.c.h.b16 %v470
        %v1086 = vunpack.c.l.b16 %v471
        %v1087 = vunpack.c.h.b16 %v471
        %v1088 = vunpack.c.l.b16 %v472
        %v1089 = vunpack.c.h.b16 %v472
        %v1090 = vunpack.c.l.b16 %v473
        %v1091 = vunpack.c.h.b16 %v473
        %v1092 = vunpack.c.l.b16 %v474
        %v1093 = vunpack.c.h.b16 %v474
        %v1094 = vunpack.c.l.b16 %v475
        %v1095 = vunpack.c.h.b16 %v475
        %v1096 = vunpack.c.l.b16 %v476
        %v1097 = vunpack.c.h.b16 %v476
        %v1098 = vunpack.c.l.b16 %v477
        %v1099 = vunpack.c.h.b16 %v477
        %v1100 = vunpack.c.l.b16 %v478
        %v1101 = vunpack.c.h.b16 %v478
        %v1102 = vunpack.c.l.b16 %v479
        %v1103 = vunpack.c.h.b16 %v479
        %v1104 = vunpack.c.l.b16 %v480
        %v1105 = vunpack.c.h.b16 %v480
        %v1106 = vunpack.c.l.b16 %v481
        %v1107 = vunpack.c.h.b16 %v481
        %v1108 = vunpack.c.l.b16 %v482
        %v1109 = vunpack.c.h.b16 %v482
        %v1110 = vunpack.c.l.b16 %v483
        %v1111 = vunpack.c.h.b16 %v483
        %v1112 = vunpack.c.l.b16 %v484
        %v1113 = vunpack.c.h.b16 %v484
        %v1114 = vunpack.c.l.b16 %v485
        %v1115 = vunpack.c.h.b16 %v485
        %v1116 = vunpack.c.l.b16 %v486
        %v1117 = vunpack.c.h.b16 %v486
        %v1118 = vunpack.c.l.b16 %v487
        %v1119 = vunpack.c.h.b16 %v487
        %v1120 = vunpack.c.l.b16 %v488
        %v1121 = vunpack.c.h.b16 %v488
        %v1122 = vunpack.c.l.b16 %v489
        %v1123 = vunpack.c.h.b16 %v489
        %v1124 = vunpack.c.l.b16 %v490
        %v1125 = vunpack.c.h.b16 %v490
        %v1126 = vunpack.c.l.b16 %v491
        %v1127 = vunpack.c.h.b16 %v491
        %v1128 = vunpack.c.l.b16 %v492
        %v1129 = vunpack.c.h.b16 %v492
        %v1130 = vunpack.c.l.b16 %v493
        %v1131 = vunpack.c.h.b16 %v493
        %v1132 = vunpack.c.l.b16 %v494
        %v1133 = vunpack.c.h.b16 %v494
        %v1134 = vunpack.c.l.b16 %v495
        %v1135 = vunpack.c.h.b16 %v495
        %v1136 = vunpack.c.l.b16 %v496
        %v1137 = vunpack.c.h.b16 %v496
        %v1138 = vunpack.c.l.b16 %v497
        %v1139 = vunpack.c.h.b16 %v497
        %v1140 = vunpack.c.l.b16 %v498
        %v1141 = vunpack.c.h.b16 %v498
        %v1142 = vunpack.c.l.b16 %v499
        %v1143 = vunpack.c.h.b16 %v499
        %v1144 = vunpack.c.l.b16 %v500
        %v1145 = vunpack.c.h.b16 %v500
        %v1146 = vunpack.c.l.b16 %v501
        %v1147 = vunpack.c.h.b16 %v501
        %v1148 = vunpack.c.l.b16 %v502
        %v1149 = vunpack.c.h.b16 %v502
        %v1150 = vunpack.c.l.b16 %v503
        %v1151 = vunpack.c.h.b16 %v503
        %v1152 = vunpack.c.l.b16 %v504
        %v1153 = vunpack.c.h.b16 %v504
        %v1154 = vunpack.c.l.b16 %v505
        %v1155 = vunpack.c.h.b16 %v505
        %v1156 = vunpack.c.l.b16 %v506
        %v1157 = vunpack.c.h.b16 %v506
        %v1158 = vunpack.c.l.b16 %v507
        %v1159 = vunpack.c.h.b16 %v507
        %v1160 = vunpack.c.l.b16 %v508
        %v1161 = vunpack.c.h.b16 %v508
        %v1162 = vunpack.c.l.b16 %v509
        %v1163 = vunpack.c.h.b16 %v509
        %v1164 = vunpack.c.l.b16 %v510
        %v1165 = vunpack.c.h.b16 %v510
        %v1166 = vunpack.c.l.b16 %v511
        %v1167 = vunpack.c.h.b16 %v511
        %v1168 = vunpack.c.l.b16 %v512
        %v1169 = vunpack.c.h.b16 %v512
        %v1170 = vunpack.c.l.b16 %v513
        %v1171 = vunpack.c.h.b16 %v513
        %v1172 = vunpack.c.l.b16 %v514
        %v1173 = vunpack.c.h.b16 %v514
        %v1174 = vunpack.c.l.b16 %v515
        %v1175 = vunpack.c.h.b16 %v515
        %v1176 = vunpack.c.l.b16 %v516
        %v1177 = vunpack.c.h.b16 %v516
        %v1178 = vunpack.c.l.b16 %v517
        %v1179 = vunpack.c.h.b16 %v517
        %v1180 = vunpack.c.l.b16 %v518
        %v1181 = vunpack.c.h.b16 %v518
        %v1182 = vunpack.c.l.b16 %v519
        %v1183 = vunpack.c.h.b16 %v519
        %v1184 = vunpack.c.l.b16 %v520
        %v1185 = vunpack.c.h.b16 %v520
        %v1186 = vunpack.c.l.b16 %v521
        %v1187 = vunpack.c.h.b16 %v521
        %v1188 = vunpack.c.l.b16 %v522
        %v1189 = vunpack.c.h.b16 %v522
        %v1190 = vunpack.c.l.b16 %v523
        %v1191 = vunpack.c.h.b16 %v523
        %v1192 = vunpack.c.l.b16 %v524
        %v1193 = vunpack.c.h.b16 %v524
        %v1194 = vunpack.c.l.b16 %v525
        %v1195 = vunpack.c.h.b16 %v525
        %v1196 = vunpack.c.l.b16 %v526
        %v1197 = vunpack.c.h.b16 %v526
        %v1198 = vunpack.c.l.b16 %v527
        %v1199 = vunpack.c.h.b16 %v527
        %v1200 = vunpack.c.l.b16 %v528
        %v1201 = vunpack.c.h.b16 %v528
        %v1202 = vunpack.c.l.b16 %v529
        %v1203 = vunpack.c.h.b16 %v529
        %v1204 = vunpack.c.l.b16 %v530
        %v1205 = vunpack.c.h.b16 %v530
        %v1206 = vunpack.c.l.b16 %v531
        %v1207 = vunpack.c.h.b16 %v531
        %v1208 = vunpack.c.l.b16 %v532
        %v1209 = vunpack.c.h.b16 %v532
        %v1210 = vunpack.c.l.b16 %v533
        %v1211 = vunpack.c.h.b16 %v533
        %v1212 = vunpack.c.l.b16 %v534
        %v1213 = vunpack.c.h.b16 %v534
        %v1214 = vunpack.c.l.b16 %v535
        %v1215 = vunpack.c.h.b16 %v535
        %v1216 = vunpack.c.l.b16 %v536
        %v1217 = vunpack.c.h.b16 %v536
        %v1218 = vunpack.c.l.b16 %v537
        %v1219 = vunpack.c.h.b16 %v537
        %v1220 = vunpack.c.l.b16 %v538
        %v1221 = vunpack.c.h.b16 %v538
        %v1222 = vunpack.c.l.b16 %v539
        %v1223 = vunpack.c.h.b16 %v539
        %v1224 = vunpack.c.l.b16 %v540
        %v1225 = vunpack.c.h.b16 %v540
        %v1226 = vunpack.c.l.b16 %v541
        %v1227 = vunpack.c.h.b16 %v541
        %v1228 = vunpack.c.l.b16 %v542
        %v1229 = vunpack.c.h.b16 %v542
        %v1230 = vunpack.c.l.b16 %v543
        %v1231 = vunpack.c.h.b16 %v543
        %v1232 = vunpack.c.l.b16 %v544
        %v1233 = vunpack.c.h.b16 %v544
        %v1234 = vunpack.c.l.b16 %v545
        %v1235 = vunpack.c.h.b16 %v545
        %v1236 = vunpack.c.l.b16 %v546
        %v1237 = vunpack.c.h.b16 %v546
        %v1238 = vunpack.c.l.b16 %v547
        %v1239 = vunpack.c.h.b16 %v547
        %v1240 = vunpack.c.l.b16 %v548
        %v1241 = vunpack.c.h.b16 %v548
        %v1242 = vunpack.c.l.b16 %v549
        %v1243 = vunpack.c.h.b16 %v549
        %v1244 = vunpack.c.l.b16 %v550
        %v1245 = vunpack.c.h.b16 %v550
        %v1246 = vunpack.c.l.b16 %v551
        %v1247 = vunpack.c.h.b16 %v551
        %v1248 = vunpack.c.l.b16 %v552
        %v1249 = vunpack.c.h.b16 %v552
        %v1250 = vunpack.c.l.b16 %v553
        %v1251 = vunpack.c.h.b16 %v553
        %v1252 = vunpack.c.l.b16 %v554
        %v1253 = vunpack.c.h.b16 %v554
        %v1254 = vunpack.c.l.b16 %v555
        %v1255 = vunpack.c.h.b16 %v555
        %v1256 = vunpack.c.l.b16 %v556
        %v1257 = vunpack.c.h.b16 %v556
        %v1258 = vunpack.c.l.b16 %v557
        %v1259 = vunpack.c.h.b16 %v557
        %v1260 = vunpack.c.l.b16 %v558
        %v1261 = vunpack.c.h.b16 %v558
        %v1262 = vunpack.c.l.b16 %v559
        %v1263 = vunpack.c.h.b16 %v559
        %v1264 = vunpack.c.l.b16 %v560
        %v1265 = vunpack.c.h.b16 %v560
        %v1266 = vunpack.c.l.b16 %v561
        %v1267 = vunpack.c.h.b16 %v561
        %v1268 = vunpack.c.l.b16 %v562
        %v1269 = vunpack.c.h.b16 %v562
        %v1270 = vunpack.c.l.b16 %v563
        %v1271 = vunpack.c.h.b16 %v563
        %v1272 = vunpack.c.l.b16 %v564
        %v1273 = vunpack.c.h.b16 %v564
        %v1274 = vunpack.c.l.b16 %v565
        %v1275 = vunpack.c.h.b16 %v565
        %v1276 = vunpack.c.l.b16 %v566
        %v1277 = vunpack.c.h.b16 %v566
        %v1278 = vunpack.c.l.b16 %v567
        %v1279 = vunpack.c.h.b16 %v567
        %v1280 = vunpack.c.l.b16 %v568
        %v1281 = vunpack.c.h.b16 %v568
        %v1282 = vunpack.c.l.b16 %v569
        %v1283 = vunpack.c.h.b16 %v569
        %v1284 = vunpack.c.l.b16 %v570
        %v1285 = vunpack.c.h.b16 %v570
        %v1286 = vunpack.c.l.b16 %v571
        %v1287 = vunpack.c.h.b16 %v571
        %v1288 = vunpack.c.l.b16 %v572
        %v1289 = vunpack.c.h.b16 %v572
        %v1290 = vunpack.c.l.b16 %v573
        %v1291 = vunpack.c.h.b16 %v573
        %v1292 = vunpack.c.l.b16 %v574
        %v1293 = vunpack.c.h.b16 %v574
        %v1294 = vunpack.c.l.b16 %v575
        %v1295 = vunpack.c.h.b16 %v575
        %v1296 = vunpack.c.l.b16 %v576
        %v1297 = vunpack.c.h.b16 %v576
        %v1298 = vunpack.c.l.b16 %v577
        %v1299 = vunpack.c.h.b16 %v577
        %v1300 = vunpack.c.l.b16 %v578
        %v1301 = vunpack.c.h.b16 %v578
        %v1302 = vunpack.c.l.b16 %v579
        %v1303 = vunpack.c.h.b16 %v579
        %v1304 = vunpack.c.l.b16 %v580
        %v1305 = vunpack.c.h.b16 %v580
        %v1306 = vunpack.c.l.b16 %v581
        %v1307 = vunpack.c.h.b16 %v581
        %v1308 = vunpack.c.l.b16 %v582
        %v1309 = vunpack.c.h.b16 %v582
        %v1310 = vunpack.c.l.b16 %v583
        %v1311 = vunpack.c.h.b16 %v583
        %v1312 = vunpack.c.l.b16 %v584
        %v1313 = vunpack.c.h.b16 %v584
        %v1314 = vunpack.c.l.b16 %v585
        %v1315 = vunpack.c.h.b16 %v585
        %v1316 = vunpack.c.l.b16 %v586
        %v1317 = vunpack.c.h.b16 %v586
        %v1318 = vunpack.c.l.b16 %v587
        %v1319 = vunpack.c.h.b16 %v587
        %v1320 = vunpack.c.l.b16 %v588
        %v1321 = vunpack.c.h.b16 %v588
        %v1322 = vunpack.c.l.b16 %v589
        %v1323 = vunpack.c.h.b16 %v589
        %v1324 = vunpack.c.l.b16 %v590
        %v1325 = vunpack.c.h.b16 %v590
        %v1326 = vunpack.c.l.b16 %v591
        %v1327 = vunpack.c.h.b16 %v591
        %v1328 = vunpack.c.l.b16 %v592
        %v1329 = vunpack.c.h.b16 %v592
        %v1330 = vunpack.c.l.b16 %v593
        %v1331 = vunpack.c.h.b16 %v593
        %v1332 = vunpack.c.l.b16 %v594
        %v1333 = vunpack.c.h.b16 %v594
        %v1334 = vunpack.c.l.b16 %v595
        %v1335 = vunpack.c.h.b16 %v595
        %v1336 = vunpack.c.l.b16 %v596
        %v1337 = vunpack.c.h.b16 %v596
        %v1338 = vunpack.c.l.b16 %v597
        %v1339 = vunpack.c.h.b16 %v597
        %v1340 = vunpack.c.l.b16 %v598
        %v1341 = vunpack.c.h.b16 %v598
        %v1342 = vunpack.c.l.b16 %v599
        %v1343 = vunpack.c.h.b16 %v599
        %v1344 = vunpack.c.l.b16 %v600
        %v1345 = vunpack.c.h.b16 %v600
        %v1346 = vunpack.c.l.b16 %v601
        %v1347 = vunpack.c.h.b16 %v601
        %v1348 = vunpack.c.l.b16 %v602
        %v1349 = vunpack.c.h.b16 %v602
        %v1350 = vunpack.c.l.b16 %v603
        %v1351 = vunpack.c.h.b16 %v603
        %v1352 = vunpack.c.l.b16 %v604
        %v1353 = vunpack.c.h.b16 %v604
        %v1354 = vunpack.c.l.b16 %v605
        %v1355 = vunpack.c.h.b16 %v605
        %v1356 = vunpack.c.l.b16 %v606
        %v1357 = vunpack.c.h.b16 %v606
        %v1358 = vunpack.c.l.b16 %v607
        %v1359 = vunpack.c.h.b16 %v607
        %v1360 = vunpack.c.l.b16 %v608
        %v1361 = vunpack.c.h.b16 %v608
        %v1362 = vunpack.c.l.b16 %v609
        %v1363 = vunpack.c.h.b16 %v609
        %v1364 = vunpack.c.l.b16 %v610
        %v1365 = vunpack.c.h.b16 %v610
        %v1366 = vunpack.c.l.b16 %v611
        %v1367 = vunpack.c.h.b16 %v611
        %v1368 = vunpack.c.l.b16 %v612
        %v1369 = vunpack.c.h.b16 %v612
        %v1370 = vunpack.c.l.b16 %v613
        %v1371 = vunpack.c.h.b16 %v613
        %v1372 = vunpack.c.l.b16 %v614
        %v1373 = vunpack.c.h.b16 %v614
        %v1374 = vunpack.c.l.b16 %v615
        %v1375 = vunpack.c.h.b16 %v615
        %v1376 = vunpack.c.l.b16 %v616
        %v1377 = vunpack.c.h.b16 %v616
        %v1378 = vunpack.c.l.b16 %v617
        %v1379 = vunpack.c.h.b16 %v617
        %v1380 = vunpack.c.l.b16 %v618
        %v1381 = vunpack.c.h.b16 %v618
        %v1382 = vunpack.c.l.b16 %v619
        %v1383 = vunpack.c.h.b16 %v619
        %v1384 = vunpack.c.l.b16 %v620
        %v1385 = vunpack.c.h.b16 %v620
        %v1386 = vunpack.c.l.b16 %v621
        %v1387 = vunpack.c.h.b16 %v621
        %v1388 = vunpack.c.l.b16 %v622
        %v1389 = vunpack.c.h.b16 %v622
        %v1390 = vunpack.c.l.b16 %v623
        %v1391 = vunpack.c.h.b16 %v623
        %v1392 = vunpack.c.l.b16 %v624
        %v1393 = vunpack.c.h.b16 %v624
        %v1394 = vunpack.c.l.b16 %v625
        %v1395 = vunpack.c.h.b16 %v625
        %v1396 = vunpack.c.l.b16 %v626
        %v1397 = vunpack.c.h.b16 %v626
        %v1398 = vunpack.c.l.b16 %v627
        %v1399 = vunpack.c.h.b16 %v627
        %v1400 = vunpack.c.l.b16 %v628
        %v1401 = vunpack.c.h.b16 %v628
        %v1402 = vunpack.c.l.b16 %v629
        %v1403 = vunpack.c.h.b16 %v629
        %v1404 = vunpack.c.l.b16 %v630
        %v1405 = vunpack.c.h.b16 %v630
        %v1406 = vunpack.c.l.b16 %v631
        %v1407 = vunpack.c.h.b16 %v631
        %v1408 = vunpack.c.l.b16 %v632
        %v1409 = vunpack.c.h.b16 %v632
        %v1410 = vunpack.c.l.b16 %v633
        %v1411 = vunpack.c.h.b16 %v633
        %v1412 = vunpack.c.l.b16 %v634
        %v1413 = vunpack.c.h.b16 %v634
        %v1414 = vunpack.c.l.b16 %v635
        %v1415 = vunpack.c.h.b16 %v635
        %v1416 = vunpack.c.l.b16 %v636
        %v1417 = vunpack.c.h.b16 %v636
        %v1418 = vunpack.c.l.b16 %v637
        %v1419 = vunpack.c.h.b16 %v637
        %v1420 = vunpack.c.l.b16 %v638
        %v1421 = vunpack.c.h.b16 %v638
        %v1422 = vunpack.c.l.b16 %v639
        %v1423 = vunpack.c.h.b16 %v639
        %v1424 = vunpack.c.l.b16 %v640
        %v1425 = vunpack.c.h.b16 %v640
        %v1426 = vunpack.c.l.b16 %v641
        %v1427 = vunpack.c.h.b16 %v641
        %v1428 = vunpack.c.l.b16 %v642
        %v1429 = vunpack.c.h.b16 %v642
        %v1430 = vunpack.c.l.b16 %v643
        %v1431 = vunpack.c.h.b16 %v643
        %v1432 = vunpack.c.l.b16 %v644
        %v1433 = vunpack.c.h.b16 %v644
        %v1434 = vunpack.c.l.b16 %v645
        %v1435 = vunpack.c.h.b16 %v645
        %v1436 = vunpack.c.l.b16 %v646
        %v1437 = vunpack.c.h.b16 %v646
        %v1438 = vunpack.c.l.b16 %v647
        %v1439 = vunpack.c.h.b16 %v647
        %v1440 = vunpack.c.l.b16 %v648
        %v1441 = vunpack.c.h.b16 %v648
        %v1442 = vunpack.c.l.b16 %v649
        %v1443 = vunpack.c.h.b16 %v649
        %v1444 = vunpack.c.l.b16 %v650
        %v1445 = vunpack.c.h.b16 %v650
        %v1446 = vunpack.c.l.b16 %v651
        %v1447 = vunpack.c.h.b16 %v651
        %v1448 = vunpack.c.l.b16 %v652
        %v1449 = vunpack.c.h.b16 %v652
        %v1450 = vunpack.c.l.b16 %v653
        %v1451 = vunpack.c.h.b16 %v653
        %v1452 = vunpack.c.l.b16 %v654
        %v1453 = vunpack.c.h.b16 %v654
        %v1454 = vunpack.c.l.b16 %v655
        %v1455 = vunpack.c.h.b16 %v655
        %v1456 = vunpack.c.l.b16 %v656
        %v1457 = vunpack.c.h.b16 %v656
        %v1458 = vunpack.c.l.b16 %v657
        %v1459 = vunpack.c.h.b16 %v657
        %v1460 = vunpack.c.l.b16 %v658
        %v1461 = vunpack.c.h.b16 %v658
        %v1462 = vunpack.c.l.b16 %v659
        %v1463 = vunpack.c.h.b16 %v659
        %v1464 = vunpack.c.l.b16 %v660
        %v1465 = vunpack.c.h.b16 %v660
        %v1466 = vunpack.c.l.b16 %v661
        %v1467 = vunpack.c.h.b16 %v661
        %v1468 = vunpack.c.l.b16 %v662
        %v1469 = vunpack.c.h.b16 %v662
        %v1470 = vunpack.c.l.b16 %v663
        %v1471 = vunpack.c.h.b16 %v663
        %v1472 = vunpack.c.l.b16 %v664
        %v1473 = vunpack.c.h.b16 %v664
        %v1474 = vunpack.c.l.b16 %v665
        %v1475 = vunpack.c.h.b16 %v665
        %v1476 = vpack.c.b16 %v972, %v964
        %v1477 = vpack.c.b16 %v973, %v965
        %v1478 = vpack.c.b16 %v974, %v966
        %v1479 = vpack.c.b16 %v975, %v967
        %v1480 = vpack.c.b16 %v976, %v968
        %v1481 = vpack.c.b16 %v977, %v969
        %v1482 = vpack.c.b16 %v978, %v970
        %v1483 = vpack.c.b16 %v979, %v971
        %v1484 = vpack.c.b16 %v988, %v980
        %v1485 = vpack.c.b16 %v989, %v981
        %v1486 = vpack.c.b16 %v990, %v982
        %v1487 = vpack.c.b16 %v991, %v983
        %v1488 = vpack.c.b16 %v992, %v984
        %v1489 = vpack.c.b16 %v993, %v985
        %v1490 = vpack.c.b16 %v994, %v986
        %v1491 = vpack.c.b16 %v995, %v987
        %v1492 = vpack.c.b16 %v1004, %v996
        %v1493 = vpack.c.b16 %v1005, %v997
        %v1494 = vpack.c.b16 %v1006, %v998
        %v1495 = vpack.c.b16 %v1007, %v999
        %v1496 = vpack.c.b16 %v1008, %v1000
        %v1497 = vpack.c.b16 %v1009, %v1001
        %v1498 = vpack.c.b16 %v1010, %v1002
        %v1499 = vpack.c.b16 %v1011, %v1003
        %v1500 = vpack.c.b16 %v1020, %v1012
        %v1501 = vpack.c.b16 %v1021, %v1013
        %v1502 = vpack.c.b16 %v1022, %v1014
        %v1503 = vpack.c.b16 %v1023, %v1015
        %v1504 = vpack.c.b16 %v1024, %v1016
        %v1505 = vpack.c.b16 %v1025, %v1017
        %v1506 = vpack.c.b16 %v1026, %v1018
        %v1507 = vpack.c.b16 %v1027, %v1019
        %v1508 = vpack.c.b16 %v1036, %v1028
        %v1509 = vpack.c.b16 %v1037, %v1029
        %v1510 = vpack.c.b16 %v1038, %v1030
        %v1511 = vpack.c.b16 %v1039, %v1031
        %v1512 = vpack.c.b16 %v1040, %v1032
        %v1513 = vpack.c.b16 %v1041, %v1033
        %v1514 = vpack.c.b16 %v1042, %v1034
        %v1515 = vpack.c.b16 %v1043, %v1035
        %v1516 = vpack.c.b16 %v1052, %v1044
        %v1517 = vpack.c.b16 %v1053, %v1045
        %v1518 = vpack.c.b16 %v1054, %v1046
        %v1519 = vpack.c.b16 %v1055, %v1047
        %v1520 = vpack.c.b16 %v1056, %v1048
        %v1521 = vpack.c.b16 %v1057, %v1049
        %v1522 = vpack.c.b16 %v1058, %v1050
        %v1523 = vpack.c.b16 %v1059, %v1051
        %v1524 = vpack.c.b16 %v1068, %v1060
        %v1525 = vpack.c.b16 %v1069, %v1061
        %v1526 = vpack.c.b16 %v1070, %v1062
        %v1527 = vpack.c.b16 %v1071, %v1063
        %v1528 = vpack.c.b16 %v1072, %v1064
        %v1529 = vpack.c.b16 %v1073, %v1065
        %v1530 = vpack.c.b16 %v1074, %v1066
        %v1531 = vpack.c.b16 %v1075, %v1067
        %v1532 = vpack.c.b16 %v1084, %v1076
        %v1533 = vpack.c.b16 %v1085, %v1077
        %v1534 = vpack.c.b16 %v1086, %v1078
        %v1535 = vpack.c.b16 %v1087, %v1079
        %v1536 = vpack.c.b16 %v1088, %v1080
        %v1537 = vpack.c.b16 %v1089, %v1081
        %v1538 = vpack.c.b16 %v1090, %v1082
        %v1539 = vpack.c.b16 %v1091, %v1083
        %v1540 = vpack.c.b16 %v1100, %v1092
        %v1541 = vpack.c.b16 %v1101, %v1093
        %v1542 = vpack.c.b16 %v1102, %v1094
        %v1543 = vpack.c.b16 %v1103, %v1095
        %v1544 = vpack.c.b16 %v1104, %v1096
        %v1545 = vpack.c.b16 %v1105, %v1097
        %v1546 = vpack.c.b16 %v1106, %v1098
        %v1547 = vpack.c.b16 %v1107, %v1099
        %v1548 = vpack.c.b16 %v1116, %v1108
        %v1549 = vpack.c.b16 %v1117, %v1109
        %v1550 = vpack.c.b16 %v1118, %v1110
        %v1551 = vpack.c.b16 %v1119, %v1111
        %v1552 = vpack.c.b16 %v1120, %v1112
        %v1553 = vpack.c.b16 %v1121, %v1113
        %v1554 = vpack.c.b16 %v1122, %v1114
        %v1555 = vpack.c.b16 %v1123, %v1115
        %v1556 = vpack.c.b16 %v1132, %v1124
        %v1557 = vpack.c.b16 %v1133, %v1125
        %v1558 = vpack.c.b16 %v1134, %v1126
        %v1559 = vpack.c.b16 %v1135, %v1127
        %v1560 = vpack.c.b16 %v1136, %v1128
        %v1561 = vpack.c.b16 %v1137, %v1129
        %v1562 = vpack.c.b16 %v1138, %v1130
        %v1563 = vpack.c.b16 %v1139, %v1131
        %v1564 = vpack.c.b16 %v1148, %v1140
        %v1565 = vpack.c.b16 %v1149, %v1141
        %v1566 = vpack.c.b16 %v1150, %v1142
        %v1567 = vpack.c.b16 %v1151, %v1143
        %v1568 = vpack.c.b16 %v1152, %v1144
        %v1569 = vpack.c.b16 %v1153, %v1145
        %v1570 = vpack.c.b16 %v1154, %v1146
        %v1571 = vpack.c.b16 %v1155, %v1147
        %v1572 = vpack.c.b16 %v1164, %v1156
        %v1573 = vpack.c.b16 %v1165, %v1157
        %v1574 = vpack.c.b16 %v1166, %v1158
        %v1575 = vpack.c.b16 %v1167, %v1159
        %v1576 = vpack.c.b16 %v1168, %v1160
        %v1577 = vpack.c.b16 %v1169, %v1161
        %v1578 = vpack.c.b16 %v1170, %v1162
        %v1579 = vpack.c.b16 %v1171, %v1163
        %v1580 = vpack.c.b16 %v1180, %v1172
        %v1581 = vpack.c.b16 %v1181, %v1173
        %v1582 = vpack.c.b16 %v1182, %v1174
        %v1583 = vpack.c.b16 %v1183, %v1175
        %v1584 = vpack.c.b16 %v1184, %v1176
        %v1585 = vpack.c.b16 %v1185, %v1177
        %v1586 = vpack.c.b16 %v1186, %v1178
        %v1587 = vpack.c.b16 %v1187, %v1179
        %v1588 = vpack.c.b16 %v1196, %v1188
        %v1589 = vpack.c.b16 %v1197, %v1189
        %v1590 = vpack.c.b16 %v1198, %v1190
        %v1591 = vpack.c.b16 %v1199, %v1191
        %v1592 = vpack.c.b16 %v1200, %v1192
        %v1593 = vpack.c.b16 %v1201, %v1193
        %v1594 = vpack.c.b16 %v1202, %v1194
        %v1595 = vpack.c.b16 %v1203, %v1195
        %v1596 = vpack.c.b16 %v1212, %v1204
        %v1597 = vpack.c.b16 %v1213, %v1205
        %v1598 = vpack.c.b16 %v1214, %v1206
        %v1599 = vpack.c.b16 %v1215, %v1207
        %v1600 = vpack.c.b16 %v1216, %v1208
        %v1601 = vpack.c.b16 %v1217, %v1209
        %v1602 = vpack.c.b16 %v1218, %v1210
        %v1603 = vpack.c.b16 %v1219, %v1211
        %v1604 = vpack.c.b16 %v1228, %v1220
        %v1605 = vpack.c.b16 %v1229, %v1221
        %v1606 = vpack.c.b16 %v1230, %v1222
        %v1607 = vpack.c.b16 %v1231, %v1223
        %v1608 = vpack.c.b16 %v1232, %v1224
        %v1609 = vpack.c.b16 %v1233, %v1225
        %v1610 = vpack.c.b16 %v1234, %v1226
        %v1611 = vpack.c.b16 %v1235, %v1227
        %v1612 = vpack.c.b16 %v1244, %v1236
        %v1613 = vpack.c.b16 %v1245, %v1237
        %v1614 = vpack.c.b16 %v1246, %v1238
        %v1615 = vpack.c.b16 %v1247, %v1239
        %v1616 = vpack.c.b16 %v1248, %v1240
        %v1617 = vpack.c.b16 %v1249, %v1241
        %v1618 = vpack.c.b16 %v1250, %v1242
        %v1619 = vpack.c.b16 %v1251, %v1243
        %v1620 = vpack.c.b16 %v1260, %v1252
        %v1621 = vpack.c.b16 %v1261, %v1253
        %v1622 = vpack.c.b16 %v1262, %v1254
        %v1623 = vpack.c.b16 %v1263, %v1255
        %v1624 = vpack.c.b16 %v1264, %v1256
        %v1625 = vpack.c.b16 %v1265, %v1257
        %v1626 = vpack.c.b16 %v1266, %v1258
        %v1627 = vpack.c.b16 %v1267, %v1259
        %v1628 = vpack.c.b16 %v1276, %v1268
        %v1629 = vpack.c.b16 %v1277, %v1269
        %v1630 = vpack.c.b16 %v1278, %v1270
        %v1631 = vpack.c.b16 %v1279, %v1271
        %v1632 = vpack.c.b16 %v1280, %v1272
        %v1633 = vpack.c.b16 %v1281, %v1273
        %v1634 = vpack.c.b16 %v1282, %v1274
        %v1635 = vpack.c.b16 %v1283, %v1275
        %v1636 = vpack.c.b16 %v1292, %v1284
        %v1637 = vpack.c.b16 %v1293, %v1285
        %v1638 = vpack.c.b16 %v1294, %v1286
        %v1639 = vpack.c.b16 %v1295, %v1287
        %v1640 = vpack.c.b16 %v1296, %v1288
        %v1641 = vpack.c.b16 %v1297, %v1289
        %v1642 = vpack.c.b16 %v1298, %v1290
        %v1643 = vpack.c.b16 %v1299, %v1291
        %v1644 = vpack.c.b16 %v1308, %v1300
        %v1645 = vpack.c.b16 %v1309, %v1301
        %v1646 = vpack.c.b16 %v1310, %v1302
        %v1647 = vpack.c.b16 %v1311, %v1303
        %v1648 = vpack.c.b16 %v1312, %v1304
        %v1649 = vpack.c.b16 %v1313, %v1305
        %v1650 = vpack.c.b16 %v1314, %v1306
        %v1651 = vpack.c.b16 %v1315, %v1307
        %v1652 = vpack.c.b16 %v1324, %v1316
        %v1653 = vpack.c.b16 %v1325, %v1317
        %v1654 = vpack.c.b16 %v1326, %v1318
        %v1655 = vpack.c.b16 %v1327, %v1319
        %v1656 = vpack.c.b16 %v1328, %v1320
        %v1657 = vpack.c.b16 %v1329, %v1321
        %v1658 = vpack.c.b16 %v1330, %v1322
        %v1659 = vpack.c.b16 %v1331, %v1323
        %v1660 = vpack.c.b16 %v1340, %v1332
        %v1661 = vpack.c.b16 %v1341, %v1333
        %v1662 = vpack.c.b16 %v1342, %v1334
        %v1663 = vpack.c.b16 %v1343, %v1335
        %v1664 = vpack.c.b16 %v1344, %v1336
        %v1665 = vpack.c.b16 %v1345, %v1337
        %v1666 = vpack.c.b16 %v1346, %v1338
        %v1667 = vpack.c.b16 %v1347, %v1339
        %v1668 = vpack.c.b16 %v1356, %v1348
        %v1669 = vpack.c.b16 %v1357, %v1349
        %v1670 = vpack.c.b16 %v1358, %v1350
        %v1671 = vpack.c.b16 %v1359, %v1351
        %v1672 = vpack.c.b16 %v1360, %v1352
        %v1673 = vpack.c.b16 %v1361, %v1353
        %v1674 = vpack.c.b16 %v1362, %v1354
        %v1675 = vpack.c.b16 %v1363, %v1355
        %v1676 = vpack.c.b16 %v1372, %v1364
        %v1677 = vpack.c.b16 %v1373, %v1365
        %v1678 = vpack.c.b16 %v1374, %v1366
        %v1679 = vpack.c.b16 %v1375, %v1367
        %v1680 = vpack.c.b16 %v1376, %v1368
        %v1681 = vpack.c.b16 %v1377, %v1369
        %v1682 = vpack.c.b16 %v1378, %v1370
        %v1683 = vpack.c.b16 %v1379, %v1371
        %v1684 = vpack.c.b16 %v1388, %v1380
        %v1685 = vpack.c.b16 %v1389, %v1381
        %v1686 = vpack.c.b16 %v1390, %v1382
        %v1687 = vpack.c.b16 %v1391, %v1383
        %v1688 = vpack.c.b16 %v1392, %v1384
        %v1689 = vpack.c.b16 %v1393, %v1385
        %v1690 = vpack.c.b16 %v1394, %v1386
        %v1691 = vpack.c.b16 %v1395, %v1387
        %v1692 = vpack.c.b16 %v1404, %v1396
        %v1693 = vpack.c.b16 %v1405, %v1397
        %v1694 = vpack.c.b16 %v1406, %v1398
        %v1695 = vpack.c.b16 %v1407, %v1399
        %v1696 = vpack.c.b16 %v1408, %v1400
        %v1697 = vpack.c.b16 %v1409, %v1401
        %v1698 = vpack.c.b16 %v1410, %v1402
        %v1699 = vpack.c.b16 %v1411, %v1403
        %v1700 = vpack.c.b16 %v1420, %v1412
        %v1701 = vpack.c.b16 %v1421, %v1413
        %v1702 = vpack.c.b16 %v1422, %v1414
        %v1703 = vpack.c.b16 %v1423, %v1415
        %v1704 = vpack.c.b16 %v1424, %v1416
        %v1705 = vpack.c.b16 %v1425, %v1417
        %v1706 = vpack.c.b16 %v1426, %v1418
        %v1707 = vpack.c.b16 %v1427, %v1419
        %v1708 = vpack.c.b16 %v1436, %v1428
        %v1709 = vpack.c.b16 %v1437, %v1429
        %v1710 = vpack.c.b16 %v1438, %v1430
        %v1711 = vpack.c.b16 %v1439, %v1431
        %v1712 = vpack.c.b16 %v1440, %v1432
        %v1713 = vpack.c.b16 %v1441, %v1433
        %v1714 = vpack.c.b16 %v1442, %v1434
        %v1715 = vpack.c.b16 %v1443, %v1435
        %v1716 = vpack.c.b16 %v1452, %v1444
        %v1717 = vpack.c.b16 %v1453, %v1445
        %v1718 = vpack.c.b16 %v1454, %v1446
        %v1719 = vpack.c.b16 %v1455, %v1447
        %v1720 = vpack.c.b16 %v1456, %v1448
        %v1721 = vpack.c.b16 %v1457, %v1449
        %v1722 = vpack.c.b16 %v1458, %v1450
        %v1723 = vpack.c.b16 %v1459, %v1451
        %v1724 = vpack.c.b16 %v1468, %v1460
        %v1725 = vpack.c.b16 %v1469, %v1461
        %v1726 = vpack.c.b16 %v1470, %v1462
        %v1727 = vpack.c.b16 %v1471, %v1463
        %v1728 = vpack.c.b16 %v1472, %v1464
        %v1729 = vpack.c.b16 %v1473, %v1465
        %v1730 = vpack.c.b16 %v1474, %v1466
        %v1731 = vpack.c.b16 %v1475, %v1467
        %1988 = vmatprep.subr.bf16.mxu0 %v1533
        %1989 = vmatpush1.bf16.msra.mxu0 %v1532
        %1990 = vmatprep.subr.bf16.mxu0 %v1525
        %1991 = vmatpush1.bf16.msra.mxu0 %v1524
        %1992 = vmatprep.subr.bf16.mxu0 %v1517
        %1993 = vmatpush1.bf16.msra.mxu0 %v1516
        %1994 = vmatprep.subr.bf16.mxu0 %v1509
        %1995 = vmatpush1.bf16.msra.mxu0 %v1508
        %1996 = vmatprep.subr.bf16.mxu0 %v1501
        %1997 = vmatpush1.bf16.msra.mxu0 %v1500
        %1998 = vmatprep.subr.bf16.mxu0 %v1493
        %1999 = vmatpush1.bf16.msra.mxu0 %v1492
        %2000 = vmatprep.subr.bf16.mxu0 %v1485
        %2001 = vmatpush1.bf16.msra.mxu0 %v1484
        %2002 = vmatprep.subr.bf16.mxu0 %v1477
        %2003 = vmatpush1.bf16.msra.mxu0 %v1476
        %2004 = vmatprep.subr.bf16.mxu0 %v1597
        %2005 = vmatpush2.bf16.msra.mxu0 %v1596
        %2006 = vmatprep.subr.bf16.mxu0 %v1589
        %2007 = vmatpush2.bf16.msra.mxu0 %v1588
        %2008 = vmatprep.subr.bf16.mxu0 %v1581
        %2009 = vmatpush2.bf16.msra.mxu0 %v1580
        %2010 = vmatprep.subr.bf16.mxu0 %v1573
        %2011 = vmatpush2.bf16.msra.mxu0 %v1572
        %2012 = vmatprep.subr.bf16.mxu0 %v1565
        %2013 = vmatpush2.bf16.msra.mxu0 %v1564
        %2014 = vmatprep.subr.bf16.mxu0 %v1557
        %2015 = vmatpush2.bf16.msra.mxu0 %v1556
        %2016 = vmatprep.subr.bf16.mxu0 %v1549
        %2017 = vmatpush2.bf16.msra.mxu0 %v1548
        %2018 = vmatprep.subr.bf16.mxu0 %v1541
        %2019 = vmatpush2.bf16.msra.mxu0 %v1540
        %2020 = vmatprep.mubr.bf16.mxu0 %v407
        %2021 = vmatmul.mubr.bf16.gmra.mxu0 %v406
        %v2022 = vpop.f32.mrf.mxu0
        %v2023 = vadd.f32 %v671, %v2022
        %v2024 = vpop.f32.mrf.mxu0
        %v2025 = vadd.f32 %v675, %v2024
        %v2026 = vpop.f32.mrf.mxu0
        %v2027 = vpop.f32.mrf.mxu0
        %2028 = vdwg.mxu0
        %2029 = vmatprep.subr.bf16.mxu0 %v1661
        %2030 = vmatpush1.bf16.msra.mxu0 %v1660
        %2031 = vmatprep.subr.bf16.mxu0 %v1653
        %2032 = vmatpush1.bf16.msra.mxu0 %v1652
        %2033 = vmatprep.subr.bf16.mxu0 %v1645
        %2034 = vmatpush1.bf16.msra.mxu0 %v1644
        %2035 = vmatprep.subr.bf16.mxu0 %v1637
        %2036 = vmatpush1.bf16.msra.mxu0 %v1636
        %2037 = vmatprep.subr.bf16.mxu0 %v1629
        %2038 = vmatpush1.bf16.msra.mxu0 %v1628
        %2039 = vmatprep.subr.bf16.mxu0 %v1621
        %2040 = vmatpush1.bf16.msra.mxu0 %v1620
        %2041 = vmatprep.subr.bf16.mxu0 %v1613
        %2042 = vmatpush1.bf16.msra.mxu0 %v1612
        %2043 = vmatprep.subr.bf16.mxu0 %v1605
        %2044 = vmatpush1.bf16.msra.mxu0 %v1604
        %2045 = vmatprep.subr.bf16.mxu0 %v1725
        %2046 = vmatpush2.bf16.msra.mxu0 %v1724
        %2047 = vmatprep.subr.bf16.mxu0 %v1717
        %2048 = vmatpush2.bf16.msra.mxu0 %v1716
        %2049 = vmatprep.subr.bf16.mxu0 %v1709
        %2050 = vmatpush2.bf16.msra.mxu0 %v1708
        %2051 = vmatprep.subr.bf16.mxu0 %v1701
        %2052 = vmatpush2.bf16.msra.mxu0 %v1700
        %2053 = vmatprep.subr.bf16.mxu0 %v1693
        %2054 = vmatpush2.bf16.msra.mxu0 %v1692
        %2055 = vmatprep.subr.bf16.mxu0 %v1685
        %2056 = vmatpush2.bf16.msra.mxu0 %v1684
        %2057 = vmatprep.subr.bf16.mxu0 %v1677
        %2058 = vmatpush2.bf16.msra.mxu0 %v1676
        %2059 = vmatprep.subr.bf16.mxu0 %v1669
        %2060 = vmatpush2.bf16.msra.mxu0 %v1668
        %2061 = vmatprep.mubr.bf16.mxu0 %v409
        %2062 = vmatmul.mubr.bf16.gmra.mxu0 %v408
        %v2063 = vpop.f32.mrf.mxu0
        %v2064 = vadd.f32 %v2023, %v2063
        %v2065 = vpop.f32.mrf.mxu0
        %v2066 = vadd.f32 %v2025, %v2065
        %v2067 = vpop.f32.mrf.mxu0
        %v2068 = vpop.f32.mrf.mxu0
        %2069 = vdwg.mxu0
        %2070 = vmatprep.subr.bf16.mxu0 %v1535
        %2071 = vmatpush1.bf16.msra.mxu0 %v1534
        %2072 = vmatprep.subr.bf16.mxu0 %v1527
        %2073 = vmatpush1.bf16.msra.mxu0 %v1526
        %2074 = vmatprep.subr.bf16.mxu0 %v1519
        %2075 = vmatpush1.bf16.msra.mxu0 %v1518
        %2076 = vmatprep.subr.bf16.mxu0 %v1511
        %2077 = vmatpush1.bf16.msra.mxu0 %v1510
        %2078 = vmatprep.subr.bf16.mxu0 %v1503
        %2079 = vmatpush1.bf16.msra.mxu0 %v1502
        %2080 = vmatprep.subr.bf16.mxu0 %v1495
        %2081 = vmatpush1.bf16.msra.mxu0 %v1494
        %2082 = vmatprep.subr.bf16.mxu0 %v1487
        %2083 = vmatpush1.bf16.msra.mxu0 %v1486
        %2084 = vmatprep.subr.bf16.mxu0 %v1479
        %2085 = vmatpush1.bf16.msra.mxu0 %v1478
        %2086 = vmatprep.subr.bf16.mxu0 %v1599
        %2087 = vmatpush2.bf16.msra.mxu0 %v1598
        %2088 = vmatprep.subr.bf16.mxu0 %v1591
        %2089 = vmatpush2.bf16.msra.mxu0 %v1590
        %2090 = vmatprep.subr.bf16.mxu0 %v1583
        %2091 = vmatpush2.bf16.msra.mxu0 %v1582
        %2092 = vmatprep.subr.bf16.mxu0 %v1575
        %2093 = vmatpush2.bf16.msra.mxu0 %v1574
        %2094 = vmatprep.subr.bf16.mxu0 %v1567
        %2095 = vmatpush2.bf16.msra.mxu0 %v1566
        %2096 = vmatprep.subr.bf16.mxu0 %v1559
        %2097 = vmatpush2.bf16.msra.mxu0 %v1558
        %2098 = vmatprep.subr.bf16.mxu0 %v1551
        %2099 = vmatpush2.bf16.msra.mxu0 %v1550
        %2100 = vmatprep.subr.bf16.mxu0 %v1543
        %2101 = vmatpush2.bf16.msra.mxu0 %v1542
        %2102 = vmatprep.mubr.bf16.mxu0 %v407
        %2103 = vmatmul.mubr.bf16.gmra.mxu0 %v406
        %v2104 = vpop.f32.mrf.mxu0
        %v2105 = vadd.f32 %v679, %v2104
        %v2106 = vpop.f32.mrf.mxu0
        %v2107 = vadd.f32 %v683, %v2106
        %v2108 = vpop.f32.mrf.mxu0
        %v2109 = vpop.f32.mrf.mxu0
        %2110 = vdwg.mxu0
        %2111 = vmatprep.subr.bf16.mxu0 %v1663
        %2112 = vmatpush1.bf16.msra.mxu0 %v1662
        %2113 = vmatprep.subr.bf16.mxu0 %v1655
        %2114 = vmatpush1.bf16.msra.mxu0 %v1654
        %2115 = vmatprep.subr.bf16.mxu0 %v1647
        %2116 = vmatpush1.bf16.msra.mxu0 %v1646
        %2117 = vmatprep.subr.bf16.mxu0 %v1639
        %2118 = vmatpush1.bf16.msra.mxu0 %v1638
        %2119 = vmatprep.subr.bf16.mxu0 %v1631
        %2120 = vmatpush1.bf16.msra.mxu0 %v1630
        %2121 = vmatprep.subr.bf16.mxu0 %v1623
        %2122 = vmatpush1.bf16.msra.mxu0 %v1622
        %2123 = vmatprep.subr.bf16.mxu0 %v1615
        %2124 = vmatpush1.bf16.msra.mxu0 %v1614
        %2125 = vmatprep.subr.bf16.mxu0 %v1607
        %2126 = vmatpush1.bf16.msra.mxu0 %v1606
        %2127 = vmatprep.subr.bf16.mxu0 %v1727
        %2128 = vmatpush2.bf16.msra.mxu0 %v1726
        %2129 = vmatprep.subr.bf16.mxu0 %v1719
        %2130 = vmatpush2.bf16.msra.mxu0 %v1718
        %2131 = vmatprep.subr.bf16.mxu0 %v1711
        %2132 = vmatpush2.bf16.msra.mxu0 %v1710
        %2133 = vmatprep.subr.bf16.mxu0 %v1703
        %2134 = vmatpush2.bf16.msra.mxu0 %v1702
        %2135 = vmatprep.subr.bf16.mxu0 %v1695
        %2136 = vmatpush2.bf16.msra.mxu0 %v1694
        %2137 = vmatprep.subr.bf16.mxu0 %v1687
        %2138 = vmatpush2.bf16.msra.mxu0 %v1686
        %2139 = vmatprep.subr.bf16.mxu0 %v1679
        %2140 = vmatpush2.bf16.msra.mxu0 %v1678
        %2141 = vmatprep.subr.bf16.mxu0 %v1671
        %2142 = vmatpush2.bf16.msra.mxu0 %v1670
        %2143 = vmatprep.mubr.bf16.mxu0 %v409
        %2144 = vmatmul.mubr.bf16.gmra.mxu0 %v408
        %v2145 = vpop.f32.mrf.mxu0
        %v2146 = vadd.f32 %v2105, %v2145
        %v2147 = vpop.f32.mrf.mxu0
        %v2148 = vadd.f32 %v2107, %v2147
        %v2149 = vpop.f32.mrf.mxu0
        %v2150 = vpop.f32.mrf.mxu0
        %2151 = vdwg.mxu0
        %2152 = vmatprep.subr.bf16.mxu0 %v1537
        %2153 = vmatpush1.bf16.msra.mxu0 %v1536
        %2154 = vmatprep.subr.bf16.mxu0 %v1529
        %2155 = vmatpush1.bf16.msra.mxu0 %v1528
        %2156 = vmatprep.subr.bf16.mxu0 %v1521
        %2157 = vmatpush1.bf16.msra.mxu0 %v1520
        %2158 = vmatprep.subr.bf16.mxu0 %v1513
        %2159 = vmatpush1.bf16.msra.mxu0 %v1512
        %2160 = vmatprep.subr.bf16.mxu0 %v1505
        %2161 = vmatpush1.bf16.msra.mxu0 %v1504
        %2162 = vmatprep.subr.bf16.mxu0 %v1497
        %2163 = vmatpush1.bf16.msra.mxu0 %v1496
        %2164 = vmatprep.subr.bf16.mxu0 %v1489
        %2165 = vmatpush1.bf16.msra.mxu0 %v1488
        %2166 = vmatprep.subr.bf16.mxu0 %v1481
        %2167 = vmatpush1.bf16.msra.mxu0 %v1480
        %2168 = vmatprep.subr.bf16.mxu0 %v1601
        %2169 = vmatpush2.bf16.msra.mxu0 %v1600
        %2170 = vmatprep.subr.bf16.mxu0 %v1593
        %2171 = vmatpush2.bf16.msra.mxu0 %v1592
        %2172 = vmatprep.subr.bf16.mxu0 %v1585
        %2173 = vmatpush2.bf16.msra.mxu0 %v1584
        %2174 = vmatprep.subr.bf16.mxu0 %v1577
        %2175 = vmatpush2.bf16.msra.mxu0 %v1576
        %2176 = vmatprep.subr.bf16.mxu0 %v1569
        %2177 = vmatpush2.bf16.msra.mxu0 %v1568
        %2178 = vmatprep.subr.bf16.mxu0 %v1561
        %2179 = vmatpush2.bf16.msra.mxu0 %v1560
        %2180 = vmatprep.subr.bf16.mxu0 %v1553
        %2181 = vmatpush2.bf16.msra.mxu0 %v1552
        %2182 = vmatprep.subr.bf16.mxu0 %v1545
        %2183 = vmatpush2.bf16.msra.mxu0 %v1544
        %2184 = vmatprep.mubr.bf16.mxu0 %v407
        %2185 = vmatmul.mubr.bf16.gmra.mxu0 %v406
        %v2186 = vpop.f32.mrf.mxu0
        %v2187 = vadd.f32 %v687, %v2186
        %v2188 = vpop.f32.mrf.mxu0
        %v2189 = vadd.f32 %v691, %v2188
        %v2190 = vpop.f32.mrf.mxu0
        %v2191 = vpop.f32.mrf.mxu0
        %2192 = vdwg.mxu0
        %2193 = vmatprep.subr.bf16.mxu0 %v1665
        %2194 = vmatpush1.bf16.msra.mxu0 %v1664
        %2195 = vmatprep.subr.bf16.mxu0 %v1657
        %2196 = vmatpush1.bf16.msra.mxu0 %v1656
        %2197 = vmatprep.subr.bf16.mxu0 %v1649
        %2198 = vmatpush1.bf16.msra.mxu0 %v1648
        %2199 = vmatprep.subr.bf16.mxu0 %v1641
        %2200 = vmatpush1.bf16.msra.mxu0 %v1640
        %2201 = vmatprep.subr.bf16.mxu0 %v1633
        %2202 = vmatpush1.bf16.msra.mxu0 %v1632
        %2203 = vmatprep.subr.bf16.mxu0 %v1625
        %2204 = vmatpush1.bf16.msra.mxu0 %v1624
        %2205 = vmatprep.subr.bf16.mxu0 %v1617
        %2206 = vmatpush1.bf16.msra.mxu0 %v1616
        %2207 = vmatprep.subr.bf16.mxu0 %v1609
        %2208 = vmatpush1.bf16.msra.mxu0 %v1608
        %2209 = vmatprep.subr.bf16.mxu0 %v1729
        %2210 = vmatpush2.bf16.msra.mxu0 %v1728
        %2211 = vmatprep.subr.bf16.mxu0 %v1721
        %2212 = vmatpush2.bf16.msra.mxu0 %v1720
        %2213 = vmatprep.subr.bf16.mxu0 %v1713
        %2214 = vmatpush2.bf16.msra.mxu0 %v1712
        %2215 = vmatprep.subr.bf16.mxu0 %v1705
        %2216 = vmatpush2.bf16.msra.mxu0 %v1704
        %2217 = vmatprep.subr.bf16.mxu0 %v1697
        %2218 = vmatpush2.bf16.msra.mxu0 %v1696
        %2219 = vmatprep.subr.bf16.mxu0 %v1689
        %2220 = vmatpush2.bf16.msra.mxu0 %v1688
        %2221 = vmatprep.subr.bf16.mxu0 %v1681
        %2222 = vmatpush2.bf16.msra.mxu0 %v1680
        %2223 = vmatprep.subr.bf16.mxu0 %v1673
        %2224 = vmatpush2.bf16.msra.mxu0 %v1672
        %2225 = vmatprep.mubr.bf16.mxu0 %v409
        %2226 = vmatmul.mubr.bf16.gmra.mxu0 %v408
        %v2227 = vpop.f32.mrf.mxu0
        %v2228 = vadd.f32 %v2187, %v2227
        %v2229 = vpop.f32.mrf.mxu0
        %v2230 = vadd.f32 %v2189, %v2229
        %v2231 = vpop.f32.mrf.mxu0
        %v2232 = vpop.f32.mrf.mxu0
        %2233 = vdwg.mxu0
        %2234 = vmatprep.subr.bf16.mxu0 %v1539
        %2235 = vmatpush1.bf16.msra.mxu0 %v1538
        %2236 = vmatprep.subr.bf16.mxu0 %v1531
        %2237 = vmatpush1.bf16.msra.mxu0 %v1530
        %2238 = vmatprep.subr.bf16.mxu0 %v1523
        %2239 = vmatpush1.bf16.msra.mxu0 %v1522
        %2240 = vmatprep.subr.bf16.mxu0 %v1515
        %2241 = vmatpush1.bf16.msra.mxu0 %v1514
        %2242 = vmatprep.subr.bf16.mxu0 %v1507
        %2243 = vmatpush1.bf16.msra.mxu0 %v1506
        %2244 = vmatprep.subr.bf16.mxu0 %v1499
        %2245 = vmatpush1.bf16.msra.mxu0 %v1498
        %2246 = vmatprep.subr.bf16.mxu0 %v1491
        %2247 = vmatpush1.bf16.msra.mxu0 %v1490
        %2248 = vmatprep.subr.bf16.mxu0 %v1483
        %2249 = vmatpush1.bf16.msra.mxu0 %v1482
        %2250 = vmatprep.subr.bf16.mxu0 %v1603
        %2251 = vmatpush2.bf16.msra.mxu0 %v1602
        %2252 = vmatprep.subr.bf16.mxu0 %v1595
        %2253 = vmatpush2.bf16.msra.mxu0 %v1594
        %2254 = vmatprep.subr.bf16.mxu0 %v1587
        %2255 = vmatpush2.bf16.msra.mxu0 %v1586
        %2256 = vmatprep.subr.bf16.mxu0 %v1579
        %2257 = vmatpush2.bf16.msra.mxu0 %v1578
        %2258 = vmatprep.subr.bf16.mxu0 %v1571
        %2259 = vmatpush2.bf16.msra.mxu0 %v1570
        %2260 = vmatprep.subr.bf16.mxu0 %v1563
        %2261 = vmatpush2.bf16.msra.mxu0 %v1562
        %2262 = vmatprep.subr.bf16.mxu0 %v1555
        %2263 = vmatpush2.bf16.msra.mxu0 %v1554
        %2264 = vmatprep.subr.bf16.mxu0 %v1547
        %2265 = vmatpush2.bf16.msra.mxu0 %v1546
        %2266 = vmatprep.mubr.bf16.mxu0 %v407
        %2267 = vmatmul.mubr.bf16.gmra.mxu0 %v406
        %v2268 = vpop.f32.mrf.mxu0
        %v2269 = vadd.f32 %v695, %v2268
        %v2270 = vpop.f32.mrf.mxu0
        %v2271 = vadd.f32 %v699, %v2270
        %v2272 = vpop.f32.mrf.mxu0
        %v2273 = vpop.f32.mrf.mxu0
        %2274 = vdwg.mxu0
        %2275 = vmatprep.subr.bf16.mxu0 %v1667
        %2276 = vmatpush1.bf16.msra.mxu0 %v1666
        %2277 = vmatprep.subr.bf16.mxu0 %v1659
        %2278 = vmatpush1.bf16.msra.mxu0 %v1658
        %2279 = vmatprep.subr.bf16.mxu0 %v1651
        %2280 = vmatpush1.bf16.msra.mxu0 %v1650
        %2281 = vmatprep.subr.bf16.mxu0 %v1643
        %2282 = vmatpush1.bf16.msra.mxu0 %v1642
        %2283 = vmatprep.subr.bf16.mxu0 %v1635
        %2284 = vmatpush1.bf16.msra.mxu0 %v1634
        %2285 = vmatprep.subr.bf16.mxu0 %v1627
        %2286 = vmatpush1.bf16.msra.mxu0 %v1626
        %2287 = vmatprep.subr.bf16.mxu0 %v1619
        %2288 = vmatpush1.bf16.msra.mxu0 %v1618
        %2289 = vmatprep.subr.bf16.mxu0 %v1611
        %2290 = vmatpush1.bf16.msra.mxu0 %v1610
        %2291 = vmatprep.subr.bf16.mxu0 %v1731
        %2292 = vmatpush2.bf16.msra.mxu0 %v1730
        %2293 = vmatprep.subr.bf16.mxu0 %v1723
        %2294 = vmatpush2.bf16.msra.mxu0 %v1722
        %2295 = vmatprep.subr.bf16.mxu0 %v1715
        %2296 = vmatpush2.bf16.msra.mxu0 %v1714
        %2297 = vmatprep.subr.bf16.mxu0 %v1707
        %2298 = vmatpush2.bf16.msra.mxu0 %v1706
        %2299 = vmatprep.subr.bf16.mxu0 %v1699
        %2300 = vmatpush2.bf16.msra.mxu0 %v1698
        %2301 = vmatprep.subr.bf16.mxu0 %v1691
        %2302 = vmatpush2.bf16.msra.mxu0 %v1690
        %2303 = vmatprep.subr.bf16.mxu0 %v1683
        %2304 = vmatpush2.bf16.msra.mxu0 %v1682
        %2305 = vmatprep.subr.bf16.mxu0 %v1675
        %2306 = vmatpush2.bf16.msra.mxu0 %v1674
        %2307 = vmatprep.mubr.bf16.mxu0 %v409
        %2308 = vmatmul.mubr.bf16.gmra.mxu0 %v408
        %v2309 = vpop.f32.mrf.mxu0
        %v2310 = vadd.f32 %v2269, %v2309
        %v2311 = vpop.f32.mrf.mxu0
        %v2312 = vadd.f32 %v2271, %v2311
        %v2313 = vpop.f32.mrf.mxu0
        %v2314 = vpop.f32.mrf.mxu0
        %2315 = vdwg.mxu0
        %v2316 = vpack.c.bf16 %v2064, %v2064
        %v2317 = vpack.c.bf16 %v2066, %v2066
        %v2318 = vpack.c.bf16 %v2146, %v2146
        %v2319 = vpack.c.bf16 %v2148, %v2148
        %v2320 = vpack.c.bf16 %v2228, %v2228
        %v2321 = vpack.c.bf16 %v2230, %v2230
        %v2322 = vpack.c.bf16 %v2310, %v2310
        %v2323 = vpack.c.bf16 %v2312, %v2312
        %v2324 = vld [vmem:[#allocation8] sm:$0xff]
        %v2325 = vld [vmem:[#allocation8 + $0x8] sm:$0xff]
        %v2326 = vld [vmem:[#allocation8 + $0x10] sm:$0xff]
        %v2327 = vld [vmem:[#allocation8 + $0x18] sm:$0xff]
        %v2328 = vld [vmem:[#allocation8 + $0x20] sm:$0xff]
        %v2329 = vld [vmem:[#allocation8 + $0x28] sm:$0xff]
        %v2330 = vld [vmem:[#allocation8 + $0x30] sm:$0xff]
        %v2331 = vld [vmem:[#allocation8 + $0x38] sm:$0xff]
        %v2332 = vld [vmem:[#allocation8 + $0x40] sm:$0xff]
        %v2333 = vld [vmem:[#allocation8 + $0x48] sm:$0xff]
        %v2334 = vld [vmem:[#allocation8 + $0x50] sm:$0xff]
        %v2335 = vld [vmem:[#allocation8 + $0x58] sm:$0xff]
        %v2336 = vld [vmem:[#allocation8 + $0x60] sm:$0xff]
        %v2337 = vld [vmem:[#allocation8 + $0x68] sm:$0xff]
        %v2338 = vld [vmem:[#allocation8 + $0x70] sm:$0xff]
        %v2339 = vld [vmem:[#allocation8 + $0x78] sm:$0xff]
        %v2340 = vld [vmem:[#allocation8 + $0x80] sm:$0xff]
        %v2341 = vld [vmem:[#allocation8 + $0x88] sm:$0xff]
        %v2342 = vld [vmem:[#allocation8 + $0x90] sm:$0xff]
        %v2343 = vld [vmem:[#allocation8 + $0x98] sm:$0xff]
        %v2344 = vld [vmem:[#allocation8 + $0xa0] sm:$0xff]
        %v2345 = vld [vmem:[#allocation8 + $0xa8] sm:$0xff]
        %v2346 = vld [vmem:[#allocation8 + $0xb0] sm:$0xff]
        %v2347 = vld [vmem:[#allocation8 + $0xb8] sm:$0xff]
        %v2348 = vld [vmem:[#allocation8 + $0xc0] sm:$0xff]
        %v2349 = vld [vmem:[#allocation8 + $0xc8] sm:$0xff]
        %v2350 = vld [vmem:[#allocation8 + $0xd0] sm:$0xff]
        %v2351 = vld [vmem:[#allocation8 + $0xd8] sm:$0xff]
        %v2352 = vld [vmem:[#allocation8 + $0xe0] sm:$0xff]
        %v2353 = vld [vmem:[#allocation8 + $0xe8] sm:$0xff]
        %v2354 = vld [vmem:[#allocation8 + $0xf0] sm:$0xff]
        %v2355 = vld [vmem:[#allocation8 + $0xf8] sm:$0xff]
        %v2356 = vld [vmem:[#allocation8 + $0x100] sm:$0xff]
        %v2357 = vld [vmem:[#allocation8 + $0x108] sm:$0xff]
        %v2358 = vld [vmem:[#allocation8 + $0x110] sm:$0xff]
        %v2359 = vld [vmem:[#allocation8 + $0x118] sm:$0xff]
        %v2360 = vld [vmem:[#allocation8 + $0x120] sm:$0xff]
        %v2361 = vld [vmem:[#allocation8 + $0x128] sm:$0xff]
        %v2362 = vld [vmem:[#allocation8 + $0x130] sm:$0xff]
        %v2363 = vld [vmem:[#allocation8 + $0x138] sm:$0xff]
        %v2364 = vld [vmem:[#allocation8 + $0x140] sm:$0xff]
        %v2365 = vld [vmem:[#allocation8 + $0x148] sm:$0xff]
        %v2366 = vld [vmem:[#allocation8 + $0x150] sm:$0xff]
        %v2367 = vld [vmem:[#allocation8 + $0x158] sm:$0xff]
        %v2368 = vld [vmem:[#allocation8 + $0x160] sm:$0xff]
        %v2369 = vld [vmem:[#allocation8 + $0x168] sm:$0xff]
        %v2370 = vld [vmem:[#allocation8 + $0x170] sm:$0xff]
        %v2371 = vld [vmem:[#allocation8 + $0x178] sm:$0xff]
        %v2372 = vld [vmem:[#allocation8 + $0x180] sm:$0xff]
        %v2373 = vld [vmem:[#allocation8 + $0x188] sm:$0xff]
        %v2374 = vld [vmem:[#allocation8 + $0x190] sm:$0xff]
        %v2375 = vld [vmem:[#allocation8 + $0x198] sm:$0xff]
        %v2376 = vld [vmem:[#allocation8 + $0x1a0] sm:$0xff]
        %v2377 = vld [vmem:[#allocation8 + $0x1a8] sm:$0xff]
        %v2378 = vld [vmem:[#allocation8 + $0x1b0] sm:$0xff]
        %v2379 = vld [vmem:[#allocation8 + $0x1b8] sm:$0xff]
        %v2380 = vld [vmem:[#allocation8 + $0x1c0] sm:$0xff]
        %v2381 = vld [vmem:[#allocation8 + $0x1c8] sm:$0xff]
        %v2382 = vld [vmem:[#allocation8 + $0x1d0] sm:$0xff]
        %v2383 = vld [vmem:[#allocation8 + $0x1d8] sm:$0xff]
        %v2384 = vld [vmem:[#allocation8 + $0x1e0] sm:$0xff]
        %v2385 = vld [vmem:[#allocation8 + $0x1e8] sm:$0xff]
        %v2386 = vld [vmem:[#allocation8 + $0x1f0] sm:$0xff]
        %v2387 = vld [vmem:[#allocation8 + $0x1f8] sm:$0xff]
        %v2388 = vld [vmem:[#allocation8 + $0x200] sm:$0xff]
        %v2389 = vld [vmem:[#allocation8 + $0x208] sm:$0xff]
        %v2390 = vld [vmem:[#allocation8 + $0x210] sm:$0xff]
        %v2391 = vld [vmem:[#allocation8 + $0x218] sm:$0xff]
        %v2392 = vld [vmem:[#allocation8 + $0x220] sm:$0xff]
        %v2393 = vld [vmem:[#allocation8 + $0x228] sm:$0xff]
        %v2394 = vld [vmem:[#allocation8 + $0x230] sm:$0xff]
        %v2395 = vld [vmem:[#allocation8 + $0x238] sm:$0xff]
        %v2396 = vld [vmem:[#allocation8 + $0x240] sm:$0xff]
        %v2397 = vld [vmem:[#allocation8 + $0x248] sm:$0xff]
        %v2398 = vld [vmem:[#allocation8 + $0x250] sm:$0xff]
        %v2399 = vld [vmem:[#allocation8 + $0x258] sm:$0xff]
        %v2400 = vld [vmem:[#allocation8 + $0x260] sm:$0xff]
        %v2401 = vld [vmem:[#allocation8 + $0x268] sm:$0xff]
        %v2402 = vld [vmem:[#allocation8 + $0x270] sm:$0xff]
        %v2403 = vld [vmem:[#allocation8 + $0x278] sm:$0xff]
        %v2404 = vld [vmem:[#allocation8 + $0x280] sm:$0xff]
        %v2405 = vld [vmem:[#allocation8 + $0x288] sm:$0xff]
        %v2406 = vld [vmem:[#allocation8 + $0x290] sm:$0xff]
        %v2407 = vld [vmem:[#allocation8 + $0x298] sm:$0xff]
        %v2408 = vld [vmem:[#allocation8 + $0x2a0] sm:$0xff]
        %v2409 = vld [vmem:[#allocation8 + $0x2a8] sm:$0xff]
        %v2410 = vld [vmem:[#allocation8 + $0x2b0] sm:$0xff]
        %v2411 = vld [vmem:[#allocation8 + $0x2b8] sm:$0xff]
        %v2412 = vld [vmem:[#allocation8 + $0x2c0] sm:$0xff]
        %v2413 = vld [vmem:[#allocation8 + $0x2c8] sm:$0xff]
        %v2414 = vld [vmem:[#allocation8 + $0x2d0] sm:$0xff]
        %v2415 = vld [vmem:[#allocation8 + $0x2d8] sm:$0xff]
        %v2416 = vld [vmem:[#allocation8 + $0x2e0] sm:$0xff]
        %v2417 = vld [vmem:[#allocation8 + $0x2e8] sm:$0xff]
        %v2418 = vld [vmem:[#allocation8 + $0x2f0] sm:$0xff]
        %v2419 = vld [vmem:[#allocation8 + $0x2f8] sm:$0xff]
        %v2420 = vld [vmem:[#allocation8 + $0x300] sm:$0xff]
        %v2421 = vld [vmem:[#allocation8 + $0x308] sm:$0xff]
        %v2422 = vld [vmem:[#allocation8 + $0x310] sm:$0xff]
        %v2423 = vld [vmem:[#allocation8 + $0x318] sm:$0xff]
        %v2424 = vld [vmem:[#allocation8 + $0x320] sm:$0xff]
        %v2425 = vld [vmem:[#allocation8 + $0x328] sm:$0xff]
        %v2426 = vld [vmem:[#allocation8 + $0x330] sm:$0xff]
        %v2427 = vld [vmem:[#allocation8 + $0x338] sm:$0xff]
        %v2428 = vld [vmem:[#allocation8 + $0x340] sm:$0xff]
        %v2429 = vld [vmem:[#allocation8 + $0x348] sm:$0xff]
        %v2430 = vld [vmem:[#allocation8 + $0x350] sm:$0xff]
        %v2431 = vld [vmem:[#allocation8 + $0x358] sm:$0xff]
        %v2432 = vld [vmem:[#allocation8 + $0x360] sm:$0xff]
        %v2433 = vld [vmem:[#allocation8 + $0x368] sm:$0xff]
        %v2434 = vld [vmem:[#allocation8 + $0x370] sm:$0xff]
        %v2435 = vld [vmem:[#allocation8 + $0x378] sm:$0xff]
        %v2436 = vld [vmem:[#allocation8 + $0x380] sm:$0xff]
        %v2437 = vld [vmem:[#allocation8 + $0x388] sm:$0xff]
        %v2438 = vld [vmem:[#allocation8 + $0x390] sm:$0xff]
        %v2439 = vld [vmem:[#allocation8 + $0x398] sm:$0xff]
        %v2440 = vld [vmem:[#allocation8 + $0x3a0] sm:$0xff]
        %v2441 = vld [vmem:[#allocation8 + $0x3a8] sm:$0xff]
        %v2442 = vld [vmem:[#allocation8 + $0x3b0] sm:$0xff]
        %v2443 = vld [vmem:[#allocation8 + $0x3b8] sm:$0xff]
        %v2444 = vld [vmem:[#allocation8 + $0x3c0] sm:$0xff]
        %v2445 = vld [vmem:[#allocation8 + $0x3c8] sm:$0xff]
        %v2446 = vld [vmem:[#allocation8 + $0x3d0] sm:$0xff]
        %v2447 = vld [vmem:[#allocation8 + $0x3d8] sm:$0xff]
        %v2448 = vld [vmem:[#allocation8 + $0x3e0] sm:$0xff]
        %v2449 = vld [vmem:[#allocation8 + $0x3e8] sm:$0xff]
        %v2450 = vld [vmem:[#allocation8 + $0x3f0] sm:$0xff]
        %v2451 = vld [vmem:[#allocation8 + $0x3f8] sm:$0xff]
        %v2452 = vld [vmem:[#allocation8 + $0x400] sm:$0xff]
        %v2453 = vld [vmem:[#allocation8 + $0x408] sm:$0xff]
        %v2454 = vld [vmem:[#allocation8 + $0x410] sm:$0xff]
        %v2455 = vld [vmem:[#allocation8 + $0x418] sm:$0xff]
        %v2456 = vld [vmem:[#allocation8 + $0x420] sm:$0xff]
        %v2457 = vld [vmem:[#allocation8 + $0x428] sm:$0xff]
        %v2458 = vld [vmem:[#allocation8 + $0x430] sm:$0xff]
        %v2459 = vld [vmem:[#allocation8 + $0x438] sm:$0xff]
        %v2460 = vld [vmem:[#allocation8 + $0x440] sm:$0xff]
        %v2461 = vld [vmem:[#allocation8 + $0x448] sm:$0xff]
        %v2462 = vld [vmem:[#allocation8 + $0x450] sm:$0xff]
        %v2463 = vld [vmem:[#allocation8 + $0x458] sm:$0xff]
        %v2464 = vld [vmem:[#allocation8 + $0x460] sm:$0xff]
        %v2465 = vld [vmem:[#allocation8 + $0x468] sm:$0xff]
        %v2466 = vld [vmem:[#allocation8 + $0x470] sm:$0xff]
        %v2467 = vld [vmem:[#allocation8 + $0x478] sm:$0xff]
        %v2468 = vld [vmem:[#allocation8 + $0x480] sm:$0xff]
        %v2469 = vld [vmem:[#allocation8 + $0x488] sm:$0xff]
        %v2470 = vld [vmem:[#allocation8 + $0x490] sm:$0xff]
        %v2471 = vld [vmem:[#allocation8 + $0x498] sm:$0xff]
        %v2472 = vld [vmem:[#allocation8 + $0x4a0] sm:$0xff]
        %v2473 = vld [vmem:[#allocation8 + $0x4a8] sm:$0xff]
        %v2474 = vld [vmem:[#allocation8 + $0x4b0] sm:$0xff]
        %v2475 = vld [vmem:[#allocation8 + $0x4b8] sm:$0xff]
        %v2476 = vld [vmem:[#allocation8 + $0x4c0] sm:$0xff]
        %v2477 = vld [vmem:[#allocation8 + $0x4c8] sm:$0xff]
        %v2478 = vld [vmem:[#allocation8 + $0x4d0] sm:$0xff]
        %v2479 = vld [vmem:[#allocation8 + $0x4d8] sm:$0xff]
        %v2480 = vld [vmem:[#allocation8 + $0x4e0] sm:$0xff]
        %v2481 = vld [vmem:[#allocation8 + $0x4e8] sm:$0xff]
        %v2482 = vld [vmem:[#allocation8 + $0x4f0] sm:$0xff]
        %v2483 = vld [vmem:[#allocation8 + $0x4f8] sm:$0xff]
        %v2484 = vld [vmem:[#allocation8 + $0x500] sm:$0xff]
        %v2485 = vld [vmem:[#allocation8 + $0x508] sm:$0xff]
        %v2486 = vld [vmem:[#allocation8 + $0x510] sm:$0xff]
        %v2487 = vld [vmem:[#allocation8 + $0x518] sm:$0xff]
        %v2488 = vld [vmem:[#allocation8 + $0x520] sm:$0xff]
        %v2489 = vld [vmem:[#allocation8 + $0x528] sm:$0xff]
        %v2490 = vld [vmem:[#allocation8 + $0x530] sm:$0xff]
        %v2491 = vld [vmem:[#allocation8 + $0x538] sm:$0xff]
        %v2492 = vld [vmem:[#allocation8 + $0x540] sm:$0xff]
        %v2493 = vld [vmem:[#allocation8 + $0x548] sm:$0xff]
        %v2494 = vld [vmem:[#allocation8 + $0x550] sm:$0xff]
        %v2495 = vld [vmem:[#allocation8 + $0x558] sm:$0xff]
        %v2496 = vld [vmem:[#allocation8 + $0x560] sm:$0xff]
        %v2497 = vld [vmem:[#allocation8 + $0x568] sm:$0xff]
        %v2498 = vld [vmem:[#allocation8 + $0x570] sm:$0xff]
        %v2499 = vld [vmem:[#allocation8 + $0x578] sm:$0xff]
        %v2500 = vld [vmem:[#allocation8 + $0x580] sm:$0xff]
        %v2501 = vld [vmem:[#allocation8 + $0x588] sm:$0xff]
        %v2502 = vld [vmem:[#allocation8 + $0x590] sm:$0xff]
        %v2503 = vld [vmem:[#allocation8 + $0x598] sm:$0xff]
        %v2504 = vld [vmem:[#allocation8 + $0x5a0] sm:$0xff]
        %v2505 = vld [vmem:[#allocation8 + $0x5a8] sm:$0xff]
        %v2506 = vld [vmem:[#allocation8 + $0x5b0] sm:$0xff]
        %v2507 = vld [vmem:[#allocation8 + $0x5b8] sm:$0xff]
        %v2508 = vld [vmem:[#allocation8 + $0x5c0] sm:$0xff]
        %v2509 = vld [vmem:[#allocation8 + $0x5c8] sm:$0xff]
        %v2510 = vld [vmem:[#allocation8 + $0x5d0] sm:$0xff]
        %v2511 = vld [vmem:[#allocation8 + $0x5d8] sm:$0xff]
        %v2512 = vld [vmem:[#allocation8 + $0x5e0] sm:$0xff]
        %v2513 = vld [vmem:[#allocation8 + $0x5e8] sm:$0xff]
        %v2514 = vld [vmem:[#allocation8 + $0x5f0] sm:$0xff]
        %v2515 = vld [vmem:[#allocation8 + $0x5f8] sm:$0xff]
        %v2516 = vld [vmem:[#allocation8 + $0x600] sm:$0xff]
        %v2517 = vld [vmem:[#allocation8 + $0x608] sm:$0xff]
        %v2518 = vld [vmem:[#allocation8 + $0x610] sm:$0xff]
        %v2519 = vld [vmem:[#allocation8 + $0x618] sm:$0xff]
        %v2520 = vld [vmem:[#allocation8 + $0x620] sm:$0xff]
        %v2521 = vld [vmem:[#allocation8 + $0x628] sm:$0xff]
        %v2522 = vld [vmem:[#allocation8 + $0x630] sm:$0xff]
        %v2523 = vld [vmem:[#allocation8 + $0x638] sm:$0xff]
        %v2524 = vld [vmem:[#allocation8 + $0x640] sm:$0xff]
        %v2525 = vld [vmem:[#allocation8 + $0x648] sm:$0xff]
        %v2526 = vld [vmem:[#allocation8 + $0x650] sm:$0xff]
        %v2527 = vld [vmem:[#allocation8 + $0x658] sm:$0xff]
        %v2528 = vld [vmem:[#allocation8 + $0x660] sm:$0xff]
        %v2529 = vld [vmem:[#allocation8 + $0x668] sm:$0xff]
        %v2530 = vld [vmem:[#allocation8 + $0x670] sm:$0xff]
        %v2531 = vld [vmem:[#allocation8 + $0x678] sm:$0xff]
        %v2532 = vld [vmem:[#allocation8 + $0x680] sm:$0xff]
        %v2533 = vld [vmem:[#allocation8 + $0x688] sm:$0xff]
        %v2534 = vld [vmem:[#allocation8 + $0x690] sm:$0xff]
        %v2535 = vld [vmem:[#allocation8 + $0x698] sm:$0xff]
        %v2536 = vld [vmem:[#allocation8 + $0x6a0] sm:$0xff]
        %v2537 = vld [vmem:[#allocation8 + $0x6a8] sm:$0xff]
        %v2538 = vld [vmem:[#allocation8 + $0x6b0] sm:$0xff]
        %v2539 = vld [vmem:[#allocation8 + $0x6b8] sm:$0xff]
        %v2540 = vld [vmem:[#allocation8 + $0x6c0] sm:$0xff]
        %v2541 = vld [vmem:[#allocation8 + $0x6c8] sm:$0xff]
        %v2542 = vld [vmem:[#allocation8 + $0x6d0] sm:$0xff]
        %v2543 = vld [vmem:[#allocation8 + $0x6d8] sm:$0xff]
        %v2544 = vld [vmem:[#allocation8 + $0x6e0] sm:$0xff]
        %v2545 = vld [vmem:[#allocation8 + $0x6e8] sm:$0xff]
        %v2546 = vld [vmem:[#allocation8 + $0x6f0] sm:$0xff]
        %v2547 = vld [vmem:[#allocation8 + $0x6f8] sm:$0xff]
        %v2548 = vld [vmem:[#allocation8 + $0x700] sm:$0xff]
        %v2549 = vld [vmem:[#allocation8 + $0x708] sm:$0xff]
        %v2550 = vld [vmem:[#allocation8 + $0x710] sm:$0xff]
        %v2551 = vld [vmem:[#allocation8 + $0x718] sm:$0xff]
        %v2552 = vld [vmem:[#allocation8 + $0x720] sm:$0xff]
        %v2553 = vld [vmem:[#allocation8 + $0x728] sm:$0xff]
        %v2554 = vld [vmem:[#allocation8 + $0x730] sm:$0xff]
        %v2555 = vld [vmem:[#allocation8 + $0x738] sm:$0xff]
        %v2556 = vld [vmem:[#allocation8 + $0x740] sm:$0xff]
        %v2557 = vld [vmem:[#allocation8 + $0x748] sm:$0xff]
        %v2558 = vld [vmem:[#allocation8 + $0x750] sm:$0xff]
        %v2559 = vld [vmem:[#allocation8 + $0x758] sm:$0xff]
        %v2560 = vld [vmem:[#allocation8 + $0x760] sm:$0xff]
        %v2561 = vld [vmem:[#allocation8 + $0x768] sm:$0xff]
        %v2562 = vld [vmem:[#allocation8 + $0x770] sm:$0xff]
        %v2563 = vld [vmem:[#allocation8 + $0x778] sm:$0xff]
        %v2564 = vld [vmem:[#allocation8 + $0x780] sm:$0xff]
        %v2565 = vld [vmem:[#allocation8 + $0x788] sm:$0xff]
        %v2566 = vld [vmem:[#allocation8 + $0x790] sm:$0xff]
        %v2567 = vld [vmem:[#allocation8 + $0x798] sm:$0xff]
        %v2568 = vld [vmem:[#allocation8 + $0x7a0] sm:$0xff]
        %v2569 = vld [vmem:[#allocation8 + $0x7a8] sm:$0xff]
        %v2570 = vld [vmem:[#allocation8 + $0x7b0] sm:$0xff]
        %v2571 = vld [vmem:[#allocation8 + $0x7b8] sm:$0xff]
        %v2572 = vld [vmem:[#allocation8 + $0x7c0] sm:$0xff]
        %v2573 = vld [vmem:[#allocation8 + $0x7c8] sm:$0xff]
        %v2574 = vld [vmem:[#allocation8 + $0x7d0] sm:$0xff]
        %v2575 = vld [vmem:[#allocation8 + $0x7d8] sm:$0xff]
        %v2576 = vld [vmem:[#allocation8 + $0x7e0] sm:$0xff]
        %v2577 = vld [vmem:[#allocation8 + $0x7e8] sm:$0xff]
        %v2578 = vld [vmem:[#allocation8 + $0x7f0] sm:$0xff]
        %v2579 = vld [vmem:[#allocation8 + $0x7f8] sm:$0xff]
        %v2580 = vld [vmem:[#allocation8 + $0x800] sm:$0xff]
        %v2581 = vld [vmem:[#allocation8 + $0x808] sm:$0xff]
        %v2582 = vld [vmem:[#allocation8 + $0x810] sm:$0xff]
        %v2583 = vld [vmem:[#allocation8 + $0x818] sm:$0xff]
        %v2584 = vld [vmem:[#allocation8 + $0x820] sm:$0xff]
        %v2585 = vld [vmem:[#allocation8 + $0x828] sm:$0xff]
        %v2586 = vld [vmem:[#allocation8 + $0x830] sm:$0xff]
        %v2587 = vld [vmem:[#allocation8 + $0x838] sm:$0xff]
        %v2588 = vld [vmem:[#allocation8 + $0x840] sm:$0xff]
        %v2589 = vld [vmem:[#allocation8 + $0x848] sm:$0xff]
        %v2590 = vld [vmem:[#allocation8 + $0x850] sm:$0xff]
        %v2591 = vld [vmem:[#allocation8 + $0x858] sm:$0xff]
        %v2592 = vld [vmem:[#allocation8 + $0x860] sm:$0xff]
        %v2593 = vld [vmem:[#allocation8 + $0x868] sm:$0xff]
        %v2594 = vld [vmem:[#allocation8 + $0x870] sm:$0xff]
        %v2595 = vld [vmem:[#allocation8 + $0x878] sm:$0xff]
        %v2596 = vld [vmem:[#allocation8 + $0x880] sm:$0xff]
        %v2597 = vld [vmem:[#allocation8 + $0x888] sm:$0xff]
        %v2598 = vld [vmem:[#allocation8 + $0x890] sm:$0xff]
        %v2599 = vld [vmem:[#allocation8 + $0x898] sm:$0xff]
        %v2600 = vld [vmem:[#allocation8 + $0x8a0] sm:$0xff]
        %v2601 = vld [vmem:[#allocation8 + $0x8a8] sm:$0xff]
        %v2602 = vld [vmem:[#allocation8 + $0x8b0] sm:$0xff]
        %v2603 = vld [vmem:[#allocation8 + $0x8b8] sm:$0xff]
        %v2604 = vld [vmem:[#allocation8 + $0x8c0] sm:$0xff]
        %v2605 = vld [vmem:[#allocation8 + $0x8c8] sm:$0xff]
        %v2606 = vld [vmem:[#allocation8 + $0x8d0] sm:$0xff]
        %v2607 = vld [vmem:[#allocation8 + $0x8d8] sm:$0xff]
        %v2608 = vld [vmem:[#allocation8 + $0x8e0] sm:$0xff]
        %v2609 = vld [vmem:[#allocation8 + $0x8e8] sm:$0xff]
        %v2610 = vld [vmem:[#allocation8 + $0x8f0] sm:$0xff]
        %v2611 = vld [vmem:[#allocation8 + $0x8f8] sm:$0xff]
        %v2612 = vld [vmem:[#allocation8 + $0x900] sm:$0xff]
        %v2613 = vld [vmem:[#allocation8 + $0x908] sm:$0xff]
        %v2614 = vld [vmem:[#allocation8 + $0x910] sm:$0xff]
        %v2615 = vld [vmem:[#allocation8 + $0x918] sm:$0xff]
        %v2616 = vld [vmem:[#allocation8 + $0x920] sm:$0xff]
        %v2617 = vld [vmem:[#allocation8 + $0x928] sm:$0xff]
        %v2618 = vld [vmem:[#allocation8 + $0x930] sm:$0xff]
        %v2619 = vld [vmem:[#allocation8 + $0x938] sm:$0xff]
        %v2620 = vld [vmem:[#allocation8 + $0x940] sm:$0xff]
        %v2621 = vld [vmem:[#allocation8 + $0x948] sm:$0xff]
        %v2622 = vld [vmem:[#allocation8 + $0x950] sm:$0xff]
        %v2623 = vld [vmem:[#allocation8 + $0x958] sm:$0xff]
        %v2624 = vld [vmem:[#allocation8 + $0x960] sm:$0xff]
        %v2625 = vld [vmem:[#allocation8 + $0x968] sm:$0xff]
        %v2626 = vld [vmem:[#allocation8 + $0x970] sm:$0xff]
        %v2627 = vld [vmem:[#allocation8 + $0x978] sm:$0xff]
        %v2628 = vld [vmem:[#allocation8 + $0x980] sm:$0xff]
        %v2629 = vld [vmem:[#allocation8 + $0x988] sm:$0xff]
        %v2630 = vld [vmem:[#allocation8 + $0x990] sm:$0xff]
        %v2631 = vld [vmem:[#allocation8 + $0x998] sm:$0xff]
        %v2632 = vld [vmem:[#allocation8 + $0x9a0] sm:$0xff]
        %v2633 = vld [vmem:[#allocation8 + $0x9a8] sm:$0xff]
        %v2634 = vld [vmem:[#allocation8 + $0x9b0] sm:$0xff]
        %v2635 = vld [vmem:[#allocation8 + $0x9b8] sm:$0xff]
        %v2636 = vld [vmem:[#allocation8 + $0x9c0] sm:$0xff]
        %v2637 = vld [vmem:[#allocation8 + $0x9c8] sm:$0xff]
        %v2638 = vld [vmem:[#allocation8 + $0x9d0] sm:$0xff]
        %v2639 = vld [vmem:[#allocation8 + $0x9d8] sm:$0xff]
        %v2640 = vld [vmem:[#allocation8 + $0x9e0] sm:$0xff]
        %v2641 = vld [vmem:[#allocation8 + $0x9e8] sm:$0xff]
        %v2642 = vld [vmem:[#allocation8 + $0x9f0] sm:$0xff]
        %v2643 = vld [vmem:[#allocation8 + $0x9f8] sm:$0xff]
        %v2644 = vld [vmem:[#allocation8 + $0xa00] sm:$0xff]
        %v2645 = vld [vmem:[#allocation8 + $0xa08] sm:$0xff]
        %v2646 = vld [vmem:[#allocation8 + $0xa10] sm:$0xff]
        %v2647 = vld [vmem:[#allocation8 + $0xa18] sm:$0xff]
        %v2648 = vld [vmem:[#allocation8 + $0xa20] sm:$0xff]
        %v2649 = vld [vmem:[#allocation8 + $0xa28] sm:$0xff]
        %v2650 = vld [vmem:[#allocation8 + $0xa30] sm:$0xff]
        %v2651 = vld [vmem:[#allocation8 + $0xa38] sm:$0xff]
        %v2652 = vld [vmem:[#allocation8 + $0xa40] sm:$0xff]
        %v2653 = vld [vmem:[#allocation8 + $0xa48] sm:$0xff]
        %v2654 = vld [vmem:[#allocation8 + $0xa50] sm:$0xff]
        %v2655 = vld [vmem:[#allocation8 + $0xa58] sm:$0xff]
        %v2656 = vld [vmem:[#allocation8 + $0xa60] sm:$0xff]
        %v2657 = vld [vmem:[#allocation8 + $0xa68] sm:$0xff]
        %v2658 = vld [vmem:[#allocation8 + $0xa70] sm:$0xff]
        %v2659 = vld [vmem:[#allocation8 + $0xa78] sm:$0xff]
        %v2660 = vld [vmem:[#allocation8 + $0xa80] sm:$0xff]
        %v2661 = vld [vmem:[#allocation8 + $0xa88] sm:$0xff]
        %v2662 = vld [vmem:[#allocation8 + $0xa90] sm:$0xff]
        %v2663 = vld [vmem:[#allocation8 + $0xa98] sm:$0xff]
        %v2664 = vld [vmem:[#allocation8 + $0xaa0] sm:$0xff]
        %v2665 = vld [vmem:[#allocation8 + $0xaa8] sm:$0xff]
        %v2666 = vld [vmem:[#allocation8 + $0xab0] sm:$0xff]
        %v2667 = vld [vmem:[#allocation8 + $0xab8] sm:$0xff]
        %v2668 = vld [vmem:[#allocation8 + $0xac0] sm:$0xff]
        %v2669 = vld [vmem:[#allocation8 + $0xac8] sm:$0xff]
        %v2670 = vld [vmem:[#allocation8 + $0xad0] sm:$0xff]
        %v2671 = vld [vmem:[#allocation8 + $0xad8] sm:$0xff]
        %v2672 = vld [vmem:[#allocation8 + $0xae0] sm:$0xff]
        %v2673 = vld [vmem:[#allocation8 + $0xae8] sm:$0xff]
        %v2674 = vld [vmem:[#allocation8 + $0xaf0] sm:$0xff]
        %v2675 = vld [vmem:[#allocation8 + $0xaf8] sm:$0xff]
        %v2676 = vld [vmem:[#allocation8 + $0xb00] sm:$0xff]
        %v2677 = vld [vmem:[#allocation8 + $0xb08] sm:$0xff]
        %v2678 = vld [vmem:[#allocation8 + $0xb10] sm:$0xff]
        %v2679 = vld [vmem:[#allocation8 + $0xb18] sm:$0xff]
        %v2680 = vld [vmem:[#allocation8 + $0xb20] sm:$0xff]
        %v2681 = vld [vmem:[#allocation8 + $0xb28] sm:$0xff]
        %v2682 = vld [vmem:[#allocation8 + $0xb30] sm:$0xff]
        %v2683 = vld [vmem:[#allocation8 + $0xb38] sm:$0xff]
        %v2684 = vld [vmem:[#allocation8 + $0xb40] sm:$0xff]
        %v2685 = vld [vmem:[#allocation8 + $0xb48] sm:$0xff]
        %v2686 = vld [vmem:[#allocation8 + $0xb50] sm:$0xff]
        %v2687 = vld [vmem:[#allocation8 + $0xb58] sm:$0xff]
        %v2688 = vld [vmem:[#allocation8 + $0xb60] sm:$0xff]
        %v2689 = vld [vmem:[#allocation8 + $0xb68] sm:$0xff]
        %v2690 = vld [vmem:[#allocation8 + $0xb70] sm:$0xff]
        %v2691 = vld [vmem:[#allocation8 + $0xb78] sm:$0xff]
        %v2692 = vld [vmem:[#allocation8 + $0xb80] sm:$0xff]
        %v2693 = vld [vmem:[#allocation8 + $0xb88] sm:$0xff]
        %v2694 = vld [vmem:[#allocation8 + $0xb90] sm:$0xff]
        %v2695 = vld [vmem:[#allocation8 + $0xb98] sm:$0xff]
        %v2696 = vld [vmem:[#allocation8 + $0xba0] sm:$0xff]
        %v2697 = vld [vmem:[#allocation8 + $0xba8] sm:$0xff]
        %v2698 = vld [vmem:[#allocation8 + $0xbb0] sm:$0xff]
        %v2699 = vld [vmem:[#allocation8 + $0xbb8] sm:$0xff]
        %v2700 = vld [vmem:[#allocation8 + $0xbc0] sm:$0xff]
        %v2701 = vld [vmem:[#allocation8 + $0xbc8] sm:$0xff]
        %v2702 = vld [vmem:[#allocation8 + $0xbd0] sm:$0xff]
        %v2703 = vld [vmem:[#allocation8 + $0xbd8] sm:$0xff]
        %v2704 = vld [vmem:[#allocation8 + $0xbe0] sm:$0xff]
        %v2705 = vld [vmem:[#allocation8 + $0xbe8] sm:$0xff]
        %v2706 = vld [vmem:[#allocation8 + $0xbf0] sm:$0xff]
        %v2707 = vld [vmem:[#allocation8 + $0xbf8] sm:$0xff]
        %v2708 = vld [vmem:[#allocation8 + $0xc00] sm:$0xff]
        %v2709 = vld [vmem:[#allocation8 + $0xc08] sm:$0xff]
        %v2710 = vld [vmem:[#allocation8 + $0xc10] sm:$0xff]
        %v2711 = vld [vmem:[#allocation8 + $0xc18] sm:$0xff]
        %v2712 = vld [vmem:[#allocation8 + $0xc20] sm:$0xff]
        %v2713 = vld [vmem:[#allocation8 + $0xc28] sm:$0xff]
        %v2714 = vld [vmem:[#allocation8 + $0xc30] sm:$0xff]
        %v2715 = vld [vmem:[#allocation8 + $0xc38] sm:$0xff]
        %v2716 = vld [vmem:[#allocation8 + $0xc40] sm:$0xff]
        %v2717 = vld [vmem:[#allocation8 + $0xc48] sm:$0xff]
        %v2718 = vld [vmem:[#allocation8 + $0xc50] sm:$0xff]
        %v2719 = vld [vmem:[#allocation8 + $0xc58] sm:$0xff]
        %v2720 = vld [vmem:[#allocation8 + $0xc60] sm:$0xff]
        %v2721 = vld [vmem:[#allocation8 + $0xc68] sm:$0xff]
        %v2722 = vld [vmem:[#allocation8 + $0xc70] sm:$0xff]
        %v2723 = vld [vmem:[#allocation8 + $0xc78] sm:$0xff]
        %v2724 = vld [vmem:[#allocation8 + $0xc80] sm:$0xff]
        %v2725 = vld [vmem:[#allocation8 + $0xc88] sm:$0xff]
        %v2726 = vld [vmem:[#allocation8 + $0xc90] sm:$0xff]
        %v2727 = vld [vmem:[#allocation8 + $0xc98] sm:$0xff]
        %v2728 = vld [vmem:[#allocation8 + $0xca0] sm:$0xff]
        %v2729 = vld [vmem:[#allocation8 + $0xca8] sm:$0xff]
        %v2730 = vld [vmem:[#allocation8 + $0xcb0] sm:$0xff]
        %v2731 = vld [vmem:[#allocation8 + $0xcb8] sm:$0xff]
        %v2732 = vld [vmem:[#allocation8 + $0xcc0] sm:$0xff]
        %v2733 = vld [vmem:[#allocation8 + $0xcc8] sm:$0xff]
        %v2734 = vld [vmem:[#allocation8 + $0xcd0] sm:$0xff]
        %v2735 = vld [vmem:[#allocation8 + $0xcd8] sm:$0xff]
        %v2736 = vld [vmem:[#allocation8 + $0xce0] sm:$0xff]
        %v2737 = vld [vmem:[#allocation8 + $0xce8] sm:$0xff]
        %v2738 = vld [vmem:[#allocation8 + $0xcf0] sm:$0xff]
        %v2739 = vld [vmem:[#allocation8 + $0xcf8] sm:$0xff]
        %v2740 = vld [vmem:[#allocation8 + $0xd00] sm:$0xff]
        %v2741 = vld [vmem:[#allocation8 + $0xd08] sm:$0xff]
        %v2742 = vld [vmem:[#allocation8 + $0xd10] sm:$0xff]
        %v2743 = vld [vmem:[#allocation8 + $0xd18] sm:$0xff]
        %v2744 = vld [vmem:[#allocation8 + $0xd20] sm:$0xff]
        %v2745 = vld [vmem:[#allocation8 + $0xd28] sm:$0xff]
        %v2746 = vld [vmem:[#allocation8 + $0xd30] sm:$0xff]
        %v2747 = vld [vmem:[#allocation8 + $0xd38] sm:$0xff]
        %v2748 = vld [vmem:[#allocation8 + $0xd40] sm:$0xff]
        %v2749 = vld [vmem:[#allocation8 + $0xd48] sm:$0xff]
        %v2750 = vld [vmem:[#allocation8 + $0xd50] sm:$0xff]
        %v2751 = vld [vmem:[#allocation8 + $0xd58] sm:$0xff]
        %v2752 = vld [vmem:[#allocation8 + $0xd60] sm:$0xff]
        %v2753 = vld [vmem:[#allocation8 + $0xd68] sm:$0xff]
        %v2754 = vld [vmem:[#allocation8 + $0xd70] sm:$0xff]
        %v2755 = vld [vmem:[#allocation8 + $0xd78] sm:$0xff]
        %v2756 = vld [vmem:[#allocation8 + $0xd80] sm:$0xff]
        %v2757 = vld [vmem:[#allocation8 + $0xd88] sm:$0xff]
        %v2758 = vld [vmem:[#allocation8 + $0xd90] sm:$0xff]
        %v2759 = vld [vmem:[#allocation8 + $0xd98] sm:$0xff]
        %v2760 = vld [vmem:[#allocation8 + $0xda0] sm:$0xff]
        %v2761 = vld [vmem:[#allocation8 + $0xda8] sm:$0xff]
        %v2762 = vld [vmem:[#allocation8 + $0xdb0] sm:$0xff]
        %v2763 = vld [vmem:[#allocation8 + $0xdb8] sm:$0xff]
        %v2764 = vld [vmem:[#allocation8 + $0xdc0] sm:$0xff]
        %v2765 = vld [vmem:[#allocation8 + $0xdc8] sm:$0xff]
        %v2766 = vld [vmem:[#allocation8 + $0xdd0] sm:$0xff]
        %v2767 = vld [vmem:[#allocation8 + $0xdd8] sm:$0xff]
        %v2768 = vld [vmem:[#allocation8 + $0xde0] sm:$0xff]
        %v2769 = vld [vmem:[#allocation8 + $0xde8] sm:$0xff]
        %v2770 = vld [vmem:[#allocation8 + $0xdf0] sm:$0xff]
        %v2771 = vld [vmem:[#allocation8 + $0xdf8] sm:$0xff]
        %v2772 = vld [vmem:[#allocation8 + $0xe00] sm:$0xff]
        %v2773 = vld [vmem:[#allocation8 + $0xe08] sm:$0xff]
        %v2774 = vld [vmem:[#allocation8 + $0xe10] sm:$0xff]
        %v2775 = vld [vmem:[#allocation8 + $0xe18] sm:$0xff]
        %v2776 = vld [vmem:[#allocation8 + $0xe20] sm:$0xff]
        %v2777 = vld [vmem:[#allocation8 + $0xe28] sm:$0xff]
        %v2778 = vld [vmem:[#allocation8 + $0xe30] sm:$0xff]
        %v2779 = vld [vmem:[#allocation8 + $0xe38] sm:$0xff]
        %v2780 = vld [vmem:[#allocation8 + $0xe40] sm:$0xff]
        %v2781 = vld [vmem:[#allocation8 + $0xe48] sm:$0xff]
        %v2782 = vld [vmem:[#allocation8 + $0xe50] sm:$0xff]
        %v2783 = vld [vmem:[#allocation8 + $0xe58] sm:$0xff]
        %v2784 = vld [vmem:[#allocation8 + $0xe60] sm:$0xff]
        %v2785 = vld [vmem:[#allocation8 + $0xe68] sm:$0xff]
        %v2786 = vld [vmem:[#allocation8 + $0xe70] sm:$0xff]
        %v2787 = vld [vmem:[#allocation8 + $0xe78] sm:$0xff]
        %v2788 = vld [vmem:[#allocation8 + $0xe80] sm:$0xff]
        %v2789 = vld [vmem:[#allocation8 + $0xe88] sm:$0xff]
        %v2790 = vld [vmem:[#allocation8 + $0xe90] sm:$0xff]
        %v2791 = vld [vmem:[#allocation8 + $0xe98] sm:$0xff]
        %v2792 = vld [vmem:[#allocation8 + $0xea0] sm:$0xff]
        %v2793 = vld [vmem:[#allocation8 + $0xea8] sm:$0xff]
        %v2794 = vld [vmem:[#allocation8 + $0xeb0] sm:$0xff]
        %v2795 = vld [vmem:[#allocation8 + $0xeb8] sm:$0xff]
        %v2796 = vld [vmem:[#allocation8 + $0xec0] sm:$0xff]
        %v2797 = vld [vmem:[#allocation8 + $0xec8] sm:$0xff]
        %v2798 = vld [vmem:[#allocation8 + $0xed0] sm:$0xff]
        %v2799 = vld [vmem:[#allocation8 + $0xed8] sm:$0xff]
        %v2800 = vld [vmem:[#allocation8 + $0xee0] sm:$0xff]
        %v2801 = vld [vmem:[#allocation8 + $0xee8] sm:$0xff]
        %v2802 = vld [vmem:[#allocation8 + $0xef0] sm:$0xff]
        %v2803 = vld [vmem:[#allocation8 + $0xef8] sm:$0xff]
        %v2804 = vld [vmem:[#allocation8 + $0xf00] sm:$0xff]
        %v2805 = vld [vmem:[#allocation8 + $0xf08] sm:$0xff]
        %v2806 = vld [vmem:[#allocation8 + $0xf10] sm:$0xff]
        %v2807 = vld [vmem:[#allocation8 + $0xf18] sm:$0xff]
        %v2808 = vld [vmem:[#allocation8 + $0xf20] sm:$0xff]
        %v2809 = vld [vmem:[#allocation8 + $0xf28] sm:$0xff]
        %v2810 = vld [vmem:[#allocation8 + $0xf30] sm:$0xff]
        %v2811 = vld [vmem:[#allocation8 + $0xf38] sm:$0xff]
        %v2812 = vld [vmem:[#allocation8 + $0xf40] sm:$0xff]
        %v2813 = vld [vmem:[#allocation8 + $0xf48] sm:$0xff]
        %v2814 = vld [vmem:[#allocation8 + $0xf50] sm:$0xff]
        %v2815 = vld [vmem:[#allocation8 + $0xf58] sm:$0xff]
        %v2816 = vld [vmem:[#allocation8 + $0xf60] sm:$0xff]
        %v2817 = vld [vmem:[#allocation8 + $0xf68] sm:$0xff]
        %v2818 = vld [vmem:[#allocation8 + $0xf70] sm:$0xff]
        %v2819 = vld [vmem:[#allocation8 + $0xf78] sm:$0xff]
        %v2820 = vld [vmem:[#allocation8 + $0xf80] sm:$0xff]
        %v2821 = vld [vmem:[#allocation8 + $0xf88] sm:$0xff]
        %v2822 = vld [vmem:[#allocation8 + $0xf90] sm:$0xff]
        %v2823 = vld [vmem:[#allocation8 + $0xf98] sm:$0xff]
        %v2824 = vld [vmem:[#allocation8 + $0xfa0] sm:$0xff]
        %v2825 = vld [vmem:[#allocation8 + $0xfa8] sm:$0xff]
        %v2826 = vld [vmem:[#allocation8 + $0xfb0] sm:$0xff]
        %v2827 = vld [vmem:[#allocation8 + $0xfb8] sm:$0xff]
        %v2828 = vld [vmem:[#allocation8 + $0xfc0] sm:$0xff]
        %v2829 = vld [vmem:[#allocation8 + $0xfc8] sm:$0xff]
        %v2830 = vld [vmem:[#allocation8 + $0xfd0] sm:$0xff]
        %v2831 = vld [vmem:[#allocation8 + $0xfd8] sm:$0xff]
        %v2832 = vld [vmem:[#allocation8 + $0xfe0] sm:$0xff]
        %v2833 = vld [vmem:[#allocation8 + $0xfe8] sm:$0xff]
        %v2834 = vld [vmem:[#allocation8 + $0xff0] sm:$0xff]
        %v2835 = vld [vmem:[#allocation8 + $0xff8] sm:$0xff]
        %v2836 = vld [vmem:[#allocation8 + $0x1000] sm:$0xff]
        %v2837 = vld [vmem:[#allocation8 + $0x1008] sm:$0xff]
        %v2838 = vld [vmem:[#allocation8 + $0x1010] sm:$0xff]
        %v2839 = vld [vmem:[#allocation8 + $0x1018] sm:$0xff]
        %v2840 = vld [vmem:[#allocation8 + $0x1020] sm:$0xff]
        %v2841 = vld [vmem:[#allocation8 + $0x1028] sm:$0xff]
        %v2842 = vld [vmem:[#allocation8 + $0x1030] sm:$0xff]
        %v2843 = vld [vmem:[#allocation8 + $0x1038] sm:$0xff]
        %v2844 = vld [vmem:[#allocation8 + $0x1040] sm:$0xff]
        %v2845 = vld [vmem:[#allocation8 + $0x1048] sm:$0xff]
        %v2846 = vld [vmem:[#allocation8 + $0x1050] sm:$0xff]
        %v2847 = vld [vmem:[#allocation8 + $0x1058] sm:$0xff]
        %v2848 = vld [vmem:[#allocation8 + $0x1060] sm:$0xff]
        %v2849 = vld [vmem:[#allocation8 + $0x1068] sm:$0xff]
        %v2850 = vld [vmem:[#allocation8 + $0x1070] sm:$0xff]
        %v2851 = vld [vmem:[#allocation8 + $0x1078] sm:$0xff]
        %v2852 = vld [vmem:[#allocation8 + $0x1080] sm:$0xff]
        %v2853 = vld [vmem:[#allocation8 + $0x1088] sm:$0xff]
        %v2854 = vld [vmem:[#allocation8 + $0x1090] sm:$0xff]
        %v2855 = vld [vmem:[#allocation8 + $0x1098] sm:$0xff]
        %v2856 = vld [vmem:[#allocation8 + $0x10a0] sm:$0xff]
        %v2857 = vld [vmem:[#allocation8 + $0x10a8] sm:$0xff]
        %v2858 = vld [vmem:[#allocation8 + $0x10b0] sm:$0xff]
        %v2859 = vld [vmem:[#allocation8 + $0x10b8] sm:$0xff]
        %v2860 = vld [vmem:[#allocation8 + $0x10c0] sm:$0xff]
        %v2861 = vld [vmem:[#allocation8 + $0x10c8] sm:$0xff]
        %v2862 = vld [vmem:[#allocation8 + $0x10d0] sm:$0xff]
        %v2863 = vld [vmem:[#allocation8 + $0x10d8] sm:$0xff]
        %v2864 = vld [vmem:[#allocation8 + $0x10e0] sm:$0xff]
        %v2865 = vld [vmem:[#allocation8 + $0x10e8] sm:$0xff]
        %v2866 = vld [vmem:[#allocation8 + $0x10f0] sm:$0xff]
        %v2867 = vld [vmem:[#allocation8 + $0x10f8] sm:$0xff]
        %v2868 = vld [vmem:[#allocation8 + $0x1100] sm:$0xff]
        %v2869 = vld [vmem:[#allocation8 + $0x1108] sm:$0xff]
        %v2870 = vld [vmem:[#allocation8 + $0x1110] sm:$0xff]
        %v2871 = vld [vmem:[#allocation8 + $0x1118] sm:$0xff]
        %v2872 = vld [vmem:[#allocation8 + $0x1120] sm:$0xff]
        %v2873 = vld [vmem:[#allocation8 + $0x1128] sm:$0xff]
        %v2874 = vld [vmem:[#allocation8 + $0x1130] sm:$0xff]
        %v2875 = vld [vmem:[#allocation8 + $0x1138] sm:$0xff]
        %v2876 = vld [vmem:[#allocation8 + $0x1140] sm:$0xff]
        %v2877 = vld [vmem:[#allocation8 + $0x1148] sm:$0xff]
        %v2878 = vld [vmem:[#allocation8 + $0x1150] sm:$0xff]
        %v2879 = vld [vmem:[#allocation8 + $0x1158] sm:$0xff]
        %v2880 = vld [vmem:[#allocation8 + $0x1160] sm:$0xff]
        %v2881 = vld [vmem:[#allocation8 + $0x1168] sm:$0xff]
        %v2882 = vld [vmem:[#allocation8 + $0x1170] sm:$0xff]
        %v2883 = vld [vmem:[#allocation8 + $0x1178] sm:$0xff]
        %v2884 = vld [vmem:[#allocation8 + $0x1180] sm:$0xff]
        %v2885 = vld [vmem:[#allocation8 + $0x1188] sm:$0xff]
        %v2886 = vld [vmem:[#allocation8 + $0x1190] sm:$0xff]
        %v2887 = vld [vmem:[#allocation8 + $0x1198] sm:$0xff]
        %v2888 = vld [vmem:[#allocation8 + $0x11a0] sm:$0xff]
        %v2889 = vld [vmem:[#allocation8 + $0x11a8] sm:$0xff]
        %v2890 = vld [vmem:[#allocation8 + $0x11b0] sm:$0xff]
        %v2891 = vld [vmem:[#allocation8 + $0x11b8] sm:$0xff]
        %v2892 = vld [vmem:[#allocation8 + $0x11c0] sm:$0xff]
        %v2893 = vld [vmem:[#allocation8 + $0x11c8] sm:$0xff]
        %v2894 = vld [vmem:[#allocation8 + $0x11d0] sm:$0xff]
        %v2895 = vld [vmem:[#allocation8 + $0x11d8] sm:$0xff]
        %v2896 = vld [vmem:[#allocation8 + $0x11e0] sm:$0xff]
        %v2897 = vld [vmem:[#allocation8 + $0x11e8] sm:$0xff]
        %v2898 = vld [vmem:[#allocation8 + $0x11f0] sm:$0xff]
        %v2899 = vld [vmem:[#allocation8 + $0x11f8] sm:$0xff]
        %v2900 = vld [vmem:[#allocation8 + $0x1200] sm:$0xff]
        %v2901 = vld [vmem:[#allocation8 + $0x1208] sm:$0xff]
        %v2902 = vld [vmem:[#allocation8 + $0x1210] sm:$0xff]
        %v2903 = vld [vmem:[#allocation8 + $0x1218] sm:$0xff]
        %v2904 = vld [vmem:[#allocation8 + $0x1220] sm:$0xff]
        %v2905 = vld [vmem:[#allocation8 + $0x1228] sm:$0xff]
        %v2906 = vld [vmem:[#allocation8 + $0x1230] sm:$0xff]
        %v2907 = vld [vmem:[#allocation8 + $0x1238] sm:$0xff]
        %v2908 = vld [vmem:[#allocation8 + $0x1240] sm:$0xff]
        %v2909 = vld [vmem:[#allocation8 + $0x1248] sm:$0xff]
        %v2910 = vld [vmem:[#allocation8 + $0x1250] sm:$0xff]
        %v2911 = vld [vmem:[#allocation8 + $0x1258] sm:$0xff]
        %v2912 = vld [vmem:[#allocation8 + $0x1260] sm:$0xff]
        %v2913 = vld [vmem:[#allocation8 + $0x1268] sm:$0xff]
        %v2914 = vld [vmem:[#allocation8 + $0x1270] sm:$0xff]
        %v2915 = vld [vmem:[#allocation8 + $0x1278] sm:$0xff]
        %v2916 = vld [vmem:[#allocation8 + $0x1280] sm:$0xff]
        %v2917 = vld [vmem:[#allocation8 + $0x1288] sm:$0xff]
        %v2918 = vld [vmem:[#allocation8 + $0x1290] sm:$0xff]
        %v2919 = vld [vmem:[#allocation8 + $0x1298] sm:$0xff]
        %v2920 = vld [vmem:[#allocation8 + $0x12a0] sm:$0xff]
        %v2921 = vld [vmem:[#allocation8 + $0x12a8] sm:$0xff]
        %v2922 = vld [vmem:[#allocation8 + $0x12b0] sm:$0xff]
        %v2923 = vld [vmem:[#allocation8 + $0x12b8] sm:$0xff]
        %v2924 = vld [vmem:[#allocation8 + $0x12c0] sm:$0xff]
        %v2925 = vld [vmem:[#allocation8 + $0x12c8] sm:$0xff]
        %v2926 = vld [vmem:[#allocation8 + $0x12d0] sm:$0xff]
        %v2927 = vld [vmem:[#allocation8 + $0x12d8] sm:$0xff]
        %v2928 = vld [vmem:[#allocation8 + $0x12e0] sm:$0xff]
        %v2929 = vld [vmem:[#allocation8 + $0x12e8] sm:$0xff]
        %v2930 = vld [vmem:[#allocation8 + $0x12f0] sm:$0xff]
        %v2931 = vld [vmem:[#allocation8 + $0x12f8] sm:$0xff]
        %v2932 = vld [vmem:[#allocation8 + $0x1300] sm:$0xff]
        %v2933 = vld [vmem:[#allocation8 + $0x1308] sm:$0xff]
        %v2934 = vld [vmem:[#allocation8 + $0x1310] sm:$0xff]
        %v2935 = vld [vmem:[#allocation8 + $0x1318] sm:$0xff]
        %v2936 = vld [vmem:[#allocation8 + $0x1320] sm:$0xff]
        %v2937 = vld [vmem:[#allocation8 + $0x1328] sm:$0xff]
        %v2938 = vld [vmem:[#allocation8 + $0x1330] sm:$0xff]
        %v2939 = vld [vmem:[#allocation8 + $0x1338] sm:$0xff]
        %v2940 = vld [vmem:[#allocation8 + $0x1340] sm:$0xff]
        %v2941 = vld [vmem:[#allocation8 + $0x1348] sm:$0xff]
        %v2942 = vld [vmem:[#allocation8 + $0x1350] sm:$0xff]
        %v2943 = vld [vmem:[#allocation8 + $0x1358] sm:$0xff]
        %v2944 = vld [vmem:[#allocation8 + $0x1360] sm:$0xff]
        %v2945 = vld [vmem:[#allocation8 + $0x1368] sm:$0xff]
        %v2946 = vld [vmem:[#allocation8 + $0x1370] sm:$0xff]
        %v2947 = vld [vmem:[#allocation8 + $0x1378] sm:$0xff]
        %v2948 = vld [vmem:[#allocation8 + $0x1380] sm:$0xff]
        %v2949 = vld [vmem:[#allocation8 + $0x1388] sm:$0xff]
        %v2950 = vld [vmem:[#allocation8 + $0x1390] sm:$0xff]
        %v2951 = vld [vmem:[#allocation8 + $0x1398] sm:$0xff]
        %v2952 = vld [vmem:[#allocation8 + $0x13a0] sm:$0xff]
        %v2953 = vld [vmem:[#allocation8 + $0x13a8] sm:$0xff]
        %v2954 = vld [vmem:[#allocation8 + $0x13b0] sm:$0xff]
        %v2955 = vld [vmem:[#allocation8 + $0x13b8] sm:$0xff]
        %v2956 = vld [vmem:[#allocation8 + $0x13c0] sm:$0xff]
        %v2957 = vld [vmem:[#allocation8 + $0x13c8] sm:$0xff]
        %v2958 = vld [vmem:[#allocation8 + $0x13d0] sm:$0xff]
        %v2959 = vld [vmem:[#allocation8 + $0x13d8] sm:$0xff]
        %v2960 = vld [vmem:[#allocation8 + $0x13e0] sm:$0xff]
        %v2961 = vld [vmem:[#allocation8 + $0x13e8] sm:$0xff]
        %v2962 = vld [vmem:[#allocation8 + $0x13f0] sm:$0xff]
        %v2963 = vld [vmem:[#allocation8 + $0x13f8] sm:$0xff]
        %v2964 = vld [vmem:[#allocation8 + $0x1400] sm:$0xff]
        %v2965 = vld [vmem:[#allocation8 + $0x1408] sm:$0xff]
        %v2966 = vld [vmem:[#allocation8 + $0x1410] sm:$0xff]
        %v2967 = vld [vmem:[#allocation8 + $0x1418] sm:$0xff]
        %v2968 = vld [vmem:[#allocation8 + $0x1420] sm:$0xff]
        %v2969 = vld [vmem:[#allocation8 + $0x1428] sm:$0xff]
        %v2970 = vld [vmem:[#allocation8 + $0x1430] sm:$0xff]
        %v2971 = vld [vmem:[#allocation8 + $0x1438] sm:$0xff]
        %v2972 = vld [vmem:[#allocation8 + $0x1440] sm:$0xff]
        %v2973 = vld [vmem:[#allocation8 + $0x1448] sm:$0xff]
        %v2974 = vld [vmem:[#allocation8 + $0x1450] sm:$0xff]
        %v2975 = vld [vmem:[#allocation8 + $0x1458] sm:$0xff]
        %v2976 = vld [vmem:[#allocation8 + $0x1460] sm:$0xff]
        %v2977 = vld [vmem:[#allocation8 + $0x1468] sm:$0xff]
        %v2978 = vld [vmem:[#allocation8 + $0x1470] sm:$0xff]
        %v2979 = vld [vmem:[#allocation8 + $0x1478] sm:$0xff]
        %v2980 = vld [vmem:[#allocation8 + $0x1480] sm:$0xff]
        %v2981 = vld [vmem:[#allocation8 + $0x1488] sm:$0xff]
        %v2982 = vld [vmem:[#allocation8 + $0x1490] sm:$0xff]
        %v2983 = vld [vmem:[#allocation8 + $0x1498] sm:$0xff]
        %v2984 = vld [vmem:[#allocation8 + $0x14a0] sm:$0xff]
        %v2985 = vld [vmem:[#allocation8 + $0x14a8] sm:$0xff]
        %v2986 = vld [vmem:[#allocation8 + $0x14b0] sm:$0xff]
        %v2987 = vld [vmem:[#allocation8 + $0x14b8] sm:$0xff]
        %v2988 = vld [vmem:[#allocation8 + $0x14c0] sm:$0xff]
        %v2989 = vld [vmem:[#allocation8 + $0x14c8] sm:$0xff]
        %v2990 = vld [vmem:[#allocation8 + $0x14d0] sm:$0xff]
        %v2991 = vld [vmem:[#allocation8 + $0x14d8] sm:$0xff]
        %v2992 = vld [vmem:[#allocation8 + $0x14e0] sm:$0xff]
        %v2993 = vld [vmem:[#allocation8 + $0x14e8] sm:$0xff]
        %v2994 = vld [vmem:[#allocation8 + $0x14f0] sm:$0xff]
        %v2995 = vld [vmem:[#allocation8 + $0x14f8] sm:$0xff]
        %v2996 = vld [vmem:[#allocation8 + $0x1500] sm:$0xff]
        %v2997 = vld [vmem:[#allocation8 + $0x1508] sm:$0xff]
        %v2998 = vld [vmem:[#allocation8 + $0x1510] sm:$0xff]
        %v2999 = vld [vmem:[#allocation8 + $0x1518] sm:$0xff]
        %v3000 = vld [vmem:[#allocation8 + $0x1520] sm:$0xff]
        %v3001 = vld [vmem:[#allocation8 + $0x1528] sm:$0xff]
        %v3002 = vld [vmem:[#allocation8 + $0x1530] sm:$0xff]
        %v3003 = vld [vmem:[#allocation8 + $0x1538] sm:$0xff]
        %v3004 = vld [vmem:[#allocation8 + $0x1540] sm:$0xff]
        %v3005 = vld [vmem:[#allocation8 + $0x1548] sm:$0xff]
        %v3006 = vld [vmem:[#allocation8 + $0x1550] sm:$0xff]
        %v3007 = vld [vmem:[#allocation8 + $0x1558] sm:$0xff]
        %v3008 = vld [vmem:[#allocation8 + $0x1560] sm:$0xff]
        %v3009 = vld [vmem:[#allocation8 + $0x1568] sm:$0xff]
        %v3010 = vld [vmem:[#allocation8 + $0x1570] sm:$0xff]
        %v3011 = vld [vmem:[#allocation8 + $0x1578] sm:$0xff]
        %v3012 = vld [vmem:[#allocation8 + $0x1580] sm:$0xff]
        %v3013 = vld [vmem:[#allocation8 + $0x1588] sm:$0xff]
        %v3014 = vld [vmem:[#allocation8 + $0x1590] sm:$0xff]
        %v3015 = vld [vmem:[#allocation8 + $0x1598] sm:$0xff]
        %v3016 = vld [vmem:[#allocation8 + $0x15a0] sm:$0xff]
        %v3017 = vld [vmem:[#allocation8 + $0x15a8] sm:$0xff]
        %v3018 = vld [vmem:[#allocation8 + $0x15b0] sm:$0xff]
        %v3019 = vld [vmem:[#allocation8 + $0x15b8] sm:$0xff]
        %v3020 = vld [vmem:[#allocation8 + $0x15c0] sm:$0xff]
        %v3021 = vld [vmem:[#allocation8 + $0x15c8] sm:$0xff]
        %v3022 = vld [vmem:[#allocation8 + $0x15d0] sm:$0xff]
        %v3023 = vld [vmem:[#allocation8 + $0x15d8] sm:$0xff]
        %v3024 = vld [vmem:[#allocation8 + $0x15e0] sm:$0xff]
        %v3025 = vld [vmem:[#allocation8 + $0x15e8] sm:$0xff]
        %v3026 = vld [vmem:[#allocation8 + $0x15f0] sm:$0xff]
        %v3027 = vld [vmem:[#allocation8 + $0x15f8] sm:$0xff]
        %v3028 = vld [vmem:[#allocation8 + $0x1600] sm:$0xff]
        %v3029 = vld [vmem:[#allocation8 + $0x1608] sm:$0xff]
        %v3030 = vld [vmem:[#allocation8 + $0x1610] sm:$0xff]
        %v3031 = vld [vmem:[#allocation8 + $0x1618] sm:$0xff]
        %v3032 = vld [vmem:[#allocation8 + $0x1620] sm:$0xff]
        %v3033 = vld [vmem:[#allocation8 + $0x1628] sm:$0xff]
        %v3034 = vld [vmem:[#allocation8 + $0x1630] sm:$0xff]
        %v3035 = vld [vmem:[#allocation8 + $0x1638] sm:$0xff]
        %v3036 = vld [vmem:[#allocation8 + $0x1640] sm:$0xff]
        %v3037 = vld [vmem:[#allocation8 + $0x1648] sm:$0xff]
        %v3038 = vld [vmem:[#allocation8 + $0x1650] sm:$0xff]
        %v3039 = vld [vmem:[#allocation8 + $0x1658] sm:$0xff]
        %v3040 = vld [vmem:[#allocation8 + $0x1660] sm:$0xff]
        %v3041 = vld [vmem:[#allocation8 + $0x1668] sm:$0xff]
        %v3042 = vld [vmem:[#allocation8 + $0x1670] sm:$0xff]
        %v3043 = vld [vmem:[#allocation8 + $0x1678] sm:$0xff]
        %v3044 = vld [vmem:[#allocation8 + $0x1680] sm:$0xff]
        %v3045 = vld [vmem:[#allocation8 + $0x1688] sm:$0xff]
        %v3046 = vld [vmem:[#allocation8 + $0x1690] sm:$0xff]
        %v3047 = vld [vmem:[#allocation8 + $0x1698] sm:$0xff]
        %v3048 = vld [vmem:[#allocation8 + $0x16a0] sm:$0xff]
        %v3049 = vld [vmem:[#allocation8 + $0x16a8] sm:$0xff]
        %v3050 = vld [vmem:[#allocation8 + $0x16b0] sm:$0xff]
        %v3051 = vld [vmem:[#allocation8 + $0x16b8] sm:$0xff]
        %v3052 = vld [vmem:[#allocation8 + $0x16c0] sm:$0xff]
        %v3053 = vld [vmem:[#allocation8 + $0x16c8] sm:$0xff]
        %v3054 = vld [vmem:[#allocation8 + $0x16d0] sm:$0xff]
        %v3055 = vld [vmem:[#allocation8 + $0x16d8] sm:$0xff]
        %v3056 = vld [vmem:[#allocation8 + $0x16e0] sm:$0xff]
        %v3057 = vld [vmem:[#allocation8 + $0x16e8] sm:$0xff]
        %v3058 = vld [vmem:[#allocation8 + $0x16f0] sm:$0xff]
        %v3059 = vld [vmem:[#allocation8 + $0x16f8] sm:$0xff]
        %v3060 = vld [vmem:[#allocation8 + $0x1700] sm:$0xff]
        %v3061 = vld [vmem:[#allocation8 + $0x1708] sm:$0xff]
        %v3062 = vld [vmem:[#allocation8 + $0x1710] sm:$0xff]
        %v3063 = vld [vmem:[#allocation8 + $0x1718] sm:$0xff]
        %v3064 = vld [vmem:[#allocation8 + $0x1720] sm:$0xff]
        %v3065 = vld [vmem:[#allocation8 + $0x1728] sm:$0xff]
        %v3066 = vld [vmem:[#allocation8 + $0x1730] sm:$0xff]
        %v3067 = vld [vmem:[#allocation8 + $0x1738] sm:$0xff]
        %v3068 = vld [vmem:[#allocation8 + $0x1740] sm:$0xff]
        %v3069 = vld [vmem:[#allocation8 + $0x1748] sm:$0xff]
        %v3070 = vld [vmem:[#allocation8 + $0x1750] sm:$0xff]
        %v3071 = vld [vmem:[#allocation8 + $0x1758] sm:$0xff]
        %v3072 = vld [vmem:[#allocation8 + $0x1760] sm:$0xff]
        %v3073 = vld [vmem:[#allocation8 + $0x1768] sm:$0xff]
        %v3074 = vld [vmem:[#allocation8 + $0x1770] sm:$0xff]
        %v3075 = vld [vmem:[#allocation8 + $0x1778] sm:$0xff]
        %v3076 = vld [vmem:[#allocation8 + $0x1780] sm:$0xff]
        %v3077 = vld [vmem:[#allocation8 + $0x1788] sm:$0xff]
        %v3078 = vld [vmem:[#allocation8 + $0x1790] sm:$0xff]
        %v3079 = vld [vmem:[#allocation8 + $0x1798] sm:$0xff]
        %v3080 = vld [vmem:[#allocation8 + $0x17a0] sm:$0xff]
        %v3081 = vld [vmem:[#allocation8 + $0x17a8] sm:$0xff]
        %v3082 = vld [vmem:[#allocation8 + $0x17b0] sm:$0xff]
        %v3083 = vld [vmem:[#allocation8 + $0x17b8] sm:$0xff]
        %v3084 = vld [vmem:[#allocation8 + $0x17c0] sm:$0xff]
        %v3085 = vld [vmem:[#allocation8 + $0x17c8] sm:$0xff]
        %v3086 = vld [vmem:[#allocation8 + $0x17d0] sm:$0xff]
        %v3087 = vld [vmem:[#allocation8 + $0x17d8] sm:$0xff]
        %v3088 = vld [vmem:[#allocation8 + $0x17e0] sm:$0xff]
        %v3089 = vld [vmem:[#allocation8 + $0x17e8] sm:$0xff]
        %v3090 = vld [vmem:[#allocation8 + $0x17f0] sm:$0xff]
        %v3091 = vld [vmem:[#allocation8 + $0x17f8] sm:$0xff]
        %v3092 = vld [vmem:[#allocation8 + $0x1800] sm:$0xff]
        %v3093 = vld [vmem:[#allocation8 + $0x1808] sm:$0xff]
        %v3094 = vld [vmem:[#allocation8 + $0x1810] sm:$0xff]
        %v3095 = vld [vmem:[#allocation8 + $0x1818] sm:$0xff]
        %v3096 = vld [vmem:[#allocation8 + $0x1820] sm:$0xff]
        %v3097 = vld [vmem:[#allocation8 + $0x1828] sm:$0xff]
        %v3098 = vld [vmem:[#allocation8 + $0x1830] sm:$0xff]
        %v3099 = vld [vmem:[#allocation8 + $0x1838] sm:$0xff]
        %v3100 = vld [vmem:[#allocation8 + $0x1840] sm:$0xff]
        %v3101 = vld [vmem:[#allocation8 + $0x1848] sm:$0xff]
        %v3102 = vld [vmem:[#allocation8 + $0x1850] sm:$0xff]
        %v3103 = vld [vmem:[#allocation8 + $0x1858] sm:$0xff]
        %v3104 = vld [vmem:[#allocation8 + $0x1860] sm:$0xff]
        %v3105 = vld [vmem:[#allocation8 + $0x1868] sm:$0xff]
        %v3106 = vld [vmem:[#allocation8 + $0x1870] sm:$0xff]
        %v3107 = vld [vmem:[#allocation8 + $0x1878] sm:$0xff]
        %v3108 = vld [vmem:[#allocation8 + $0x1880] sm:$0xff]
        %v3109 = vld [vmem:[#allocation8 + $0x1888] sm:$0xff]
        %v3110 = vld [vmem:[#allocation8 + $0x1890] sm:$0xff]
        %v3111 = vld [vmem:[#allocation8 + $0x1898] sm:$0xff]
        %v3112 = vld [vmem:[#allocation8 + $0x18a0] sm:$0xff]
        %v3113 = vld [vmem:[#allocation8 + $0x18a8] sm:$0xff]
        %v3114 = vld [vmem:[#allocation8 + $0x18b0] sm:$0xff]
        %v3115 = vld [vmem:[#allocation8 + $0x18b8] sm:$0xff]
        %v3116 = vld [vmem:[#allocation8 + $0x18c0] sm:$0xff]
        %v3117 = vld [vmem:[#allocation8 + $0x18c8] sm:$0xff]
        %v3118 = vld [vmem:[#allocation8 + $0x18d0] sm:$0xff]
        %v3119 = vld [vmem:[#allocation8 + $0x18d8] sm:$0xff]
        %v3120 = vld [vmem:[#allocation8 + $0x18e0] sm:$0xff]
        %v3121 = vld [vmem:[#allocation8 + $0x18e8] sm:$0xff]
        %v3122 = vld [vmem:[#allocation8 + $0x18f0] sm:$0xff]
        %v3123 = vld [vmem:[#allocation8 + $0x18f8] sm:$0xff]
        %v3124 = vld [vmem:[#allocation8 + $0x1900] sm:$0xff]
        %v3125 = vld [vmem:[#allocation8 + $0x1908] sm:$0xff]
        %v3126 = vld [vmem:[#allocation8 + $0x1910] sm:$0xff]
        %v3127 = vld [vmem:[#allocation8 + $0x1918] sm:$0xff]
        %v3128 = vld [vmem:[#allocation8 + $0x1920] sm:$0xff]
        %v3129 = vld [vmem:[#allocation8 + $0x1928] sm:$0xff]
        %v3130 = vld [vmem:[#allocation8 + $0x1930] sm:$0xff]
        %v3131 = vld [vmem:[#allocation8 + $0x1938] sm:$0xff]
        %v3132 = vld [vmem:[#allocation8 + $0x1940] sm:$0xff]
        %v3133 = vld [vmem:[#allocation8 + $0x1948] sm:$0xff]
        %v3134 = vld [vmem:[#allocation8 + $0x1950] sm:$0xff]
        %v3135 = vld [vmem:[#allocation8 + $0x1958] sm:$0xff]
        %v3136 = vld [vmem:[#allocation8 + $0x1960] sm:$0xff]
        %v3137 = vld [vmem:[#allocation8 + $0x1968] sm:$0xff]
        %v3138 = vld [vmem:[#allocation8 + $0x1970] sm:$0xff]
        %v3139 = vld [vmem:[#allocation8 + $0x1978] sm:$0xff]
        %v3140 = vld [vmem:[#allocation8 + $0x1980] sm:$0xff]
        %v3141 = vld [vmem:[#allocation8 + $0x1988] sm:$0xff]
        %v3142 = vld [vmem:[#allocation8 + $0x1990] sm:$0xff]
        %v3143 = vld [vmem:[#allocation8 + $0x1998] sm:$0xff]
        %v3144 = vld [vmem:[#allocation8 + $0x19a0] sm:$0xff]
        %v3145 = vld [vmem:[#allocation8 + $0x19a8] sm:$0xff]
        %v3146 = vld [vmem:[#allocation8 + $0x19b0] sm:$0xff]
        %v3147 = vld [vmem:[#allocation8 + $0x19b8] sm:$0xff]
        %v3148 = vld [vmem:[#allocation8 + $0x19c0] sm:$0xff]
        %v3149 = vld [vmem:[#allocation8 + $0x19c8] sm:$0xff]
        %v3150 = vld [vmem:[#allocation8 + $0x19d0] sm:$0xff]
        %v3151 = vld [vmem:[#allocation8 + $0x19d8] sm:$0xff]
        %v3152 = vld [vmem:[#allocation8 + $0x19e0] sm:$0xff]
        %v3153 = vld [vmem:[#allocation8 + $0x19e8] sm:$0xff]
        %v3154 = vld [vmem:[#allocation8 + $0x19f0] sm:$0xff]
        %v3155 = vld [vmem:[#allocation8 + $0x19f8] sm:$0xff]
        %v3156 = vld [vmem:[#allocation8 + $0x1a00] sm:$0xff]
        %v3157 = vld [vmem:[#allocation8 + $0x1a08] sm:$0xff]
        %v3158 = vld [vmem:[#allocation8 + $0x1a10] sm:$0xff]
        %v3159 = vld [vmem:[#allocation8 + $0x1a18] sm:$0xff]
        %v3160 = vld [vmem:[#allocation8 + $0x1a20] sm:$0xff]
        %v3161 = vld [vmem:[#allocation8 + $0x1a28] sm:$0xff]
        %v3162 = vld [vmem:[#allocation8 + $0x1a30] sm:$0xff]
        %v3163 = vld [vmem:[#allocation8 + $0x1a38] sm:$0xff]
        %v3164 = vld [vmem:[#allocation8 + $0x1a40] sm:$0xff]
        %v3165 = vld [vmem:[#allocation8 + $0x1a48] sm:$0xff]
        %v3166 = vld [vmem:[#allocation8 + $0x1a50] sm:$0xff]
        %v3167 = vld [vmem:[#allocation8 + $0x1a58] sm:$0xff]
        %v3168 = vld [vmem:[#allocation8 + $0x1a60] sm:$0xff]
        %v3169 = vld [vmem:[#allocation8 + $0x1a68] sm:$0xff]
        %v3170 = vld [vmem:[#allocation8 + $0x1a70] sm:$0xff]
        %v3171 = vld [vmem:[#allocation8 + $0x1a78] sm:$0xff]
        %v3172 = vld [vmem:[#allocation8 + $0x1a80] sm:$0xff]
        %v3173 = vld [vmem:[#allocation8 + $0x1a88] sm:$0xff]
        %v3174 = vld [vmem:[#allocation8 + $0x1a90] sm:$0xff]
        %v3175 = vld [vmem:[#allocation8 + $0x1a98] sm:$0xff]
        %v3176 = vld [vmem:[#allocation8 + $0x1aa0] sm:$0xff]
        %v3177 = vld [vmem:[#allocation8 + $0x1aa8] sm:$0xff]
        %v3178 = vld [vmem:[#allocation8 + $0x1ab0] sm:$0xff]
        %v3179 = vld [vmem:[#allocation8 + $0x1ab8] sm:$0xff]
        %v3180 = vld [vmem:[#allocation8 + $0x1ac0] sm:$0xff]
        %v3181 = vld [vmem:[#allocation8 + $0x1ac8] sm:$0xff]
        %v3182 = vld [vmem:[#allocation8 + $0x1ad0] sm:$0xff]
        %v3183 = vld [vmem:[#allocation8 + $0x1ad8] sm:$0xff]
        %v3184 = vld [vmem:[#allocation8 + $0x1ae0] sm:$0xff]
        %v3185 = vld [vmem:[#allocation8 + $0x1ae8] sm:$0xff]
        %v3186 = vld [vmem:[#allocation8 + $0x1af0] sm:$0xff]
        %v3187 = vld [vmem:[#allocation8 + $0x1af8] sm:$0xff]
        %v3188 = vld [vmem:[#allocation8 + $0x1b00] sm:$0xff]
        %v3189 = vld [vmem:[#allocation8 + $0x1b08] sm:$0xff]
        %v3190 = vld [vmem:[#allocation8 + $0x1b10] sm:$0xff]
        %v3191 = vld [vmem:[#allocation8 + $0x1b18] sm:$0xff]
        %v3192 = vld [vmem:[#allocation8 + $0x1b20] sm:$0xff]
        %v3193 = vld [vmem:[#allocation8 + $0x1b28] sm:$0xff]
        %v3194 = vld [vmem:[#allocation8 + $0x1b30] sm:$0xff]
        %v3195 = vld [vmem:[#allocation8 + $0x1b38] sm:$0xff]
        %v3196 = vld [vmem:[#allocation8 + $0x1b40] sm:$0xff]
        %v3197 = vld [vmem:[#allocation8 + $0x1b48] sm:$0xff]
        %v3198 = vld [vmem:[#allocation8 + $0x1b50] sm:$0xff]
        %v3199 = vld [vmem:[#allocation8 + $0x1b58] sm:$0xff]
        %v3200 = vld [vmem:[#allocation8 + $0x1b60] sm:$0xff]
        %v3201 = vld [vmem:[#allocation8 + $0x1b68] sm:$0xff]
        %v3202 = vld [vmem:[#allocation8 + $0x1b70] sm:$0xff]
        %v3203 = vld [vmem:[#allocation8 + $0x1b78] sm:$0xff]
        %v3204 = vld [vmem:[#allocation8 + $0x1b80] sm:$0xff]
        %v3205 = vld [vmem:[#allocation8 + $0x1b88] sm:$0xff]
        %v3206 = vld [vmem:[#allocation8 + $0x1b90] sm:$0xff]
        %v3207 = vld [vmem:[#allocation8 + $0x1b98] sm:$0xff]
        %v3208 = vld [vmem:[#allocation8 + $0x1ba0] sm:$0xff]
        %v3209 = vld [vmem:[#allocation8 + $0x1ba8] sm:$0xff]
        %v3210 = vld [vmem:[#allocation8 + $0x1bb0] sm:$0xff]
        %v3211 = vld [vmem:[#allocation8 + $0x1bb8] sm:$0xff]
        %v3212 = vld [vmem:[#allocation8 + $0x1bc0] sm:$0xff]
        %v3213 = vld [vmem:[#allocation8 + $0x1bc8] sm:$0xff]
        %v3214 = vld [vmem:[#allocation8 + $0x1bd0] sm:$0xff]
        %v3215 = vld [vmem:[#allocation8 + $0x1bd8] sm:$0xff]
        %v3216 = vld [vmem:[#allocation8 + $0x1be0] sm:$0xff]
        %v3217 = vld [vmem:[#allocation8 + $0x1be8] sm:$0xff]
        %v3218 = vld [vmem:[#allocation8 + $0x1bf0] sm:$0xff]
        %v3219 = vld [vmem:[#allocation8 + $0x1bf8] sm:$0xff]
        %v3220 = vld [vmem:[#allocation8 + $0x1c00] sm:$0xff]
        %v3221 = vld [vmem:[#allocation8 + $0x1c08] sm:$0xff]
        %v3222 = vld [vmem:[#allocation8 + $0x1c10] sm:$0xff]
        %v3223 = vld [vmem:[#allocation8 + $0x1c18] sm:$0xff]
        %v3224 = vld [vmem:[#allocation8 + $0x1c20] sm:$0xff]
        %v3225 = vld [vmem:[#allocation8 + $0x1c28] sm:$0xff]
        %v3226 = vld [vmem:[#allocation8 + $0x1c30] sm:$0xff]
        %v3227 = vld [vmem:[#allocation8 + $0x1c38] sm:$0xff]
        %v3228 = vld [vmem:[#allocation8 + $0x1c40] sm:$0xff]
        %v3229 = vld [vmem:[#allocation8 + $0x1c48] sm:$0xff]
        %v3230 = vld [vmem:[#allocation8 + $0x1c50] sm:$0xff]
        %v3231 = vld [vmem:[#allocation8 + $0x1c58] sm:$0xff]
        %v3232 = vld [vmem:[#allocation8 + $0x1c60] sm:$0xff]
        %v3233 = vld [vmem:[#allocation8 + $0x1c68] sm:$0xff]
        %v3234 = vld [vmem:[#allocation8 + $0x1c70] sm:$0xff]
        %v3235 = vld [vmem:[#allocation8 + $0x1c78] sm:$0xff]
        %v3236 = vld [vmem:[#allocation8 + $0x1c80] sm:$0xff]
        %v3237 = vld [vmem:[#allocation8 + $0x1c88] sm:$0xff]
        %v3238 = vld [vmem:[#allocation8 + $0x1c90] sm:$0xff]
        %v3239 = vld [vmem:[#allocation8 + $0x1c98] sm:$0xff]
        %v3240 = vld [vmem:[#allocation8 + $0x1ca0] sm:$0xff]
        %v3241 = vld [vmem:[#allocation8 + $0x1ca8] sm:$0xff]
        %v3242 = vld [vmem:[#allocation8 + $0x1cb0] sm:$0xff]
        %v3243 = vld [vmem:[#allocation8 + $0x1cb8] sm:$0xff]
        %v3244 = vld [vmem:[#allocation8 + $0x1cc0] sm:$0xff]
        %v3245 = vld [vmem:[#allocation8 + $0x1cc8] sm:$0xff]
        %v3246 = vld [vmem:[#allocation8 + $0x1cd0] sm:$0xff]
        %v3247 = vld [vmem:[#allocation8 + $0x1cd8] sm:$0xff]
        %v3248 = vld [vmem:[#allocation8 + $0x1ce0] sm:$0xff]
        %v3249 = vld [vmem:[#allocation8 + $0x1ce8] sm:$0xff]
        %v3250 = vld [vmem:[#allocation8 + $0x1cf0] sm:$0xff]
        %v3251 = vld [vmem:[#allocation8 + $0x1cf8] sm:$0xff]
        %v3252 = vld [vmem:[#allocation8 + $0x1d00] sm:$0xff]
        %v3253 = vld [vmem:[#allocation8 + $0x1d08] sm:$0xff]
        %v3254 = vld [vmem:[#allocation8 + $0x1d10] sm:$0xff]
        %v3255 = vld [vmem:[#allocation8 + $0x1d18] sm:$0xff]
        %v3256 = vld [vmem:[#allocation8 + $0x1d20] sm:$0xff]
        %v3257 = vld [vmem:[#allocation8 + $0x1d28] sm:$0xff]
        %v3258 = vld [vmem:[#allocation8 + $0x1d30] sm:$0xff]
        %v3259 = vld [vmem:[#allocation8 + $0x1d38] sm:$0xff]
        %v3260 = vld [vmem:[#allocation8 + $0x1d40] sm:$0xff]
        %v3261 = vld [vmem:[#allocation8 + $0x1d48] sm:$0xff]
        %v3262 = vld [vmem:[#allocation8 + $0x1d50] sm:$0xff]
        %v3263 = vld [vmem:[#allocation8 + $0x1d58] sm:$0xff]
        %v3264 = vld [vmem:[#allocation8 + $0x1d60] sm:$0xff]
        %v3265 = vld [vmem:[#allocation8 + $0x1d68] sm:$0xff]
        %v3266 = vld [vmem:[#allocation8 + $0x1d70] sm:$0xff]
        %v3267 = vld [vmem:[#allocation8 + $0x1d78] sm:$0xff]
        %v3268 = vld [vmem:[#allocation8 + $0x1d80] sm:$0xff]
        %v3269 = vld [vmem:[#allocation8 + $0x1d88] sm:$0xff]
        %v3270 = vld [vmem:[#allocation8 + $0x1d90] sm:$0xff]
        %v3271 = vld [vmem:[#allocation8 + $0x1d98] sm:$0xff]
        %v3272 = vld [vmem:[#allocation8 + $0x1da0] sm:$0xff]
        %v3273 = vld [vmem:[#allocation8 + $0x1da8] sm:$0xff]
        %v3274 = vld [vmem:[#allocation8 + $0x1db0] sm:$0xff]
        %v3275 = vld [vmem:[#allocation8 + $0x1db8] sm:$0xff]
        %v3276 = vld [vmem:[#allocation8 + $0x1dc0] sm:$0xff]
        %v3277 = vld [vmem:[#allocation8 + $0x1dc8] sm:$0xff]
        %v3278 = vld [vmem:[#allocation8 + $0x1dd0] sm:$0xff]
        %v3279 = vld [vmem:[#allocation8 + $0x1dd8] sm:$0xff]
        %v3280 = vld [vmem:[#allocation8 + $0x1de0] sm:$0xff]
        %v3281 = vld [vmem:[#allocation8 + $0x1de8] sm:$0xff]
        %v3282 = vld [vmem:[#allocation8 + $0x1df0] sm:$0xff]
        %v3283 = vld [vmem:[#allocation8 + $0x1df8] sm:$0xff]
        %v3284 = vld [vmem:[#allocation8 + $0x1e00] sm:$0xff]
        %v3285 = vld [vmem:[#allocation8 + $0x1e08] sm:$0xff]
        %v3286 = vld [vmem:[#allocation8 + $0x1e10] sm:$0xff]
        %v3287 = vld [vmem:[#allocation8 + $0x1e18] sm:$0xff]
        %v3288 = vld [vmem:[#allocation8 + $0x1e20] sm:$0xff]
        %v3289 = vld [vmem:[#allocation8 + $0x1e28] sm:$0xff]
        %v3290 = vld [vmem:[#allocation8 + $0x1e30] sm:$0xff]
        %v3291 = vld [vmem:[#allocation8 + $0x1e38] sm:$0xff]
        %v3292 = vld [vmem:[#allocation8 + $0x1e40] sm:$0xff]
        %v3293 = vld [vmem:[#allocation8 + $0x1e48] sm:$0xff]
        %v3294 = vld [vmem:[#allocation8 + $0x1e50] sm:$0xff]
        %v3295 = vld [vmem:[#allocation8 + $0x1e58] sm:$0xff]
        %v3296 = vld [vmem:[#allocation8 + $0x1e60] sm:$0xff]
        %v3297 = vld [vmem:[#allocation8 + $0x1e68] sm:$0xff]
        %v3298 = vld [vmem:[#allocation8 + $0x1e70] sm:$0xff]
        %v3299 = vld [vmem:[#allocation8 + $0x1e78] sm:$0xff]
        %v3300 = vld [vmem:[#allocation8 + $0x1e80] sm:$0xff]
        %v3301 = vld [vmem:[#allocation8 + $0x1e88] sm:$0xff]
        %v3302 = vld [vmem:[#allocation8 + $0x1e90] sm:$0xff]
        %v3303 = vld [vmem:[#allocation8 + $0x1e98] sm:$0xff]
        %v3304 = vld [vmem:[#allocation8 + $0x1ea0] sm:$0xff]
        %v3305 = vld [vmem:[#allocation8 + $0x1ea8] sm:$0xff]
        %v3306 = vld [vmem:[#allocation8 + $0x1eb0] sm:$0xff]
        %v3307 = vld [vmem:[#allocation8 + $0x1eb8] sm:$0xff]
        %v3308 = vld [vmem:[#allocation8 + $0x1ec0] sm:$0xff]
        %v3309 = vld [vmem:[#allocation8 + $0x1ec8] sm:$0xff]
        %v3310 = vld [vmem:[#allocation8 + $0x1ed0] sm:$0xff]
        %v3311 = vld [vmem:[#allocation8 + $0x1ed8] sm:$0xff]
        %v3312 = vld [vmem:[#allocation8 + $0x1ee0] sm:$0xff]
        %v3313 = vld [vmem:[#allocation8 + $0x1ee8] sm:$0xff]
        %v3314 = vld [vmem:[#allocation8 + $0x1ef0] sm:$0xff]
        %v3315 = vld [vmem:[#allocation8 + $0x1ef8] sm:$0xff]
        %v3316 = vld [vmem:[#allocation8 + $0x1f00] sm:$0xff]
        %v3317 = vld [vmem:[#allocation8 + $0x1f08] sm:$0xff]
        %v3318 = vld [vmem:[#allocation8 + $0x1f10] sm:$0xff]
        %v3319 = vld [vmem:[#allocation8 + $0x1f18] sm:$0xff]
        %v3320 = vld [vmem:[#allocation8 + $0x1f20] sm:$0xff]
        %v3321 = vld [vmem:[#allocation8 + $0x1f28] sm:$0xff]
        %v3322 = vld [vmem:[#allocation8 + $0x1f30] sm:$0xff]
        %v3323 = vld [vmem:[#allocation8 + $0x1f38] sm:$0xff]
        %v3324 = vld [vmem:[#allocation8 + $0x1f40] sm:$0xff]
        %v3325 = vld [vmem:[#allocation8 + $0x1f48] sm:$0xff]
        %v3326 = vld [vmem:[#allocation8 + $0x1f50] sm:$0xff]
        %v3327 = vld [vmem:[#allocation8 + $0x1f58] sm:$0xff]
        %v3328 = vld [vmem:[#allocation8 + $0x1f60] sm:$0xff]
        %v3329 = vld [vmem:[#allocation8 + $0x1f68] sm:$0xff]
        %v3330 = vld [vmem:[#allocation8 + $0x1f70] sm:$0xff]
        %v3331 = vld [vmem:[#allocation8 + $0x1f78] sm:$0xff]
        %v3332 = vld [vmem:[#allocation8 + $0x1f80] sm:$0xff]
        %v3333 = vld [vmem:[#allocation8 + $0x1f88] sm:$0xff]
        %v3334 = vld [vmem:[#allocation8 + $0x1f90] sm:$0xff]
        %v3335 = vld [vmem:[#allocation8 + $0x1f98] sm:$0xff]
        %v3336 = vld [vmem:[#allocation8 + $0x1fa0] sm:$0xff]
        %v3337 = vld [vmem:[#allocation8 + $0x1fa8] sm:$0xff]
        %v3338 = vld [vmem:[#allocation8 + $0x1fb0] sm:$0xff]
        %v3339 = vld [vmem:[#allocation8 + $0x1fb8] sm:$0xff]
        %v3340 = vld [vmem:[#allocation8 + $0x1fc0] sm:$0xff]
        %v3341 = vld [vmem:[#allocation8 + $0x1fc8] sm:$0xff]
        %v3342 = vld [vmem:[#allocation8 + $0x1fd0] sm:$0xff]
        %v3343 = vld [vmem:[#allocation8 + $0x1fd8] sm:$0xff]
        %v3344 = vld [vmem:[#allocation8 + $0x1fe0] sm:$0xff]
        %v3345 = vld [vmem:[#allocation8 + $0x1fe8] sm:$0xff]
        %v3346 = vld [vmem:[#allocation8 + $0x1ff0] sm:$0xff]
        %v3347 = vld [vmem:[#allocation8 + $0x1ff8] sm:$0xff]
        %v3348 = vld [vmem:[#allocation10] sm:$0xff]
        %v3349 = vld [vmem:[#allocation10 + $0x8] sm:$0xff]
        %v3352 = vlaneseq
        %v3353 = vshrl.u32 %v3352, 7
        %v3354 = vsub.s32 0, %v3353
        %v3355 = vrot.slane %v3348, %v3354
        %v3356 = vlaneseq
        %v3357 = vshrl.u32 %v3356, 7
        %v3358 = vsub.s32 1, %v3357
        %v3359 = vrot.slane %v3348, %v3358
        %v3360 = vlaneseq
        %v3361 = vshrl.u32 %v3360, 7
        %v3362 = vsub.s32 2, %v3361
        %v3363 = vrot.slane %v3348, %v3362
        %v3364 = vlaneseq
        %v3365 = vshrl.u32 %v3364, 7
        %v3366 = vsub.s32 3, %v3365
        %v3367 = vrot.slane %v3348, %v3366
        %v3368 = vlaneseq
        %v3369 = vshrl.u32 %v3368, 7
        %v3370 = vsub.s32 4, %v3369
        %v3371 = vrot.slane %v3348, %v3370
        %v3372 = vlaneseq
        %v3373 = vshrl.u32 %v3372, 7
        %v3374 = vsub.s32 5, %v3373
        %v3375 = vrot.slane %v3348, %v3374
        %v3376 = vlaneseq
        %v3377 = vshrl.u32 %v3376, 7
        %v3378 = vsub.s32 6, %v3377
        %v3379 = vrot.slane %v3348, %v3378
        %v3380 = vlaneseq
        %v3381 = vshrl.u32 %v3380, 7
        %v3382 = vsub.s32 7, %v3381
        %v3383 = vrot.slane %v3348, %v3382
        %v3384 = vlaneseq
        %v3385 = vshrl.u32 %v3384, 7
        %v3386 = vsub.s32 0, %v3385
        %v3387 = vrot.slane %v3349, %v3386
        %v3388 = vlaneseq
        %v3389 = vshrl.u32 %v3388, 7
        %v3390 = vsub.s32 1, %v3389
        %v3391 = vrot.slane %v3349, %v3390
        %v3392 = vlaneseq
        %v3393 = vshrl.u32 %v3392, 7
        %v3394 = vsub.s32 2, %v3393
        %v3395 = vrot.slane %v3349, %v3394
        %v3396 = vlaneseq
        %v3397 = vshrl.u32 %v3396, 7
        %v3398 = vsub.s32 3, %v3397
        %v3399 = vrot.slane %v3349, %v3398
        %v3400 = vlaneseq
        %v3401 = vshrl.u32 %v3400, 7
        %v3402 = vsub.s32 4, %v3401
        %v3403 = vrot.slane %v3349, %v3402
        %v3404 = vlaneseq
        %v3405 = vshrl.u32 %v3404, 7
        %v3406 = vsub.s32 5, %v3405
        %v3407 = vrot.slane %v3349, %v3406
        %v3408 = vlaneseq
        %v3409 = vshrl.u32 %v3408, 7
        %v3410 = vsub.s32 6, %v3409
        %v3411 = vrot.slane %v3349, %v3410
        %v3412 = vlaneseq
        %v3413 = vshrl.u32 %v3412, 7
        %v3414 = vsub.s32 7, %v3413
        %v3415 = vrot.slane %v3349, %v3414
        %v4456 = vunpack.c.l.b16 %v2324
        %v4457 = vunpack.c.h.b16 %v2324
        %v4458 = vunpack.c.l.b16 %v2325
        %v4459 = vunpack.c.h.b16 %v2325
        %v4460 = vunpack.c.l.b16 %v2326
        %v4461 = vunpack.c.h.b16 %v2326
        %v4462 = vunpack.c.l.b16 %v2327
        %v4463 = vunpack.c.h.b16 %v2327
        %v4464 = vunpack.c.l.b16 %v2328
        %v4465 = vunpack.c.h.b16 %v2328
        %v4466 = vunpack.c.l.b16 %v2329
        %v4467 = vunpack.c.h.b16 %v2329
        %v4468 = vunpack.c.l.b16 %v2330
        %v4469 = vunpack.c.h.b16 %v2330
        %v4470 = vunpack.c.l.b16 %v2331
        %v4471 = vunpack.c.h.b16 %v2331
        %v4472 = vunpack.c.l.b16 %v2332
        %v4473 = vunpack.c.h.b16 %v2332
        %v4474 = vunpack.c.l.b16 %v2333
        %v4475 = vunpack.c.h.b16 %v2333
        %v4476 = vunpack.c.l.b16 %v2334
        %v4477 = vunpack.c.h.b16 %v2334
        %v4478 = vunpack.c.l.b16 %v2335
        %v4479 = vunpack.c.h.b16 %v2335
        %v4480 = vunpack.c.l.b16 %v2336
        %v4481 = vunpack.c.h.b16 %v2336
        %v4482 = vunpack.c.l.b16 %v2337
        %v4483 = vunpack.c.h.b16 %v2337
        %v4484 = vunpack.c.l.b16 %v2338
        %v4485 = vunpack.c.h.b16 %v2338
        %v4486 = vunpack.c.l.b16 %v2339
        %v4487 = vunpack.c.h.b16 %v2339
        %v4488 = vunpack.c.l.b16 %v2340
        %v4489 = vunpack.c.h.b16 %v2340
        %v4490 = vunpack.c.l.b16 %v2341
        %v4491 = vunpack.c.h.b16 %v2341
        %v4492 = vunpack.c.l.b16 %v2342
        %v4493 = vunpack.c.h.b16 %v2342
        %v4494 = vunpack.c.l.b16 %v2343
        %v4495 = vunpack.c.h.b16 %v2343
        %v4496 = vunpack.c.l.b16 %v2344
        %v4497 = vunpack.c.h.b16 %v2344
        %v4498 = vunpack.c.l.b16 %v2345
        %v4499 = vunpack.c.h.b16 %v2345
        %v4500 = vunpack.c.l.b16 %v2346
        %v4501 = vunpack.c.h.b16 %v2346
        %v4502 = vunpack.c.l.b16 %v2347
        %v4503 = vunpack.c.h.b16 %v2347
        %v4504 = vunpack.c.l.b16 %v2348
        %v4505 = vunpack.c.h.b16 %v2348
        %v4506 = vunpack.c.l.b16 %v2349
        %v4507 = vunpack.c.h.b16 %v2349
        %v4508 = vunpack.c.l.b16 %v2350
        %v4509 = vunpack.c.h.b16 %v2350
        %v4510 = vunpack.c.l.b16 %v2351
        %v4511 = vunpack.c.h.b16 %v2351
        %v4512 = vunpack.c.l.b16 %v2352
        %v4513 = vunpack.c.h.b16 %v2352
        %v4514 = vunpack.c.l.b16 %v2353
        %v4515 = vunpack.c.h.b16 %v2353
        %v4516 = vunpack.c.l.b16 %v2354
        %v4517 = vunpack.c.h.b16 %v2354
        %v4518 = vunpack.c.l.b16 %v2355
        %v4519 = vunpack.c.h.b16 %v2355
        %v4520 = vunpack.c.l.b16 %v2356
        %v4521 = vunpack.c.h.b16 %v2356
        %v4522 = vunpack.c.l.b16 %v2357
        %v4523 = vunpack.c.h.b16 %v2357
        %v4524 = vunpack.c.l.b16 %v2358
        %v4525 = vunpack.c.h.b16 %v2358
        %v4526 = vunpack.c.l.b16 %v2359
        %v4527 = vunpack.c.h.b16 %v2359
        %v4528 = vunpack.c.l.b16 %v2360
        %v4529 = vunpack.c.h.b16 %v2360
        %v4530 = vunpack.c.l.b16 %v2361
        %v4531 = vunpack.c.h.b16 %v2361
        %v4532 = vunpack.c.l.b16 %v2362
        %v4533 = vunpack.c.h.b16 %v2362
        %v4534 = vunpack.c.l.b16 %v2363
        %v4535 = vunpack.c.h.b16 %v2363
        %v4536 = vunpack.c.l.b16 %v2364
        %v4537 = vunpack.c.h.b16 %v2364
        %v4538 = vunpack.c.l.b16 %v2365
        %v4539 = vunpack.c.h.b16 %v2365
        %v4540 = vunpack.c.l.b16 %v2366
        %v4541 = vunpack.c.h.b16 %v2366
        %v4542 = vunpack.c.l.b16 %v2367
        %v4543 = vunpack.c.h.b16 %v2367
        %v4544 = vunpack.c.l.b16 %v2368
        %v4545 = vunpack.c.h.b16 %v2368
        %v4546 = vunpack.c.l.b16 %v2369
        %v4547 = vunpack.c.h.b16 %v2369
        %v4548 = vunpack.c.l.b16 %v2370
        %v4549 = vunpack.c.h.b16 %v2370
        %v4550 = vunpack.c.l.b16 %v2371
        %v4551 = vunpack.c.h.b16 %v2371
        %v4552 = vunpack.c.l.b16 %v2372
        %v4553 = vunpack.c.h.b16 %v2372
        %v4554 = vunpack.c.l.b16 %v2373
        %v4555 = vunpack.c.h.b16 %v2373
        %v4556 = vunpack.c.l.b16 %v2374
        %v4557 = vunpack.c.h.b16 %v2374
        %v4558 = vunpack.c.l.b16 %v2375
        %v4559 = vunpack.c.h.b16 %v2375
        %v4560 = vunpack.c.l.b16 %v2376
        %v4561 = vunpack.c.h.b16 %v2376
        %v4562 = vunpack.c.l.b16 %v2377
        %v4563 = vunpack.c.h.b16 %v2377
        %v4564 = vunpack.c.l.b16 %v2378
        %v4565 = vunpack.c.h.b16 %v2378
        %v4566 = vunpack.c.l.b16 %v2379
        %v4567 = vunpack.c.h.b16 %v2379
        %v4568 = vunpack.c.l.b16 %v2380
        %v4569 = vunpack.c.h.b16 %v2380
        %v4570 = vunpack.c.l.b16 %v2381
        %v4571 = vunpack.c.h.b16 %v2381
        %v4572 = vunpack.c.l.b16 %v2382
        %v4573 = vunpack.c.h.b16 %v2382
        %v4574 = vunpack.c.l.b16 %v2383
        %v4575 = vunpack.c.h.b16 %v2383
        %v4576 = vunpack.c.l.b16 %v2384
        %v4577 = vunpack.c.h.b16 %v2384
        %v4578 = vunpack.c.l.b16 %v2385
        %v4579 = vunpack.c.h.b16 %v2385
        %v4580 = vunpack.c.l.b16 %v2386
        %v4581 = vunpack.c.h.b16 %v2386
        %v4582 = vunpack.c.l.b16 %v2387
        %v4583 = vunpack.c.h.b16 %v2387
        %v4584 = vunpack.c.l.b16 %v2388
        %v4585 = vunpack.c.h.b16 %v2388
        %v4586 = vunpack.c.l.b16 %v2389
        %v4587 = vunpack.c.h.b16 %v2389
        %v4588 = vunpack.c.l.b16 %v2390
        %v4589 = vunpack.c.h.b16 %v2390
        %v4590 = vunpack.c.l.b16 %v2391
        %v4591 = vunpack.c.h.b16 %v2391
        %v4592 = vunpack.c.l.b16 %v2392
        %v4593 = vunpack.c.h.b16 %v2392
        %v4594 = vunpack.c.l.b16 %v2393
        %v4595 = vunpack.c.h.b16 %v2393
        %v4596 = vunpack.c.l.b16 %v2394
        %v4597 = vunpack.c.h.b16 %v2394
        %v4598 = vunpack.c.l.b16 %v2395
        %v4599 = vunpack.c.h.b16 %v2395
        %v4600 = vunpack.c.l.b16 %v2396
        %v4601 = vunpack.c.h.b16 %v2396
        %v4602 = vunpack.c.l.b16 %v2397
        %v4603 = vunpack.c.h.b16 %v2397
        %v4604 = vunpack.c.l.b16 %v2398
        %v4605 = vunpack.c.h.b16 %v2398
        %v4606 = vunpack.c.l.b16 %v2399
        %v4607 = vunpack.c.h.b16 %v2399
        %v4608 = vunpack.c.l.b16 %v2400
        %v4609 = vunpack.c.h.b16 %v2400
        %v4610 = vunpack.c.l.b16 %v2401
        %v4611 = vunpack.c.h.b16 %v2401
        %v4612 = vunpack.c.l.b16 %v2402
        %v4613 = vunpack.c.h.b16 %v2402
        %v4614 = vunpack.c.l.b16 %v2403
        %v4615 = vunpack.c.h.b16 %v2403
        %v4616 = vunpack.c.l.b16 %v2404
        %v4617 = vunpack.c.h.b16 %v2404
        %v4618 = vunpack.c.l.b16 %v2405
        %v4619 = vunpack.c.h.b16 %v2405
        %v4620 = vunpack.c.l.b16 %v2406
        %v4621 = vunpack.c.h.b16 %v2406
        %v4622 = vunpack.c.l.b16 %v2407
        %v4623 = vunpack.c.h.b16 %v2407
        %v4624 = vunpack.c.l.b16 %v2408
        %v4625 = vunpack.c.h.b16 %v2408
        %v4626 = vunpack.c.l.b16 %v2409
        %v4627 = vunpack.c.h.b16 %v2409
        %v4628 = vunpack.c.l.b16 %v2410
        %v4629 = vunpack.c.h.b16 %v2410
        %v4630 = vunpack.c.l.b16 %v2411
        %v4631 = vunpack.c.h.b16 %v2411
        %v4632 = vunpack.c.l.b16 %v2412
        %v4633 = vunpack.c.h.b16 %v2412
        %v4634 = vunpack.c.l.b16 %v2413
        %v4635 = vunpack.c.h.b16 %v2413
        %v4636 = vunpack.c.l.b16 %v2414
        %v4637 = vunpack.c.h.b16 %v2414
        %v4638 = vunpack.c.l.b16 %v2415
        %v4639 = vunpack.c.h.b16 %v2415
        %v4640 = vunpack.c.l.b16 %v2416
        %v4641 = vunpack.c.h.b16 %v2416
        %v4642 = vunpack.c.l.b16 %v2417
        %v4643 = vunpack.c.h.b16 %v2417
        %v4644 = vunpack.c.l.b16 %v2418
        %v4645 = vunpack.c.h.b16 %v2418
        %v4646 = vunpack.c.l.b16 %v2419
        %v4647 = vunpack.c.h.b16 %v2419
        %v4648 = vunpack.c.l.b16 %v2420
        %v4649 = vunpack.c.h.b16 %v2420
        %v4650 = vunpack.c.l.b16 %v2421
        %v4651 = vunpack.c.h.b16 %v2421
        %v4652 = vunpack.c.l.b16 %v2422
        %v4653 = vunpack.c.h.b16 %v2422
        %v4654 = vunpack.c.l.b16 %v2423
        %v4655 = vunpack.c.h.b16 %v2423
        %v4656 = vunpack.c.l.b16 %v2424
        %v4657 = vunpack.c.h.b16 %v2424
        %v4658 = vunpack.c.l.b16 %v2425
        %v4659 = vunpack.c.h.b16 %v2425
        %v4660 = vunpack.c.l.b16 %v2426
        %v4661 = vunpack.c.h.b16 %v2426
        %v4662 = vunpack.c.l.b16 %v2427
        %v4663 = vunpack.c.h.b16 %v2427
        %v4664 = vunpack.c.l.b16 %v2428
        %v4665 = vunpack.c.h.b16 %v2428
        %v4666 = vunpack.c.l.b16 %v2429
        %v4667 = vunpack.c.h.b16 %v2429
        %v4668 = vunpack.c.l.b16 %v2430
        %v4669 = vunpack.c.h.b16 %v2430
        %v4670 = vunpack.c.l.b16 %v2431
        %v4671 = vunpack.c.h.b16 %v2431
        %v4672 = vunpack.c.l.b16 %v2432
        %v4673 = vunpack.c.h.b16 %v2432
        %v4674 = vunpack.c.l.b16 %v2433
        %v4675 = vunpack.c.h.b16 %v2433
        %v4676 = vunpack.c.l.b16 %v2434
        %v4677 = vunpack.c.h.b16 %v2434
        %v4678 = vunpack.c.l.b16 %v2435
        %v4679 = vunpack.c.h.b16 %v2435
        %v4680 = vunpack.c.l.b16 %v2436
        %v4681 = vunpack.c.h.b16 %v2436
        %v4682 = vunpack.c.l.b16 %v2437
        %v4683 = vunpack.c.h.b16 %v2437
        %v4684 = vunpack.c.l.b16 %v2438
        %v4685 = vunpack.c.h.b16 %v2438
        %v4686 = vunpack.c.l.b16 %v2439
        %v4687 = vunpack.c.h.b16 %v2439
        %v4688 = vunpack.c.l.b16 %v2440
        %v4689 = vunpack.c.h.b16 %v2440
        %v4690 = vunpack.c.l.b16 %v2441
        %v4691 = vunpack.c.h.b16 %v2441
        %v4692 = vunpack.c.l.b16 %v2442
        %v4693 = vunpack.c.h.b16 %v2442
        %v4694 = vunpack.c.l.b16 %v2443
        %v4695 = vunpack.c.h.b16 %v2443
        %v4696 = vunpack.c.l.b16 %v2444
        %v4697 = vunpack.c.h.b16 %v2444
        %v4698 = vunpack.c.l.b16 %v2445
        %v4699 = vunpack.c.h.b16 %v2445
        %v4700 = vunpack.c.l.b16 %v2446
        %v4701 = vunpack.c.h.b16 %v2446
        %v4702 = vunpack.c.l.b16 %v2447
        %v4703 = vunpack.c.h.b16 %v2447
        %v4704 = vunpack.c.l.b16 %v2448
        %v4705 = vunpack.c.h.b16 %v2448
        %v4706 = vunpack.c.l.b16 %v2449
        %v4707 = vunpack.c.h.b16 %v2449
        %v4708 = vunpack.c.l.b16 %v2450
        %v4709 = vunpack.c.h.b16 %v2450
        %v4710 = vunpack.c.l.b16 %v2451
        %v4711 = vunpack.c.h.b16 %v2451
        %v4712 = vunpack.c.l.b16 %v2452
        %v4713 = vunpack.c.h.b16 %v2452
        %v4714 = vunpack.c.l.b16 %v2453
        %v4715 = vunpack.c.h.b16 %v2453
        %v4716 = vunpack.c.l.b16 %v2454
        %v4717 = vunpack.c.h.b16 %v2454
        %v4718 = vunpack.c.l.b16 %v2455
        %v4719 = vunpack.c.h.b16 %v2455
        %v4720 = vunpack.c.l.b16 %v2456
        %v4721 = vunpack.c.h.b16 %v2456
        %v4722 = vunpack.c.l.b16 %v2457
        %v4723 = vunpack.c.h.b16 %v2457
        %v4724 = vunpack.c.l.b16 %v2458
        %v4725 = vunpack.c.h.b16 %v2458
        %v4726 = vunpack.c.l.b16 %v2459
        %v4727 = vunpack.c.h.b16 %v2459
        %v4728 = vunpack.c.l.b16 %v2460
        %v4729 = vunpack.c.h.b16 %v2460
        %v4730 = vunpack.c.l.b16 %v2461
        %v4731 = vunpack.c.h.b16 %v2461
        %v4732 = vunpack.c.l.b16 %v2462
        %v4733 = vunpack.c.h.b16 %v2462
        %v4734 = vunpack.c.l.b16 %v2463
        %v4735 = vunpack.c.h.b16 %v2463
        %v4736 = vunpack.c.l.b16 %v2464
        %v4737 = vunpack.c.h.b16 %v2464
        %v4738 = vunpack.c.l.b16 %v2465
        %v4739 = vunpack.c.h.b16 %v2465
        %v4740 = vunpack.c.l.b16 %v2466
        %v4741 = vunpack.c.h.b16 %v2466
        %v4742 = vunpack.c.l.b16 %v2467
        %v4743 = vunpack.c.h.b16 %v2467
        %v4744 = vunpack.c.l.b16 %v2468
        %v4745 = vunpack.c.h.b16 %v2468
        %v4746 = vunpack.c.l.b16 %v2469
        %v4747 = vunpack.c.h.b16 %v2469
        %v4748 = vunpack.c.l.b16 %v2470
        %v4749 = vunpack.c.h.b16 %v2470
        %v4750 = vunpack.c.l.b16 %v2471
        %v4751 = vunpack.c.h.b16 %v2471
        %v4752 = vunpack.c.l.b16 %v2472
        %v4753 = vunpack.c.h.b16 %v2472
        %v4754 = vunpack.c.l.b16 %v2473
        %v4755 = vunpack.c.h.b16 %v2473
        %v4756 = vunpack.c.l.b16 %v2474
        %v4757 = vunpack.c.h.b16 %v2474
        %v4758 = vunpack.c.l.b16 %v2475
        %v4759 = vunpack.c.h.b16 %v2475
        %v4760 = vunpack.c.l.b16 %v2476
        %v4761 = vunpack.c.h.b16 %v2476
        %v4762 = vunpack.c.l.b16 %v2477
        %v4763 = vunpack.c.h.b16 %v2477
        %v4764 = vunpack.c.l.b16 %v2478
        %v4765 = vunpack.c.h.b16 %v2478
        %v4766 = vunpack.c.l.b16 %v2479
        %v4767 = vunpack.c.h.b16 %v2479
        %v4768 = vunpack.c.l.b16 %v2480
        %v4769 = vunpack.c.h.b16 %v2480
        %v4770 = vunpack.c.l.b16 %v2481
        %v4771 = vunpack.c.h.b16 %v2481
        %v4772 = vunpack.c.l.b16 %v2482
        %v4773 = vunpack.c.h.b16 %v2482
        %v4774 = vunpack.c.l.b16 %v2483
        %v4775 = vunpack.c.h.b16 %v2483
        %v4776 = vunpack.c.l.b16 %v2484
        %v4777 = vunpack.c.h.b16 %v2484
        %v4778 = vunpack.c.l.b16 %v2485
        %v4779 = vunpack.c.h.b16 %v2485
        %v4780 = vunpack.c.l.b16 %v2486
        %v4781 = vunpack.c.h.b16 %v2486
        %v4782 = vunpack.c.l.b16 %v2487
        %v4783 = vunpack.c.h.b16 %v2487
        %v4784 = vunpack.c.l.b16 %v2488
        %v4785 = vunpack.c.h.b16 %v2488
        %v4786 = vunpack.c.l.b16 %v2489
        %v4787 = vunpack.c.h.b16 %v2489
        %v4788 = vunpack.c.l.b16 %v2490
        %v4789 = vunpack.c.h.b16 %v2490
        %v4790 = vunpack.c.l.b16 %v2491
        %v4791 = vunpack.c.h.b16 %v2491
        %v4792 = vunpack.c.l.b16 %v2492
        %v4793 = vunpack.c.h.b16 %v2492
        %v4794 = vunpack.c.l.b16 %v2493
        %v4795 = vunpack.c.h.b16 %v2493
        %v4796 = vunpack.c.l.b16 %v2494
        %v4797 = vunpack.c.h.b16 %v2494
        %v4798 = vunpack.c.l.b16 %v2495
        %v4799 = vunpack.c.h.b16 %v2495
        %v4800 = vunpack.c.l.b16 %v2496
        %v4801 = vunpack.c.h.b16 %v2496
        %v4802 = vunpack.c.l.b16 %v2497
        %v4803 = vunpack.c.h.b16 %v2497
        %v4804 = vunpack.c.l.b16 %v2498
        %v4805 = vunpack.c.h.b16 %v2498
        %v4806 = vunpack.c.l.b16 %v2499
        %v4807 = vunpack.c.h.b16 %v2499
        %v4808 = vunpack.c.l.b16 %v2500
        %v4809 = vunpack.c.h.b16 %v2500
        %v4810 = vunpack.c.l.b16 %v2501
        %v4811 = vunpack.c.h.b16 %v2501
        %v4812 = vunpack.c.l.b16 %v2502
        %v4813 = vunpack.c.h.b16 %v2502
        %v4814 = vunpack.c.l.b16 %v2503
        %v4815 = vunpack.c.h.b16 %v2503
        %v4816 = vunpack.c.l.b16 %v2504
        %v4817 = vunpack.c.h.b16 %v2504
        %v4818 = vunpack.c.l.b16 %v2505
        %v4819 = vunpack.c.h.b16 %v2505
        %v4820 = vunpack.c.l.b16 %v2506
        %v4821 = vunpack.c.h.b16 %v2506
        %v4822 = vunpack.c.l.b16 %v2507
        %v4823 = vunpack.c.h.b16 %v2507
        %v4824 = vunpack.c.l.b16 %v2508
        %v4825 = vunpack.c.h.b16 %v2508
        %v4826 = vunpack.c.l.b16 %v2509
        %v4827 = vunpack.c.h.b16 %v2509
        %v4828 = vunpack.c.l.b16 %v2510
        %v4829 = vunpack.c.h.b16 %v2510
        %v4830 = vunpack.c.l.b16 %v2511
        %v4831 = vunpack.c.h.b16 %v2511
        %v4832 = vunpack.c.l.b16 %v2512
        %v4833 = vunpack.c.h.b16 %v2512
        %v4834 = vunpack.c.l.b16 %v2513
        %v4835 = vunpack.c.h.b16 %v2513
        %v4836 = vunpack.c.l.b16 %v2514
        %v4837 = vunpack.c.h.b16 %v2514
        %v4838 = vunpack.c.l.b16 %v2515
        %v4839 = vunpack.c.h.b16 %v2515
        %v4840 = vunpack.c.l.b16 %v2516
        %v4841 = vunpack.c.h.b16 %v2516
        %v4842 = vunpack.c.l.b16 %v2517
        %v4843 = vunpack.c.h.b16 %v2517
        %v4844 = vunpack.c.l.b16 %v2518
        %v4845 = vunpack.c.h.b16 %v2518
        %v4846 = vunpack.c.l.b16 %v2519
        %v4847 = vunpack.c.h.b16 %v2519
        %v4848 = vunpack.c.l.b16 %v2520
        %v4849 = vunpack.c.h.b16 %v2520
        %v4850 = vunpack.c.l.b16 %v2521
        %v4851 = vunpack.c.h.b16 %v2521
        %v4852 = vunpack.c.l.b16 %v2522
        %v4853 = vunpack.c.h.b16 %v2522
        %v4854 = vunpack.c.l.b16 %v2523
        %v4855 = vunpack.c.h.b16 %v2523
        %v4856 = vunpack.c.l.b16 %v2524
        %v4857 = vunpack.c.h.b16 %v2524
        %v4858 = vunpack.c.l.b16 %v2525
        %v4859 = vunpack.c.h.b16 %v2525
        %v4860 = vunpack.c.l.b16 %v2526
        %v4861 = vunpack.c.h.b16 %v2526
        %v4862 = vunpack.c.l.b16 %v2527
        %v4863 = vunpack.c.h.b16 %v2527
        %v4864 = vunpack.c.l.b16 %v2528
        %v4865 = vunpack.c.h.b16 %v2528
        %v4866 = vunpack.c.l.b16 %v2529
        %v4867 = vunpack.c.h.b16 %v2529
        %v4868 = vunpack.c.l.b16 %v2530
        %v4869 = vunpack.c.h.b16 %v2530
        %v4870 = vunpack.c.l.b16 %v2531
        %v4871 = vunpack.c.h.b16 %v2531
        %v4872 = vunpack.c.l.b16 %v2532
        %v4873 = vunpack.c.h.b16 %v2532
        %v4874 = vunpack.c.l.b16 %v2533
        %v4875 = vunpack.c.h.b16 %v2533
        %v4876 = vunpack.c.l.b16 %v2534
        %v4877 = vunpack.c.h.b16 %v2534
        %v4878 = vunpack.c.l.b16 %v2535
        %v4879 = vunpack.c.h.b16 %v2535
        %v4880 = vunpack.c.l.b16 %v2536
        %v4881 = vunpack.c.h.b16 %v2536
        %v4882 = vunpack.c.l.b16 %v2537
        %v4883 = vunpack.c.h.b16 %v2537
        %v4884 = vunpack.c.l.b16 %v2538
        %v4885 = vunpack.c.h.b16 %v2538
        %v4886 = vunpack.c.l.b16 %v2539
        %v4887 = vunpack.c.h.b16 %v2539
        %v4888 = vunpack.c.l.b16 %v2540
        %v4889 = vunpack.c.h.b16 %v2540
        %v4890 = vunpack.c.l.b16 %v2541
        %v4891 = vunpack.c.h.b16 %v2541
        %v4892 = vunpack.c.l.b16 %v2542
        %v4893 = vunpack.c.h.b16 %v2542
        %v4894 = vunpack.c.l.b16 %v2543
        %v4895 = vunpack.c.h.b16 %v2543
        %v4896 = vunpack.c.l.b16 %v2544
        %v4897 = vunpack.c.h.b16 %v2544
        %v4898 = vunpack.c.l.b16 %v2545
        %v4899 = vunpack.c.h.b16 %v2545
        %v4900 = vunpack.c.l.b16 %v2546
        %v4901 = vunpack.c.h.b16 %v2546
        %v4902 = vunpack.c.l.b16 %v2547
        %v4903 = vunpack.c.h.b16 %v2547
        %v4904 = vunpack.c.l.b16 %v2548
        %v4905 = vunpack.c.h.b16 %v2548
        %v4906 = vunpack.c.l.b16 %v2549
        %v4907 = vunpack.c.h.b16 %v2549
        %v4908 = vunpack.c.l.b16 %v2550
        %v4909 = vunpack.c.h.b16 %v2550
        %v4910 = vunpack.c.l.b16 %v2551
        %v4911 = vunpack.c.h.b16 %v2551
        %v4912 = vunpack.c.l.b16 %v2552
        %v4913 = vunpack.c.h.b16 %v2552
        %v4914 = vunpack.c.l.b16 %v2553
        %v4915 = vunpack.c.h.b16 %v2553
        %v4916 = vunpack.c.l.b16 %v2554
        %v4917 = vunpack.c.h.b16 %v2554
        %v4918 = vunpack.c.l.b16 %v2555
        %v4919 = vunpack.c.h.b16 %v2555
        %v4920 = vunpack.c.l.b16 %v2556
        %v4921 = vunpack.c.h.b16 %v2556
        %v4922 = vunpack.c.l.b16 %v2557
        %v4923 = vunpack.c.h.b16 %v2557
        %v4924 = vunpack.c.l.b16 %v2558
        %v4925 = vunpack.c.h.b16 %v2558
        %v4926 = vunpack.c.l.b16 %v2559
        %v4927 = vunpack.c.h.b16 %v2559
        %v4928 = vunpack.c.l.b16 %v2560
        %v4929 = vunpack.c.h.b16 %v2560
        %v4930 = vunpack.c.l.b16 %v2561
        %v4931 = vunpack.c.h.b16 %v2561
        %v4932 = vunpack.c.l.b16 %v2562
        %v4933 = vunpack.c.h.b16 %v2562
        %v4934 = vunpack.c.l.b16 %v2563
        %v4935 = vunpack.c.h.b16 %v2563
        %v4936 = vunpack.c.l.b16 %v2564
        %v4937 = vunpack.c.h.b16 %v2564
        %v4938 = vunpack.c.l.b16 %v2565
        %v4939 = vunpack.c.h.b16 %v2565
        %v4940 = vunpack.c.l.b16 %v2566
        %v4941 = vunpack.c.h.b16 %v2566
        %v4942 = vunpack.c.l.b16 %v2567
        %v4943 = vunpack.c.h.b16 %v2567
        %v4944 = vunpack.c.l.b16 %v2568
        %v4945 = vunpack.c.h.b16 %v2568
        %v4946 = vunpack.c.l.b16 %v2569
        %v4947 = vunpack.c.h.b16 %v2569
        %v4948 = vunpack.c.l.b16 %v2570
        %v4949 = vunpack.c.h.b16 %v2570
        %v4950 = vunpack.c.l.b16 %v2571
        %v4951 = vunpack.c.h.b16 %v2571
        %v4952 = vunpack.c.l.b16 %v2572
        %v4953 = vunpack.c.h.b16 %v2572
        %v4954 = vunpack.c.l.b16 %v2573
        %v4955 = vunpack.c.h.b16 %v2573
        %v4956 = vunpack.c.l.b16 %v2574
        %v4957 = vunpack.c.h.b16 %v2574
        %v4958 = vunpack.c.l.b16 %v2575
        %v4959 = vunpack.c.h.b16 %v2575
        %v4960 = vunpack.c.l.b16 %v2576
        %v4961 = vunpack.c.h.b16 %v2576
        %v4962 = vunpack.c.l.b16 %v2577
        %v4963 = vunpack.c.h.b16 %v2577
        %v4964 = vunpack.c.l.b16 %v2578
        %v4965 = vunpack.c.h.b16 %v2578
        %v4966 = vunpack.c.l.b16 %v2579
        %v4967 = vunpack.c.h.b16 %v2579
        %v4968 = vunpack.c.l.b16 %v2580
        %v4969 = vunpack.c.h.b16 %v2580
        %v4970 = vunpack.c.l.b16 %v2581
        %v4971 = vunpack.c.h.b16 %v2581
        %v4972 = vunpack.c.l.b16 %v2582
        %v4973 = vunpack.c.h.b16 %v2582
        %v4974 = vunpack.c.l.b16 %v2583
        %v4975 = vunpack.c.h.b16 %v2583
        %v4976 = vunpack.c.l.b16 %v2584
        %v4977 = vunpack.c.h.b16 %v2584
        %v4978 = vunpack.c.l.b16 %v2585
        %v4979 = vunpack.c.h.b16 %v2585
        %v4980 = vunpack.c.l.b16 %v2586
        %v4981 = vunpack.c.h.b16 %v2586
        %v4982 = vunpack.c.l.b16 %v2587
        %v4983 = vunpack.c.h.b16 %v2587
        %v4984 = vunpack.c.l.b16 %v2588
        %v4985 = vunpack.c.h.b16 %v2588
        %v4986 = vunpack.c.l.b16 %v2589
        %v4987 = vunpack.c.h.b16 %v2589
        %v4988 = vunpack.c.l.b16 %v2590
        %v4989 = vunpack.c.h.b16 %v2590
        %v4990 = vunpack.c.l.b16 %v2591
        %v4991 = vunpack.c.h.b16 %v2591
        %v4992 = vunpack.c.l.b16 %v2592
        %v4993 = vunpack.c.h.b16 %v2592
        %v4994 = vunpack.c.l.b16 %v2593
        %v4995 = vunpack.c.h.b16 %v2593
        %v4996 = vunpack.c.l.b16 %v2594
        %v4997 = vunpack.c.h.b16 %v2594
        %v4998 = vunpack.c.l.b16 %v2595
        %v4999 = vunpack.c.h.b16 %v2595
        %v5000 = vunpack.c.l.b16 %v2596
        %v5001 = vunpack.c.h.b16 %v2596
        %v5002 = vunpack.c.l.b16 %v2597
        %v5003 = vunpack.c.h.b16 %v2597
        %v5004 = vunpack.c.l.b16 %v2598
        %v5005 = vunpack.c.h.b16 %v2598
        %v5006 = vunpack.c.l.b16 %v2599
        %v5007 = vunpack.c.h.b16 %v2599
        %v5008 = vunpack.c.l.b16 %v2600
        %v5009 = vunpack.c.h.b16 %v2600
        %v5010 = vunpack.c.l.b16 %v2601
        %v5011 = vunpack.c.h.b16 %v2601
        %v5012 = vunpack.c.l.b16 %v2602
        %v5013 = vunpack.c.h.b16 %v2602
        %v5014 = vunpack.c.l.b16 %v2603
        %v5015 = vunpack.c.h.b16 %v2603
        %v5016 = vunpack.c.l.b16 %v2604
        %v5017 = vunpack.c.h.b16 %v2604
        %v5018 = vunpack.c.l.b16 %v2605
        %v5019 = vunpack.c.h.b16 %v2605
        %v5020 = vunpack.c.l.b16 %v2606
        %v5021 = vunpack.c.h.b16 %v2606
        %v5022 = vunpack.c.l.b16 %v2607
        %v5023 = vunpack.c.h.b16 %v2607
        %v5024 = vunpack.c.l.b16 %v2608
        %v5025 = vunpack.c.h.b16 %v2608
        %v5026 = vunpack.c.l.b16 %v2609
        %v5027 = vunpack.c.h.b16 %v2609
        %v5028 = vunpack.c.l.b16 %v2610
        %v5029 = vunpack.c.h.b16 %v2610
        %v5030 = vunpack.c.l.b16 %v2611
        %v5031 = vunpack.c.h.b16 %v2611
        %v5032 = vunpack.c.l.b16 %v2612
        %v5033 = vunpack.c.h.b16 %v2612
        %v5034 = vunpack.c.l.b16 %v2613
        %v5035 = vunpack.c.h.b16 %v2613
        %v5036 = vunpack.c.l.b16 %v2614
        %v5037 = vunpack.c.h.b16 %v2614
        %v5038 = vunpack.c.l.b16 %v2615
        %v5039 = vunpack.c.h.b16 %v2615
        %v5040 = vunpack.c.l.b16 %v2616
        %v5041 = vunpack.c.h.b16 %v2616
        %v5042 = vunpack.c.l.b16 %v2617
        %v5043 = vunpack.c.h.b16 %v2617
        %v5044 = vunpack.c.l.b16 %v2618
        %v5045 = vunpack.c.h.b16 %v2618
        %v5046 = vunpack.c.l.b16 %v2619
        %v5047 = vunpack.c.h.b16 %v2619
        %v5048 = vunpack.c.l.b16 %v2620
        %v5049 = vunpack.c.h.b16 %v2620
        %v5050 = vunpack.c.l.b16 %v2621
        %v5051 = vunpack.c.h.b16 %v2621
        %v5052 = vunpack.c.l.b16 %v2622
        %v5053 = vunpack.c.h.b16 %v2622
        %v5054 = vunpack.c.l.b16 %v2623
        %v5055 = vunpack.c.h.b16 %v2623
        %v5056 = vunpack.c.l.b16 %v2624
        %v5057 = vunpack.c.h.b16 %v2624
        %v5058 = vunpack.c.l.b16 %v2625
        %v5059 = vunpack.c.h.b16 %v2625
        %v5060 = vunpack.c.l.b16 %v2626
        %v5061 = vunpack.c.h.b16 %v2626
        %v5062 = vunpack.c.l.b16 %v2627
        %v5063 = vunpack.c.h.b16 %v2627
        %v5064 = vunpack.c.l.b16 %v2628
        %v5065 = vunpack.c.h.b16 %v2628
        %v5066 = vunpack.c.l.b16 %v2629
        %v5067 = vunpack.c.h.b16 %v2629
        %v5068 = vunpack.c.l.b16 %v2630
        %v5069 = vunpack.c.h.b16 %v2630
        %v5070 = vunpack.c.l.b16 %v2631
        %v5071 = vunpack.c.h.b16 %v2631
        %v5072 = vunpack.c.l.b16 %v2632
        %v5073 = vunpack.c.h.b16 %v2632
        %v5074 = vunpack.c.l.b16 %v2633
        %v5075 = vunpack.c.h.b16 %v2633
        %v5076 = vunpack.c.l.b16 %v2634
        %v5077 = vunpack.c.h.b16 %v2634
        %v5078 = vunpack.c.l.b16 %v2635
        %v5079 = vunpack.c.h.b16 %v2635
        %v5080 = vunpack.c.l.b16 %v2636
        %v5081 = vunpack.c.h.b16 %v2636
        %v5082 = vunpack.c.l.b16 %v2637
        %v5083 = vunpack.c.h.b16 %v2637
        %v5084 = vunpack.c.l.b16 %v2638
        %v5085 = vunpack.c.h.b16 %v2638
        %v5086 = vunpack.c.l.b16 %v2639
        %v5087 = vunpack.c.h.b16 %v2639
        %v5088 = vunpack.c.l.b16 %v2640
        %v5089 = vunpack.c.h.b16 %v2640
        %v5090 = vunpack.c.l.b16 %v2641
        %v5091 = vunpack.c.h.b16 %v2641
        %v5092 = vunpack.c.l.b16 %v2642
        %v5093 = vunpack.c.h.b16 %v2642
        %v5094 = vunpack.c.l.b16 %v2643
        %v5095 = vunpack.c.h.b16 %v2643
        %v5096 = vunpack.c.l.b16 %v2644
        %v5097 = vunpack.c.h.b16 %v2644
        %v5098 = vunpack.c.l.b16 %v2645
        %v5099 = vunpack.c.h.b16 %v2645
        %v5100 = vunpack.c.l.b16 %v2646
        %v5101 = vunpack.c.h.b16 %v2646
        %v5102 = vunpack.c.l.b16 %v2647
        %v5103 = vunpack.c.h.b16 %v2647
        %v5104 = vunpack.c.l.b16 %v2648
        %v5105 = vunpack.c.h.b16 %v2648
        %v5106 = vunpack.c.l.b16 %v2649
        %v5107 = vunpack.c.h.b16 %v2649
        %v5108 = vunpack.c.l.b16 %v2650
        %v5109 = vunpack.c.h.b16 %v2650
        %v5110 = vunpack.c.l.b16 %v2651
        %v5111 = vunpack.c.h.b16 %v2651
        %v5112 = vunpack.c.l.b16 %v2652
        %v5113 = vunpack.c.h.b16 %v2652
        %v5114 = vunpack.c.l.b16 %v2653
        %v5115 = vunpack.c.h.b16 %v2653
        %v5116 = vunpack.c.l.b16 %v2654
        %v5117 = vunpack.c.h.b16 %v2654
        %v5118 = vunpack.c.l.b16 %v2655
        %v5119 = vunpack.c.h.b16 %v2655
        %v5120 = vunpack.c.l.b16 %v2656
        %v5121 = vunpack.c.h.b16 %v2656
        %v5122 = vunpack.c.l.b16 %v2657
        %v5123 = vunpack.c.h.b16 %v2657
        %v5124 = vunpack.c.l.b16 %v2658
        %v5125 = vunpack.c.h.b16 %v2658
        %v5126 = vunpack.c.l.b16 %v2659
        %v5127 = vunpack.c.h.b16 %v2659
        %v5128 = vunpack.c.l.b16 %v2660
        %v5129 = vunpack.c.h.b16 %v2660
        %v5130 = vunpack.c.l.b16 %v2661
        %v5131 = vunpack.c.h.b16 %v2661
        %v5132 = vunpack.c.l.b16 %v2662
        %v5133 = vunpack.c.h.b16 %v2662
        %v5134 = vunpack.c.l.b16 %v2663
        %v5135 = vunpack.c.h.b16 %v2663
        %v5136 = vunpack.c.l.b16 %v2664
        %v5137 = vunpack.c.h.b16 %v2664
        %v5138 = vunpack.c.l.b16 %v2665
        %v5139 = vunpack.c.h.b16 %v2665
        %v5140 = vunpack.c.l.b16 %v2666
        %v5141 = vunpack.c.h.b16 %v2666
        %v5142 = vunpack.c.l.b16 %v2667
        %v5143 = vunpack.c.h.b16 %v2667
        %v5144 = vunpack.c.l.b16 %v2668
        %v5145 = vunpack.c.h.b16 %v2668
        %v5146 = vunpack.c.l.b16 %v2669
        %v5147 = vunpack.c.h.b16 %v2669
        %v5148 = vunpack.c.l.b16 %v2670
        %v5149 = vunpack.c.h.b16 %v2670
        %v5150 = vunpack.c.l.b16 %v2671
        %v5151 = vunpack.c.h.b16 %v2671
        %v5152 = vunpack.c.l.b16 %v2672
        %v5153 = vunpack.c.h.b16 %v2672
        %v5154 = vunpack.c.l.b16 %v2673
        %v5155 = vunpack.c.h.b16 %v2673
        %v5156 = vunpack.c.l.b16 %v2674
        %v5157 = vunpack.c.h.b16 %v2674
        %v5158 = vunpack.c.l.b16 %v2675
        %v5159 = vunpack.c.h.b16 %v2675
        %v5160 = vunpack.c.l.b16 %v2676
        %v5161 = vunpack.c.h.b16 %v2676
        %v5162 = vunpack.c.l.b16 %v2677
        %v5163 = vunpack.c.h.b16 %v2677
        %v5164 = vunpack.c.l.b16 %v2678
        %v5165 = vunpack.c.h.b16 %v2678
        %v5166 = vunpack.c.l.b16 %v2679
        %v5167 = vunpack.c.h.b16 %v2679
        %v5168 = vunpack.c.l.b16 %v2680
        %v5169 = vunpack.c.h.b16 %v2680
        %v5170 = vunpack.c.l.b16 %v2681
        %v5171 = vunpack.c.h.b16 %v2681
        %v5172 = vunpack.c.l.b16 %v2682
        %v5173 = vunpack.c.h.b16 %v2682
        %v5174 = vunpack.c.l.b16 %v2683
        %v5175 = vunpack.c.h.b16 %v2683
        %v5176 = vunpack.c.l.b16 %v2684
        %v5177 = vunpack.c.h.b16 %v2684
        %v5178 = vunpack.c.l.b16 %v2685
        %v5179 = vunpack.c.h.b16 %v2685
        %v5180 = vunpack.c.l.b16 %v2686
        %v5181 = vunpack.c.h.b16 %v2686
        %v5182 = vunpack.c.l.b16 %v2687
        %v5183 = vunpack.c.h.b16 %v2687
        %v5184 = vunpack.c.l.b16 %v2688
        %v5185 = vunpack.c.h.b16 %v2688
        %v5186 = vunpack.c.l.b16 %v2689
        %v5187 = vunpack.c.h.b16 %v2689
        %v5188 = vunpack.c.l.b16 %v2690
        %v5189 = vunpack.c.h.b16 %v2690
        %v5190 = vunpack.c.l.b16 %v2691
        %v5191 = vunpack.c.h.b16 %v2691
        %v5192 = vunpack.c.l.b16 %v2692
        %v5193 = vunpack.c.h.b16 %v2692
        %v5194 = vunpack.c.l.b16 %v2693
        %v5195 = vunpack.c.h.b16 %v2693
        %v5196 = vunpack.c.l.b16 %v2694
        %v5197 = vunpack.c.h.b16 %v2694
        %v5198 = vunpack.c.l.b16 %v2695
        %v5199 = vunpack.c.h.b16 %v2695
        %v5200 = vunpack.c.l.b16 %v2696
        %v5201 = vunpack.c.h.b16 %v2696
        %v5202 = vunpack.c.l.b16 %v2697
        %v5203 = vunpack.c.h.b16 %v2697
        %v5204 = vunpack.c.l.b16 %v2698
        %v5205 = vunpack.c.h.b16 %v2698
        %v5206 = vunpack.c.l.b16 %v2699
        %v5207 = vunpack.c.h.b16 %v2699
        %v5208 = vunpack.c.l.b16 %v2700
        %v5209 = vunpack.c.h.b16 %v2700
        %v5210 = vunpack.c.l.b16 %v2701
        %v5211 = vunpack.c.h.b16 %v2701
        %v5212 = vunpack.c.l.b16 %v2702
        %v5213 = vunpack.c.h.b16 %v2702
        %v5214 = vunpack.c.l.b16 %v2703
        %v5215 = vunpack.c.h.b16 %v2703
        %v5216 = vunpack.c.l.b16 %v2704
        %v5217 = vunpack.c.h.b16 %v2704
        %v5218 = vunpack.c.l.b16 %v2705
        %v5219 = vunpack.c.h.b16 %v2705
        %v5220 = vunpack.c.l.b16 %v2706
        %v5221 = vunpack.c.h.b16 %v2706
        %v5222 = vunpack.c.l.b16 %v2707
        %v5223 = vunpack.c.h.b16 %v2707
        %v5224 = vunpack.c.l.b16 %v2708
        %v5225 = vunpack.c.h.b16 %v2708
        %v5226 = vunpack.c.l.b16 %v2709
        %v5227 = vunpack.c.h.b16 %v2709
        %v5228 = vunpack.c.l.b16 %v2710
        %v5229 = vunpack.c.h.b16 %v2710
        %v5230 = vunpack.c.l.b16 %v2711
        %v5231 = vunpack.c.h.b16 %v2711
        %v5232 = vunpack.c.l.b16 %v2712
        %v5233 = vunpack.c.h.b16 %v2712
        %v5234 = vunpack.c.l.b16 %v2713
        %v5235 = vunpack.c.h.b16 %v2713
        %v5236 = vunpack.c.l.b16 %v2714
        %v5237 = vunpack.c.h.b16 %v2714
        %v5238 = vunpack.c.l.b16 %v2715
        %v5239 = vunpack.c.h.b16 %v2715
        %v5240 = vunpack.c.l.b16 %v2716
        %v5241 = vunpack.c.h.b16 %v2716
        %v5242 = vunpack.c.l.b16 %v2717
        %v5243 = vunpack.c.h.b16 %v2717
        %v5244 = vunpack.c.l.b16 %v2718
        %v5245 = vunpack.c.h.b16 %v2718
        %v5246 = vunpack.c.l.b16 %v2719
        %v5247 = vunpack.c.h.b16 %v2719
        %v5248 = vunpack.c.l.b16 %v2720
        %v5249 = vunpack.c.h.b16 %v2720
        %v5250 = vunpack.c.l.b16 %v2721
        %v5251 = vunpack.c.h.b16 %v2721
        %v5252 = vunpack.c.l.b16 %v2722
        %v5253 = vunpack.c.h.b16 %v2722
        %v5254 = vunpack.c.l.b16 %v2723
        %v5255 = vunpack.c.h.b16 %v2723
        %v5256 = vunpack.c.l.b16 %v2724
        %v5257 = vunpack.c.h.b16 %v2724
        %v5258 = vunpack.c.l.b16 %v2725
        %v5259 = vunpack.c.h.b16 %v2725
        %v5260 = vunpack.c.l.b16 %v2726
        %v5261 = vunpack.c.h.b16 %v2726
        %v5262 = vunpack.c.l.b16 %v2727
        %v5263 = vunpack.c.h.b16 %v2727
        %v5264 = vunpack.c.l.b16 %v2728
        %v5265 = vunpack.c.h.b16 %v2728
        %v5266 = vunpack.c.l.b16 %v2729
        %v5267 = vunpack.c.h.b16 %v2729
        %v5268 = vunpack.c.l.b16 %v2730
        %v5269 = vunpack.c.h.b16 %v2730
        %v5270 = vunpack.c.l.b16 %v2731
        %v5271 = vunpack.c.h.b16 %v2731
        %v5272 = vunpack.c.l.b16 %v2732
        %v5273 = vunpack.c.h.b16 %v2732
        %v5274 = vunpack.c.l.b16 %v2733
        %v5275 = vunpack.c.h.b16 %v2733
        %v5276 = vunpack.c.l.b16 %v2734
        %v5277 = vunpack.c.h.b16 %v2734
        %v5278 = vunpack.c.l.b16 %v2735
        %v5279 = vunpack.c.h.b16 %v2735
        %v5280 = vunpack.c.l.b16 %v2736
        %v5281 = vunpack.c.h.b16 %v2736
        %v5282 = vunpack.c.l.b16 %v2737
        %v5283 = vunpack.c.h.b16 %v2737
        %v5284 = vunpack.c.l.b16 %v2738
        %v5285 = vunpack.c.h.b16 %v2738
        %v5286 = vunpack.c.l.b16 %v2739
        %v5287 = vunpack.c.h.b16 %v2739
        %v5288 = vunpack.c.l.b16 %v2740
        %v5289 = vunpack.c.h.b16 %v2740
        %v5290 = vunpack.c.l.b16 %v2741
        %v5291 = vunpack.c.h.b16 %v2741
        %v5292 = vunpack.c.l.b16 %v2742
        %v5293 = vunpack.c.h.b16 %v2742
        %v5294 = vunpack.c.l.b16 %v2743
        %v5295 = vunpack.c.h.b16 %v2743
        %v5296 = vunpack.c.l.b16 %v2744
        %v5297 = vunpack.c.h.b16 %v2744
        %v5298 = vunpack.c.l.b16 %v2745
        %v5299 = vunpack.c.h.b16 %v2745
        %v5300 = vunpack.c.l.b16 %v2746
        %v5301 = vunpack.c.h.b16 %v2746
        %v5302 = vunpack.c.l.b16 %v2747
        %v5303 = vunpack.c.h.b16 %v2747
        %v5304 = vunpack.c.l.b16 %v2748
        %v5305 = vunpack.c.h.b16 %v2748
        %v5306 = vunpack.c.l.b16 %v2749
        %v5307 = vunpack.c.h.b16 %v2749
        %v5308 = vunpack.c.l.b16 %v2750
        %v5309 = vunpack.c.h.b16 %v2750
        %v5310 = vunpack.c.l.b16 %v2751
        %v5311 = vunpack.c.h.b16 %v2751
        %v5312 = vunpack.c.l.b16 %v2752
        %v5313 = vunpack.c.h.b16 %v2752
        %v5314 = vunpack.c.l.b16 %v2753
        %v5315 = vunpack.c.h.b16 %v2753
        %v5316 = vunpack.c.l.b16 %v2754
        %v5317 = vunpack.c.h.b16 %v2754
        %v5318 = vunpack.c.l.b16 %v2755
        %v5319 = vunpack.c.h.b16 %v2755
        %v5320 = vunpack.c.l.b16 %v2756
        %v5321 = vunpack.c.h.b16 %v2756
        %v5322 = vunpack.c.l.b16 %v2757
        %v5323 = vunpack.c.h.b16 %v2757
        %v5324 = vunpack.c.l.b16 %v2758
        %v5325 = vunpack.c.h.b16 %v2758
        %v5326 = vunpack.c.l.b16 %v2759
        %v5327 = vunpack.c.h.b16 %v2759
        %v5328 = vunpack.c.l.b16 %v2760
        %v5329 = vunpack.c.h.b16 %v2760
        %v5330 = vunpack.c.l.b16 %v2761
        %v5331 = vunpack.c.h.b16 %v2761
        %v5332 = vunpack.c.l.b16 %v2762
        %v5333 = vunpack.c.h.b16 %v2762
        %v5334 = vunpack.c.l.b16 %v2763
        %v5335 = vunpack.c.h.b16 %v2763
        %v5336 = vunpack.c.l.b16 %v2764
        %v5337 = vunpack.c.h.b16 %v2764
        %v5338 = vunpack.c.l.b16 %v2765
        %v5339 = vunpack.c.h.b16 %v2765
        %v5340 = vunpack.c.l.b16 %v2766
        %v5341 = vunpack.c.h.b16 %v2766
        %v5342 = vunpack.c.l.b16 %v2767
        %v5343 = vunpack.c.h.b16 %v2767
        %v5344 = vunpack.c.l.b16 %v2768
        %v5345 = vunpack.c.h.b16 %v2768
        %v5346 = vunpack.c.l.b16 %v2769
        %v5347 = vunpack.c.h.b16 %v2769
        %v5348 = vunpack.c.l.b16 %v2770
        %v5349 = vunpack.c.h.b16 %v2770
        %v5350 = vunpack.c.l.b16 %v2771
        %v5351 = vunpack.c.h.b16 %v2771
        %v5352 = vunpack.c.l.b16 %v2772
        %v5353 = vunpack.c.h.b16 %v2772
        %v5354 = vunpack.c.l.b16 %v2773
        %v5355 = vunpack.c.h.b16 %v2773
        %v5356 = vunpack.c.l.b16 %v2774
        %v5357 = vunpack.c.h.b16 %v2774
        %v5358 = vunpack.c.l.b16 %v2775
        %v5359 = vunpack.c.h.b16 %v2775
        %v5360 = vunpack.c.l.b16 %v2776
        %v5361 = vunpack.c.h.b16 %v2776
        %v5362 = vunpack.c.l.b16 %v2777
        %v5363 = vunpack.c.h.b16 %v2777
        %v5364 = vunpack.c.l.b16 %v2778
        %v5365 = vunpack.c.h.b16 %v2778
        %v5366 = vunpack.c.l.b16 %v2779
        %v5367 = vunpack.c.h.b16 %v2779
        %v5368 = vunpack.c.l.b16 %v2780
        %v5369 = vunpack.c.h.b16 %v2780
        %v5370 = vunpack.c.l.b16 %v2781
        %v5371 = vunpack.c.h.b16 %v2781
        %v5372 = vunpack.c.l.b16 %v2782
        %v5373 = vunpack.c.h.b16 %v2782
        %v5374 = vunpack.c.l.b16 %v2783
        %v5375 = vunpack.c.h.b16 %v2783
        %v5376 = vunpack.c.l.b16 %v2784
        %v5377 = vunpack.c.h.b16 %v2784
        %v5378 = vunpack.c.l.b16 %v2785
        %v5379 = vunpack.c.h.b16 %v2785
        %v5380 = vunpack.c.l.b16 %v2786
        %v5381 = vunpack.c.h.b16 %v2786
        %v5382 = vunpack.c.l.b16 %v2787
        %v5383 = vunpack.c.h.b16 %v2787
        %v5384 = vunpack.c.l.b16 %v2788
        %v5385 = vunpack.c.h.b16 %v2788
        %v5386 = vunpack.c.l.b16 %v2789
        %v5387 = vunpack.c.h.b16 %v2789
        %v5388 = vunpack.c.l.b16 %v2790
        %v5389 = vunpack.c.h.b16 %v2790
        %v5390 = vunpack.c.l.b16 %v2791
        %v5391 = vunpack.c.h.b16 %v2791
        %v5392 = vunpack.c.l.b16 %v2792
        %v5393 = vunpack.c.h.b16 %v2792
        %v5394 = vunpack.c.l.b16 %v2793
        %v5395 = vunpack.c.h.b16 %v2793
        %v5396 = vunpack.c.l.b16 %v2794
        %v5397 = vunpack.c.h.b16 %v2794
        %v5398 = vunpack.c.l.b16 %v2795
        %v5399 = vunpack.c.h.b16 %v2795
        %v5400 = vunpack.c.l.b16 %v2796
        %v5401 = vunpack.c.h.b16 %v2796
        %v5402 = vunpack.c.l.b16 %v2797
        %v5403 = vunpack.c.h.b16 %v2797
        %v5404 = vunpack.c.l.b16 %v2798
        %v5405 = vunpack.c.h.b16 %v2798
        %v5406 = vunpack.c.l.b16 %v2799
        %v5407 = vunpack.c.h.b16 %v2799
        %v5408 = vunpack.c.l.b16 %v2800
        %v5409 = vunpack.c.h.b16 %v2800
        %v5410 = vunpack.c.l.b16 %v2801
        %v5411 = vunpack.c.h.b16 %v2801
        %v5412 = vunpack.c.l.b16 %v2802
        %v5413 = vunpack.c.h.b16 %v2802
        %v5414 = vunpack.c.l.b16 %v2803
        %v5415 = vunpack.c.h.b16 %v2803
        %v5416 = vunpack.c.l.b16 %v2804
        %v5417 = vunpack.c.h.b16 %v2804
        %v5418 = vunpack.c.l.b16 %v2805
        %v5419 = vunpack.c.h.b16 %v2805
        %v5420 = vunpack.c.l.b16 %v2806
        %v5421 = vunpack.c.h.b16 %v2806
        %v5422 = vunpack.c.l.b16 %v2807
        %v5423 = vunpack.c.h.b16 %v2807
        %v5424 = vunpack.c.l.b16 %v2808
        %v5425 = vunpack.c.h.b16 %v2808
        %v5426 = vunpack.c.l.b16 %v2809
        %v5427 = vunpack.c.h.b16 %v2809
        %v5428 = vunpack.c.l.b16 %v2810
        %v5429 = vunpack.c.h.b16 %v2810
        %v5430 = vunpack.c.l.b16 %v2811
        %v5431 = vunpack.c.h.b16 %v2811
        %v5432 = vunpack.c.l.b16 %v2812
        %v5433 = vunpack.c.h.b16 %v2812
        %v5434 = vunpack.c.l.b16 %v2813
        %v5435 = vunpack.c.h.b16 %v2813
        %v5436 = vunpack.c.l.b16 %v2814
        %v5437 = vunpack.c.h.b16 %v2814
        %v5438 = vunpack.c.l.b16 %v2815
        %v5439 = vunpack.c.h.b16 %v2815
        %v5440 = vunpack.c.l.b16 %v2816
        %v5441 = vunpack.c.h.b16 %v2816
        %v5442 = vunpack.c.l.b16 %v2817
        %v5443 = vunpack.c.h.b16 %v2817
        %v5444 = vunpack.c.l.b16 %v2818
        %v5445 = vunpack.c.h.b16 %v2818
        %v5446 = vunpack.c.l.b16 %v2819
        %v5447 = vunpack.c.h.b16 %v2819
        %v5448 = vunpack.c.l.b16 %v2820
        %v5449 = vunpack.c.h.b16 %v2820
        %v5450 = vunpack.c.l.b16 %v2821
        %v5451 = vunpack.c.h.b16 %v2821
        %v5452 = vunpack.c.l.b16 %v2822
        %v5453 = vunpack.c.h.b16 %v2822
        %v5454 = vunpack.c.l.b16 %v2823
        %v5455 = vunpack.c.h.b16 %v2823
        %v5456 = vunpack.c.l.b16 %v2824
        %v5457 = vunpack.c.h.b16 %v2824
        %v5458 = vunpack.c.l.b16 %v2825
        %v5459 = vunpack.c.h.b16 %v2825
        %v5460 = vunpack.c.l.b16 %v2826
        %v5461 = vunpack.c.h.b16 %v2826
        %v5462 = vunpack.c.l.b16 %v2827
        %v5463 = vunpack.c.h.b16 %v2827
        %v5464 = vunpack.c.l.b16 %v2828
        %v5465 = vunpack.c.h.b16 %v2828
        %v5466 = vunpack.c.l.b16 %v2829
        %v5467 = vunpack.c.h.b16 %v2829
        %v5468 = vunpack.c.l.b16 %v2830
        %v5469 = vunpack.c.h.b16 %v2830
        %v5470 = vunpack.c.l.b16 %v2831
        %v5471 = vunpack.c.h.b16 %v2831
        %v5472 = vunpack.c.l.b16 %v2832
        %v5473 = vunpack.c.h.b16 %v2832
        %v5474 = vunpack.c.l.b16 %v2833
        %v5475 = vunpack.c.h.b16 %v2833
        %v5476 = vunpack.c.l.b16 %v2834
        %v5477 = vunpack.c.h.b16 %v2834
        %v5478 = vunpack.c.l.b16 %v2835
        %v5479 = vunpack.c.h.b16 %v2835
        %v5480 = vunpack.c.l.b16 %v2836
        %v5481 = vunpack.c.h.b16 %v2836
        %v5482 = vunpack.c.l.b16 %v2837
        %v5483 = vunpack.c.h.b16 %v2837
        %v5484 = vunpack.c.l.b16 %v2838
        %v5485 = vunpack.c.h.b16 %v2838
        %v5486 = vunpack.c.l.b16 %v2839
        %v5487 = vunpack.c.h.b16 %v2839
        %v5488 = vunpack.c.l.b16 %v2840
        %v5489 = vunpack.c.h.b16 %v2840
        %v5490 = vunpack.c.l.b16 %v2841
        %v5491 = vunpack.c.h.b16 %v2841
        %v5492 = vunpack.c.l.b16 %v2842
        %v5493 = vunpack.c.h.b16 %v2842
        %v5494 = vunpack.c.l.b16 %v2843
        %v5495 = vunpack.c.h.b16 %v2843
        %v5496 = vunpack.c.l.b16 %v2844
        %v5497 = vunpack.c.h.b16 %v2844
        %v5498 = vunpack.c.l.b16 %v2845
        %v5499 = vunpack.c.h.b16 %v2845
        %v5500 = vunpack.c.l.b16 %v2846
        %v5501 = vunpack.c.h.b16 %v2846
        %v5502 = vunpack.c.l.b16 %v2847
        %v5503 = vunpack.c.h.b16 %v2847
        %v5504 = vunpack.c.l.b16 %v2848
        %v5505 = vunpack.c.h.b16 %v2848
        %v5506 = vunpack.c.l.b16 %v2849
        %v5507 = vunpack.c.h.b16 %v2849
        %v5508 = vunpack.c.l.b16 %v2850
        %v5509 = vunpack.c.h.b16 %v2850
        %v5510 = vunpack.c.l.b16 %v2851
        %v5511 = vunpack.c.h.b16 %v2851
        %v5512 = vunpack.c.l.b16 %v2852
        %v5513 = vunpack.c.h.b16 %v2852
        %v5514 = vunpack.c.l.b16 %v2853
        %v5515 = vunpack.c.h.b16 %v2853
        %v5516 = vunpack.c.l.b16 %v2854
        %v5517 = vunpack.c.h.b16 %v2854
        %v5518 = vunpack.c.l.b16 %v2855
        %v5519 = vunpack.c.h.b16 %v2855
        %v5520 = vunpack.c.l.b16 %v2856
        %v5521 = vunpack.c.h.b16 %v2856
        %v5522 = vunpack.c.l.b16 %v2857
        %v5523 = vunpack.c.h.b16 %v2857
        %v5524 = vunpack.c.l.b16 %v2858
        %v5525 = vunpack.c.h.b16 %v2858
        %v5526 = vunpack.c.l.b16 %v2859
        %v5527 = vunpack.c.h.b16 %v2859
        %v5528 = vunpack.c.l.b16 %v2860
        %v5529 = vunpack.c.h.b16 %v2860
        %v5530 = vunpack.c.l.b16 %v2861
        %v5531 = vunpack.c.h.b16 %v2861
        %v5532 = vunpack.c.l.b16 %v2862
        %v5533 = vunpack.c.h.b16 %v2862
        %v5534 = vunpack.c.l.b16 %v2863
        %v5535 = vunpack.c.h.b16 %v2863
        %v5536 = vunpack.c.l.b16 %v2864
        %v5537 = vunpack.c.h.b16 %v2864
        %v5538 = vunpack.c.l.b16 %v2865
        %v5539 = vunpack.c.h.b16 %v2865
        %v5540 = vunpack.c.l.b16 %v2866
        %v5541 = vunpack.c.h.b16 %v2866
        %v5542 = vunpack.c.l.b16 %v2867
        %v5543 = vunpack.c.h.b16 %v2867
        %v5544 = vunpack.c.l.b16 %v2868
        %v5545 = vunpack.c.h.b16 %v2868
        %v5546 = vunpack.c.l.b16 %v2869
        %v5547 = vunpack.c.h.b16 %v2869
        %v5548 = vunpack.c.l.b16 %v2870
        %v5549 = vunpack.c.h.b16 %v2870
        %v5550 = vunpack.c.l.b16 %v2871
        %v5551 = vunpack.c.h.b16 %v2871
        %v5552 = vunpack.c.l.b16 %v2872
        %v5553 = vunpack.c.h.b16 %v2872
        %v5554 = vunpack.c.l.b16 %v2873
        %v5555 = vunpack.c.h.b16 %v2873
        %v5556 = vunpack.c.l.b16 %v2874
        %v5557 = vunpack.c.h.b16 %v2874
        %v5558 = vunpack.c.l.b16 %v2875
        %v5559 = vunpack.c.h.b16 %v2875
        %v5560 = vunpack.c.l.b16 %v2876
        %v5561 = vunpack.c.h.b16 %v2876
        %v5562 = vunpack.c.l.b16 %v2877
        %v5563 = vunpack.c.h.b16 %v2877
        %v5564 = vunpack.c.l.b16 %v2878
        %v5565 = vunpack.c.h.b16 %v2878
        %v5566 = vunpack.c.l.b16 %v2879
        %v5567 = vunpack.c.h.b16 %v2879
        %v5568 = vunpack.c.l.b16 %v2880
        %v5569 = vunpack.c.h.b16 %v2880
        %v5570 = vunpack.c.l.b16 %v2881
        %v5571 = vunpack.c.h.b16 %v2881
        %v5572 = vunpack.c.l.b16 %v2882
        %v5573 = vunpack.c.h.b16 %v2882
        %v5574 = vunpack.c.l.b16 %v2883
        %v5575 = vunpack.c.h.b16 %v2883
        %v5576 = vunpack.c.l.b16 %v2884
        %v5577 = vunpack.c.h.b16 %v2884
        %v5578 = vunpack.c.l.b16 %v2885
        %v5579 = vunpack.c.h.b16 %v2885
        %v5580 = vunpack.c.l.b16 %v2886
        %v5581 = vunpack.c.h.b16 %v2886
        %v5582 = vunpack.c.l.b16 %v2887
        %v5583 = vunpack.c.h.b16 %v2887
        %v5584 = vunpack.c.l.b16 %v2888
        %v5585 = vunpack.c.h.b16 %v2888
        %v5586 = vunpack.c.l.b16 %v2889
        %v5587 = vunpack.c.h.b16 %v2889
        %v5588 = vunpack.c.l.b16 %v2890
        %v5589 = vunpack.c.h.b16 %v2890
        %v5590 = vunpack.c.l.b16 %v2891
        %v5591 = vunpack.c.h.b16 %v2891
        %v5592 = vunpack.c.l.b16 %v2892
        %v5593 = vunpack.c.h.b16 %v2892
        %v5594 = vunpack.c.l.b16 %v2893
        %v5595 = vunpack.c.h.b16 %v2893
        %v5596 = vunpack.c.l.b16 %v2894
        %v5597 = vunpack.c.h.b16 %v2894
        %v5598 = vunpack.c.l.b16 %v2895
        %v5599 = vunpack.c.h.b16 %v2895
        %v5600 = vunpack.c.l.b16 %v2896
        %v5601 = vunpack.c.h.b16 %v2896
        %v5602 = vunpack.c.l.b16 %v2897
        %v5603 = vunpack.c.h.b16 %v2897
        %v5604 = vunpack.c.l.b16 %v2898
        %v5605 = vunpack.c.h.b16 %v2898
        %v5606 = vunpack.c.l.b16 %v2899
        %v5607 = vunpack.c.h.b16 %v2899
        %v5608 = vunpack.c.l.b16 %v2900
        %v5609 = vunpack.c.h.b16 %v2900
        %v5610 = vunpack.c.l.b16 %v2901
        %v5611 = vunpack.c.h.b16 %v2901
        %v5612 = vunpack.c.l.b16 %v2902
        %v5613 = vunpack.c.h.b16 %v2902
        %v5614 = vunpack.c.l.b16 %v2903
        %v5615 = vunpack.c.h.b16 %v2903
        %v5616 = vunpack.c.l.b16 %v2904
        %v5617 = vunpack.c.h.b16 %v2904
        %v5618 = vunpack.c.l.b16 %v2905
        %v5619 = vunpack.c.h.b16 %v2905
        %v5620 = vunpack.c.l.b16 %v2906
        %v5621 = vunpack.c.h.b16 %v2906
        %v5622 = vunpack.c.l.b16 %v2907
        %v5623 = vunpack.c.h.b16 %v2907
        %v5624 = vunpack.c.l.b16 %v2908
        %v5625 = vunpack.c.h.b16 %v2908
        %v5626 = vunpack.c.l.b16 %v2909
        %v5627 = vunpack.c.h.b16 %v2909
        %v5628 = vunpack.c.l.b16 %v2910
        %v5629 = vunpack.c.h.b16 %v2910
        %v5630 = vunpack.c.l.b16 %v2911
        %v5631 = vunpack.c.h.b16 %v2911
        %v5632 = vunpack.c.l.b16 %v2912
        %v5633 = vunpack.c.h.b16 %v2912
        %v5634 = vunpack.c.l.b16 %v2913
        %v5635 = vunpack.c.h.b16 %v2913
        %v5636 = vunpack.c.l.b16 %v2914
        %v5637 = vunpack.c.h.b16 %v2914
        %v5638 = vunpack.c.l.b16 %v2915
        %v5639 = vunpack.c.h.b16 %v2915
        %v5640 = vunpack.c.l.b16 %v2916
        %v5641 = vunpack.c.h.b16 %v2916
        %v5642 = vunpack.c.l.b16 %v2917
        %v5643 = vunpack.c.h.b16 %v2917
        %v5644 = vunpack.c.l.b16 %v2918
        %v5645 = vunpack.c.h.b16 %v2918
        %v5646 = vunpack.c.l.b16 %v2919
        %v5647 = vunpack.c.h.b16 %v2919
        %v5648 = vunpack.c.l.b16 %v2920
        %v5649 = vunpack.c.h.b16 %v2920
        %v5650 = vunpack.c.l.b16 %v2921
        %v5651 = vunpack.c.h.b16 %v2921
        %v5652 = vunpack.c.l.b16 %v2922
        %v5653 = vunpack.c.h.b16 %v2922
        %v5654 = vunpack.c.l.b16 %v2923
        %v5655 = vunpack.c.h.b16 %v2923
        %v5656 = vunpack.c.l.b16 %v2924
        %v5657 = vunpack.c.h.b16 %v2924
        %v5658 = vunpack.c.l.b16 %v2925
        %v5659 = vunpack.c.h.b16 %v2925
        %v5660 = vunpack.c.l.b16 %v2926
        %v5661 = vunpack.c.h.b16 %v2926
        %v5662 = vunpack.c.l.b16 %v2927
        %v5663 = vunpack.c.h.b16 %v2927
        %v5664 = vunpack.c.l.b16 %v2928
        %v5665 = vunpack.c.h.b16 %v2928
        %v5666 = vunpack.c.l.b16 %v2929
        %v5667 = vunpack.c.h.b16 %v2929
        %v5668 = vunpack.c.l.b16 %v2930
        %v5669 = vunpack.c.h.b16 %v2930
        %v5670 = vunpack.c.l.b16 %v2931
        %v5671 = vunpack.c.h.b16 %v2931
        %v5672 = vunpack.c.l.b16 %v2932
        %v5673 = vunpack.c.h.b16 %v2932
        %v5674 = vunpack.c.l.b16 %v2933
        %v5675 = vunpack.c.h.b16 %v2933
        %v5676 = vunpack.c.l.b16 %v2934
        %v5677 = vunpack.c.h.b16 %v2934
        %v5678 = vunpack.c.l.b16 %v2935
        %v5679 = vunpack.c.h.b16 %v2935
        %v5680 = vunpack.c.l.b16 %v2936
        %v5681 = vunpack.c.h.b16 %v2936
        %v5682 = vunpack.c.l.b16 %v2937
        %v5683 = vunpack.c.h.b16 %v2937
        %v5684 = vunpack.c.l.b16 %v2938
        %v5685 = vunpack.c.h.b16 %v2938
        %v5686 = vunpack.c.l.b16 %v2939
        %v5687 = vunpack.c.h.b16 %v2939
        %v5688 = vunpack.c.l.b16 %v2940
        %v5689 = vunpack.c.h.b16 %v2940
        %v5690 = vunpack.c.l.b16 %v2941
        %v5691 = vunpack.c.h.b16 %v2941
        %v5692 = vunpack.c.l.b16 %v2942
        %v5693 = vunpack.c.h.b16 %v2942
        %v5694 = vunpack.c.l.b16 %v2943
        %v5695 = vunpack.c.h.b16 %v2943
        %v5696 = vunpack.c.l.b16 %v2944
        %v5697 = vunpack.c.h.b16 %v2944
        %v5698 = vunpack.c.l.b16 %v2945
        %v5699 = vunpack.c.h.b16 %v2945
        %v5700 = vunpack.c.l.b16 %v2946
        %v5701 = vunpack.c.h.b16 %v2946
        %v5702 = vunpack.c.l.b16 %v2947
        %v5703 = vunpack.c.h.b16 %v2947
        %v5704 = vunpack.c.l.b16 %v2948
        %v5705 = vunpack.c.h.b16 %v2948
        %v5706 = vunpack.c.l.b16 %v2949
        %v5707 = vunpack.c.h.b16 %v2949
        %v5708 = vunpack.c.l.b16 %v2950
        %v5709 = vunpack.c.h.b16 %v2950
        %v5710 = vunpack.c.l.b16 %v2951
        %v5711 = vunpack.c.h.b16 %v2951
        %v5712 = vunpack.c.l.b16 %v2952
        %v5713 = vunpack.c.h.b16 %v2952
        %v5714 = vunpack.c.l.b16 %v2953
        %v5715 = vunpack.c.h.b16 %v2953
        %v5716 = vunpack.c.l.b16 %v2954
        %v5717 = vunpack.c.h.b16 %v2954
        %v5718 = vunpack.c.l.b16 %v2955
        %v5719 = vunpack.c.h.b16 %v2955
        %v5720 = vunpack.c.l.b16 %v2956
        %v5721 = vunpack.c.h.b16 %v2956
        %v5722 = vunpack.c.l.b16 %v2957
        %v5723 = vunpack.c.h.b16 %v2957
        %v5724 = vunpack.c.l.b16 %v2958
        %v5725 = vunpack.c.h.b16 %v2958
        %v5726 = vunpack.c.l.b16 %v2959
        %v5727 = vunpack.c.h.b16 %v2959
        %v5728 = vunpack.c.l.b16 %v2960
        %v5729 = vunpack.c.h.b16 %v2960
        %v5730 = vunpack.c.l.b16 %v2961
        %v5731 = vunpack.c.h.b16 %v2961
        %v5732 = vunpack.c.l.b16 %v2962
        %v5733 = vunpack.c.h.b16 %v2962
        %v5734 = vunpack.c.l.b16 %v2963
        %v5735 = vunpack.c.h.b16 %v2963
        %v5736 = vunpack.c.l.b16 %v2964
        %v5737 = vunpack.c.h.b16 %v2964
        %v5738 = vunpack.c.l.b16 %v2965
        %v5739 = vunpack.c.h.b16 %v2965
        %v5740 = vunpack.c.l.b16 %v2966
        %v5741 = vunpack.c.h.b16 %v2966
        %v5742 = vunpack.c.l.b16 %v2967
        %v5743 = vunpack.c.h.b16 %v2967
        %v5744 = vunpack.c.l.b16 %v2968
        %v5745 = vunpack.c.h.b16 %v2968
        %v5746 = vunpack.c.l.b16 %v2969
        %v5747 = vunpack.c.h.b16 %v2969
        %v5748 = vunpack.c.l.b16 %v2970
        %v5749 = vunpack.c.h.b16 %v2970
        %v5750 = vunpack.c.l.b16 %v2971
        %v5751 = vunpack.c.h.b16 %v2971
        %v5752 = vunpack.c.l.b16 %v2972
        %v5753 = vunpack.c.h.b16 %v2972
        %v5754 = vunpack.c.l.b16 %v2973
        %v5755 = vunpack.c.h.b16 %v2973
        %v5756 = vunpack.c.l.b16 %v2974
        %v5757 = vunpack.c.h.b16 %v2974
        %v5758 = vunpack.c.l.b16 %v2975
        %v5759 = vunpack.c.h.b16 %v2975
        %v5760 = vunpack.c.l.b16 %v2976
        %v5761 = vunpack.c.h.b16 %v2976
        %v5762 = vunpack.c.l.b16 %v2977
        %v5763 = vunpack.c.h.b16 %v2977
        %v5764 = vunpack.c.l.b16 %v2978
        %v5765 = vunpack.c.h.b16 %v2978
        %v5766 = vunpack.c.l.b16 %v2979
        %v5767 = vunpack.c.h.b16 %v2979
        %v5768 = vunpack.c.l.b16 %v2980
        %v5769 = vunpack.c.h.b16 %v2980
        %v5770 = vunpack.c.l.b16 %v2981
        %v5771 = vunpack.c.h.b16 %v2981
        %v5772 = vunpack.c.l.b16 %v2982
        %v5773 = vunpack.c.h.b16 %v2982
        %v5774 = vunpack.c.l.b16 %v2983
        %v5775 = vunpack.c.h.b16 %v2983
        %v5776 = vunpack.c.l.b16 %v2984
        %v5777 = vunpack.c.h.b16 %v2984
        %v5778 = vunpack.c.l.b16 %v2985
        %v5779 = vunpack.c.h.b16 %v2985
        %v5780 = vunpack.c.l.b16 %v2986
        %v5781 = vunpack.c.h.b16 %v2986
        %v5782 = vunpack.c.l.b16 %v2987
        %v5783 = vunpack.c.h.b16 %v2987
        %v5784 = vunpack.c.l.b16 %v2988
        %v5785 = vunpack.c.h.b16 %v2988
        %v5786 = vunpack.c.l.b16 %v2989
        %v5787 = vunpack.c.h.b16 %v2989
        %v5788 = vunpack.c.l.b16 %v2990
        %v5789 = vunpack.c.h.b16 %v2990
        %v5790 = vunpack.c.l.b16 %v2991
        %v5791 = vunpack.c.h.b16 %v2991
        %v5792 = vunpack.c.l.b16 %v2992
        %v5793 = vunpack.c.h.b16 %v2992
        %v5794 = vunpack.c.l.b16 %v2993
        %v5795 = vunpack.c.h.b16 %v2993
        %v5796 = vunpack.c.l.b16 %v2994
        %v5797 = vunpack.c.h.b16 %v2994
        %v5798 = vunpack.c.l.b16 %v2995
        %v5799 = vunpack.c.h.b16 %v2995
        %v5800 = vunpack.c.l.b16 %v2996
        %v5801 = vunpack.c.h.b16 %v2996
        %v5802 = vunpack.c.l.b16 %v2997
        %v5803 = vunpack.c.h.b16 %v2997
        %v5804 = vunpack.c.l.b16 %v2998
        %v5805 = vunpack.c.h.b16 %v2998
        %v5806 = vunpack.c.l.b16 %v2999
        %v5807 = vunpack.c.h.b16 %v2999
        %v5808 = vunpack.c.l.b16 %v3000
        %v5809 = vunpack.c.h.b16 %v3000
        %v5810 = vunpack.c.l.b16 %v3001
        %v5811 = vunpack.c.h.b16 %v3001
        %v5812 = vunpack.c.l.b16 %v3002
        %v5813 = vunpack.c.h.b16 %v3002
        %v5814 = vunpack.c.l.b16 %v3003
        %v5815 = vunpack.c.h.b16 %v3003
        %v5816 = vunpack.c.l.b16 %v3004
        %v5817 = vunpack.c.h.b16 %v3004
        %v5818 = vunpack.c.l.b16 %v3005
        %v5819 = vunpack.c.h.b16 %v3005
        %v5820 = vunpack.c.l.b16 %v3006
        %v5821 = vunpack.c.h.b16 %v3006
        %v5822 = vunpack.c.l.b16 %v3007
        %v5823 = vunpack.c.h.b16 %v3007
        %v5824 = vunpack.c.l.b16 %v3008
        %v5825 = vunpack.c.h.b16 %v3008
        %v5826 = vunpack.c.l.b16 %v3009
        %v5827 = vunpack.c.h.b16 %v3009
        %v5828 = vunpack.c.l.b16 %v3010
        %v5829 = vunpack.c.h.b16 %v3010
        %v5830 = vunpack.c.l.b16 %v3011
        %v5831 = vunpack.c.h.b16 %v3011
        %v5832 = vunpack.c.l.b16 %v3012
        %v5833 = vunpack.c.h.b16 %v3012
        %v5834 = vunpack.c.l.b16 %v3013
        %v5835 = vunpack.c.h.b16 %v3013
        %v5836 = vunpack.c.l.b16 %v3014
        %v5837 = vunpack.c.h.b16 %v3014
        %v5838 = vunpack.c.l.b16 %v3015
        %v5839 = vunpack.c.h.b16 %v3015
        %v5840 = vunpack.c.l.b16 %v3016
        %v5841 = vunpack.c.h.b16 %v3016
        %v5842 = vunpack.c.l.b16 %v3017
        %v5843 = vunpack.c.h.b16 %v3017
        %v5844 = vunpack.c.l.b16 %v3018
        %v5845 = vunpack.c.h.b16 %v3018
        %v5846 = vunpack.c.l.b16 %v3019
        %v5847 = vunpack.c.h.b16 %v3019
        %v5848 = vunpack.c.l.b16 %v3020
        %v5849 = vunpack.c.h.b16 %v3020
        %v5850 = vunpack.c.l.b16 %v3021
        %v5851 = vunpack.c.h.b16 %v3021
        %v5852 = vunpack.c.l.b16 %v3022
        %v5853 = vunpack.c.h.b16 %v3022
        %v5854 = vunpack.c.l.b16 %v3023
        %v5855 = vunpack.c.h.b16 %v3023
        %v5856 = vunpack.c.l.b16 %v3024
        %v5857 = vunpack.c.h.b16 %v3024
        %v5858 = vunpack.c.l.b16 %v3025
        %v5859 = vunpack.c.h.b16 %v3025
        %v5860 = vunpack.c.l.b16 %v3026
        %v5861 = vunpack.c.h.b16 %v3026
        %v5862 = vunpack.c.l.b16 %v3027
        %v5863 = vunpack.c.h.b16 %v3027
        %v5864 = vunpack.c.l.b16 %v3028
        %v5865 = vunpack.c.h.b16 %v3028
        %v5866 = vunpack.c.l.b16 %v3029
        %v5867 = vunpack.c.h.b16 %v3029
        %v5868 = vunpack.c.l.b16 %v3030
        %v5869 = vunpack.c.h.b16 %v3030
        %v5870 = vunpack.c.l.b16 %v3031
        %v5871 = vunpack.c.h.b16 %v3031
        %v5872 = vunpack.c.l.b16 %v3032
        %v5873 = vunpack.c.h.b16 %v3032
        %v5874 = vunpack.c.l.b16 %v3033
        %v5875 = vunpack.c.h.b16 %v3033
        %v5876 = vunpack.c.l.b16 %v3034
        %v5877 = vunpack.c.h.b16 %v3034
        %v5878 = vunpack.c.l.b16 %v3035
        %v5879 = vunpack.c.h.b16 %v3035
        %v5880 = vunpack.c.l.b16 %v3036
        %v5881 = vunpack.c.h.b16 %v3036
        %v5882 = vunpack.c.l.b16 %v3037
        %v5883 = vunpack.c.h.b16 %v3037
        %v5884 = vunpack.c.l.b16 %v3038
        %v5885 = vunpack.c.h.b16 %v3038
        %v5886 = vunpack.c.l.b16 %v3039
        %v5887 = vunpack.c.h.b16 %v3039
        %v5888 = vunpack.c.l.b16 %v3040
        %v5889 = vunpack.c.h.b16 %v3040
        %v5890 = vunpack.c.l.b16 %v3041
        %v5891 = vunpack.c.h.b16 %v3041
        %v5892 = vunpack.c.l.b16 %v3042
        %v5893 = vunpack.c.h.b16 %v3042
        %v5894 = vunpack.c.l.b16 %v3043
        %v5895 = vunpack.c.h.b16 %v3043
        %v5896 = vunpack.c.l.b16 %v3044
        %v5897 = vunpack.c.h.b16 %v3044
        %v5898 = vunpack.c.l.b16 %v3045
        %v5899 = vunpack.c.h.b16 %v3045
        %v5900 = vunpack.c.l.b16 %v3046
        %v5901 = vunpack.c.h.b16 %v3046
        %v5902 = vunpack.c.l.b16 %v3047
        %v5903 = vunpack.c.h.b16 %v3047
        %v5904 = vunpack.c.l.b16 %v3048
        %v5905 = vunpack.c.h.b16 %v3048
        %v5906 = vunpack.c.l.b16 %v3049
        %v5907 = vunpack.c.h.b16 %v3049
        %v5908 = vunpack.c.l.b16 %v3050
        %v5909 = vunpack.c.h.b16 %v3050
        %v5910 = vunpack.c.l.b16 %v3051
        %v5911 = vunpack.c.h.b16 %v3051
        %v5912 = vunpack.c.l.b16 %v3052
        %v5913 = vunpack.c.h.b16 %v3052
        %v5914 = vunpack.c.l.b16 %v3053
        %v5915 = vunpack.c.h.b16 %v3053
        %v5916 = vunpack.c.l.b16 %v3054
        %v5917 = vunpack.c.h.b16 %v3054
        %v5918 = vunpack.c.l.b16 %v3055
        %v5919 = vunpack.c.h.b16 %v3055
        %v5920 = vunpack.c.l.b16 %v3056
        %v5921 = vunpack.c.h.b16 %v3056
        %v5922 = vunpack.c.l.b16 %v3057
        %v5923 = vunpack.c.h.b16 %v3057
        %v5924 = vunpack.c.l.b16 %v3058
        %v5925 = vunpack.c.h.b16 %v3058
        %v5926 = vunpack.c.l.b16 %v3059
        %v5927 = vunpack.c.h.b16 %v3059
        %v5928 = vunpack.c.l.b16 %v3060
        %v5929 = vunpack.c.h.b16 %v3060
        %v5930 = vunpack.c.l.b16 %v3061
        %v5931 = vunpack.c.h.b16 %v3061
        %v5932 = vunpack.c.l.b16 %v3062
        %v5933 = vunpack.c.h.b16 %v3062
        %v5934 = vunpack.c.l.b16 %v3063
        %v5935 = vunpack.c.h.b16 %v3063
        %v5936 = vunpack.c.l.b16 %v3064
        %v5937 = vunpack.c.h.b16 %v3064
        %v5938 = vunpack.c.l.b16 %v3065
        %v5939 = vunpack.c.h.b16 %v3065
        %v5940 = vunpack.c.l.b16 %v3066
        %v5941 = vunpack.c.h.b16 %v3066
        %v5942 = vunpack.c.l.b16 %v3067
        %v5943 = vunpack.c.h.b16 %v3067
        %v5944 = vunpack.c.l.b16 %v3068
        %v5945 = vunpack.c.h.b16 %v3068
        %v5946 = vunpack.c.l.b16 %v3069
        %v5947 = vunpack.c.h.b16 %v3069
        %v5948 = vunpack.c.l.b16 %v3070
        %v5949 = vunpack.c.h.b16 %v3070
        %v5950 = vunpack.c.l.b16 %v3071
        %v5951 = vunpack.c.h.b16 %v3071
        %v5952 = vunpack.c.l.b16 %v3072
        %v5953 = vunpack.c.h.b16 %v3072
        %v5954 = vunpack.c.l.b16 %v3073
        %v5955 = vunpack.c.h.b16 %v3073
        %v5956 = vunpack.c.l.b16 %v3074
        %v5957 = vunpack.c.h.b16 %v3074
        %v5958 = vunpack.c.l.b16 %v3075
        %v5959 = vunpack.c.h.b16 %v3075
        %v5960 = vunpack.c.l.b16 %v3076
        %v5961 = vunpack.c.h.b16 %v3076
        %v5962 = vunpack.c.l.b16 %v3077
        %v5963 = vunpack.c.h.b16 %v3077
        %v5964 = vunpack.c.l.b16 %v3078
        %v5965 = vunpack.c.h.b16 %v3078
        %v5966 = vunpack.c.l.b16 %v3079
        %v5967 = vunpack.c.h.b16 %v3079
        %v5968 = vunpack.c.l.b16 %v3080
        %v5969 = vunpack.c.h.b16 %v3080
        %v5970 = vunpack.c.l.b16 %v3081
        %v5971 = vunpack.c.h.b16 %v3081
        %v5972 = vunpack.c.l.b16 %v3082
        %v5973 = vunpack.c.h.b16 %v3082
        %v5974 = vunpack.c.l.b16 %v3083
        %v5975 = vunpack.c.h.b16 %v3083
        %v5976 = vunpack.c.l.b16 %v3084
        %v5977 = vunpack.c.h.b16 %v3084
        %v5978 = vunpack.c.l.b16 %v3085
        %v5979 = vunpack.c.h.b16 %v3085
        %v5980 = vunpack.c.l.b16 %v3086
        %v5981 = vunpack.c.h.b16 %v3086
        %v5982 = vunpack.c.l.b16 %v3087
        %v5983 = vunpack.c.h.b16 %v3087
        %v5984 = vunpack.c.l.b16 %v3088
        %v5985 = vunpack.c.h.b16 %v3088
        %v5986 = vunpack.c.l.b16 %v3089
        %v5987 = vunpack.c.h.b16 %v3089
        %v5988 = vunpack.c.l.b16 %v3090
        %v5989 = vunpack.c.h.b16 %v3090
        %v5990 = vunpack.c.l.b16 %v3091
        %v5991 = vunpack.c.h.b16 %v3091
        %v5992 = vunpack.c.l.b16 %v3092
        %v5993 = vunpack.c.h.b16 %v3092
        %v5994 = vunpack.c.l.b16 %v3093
        %v5995 = vunpack.c.h.b16 %v3093
        %v5996 = vunpack.c.l.b16 %v3094
        %v5997 = vunpack.c.h.b16 %v3094
        %v5998 = vunpack.c.l.b16 %v3095
        %v5999 = vunpack.c.h.b16 %v3095
        %v6000 = vunpack.c.l.b16 %v3096
        %v6001 = vunpack.c.h.b16 %v3096
        %v6002 = vunpack.c.l.b16 %v3097
        %v6003 = vunpack.c.h.b16 %v3097
        %v6004 = vunpack.c.l.b16 %v3098
        %v6005 = vunpack.c.h.b16 %v3098
        %v6006 = vunpack.c.l.b16 %v3099
        %v6007 = vunpack.c.h.b16 %v3099
        %v6008 = vunpack.c.l.b16 %v3100
        %v6009 = vunpack.c.h.b16 %v3100
        %v6010 = vunpack.c.l.b16 %v3101
        %v6011 = vunpack.c.h.b16 %v3101
        %v6012 = vunpack.c.l.b16 %v3102
        %v6013 = vunpack.c.h.b16 %v3102
        %v6014 = vunpack.c.l.b16 %v3103
        %v6015 = vunpack.c.h.b16 %v3103
        %v6016 = vunpack.c.l.b16 %v3104
        %v6017 = vunpack.c.h.b16 %v3104
        %v6018 = vunpack.c.l.b16 %v3105
        %v6019 = vunpack.c.h.b16 %v3105
        %v6020 = vunpack.c.l.b16 %v3106
        %v6021 = vunpack.c.h.b16 %v3106
        %v6022 = vunpack.c.l.b16 %v3107
        %v6023 = vunpack.c.h.b16 %v3107
        %v6024 = vunpack.c.l.b16 %v3108
        %v6025 = vunpack.c.h.b16 %v3108
        %v6026 = vunpack.c.l.b16 %v3109
        %v6027 = vunpack.c.h.b16 %v3109
        %v6028 = vunpack.c.l.b16 %v3110
        %v6029 = vunpack.c.h.b16 %v3110
        %v6030 = vunpack.c.l.b16 %v3111
        %v6031 = vunpack.c.h.b16 %v3111
        %v6032 = vunpack.c.l.b16 %v3112
        %v6033 = vunpack.c.h.b16 %v3112
        %v6034 = vunpack.c.l.b16 %v3113
        %v6035 = vunpack.c.h.b16 %v3113
        %v6036 = vunpack.c.l.b16 %v3114
        %v6037 = vunpack.c.h.b16 %v3114
        %v6038 = vunpack.c.l.b16 %v3115
        %v6039 = vunpack.c.h.b16 %v3115
        %v6040 = vunpack.c.l.b16 %v3116
        %v6041 = vunpack.c.h.b16 %v3116
        %v6042 = vunpack.c.l.b16 %v3117
        %v6043 = vunpack.c.h.b16 %v3117
        %v6044 = vunpack.c.l.b16 %v3118
        %v6045 = vunpack.c.h.b16 %v3118
        %v6046 = vunpack.c.l.b16 %v3119
        %v6047 = vunpack.c.h.b16 %v3119
        %v6048 = vunpack.c.l.b16 %v3120
        %v6049 = vunpack.c.h.b16 %v3120
        %v6050 = vunpack.c.l.b16 %v3121
        %v6051 = vunpack.c.h.b16 %v3121
        %v6052 = vunpack.c.l.b16 %v3122
        %v6053 = vunpack.c.h.b16 %v3122
        %v6054 = vunpack.c.l.b16 %v3123
        %v6055 = vunpack.c.h.b16 %v3123
        %v6056 = vunpack.c.l.b16 %v3124
        %v6057 = vunpack.c.h.b16 %v3124
        %v6058 = vunpack.c.l.b16 %v3125
        %v6059 = vunpack.c.h.b16 %v3125
        %v6060 = vunpack.c.l.b16 %v3126
        %v6061 = vunpack.c.h.b16 %v3126
        %v6062 = vunpack.c.l.b16 %v3127
        %v6063 = vunpack.c.h.b16 %v3127
        %v6064 = vunpack.c.l.b16 %v3128
        %v6065 = vunpack.c.h.b16 %v3128
        %v6066 = vunpack.c.l.b16 %v3129
        %v6067 = vunpack.c.h.b16 %v3129
        %v6068 = vunpack.c.l.b16 %v3130
        %v6069 = vunpack.c.h.b16 %v3130
        %v6070 = vunpack.c.l.b16 %v3131
        %v6071 = vunpack.c.h.b16 %v3131
        %v6072 = vunpack.c.l.b16 %v3132
        %v6073 = vunpack.c.h.b16 %v3132
        %v6074 = vunpack.c.l.b16 %v3133
        %v6075 = vunpack.c.h.b16 %v3133
        %v6076 = vunpack.c.l.b16 %v3134
        %v6077 = vunpack.c.h.b16 %v3134
        %v6078 = vunpack.c.l.b16 %v3135
        %v6079 = vunpack.c.h.b16 %v3135
        %v6080 = vunpack.c.l.b16 %v3136
        %v6081 = vunpack.c.h.b16 %v3136
        %v6082 = vunpack.c.l.b16 %v3137
        %v6083 = vunpack.c.h.b16 %v3137
        %v6084 = vunpack.c.l.b16 %v3138
        %v6085 = vunpack.c.h.b16 %v3138
        %v6086 = vunpack.c.l.b16 %v3139
        %v6087 = vunpack.c.h.b16 %v3139
        %v6088 = vunpack.c.l.b16 %v3140
        %v6089 = vunpack.c.h.b16 %v3140
        %v6090 = vunpack.c.l.b16 %v3141
        %v6091 = vunpack.c.h.b16 %v3141
        %v6092 = vunpack.c.l.b16 %v3142
        %v6093 = vunpack.c.h.b16 %v3142
        %v6094 = vunpack.c.l.b16 %v3143
        %v6095 = vunpack.c.h.b16 %v3143
        %v6096 = vunpack.c.l.b16 %v3144
        %v6097 = vunpack.c.h.b16 %v3144
        %v6098 = vunpack.c.l.b16 %v3145
        %v6099 = vunpack.c.h.b16 %v3145
        %v6100 = vunpack.c.l.b16 %v3146
        %v6101 = vunpack.c.h.b16 %v3146
        %v6102 = vunpack.c.l.b16 %v3147
        %v6103 = vunpack.c.h.b16 %v3147
        %v6104 = vunpack.c.l.b16 %v3148
        %v6105 = vunpack.c.h.b16 %v3148
        %v6106 = vunpack.c.l.b16 %v3149
        %v6107 = vunpack.c.h.b16 %v3149
        %v6108 = vunpack.c.l.b16 %v3150
        %v6109 = vunpack.c.h.b16 %v3150
        %v6110 = vunpack.c.l.b16 %v3151
        %v6111 = vunpack.c.h.b16 %v3151
        %v6112 = vunpack.c.l.b16 %v3152
        %v6113 = vunpack.c.h.b16 %v3152
        %v6114 = vunpack.c.l.b16 %v3153
        %v6115 = vunpack.c.h.b16 %v3153
        %v6116 = vunpack.c.l.b16 %v3154
        %v6117 = vunpack.c.h.b16 %v3154
        %v6118 = vunpack.c.l.b16 %v3155
        %v6119 = vunpack.c.h.b16 %v3155
        %v6120 = vunpack.c.l.b16 %v3156
        %v6121 = vunpack.c.h.b16 %v3156
        %v6122 = vunpack.c.l.b16 %v3157
        %v6123 = vunpack.c.h.b16 %v3157
        %v6124 = vunpack.c.l.b16 %v3158
        %v6125 = vunpack.c.h.b16 %v3158
        %v6126 = vunpack.c.l.b16 %v3159
        %v6127 = vunpack.c.h.b16 %v3159
        %v6128 = vunpack.c.l.b16 %v3160
        %v6129 = vunpack.c.h.b16 %v3160
        %v6130 = vunpack.c.l.b16 %v3161
        %v6131 = vunpack.c.h.b16 %v3161
        %v6132 = vunpack.c.l.b16 %v3162
        %v6133 = vunpack.c.h.b16 %v3162
        %v6134 = vunpack.c.l.b16 %v3163
        %v6135 = vunpack.c.h.b16 %v3163
        %v6136 = vunpack.c.l.b16 %v3164
        %v6137 = vunpack.c.h.b16 %v3164
        %v6138 = vunpack.c.l.b16 %v3165
        %v6139 = vunpack.c.h.b16 %v3165
        %v6140 = vunpack.c.l.b16 %v3166
        %v6141 = vunpack.c.h.b16 %v3166
        %v6142 = vunpack.c.l.b16 %v3167
        %v6143 = vunpack.c.h.b16 %v3167
        %v6144 = vunpack.c.l.b16 %v3168
        %v6145 = vunpack.c.h.b16 %v3168
        %v6146 = vunpack.c.l.b16 %v3169
        %v6147 = vunpack.c.h.b16 %v3169
        %v6148 = vunpack.c.l.b16 %v3170
        %v6149 = vunpack.c.h.b16 %v3170
        %v6150 = vunpack.c.l.b16 %v3171
        %v6151 = vunpack.c.h.b16 %v3171
        %v6152 = vunpack.c.l.b16 %v3172
        %v6153 = vunpack.c.h.b16 %v3172
        %v6154 = vunpack.c.l.b16 %v3173
        %v6155 = vunpack.c.h.b16 %v3173
        %v6156 = vunpack.c.l.b16 %v3174
        %v6157 = vunpack.c.h.b16 %v3174
        %v6158 = vunpack.c.l.b16 %v3175
        %v6159 = vunpack.c.h.b16 %v3175
        %v6160 = vunpack.c.l.b16 %v3176
        %v6161 = vunpack.c.h.b16 %v3176
        %v6162 = vunpack.c.l.b16 %v3177
        %v6163 = vunpack.c.h.b16 %v3177
        %v6164 = vunpack.c.l.b16 %v3178
        %v6165 = vunpack.c.h.b16 %v3178
        %v6166 = vunpack.c.l.b16 %v3179
        %v6167 = vunpack.c.h.b16 %v3179
        %v6168 = vunpack.c.l.b16 %v3180
        %v6169 = vunpack.c.h.b16 %v3180
        %v6170 = vunpack.c.l.b16 %v3181
        %v6171 = vunpack.c.h.b16 %v3181
        %v6172 = vunpack.c.l.b16 %v3182
        %v6173 = vunpack.c.h.b16 %v3182
        %v6174 = vunpack.c.l.b16 %v3183
        %v6175 = vunpack.c.h.b16 %v3183
        %v6176 = vunpack.c.l.b16 %v3184
        %v6177 = vunpack.c.h.b16 %v3184
        %v6178 = vunpack.c.l.b16 %v3185
        %v6179 = vunpack.c.h.b16 %v3185
        %v6180 = vunpack.c.l.b16 %v3186
        %v6181 = vunpack.c.h.b16 %v3186
        %v6182 = vunpack.c.l.b16 %v3187
        %v6183 = vunpack.c.h.b16 %v3187
        %v6184 = vunpack.c.l.b16 %v3188
        %v6185 = vunpack.c.h.b16 %v3188
        %v6186 = vunpack.c.l.b16 %v3189
        %v6187 = vunpack.c.h.b16 %v3189
        %v6188 = vunpack.c.l.b16 %v3190
        %v6189 = vunpack.c.h.b16 %v3190
        %v6190 = vunpack.c.l.b16 %v3191
        %v6191 = vunpack.c.h.b16 %v3191
        %v6192 = vunpack.c.l.b16 %v3192
        %v6193 = vunpack.c.h.b16 %v3192
        %v6194 = vunpack.c.l.b16 %v3193
        %v6195 = vunpack.c.h.b16 %v3193
        %v6196 = vunpack.c.l.b16 %v3194
        %v6197 = vunpack.c.h.b16 %v3194
        %v6198 = vunpack.c.l.b16 %v3195
        %v6199 = vunpack.c.h.b16 %v3195
        %v6200 = vunpack.c.l.b16 %v3196
        %v6201 = vunpack.c.h.b16 %v3196
        %v6202 = vunpack.c.l.b16 %v3197
        %v6203 = vunpack.c.h.b16 %v3197
        %v6204 = vunpack.c.l.b16 %v3198
        %v6205 = vunpack.c.h.b16 %v3198
        %v6206 = vunpack.c.l.b16 %v3199
        %v6207 = vunpack.c.h.b16 %v3199
        %v6208 = vunpack.c.l.b16 %v3200
        %v6209 = vunpack.c.h.b16 %v3200
        %v6210 = vunpack.c.l.b16 %v3201
        %v6211 = vunpack.c.h.b16 %v3201
        %v6212 = vunpack.c.l.b16 %v3202
        %v6213 = vunpack.c.h.b16 %v3202
        %v6214 = vunpack.c.l.b16 %v3203
        %v6215 = vunpack.c.h.b16 %v3203
        %v6216 = vunpack.c.l.b16 %v3204
        %v6217 = vunpack.c.h.b16 %v3204
        %v6218 = vunpack.c.l.b16 %v3205
        %v6219 = vunpack.c.h.b16 %v3205
        %v6220 = vunpack.c.l.b16 %v3206
        %v6221 = vunpack.c.h.b16 %v3206
        %v6222 = vunpack.c.l.b16 %v3207
        %v6223 = vunpack.c.h.b16 %v3207
        %v6224 = vunpack.c.l.b16 %v3208
        %v6225 = vunpack.c.h.b16 %v3208
        %v6226 = vunpack.c.l.b16 %v3209
        %v6227 = vunpack.c.h.b16 %v3209
        %v6228 = vunpack.c.l.b16 %v3210
        %v6229 = vunpack.c.h.b16 %v3210
        %v6230 = vunpack.c.l.b16 %v3211
        %v6231 = vunpack.c.h.b16 %v3211
        %v6232 = vunpack.c.l.b16 %v3212
        %v6233 = vunpack.c.h.b16 %v3212
        %v6234 = vunpack.c.l.b16 %v3213
        %v6235 = vunpack.c.h.b16 %v3213
        %v6236 = vunpack.c.l.b16 %v3214
        %v6237 = vunpack.c.h.b16 %v3214
        %v6238 = vunpack.c.l.b16 %v3215
        %v6239 = vunpack.c.h.b16 %v3215
        %v6240 = vunpack.c.l.b16 %v3216
        %v6241 = vunpack.c.h.b16 %v3216
        %v6242 = vunpack.c.l.b16 %v3217
        %v6243 = vunpack.c.h.b16 %v3217
        %v6244 = vunpack.c.l.b16 %v3218
        %v6245 = vunpack.c.h.b16 %v3218
        %v6246 = vunpack.c.l.b16 %v3219
        %v6247 = vunpack.c.h.b16 %v3219
        %v6248 = vunpack.c.l.b16 %v3220
        %v6249 = vunpack.c.h.b16 %v3220
        %v6250 = vunpack.c.l.b16 %v3221
        %v6251 = vunpack.c.h.b16 %v3221
        %v6252 = vunpack.c.l.b16 %v3222
        %v6253 = vunpack.c.h.b16 %v3222
        %v6254 = vunpack.c.l.b16 %v3223
        %v6255 = vunpack.c.h.b16 %v3223
        %v6256 = vunpack.c.l.b16 %v3224
        %v6257 = vunpack.c.h.b16 %v3224
        %v6258 = vunpack.c.l.b16 %v3225
        %v6259 = vunpack.c.h.b16 %v3225
        %v6260 = vunpack.c.l.b16 %v3226
        %v6261 = vunpack.c.h.b16 %v3226
        %v6262 = vunpack.c.l.b16 %v3227
        %v6263 = vunpack.c.h.b16 %v3227
        %v6264 = vunpack.c.l.b16 %v3228
        %v6265 = vunpack.c.h.b16 %v3228
        %v6266 = vunpack.c.l.b16 %v3229
        %v6267 = vunpack.c.h.b16 %v3229
        %v6268 = vunpack.c.l.b16 %v3230
        %v6269 = vunpack.c.h.b16 %v3230
        %v6270 = vunpack.c.l.b16 %v3231
        %v6271 = vunpack.c.h.b16 %v3231
        %v6272 = vunpack.c.l.b16 %v3232
        %v6273 = vunpack.c.h.b16 %v3232
        %v6274 = vunpack.c.l.b16 %v3233
        %v6275 = vunpack.c.h.b16 %v3233
        %v6276 = vunpack.c.l.b16 %v3234
        %v6277 = vunpack.c.h.b16 %v3234
        %v6278 = vunpack.c.l.b16 %v3235
        %v6279 = vunpack.c.h.b16 %v3235
        %v6280 = vunpack.c.l.b16 %v3236
        %v6281 = vunpack.c.h.b16 %v3236
        %v6282 = vunpack.c.l.b16 %v3237
        %v6283 = vunpack.c.h.b16 %v3237
        %v6284 = vunpack.c.l.b16 %v3238
        %v6285 = vunpack.c.h.b16 %v3238
        %v6286 = vunpack.c.l.b16 %v3239
        %v6287 = vunpack.c.h.b16 %v3239
        %v6288 = vunpack.c.l.b16 %v3240
        %v6289 = vunpack.c.h.b16 %v3240
        %v6290 = vunpack.c.l.b16 %v3241
        %v6291 = vunpack.c.h.b16 %v3241
        %v6292 = vunpack.c.l.b16 %v3242
        %v6293 = vunpack.c.h.b16 %v3242
        %v6294 = vunpack.c.l.b16 %v3243
        %v6295 = vunpack.c.h.b16 %v3243
        %v6296 = vunpack.c.l.b16 %v3244
        %v6297 = vunpack.c.h.b16 %v3244
        %v6298 = vunpack.c.l.b16 %v3245
        %v6299 = vunpack.c.h.b16 %v3245
        %v6300 = vunpack.c.l.b16 %v3246
        %v6301 = vunpack.c.h.b16 %v3246
        %v6302 = vunpack.c.l.b16 %v3247
        %v6303 = vunpack.c.h.b16 %v3247
        %v6304 = vunpack.c.l.b16 %v3248
        %v6305 = vunpack.c.h.b16 %v3248
        %v6306 = vunpack.c.l.b16 %v3249
        %v6307 = vunpack.c.h.b16 %v3249
        %v6308 = vunpack.c.l.b16 %v3250
        %v6309 = vunpack.c.h.b16 %v3250
        %v6310 = vunpack.c.l.b16 %v3251
        %v6311 = vunpack.c.h.b16 %v3251
        %v6312 = vunpack.c.l.b16 %v3252
        %v6313 = vunpack.c.h.b16 %v3252
        %v6314 = vunpack.c.l.b16 %v3253
        %v6315 = vunpack.c.h.b16 %v3253
        %v6316 = vunpack.c.l.b16 %v3254
        %v6317 = vunpack.c.h.b16 %v3254
        %v6318 = vunpack.c.l.b16 %v3255
        %v6319 = vunpack.c.h.b16 %v3255
        %v6320 = vunpack.c.l.b16 %v3256
        %v6321 = vunpack.c.h.b16 %v3256
        %v6322 = vunpack.c.l.b16 %v3257
        %v6323 = vunpack.c.h.b16 %v3257
        %v6324 = vunpack.c.l.b16 %v3258
        %v6325 = vunpack.c.h.b16 %v3258
        %v6326 = vunpack.c.l.b16 %v3259
        %v6327 = vunpack.c.h.b16 %v3259
        %v6328 = vunpack.c.l.b16 %v3260
        %v6329 = vunpack.c.h.b16 %v3260
        %v6330 = vunpack.c.l.b16 %v3261
        %v6331 = vunpack.c.h.b16 %v3261
        %v6332 = vunpack.c.l.b16 %v3262
        %v6333 = vunpack.c.h.b16 %v3262
        %v6334 = vunpack.c.l.b16 %v3263
        %v6335 = vunpack.c.h.b16 %v3263
        %v6336 = vunpack.c.l.b16 %v3264
        %v6337 = vunpack.c.h.b16 %v3264
        %v6338 = vunpack.c.l.b16 %v3265
        %v6339 = vunpack.c.h.b16 %v3265
        %v6340 = vunpack.c.l.b16 %v3266
        %v6341 = vunpack.c.h.b16 %v3266
        %v6342 = vunpack.c.l.b16 %v3267
        %v6343 = vunpack.c.h.b16 %v3267
        %v6344 = vunpack.c.l.b16 %v3268
        %v6345 = vunpack.c.h.b16 %v3268
        %v6346 = vunpack.c.l.b16 %v3269
        %v6347 = vunpack.c.h.b16 %v3269
        %v6348 = vunpack.c.l.b16 %v3270
        %v6349 = vunpack.c.h.b16 %v3270
        %v6350 = vunpack.c.l.b16 %v3271
        %v6351 = vunpack.c.h.b16 %v3271
        %v6352 = vunpack.c.l.b16 %v3272
        %v6353 = vunpack.c.h.b16 %v3272
        %v6354 = vunpack.c.l.b16 %v3273
        %v6355 = vunpack.c.h.b16 %v3273
        %v6356 = vunpack.c.l.b16 %v3274
        %v6357 = vunpack.c.h.b16 %v3274
        %v6358 = vunpack.c.l.b16 %v3275
        %v6359 = vunpack.c.h.b16 %v3275
        %v6360 = vunpack.c.l.b16 %v3276
        %v6361 = vunpack.c.h.b16 %v3276
        %v6362 = vunpack.c.l.b16 %v3277
        %v6363 = vunpack.c.h.b16 %v3277
        %v6364 = vunpack.c.l.b16 %v3278
        %v6365 = vunpack.c.h.b16 %v3278
        %v6366 = vunpack.c.l.b16 %v3279
        %v6367 = vunpack.c.h.b16 %v3279
        %v6368 = vunpack.c.l.b16 %v3280
        %v6369 = vunpack.c.h.b16 %v3280
        %v6370 = vunpack.c.l.b16 %v3281
        %v6371 = vunpack.c.h.b16 %v3281
        %v6372 = vunpack.c.l.b16 %v3282
        %v6373 = vunpack.c.h.b16 %v3282
        %v6374 = vunpack.c.l.b16 %v3283
        %v6375 = vunpack.c.h.b16 %v3283
        %v6376 = vunpack.c.l.b16 %v3284
        %v6377 = vunpack.c.h.b16 %v3284
        %v6378 = vunpack.c.l.b16 %v3285
        %v6379 = vunpack.c.h.b16 %v3285
        %v6380 = vunpack.c.l.b16 %v3286
        %v6381 = vunpack.c.h.b16 %v3286
        %v6382 = vunpack.c.l.b16 %v3287
        %v6383 = vunpack.c.h.b16 %v3287
        %v6384 = vunpack.c.l.b16 %v3288
        %v6385 = vunpack.c.h.b16 %v3288
        %v6386 = vunpack.c.l.b16 %v3289
        %v6387 = vunpack.c.h.b16 %v3289
        %v6388 = vunpack.c.l.b16 %v3290
        %v6389 = vunpack.c.h.b16 %v3290
        %v6390 = vunpack.c.l.b16 %v3291
        %v6391 = vunpack.c.h.b16 %v3291
        %v6392 = vunpack.c.l.b16 %v3292
        %v6393 = vunpack.c.h.b16 %v3292
        %v6394 = vunpack.c.l.b16 %v3293
        %v6395 = vunpack.c.h.b16 %v3293
        %v6396 = vunpack.c.l.b16 %v3294
        %v6397 = vunpack.c.h.b16 %v3294
        %v6398 = vunpack.c.l.b16 %v3295
        %v6399 = vunpack.c.h.b16 %v3295
        %v6400 = vunpack.c.l.b16 %v3296
        %v6401 = vunpack.c.h.b16 %v3296
        %v6402 = vunpack.c.l.b16 %v3297
        %v6403 = vunpack.c.h.b16 %v3297
        %v6404 = vunpack.c.l.b16 %v3298
        %v6405 = vunpack.c.h.b16 %v3298
        %v6406 = vunpack.c.l.b16 %v3299
        %v6407 = vunpack.c.h.b16 %v3299
        %v6408 = vunpack.c.l.b16 %v3300
        %v6409 = vunpack.c.h.b16 %v3300
        %v6410 = vunpack.c.l.b16 %v3301
        %v6411 = vunpack.c.h.b16 %v3301
        %v6412 = vunpack.c.l.b16 %v3302
        %v6413 = vunpack.c.h.b16 %v3302
        %v6414 = vunpack.c.l.b16 %v3303
        %v6415 = vunpack.c.h.b16 %v3303
        %v6416 = vunpack.c.l.b16 %v3304
        %v6417 = vunpack.c.h.b16 %v3304
        %v6418 = vunpack.c.l.b16 %v3305
        %v6419 = vunpack.c.h.b16 %v3305
        %v6420 = vunpack.c.l.b16 %v3306
        %v6421 = vunpack.c.h.b16 %v3306
        %v6422 = vunpack.c.l.b16 %v3307
        %v6423 = vunpack.c.h.b16 %v3307
        %v6424 = vunpack.c.l.b16 %v3308
        %v6425 = vunpack.c.h.b16 %v3308
        %v6426 = vunpack.c.l.b16 %v3309
        %v6427 = vunpack.c.h.b16 %v3309
        %v6428 = vunpack.c.l.b16 %v3310
        %v6429 = vunpack.c.h.b16 %v3310
        %v6430 = vunpack.c.l.b16 %v3311
        %v6431 = vunpack.c.h.b16 %v3311
        %v6432 = vunpack.c.l.b16 %v3312
        %v6433 = vunpack.c.h.b16 %v3312
        %v6434 = vunpack.c.l.b16 %v3313
        %v6435 = vunpack.c.h.b16 %v3313
        %v6436 = vunpack.c.l.b16 %v3314
        %v6437 = vunpack.c.h.b16 %v3314
        %v6438 = vunpack.c.l.b16 %v3315
        %v6439 = vunpack.c.h.b16 %v3315
        %v6440 = vunpack.c.l.b16 %v3316
        %v6441 = vunpack.c.h.b16 %v3316
        %v6442 = vunpack.c.l.b16 %v3317
        %v6443 = vunpack.c.h.b16 %v3317
        %v6444 = vunpack.c.l.b16 %v3318
        %v6445 = vunpack.c.h.b16 %v3318
        %v6446 = vunpack.c.l.b16 %v3319
        %v6447 = vunpack.c.h.b16 %v3319
        %v6448 = vunpack.c.l.b16 %v3320
        %v6449 = vunpack.c.h.b16 %v3320
        %v6450 = vunpack.c.l.b16 %v3321
        %v6451 = vunpack.c.h.b16 %v3321
        %v6452 = vunpack.c.l.b16 %v3322
        %v6453 = vunpack.c.h.b16 %v3322
        %v6454 = vunpack.c.l.b16 %v3323
        %v6455 = vunpack.c.h.b16 %v3323
        %v6456 = vunpack.c.l.b16 %v3324
        %v6457 = vunpack.c.h.b16 %v3324
        %v6458 = vunpack.c.l.b16 %v3325
        %v6459 = vunpack.c.h.b16 %v3325
        %v6460 = vunpack.c.l.b16 %v3326
        %v6461 = vunpack.c.h.b16 %v3326
        %v6462 = vunpack.c.l.b16 %v3327
        %v6463 = vunpack.c.h.b16 %v3327
        %v6464 = vunpack.c.l.b16 %v3328
        %v6465 = vunpack.c.h.b16 %v3328
        %v6466 = vunpack.c.l.b16 %v3329
        %v6467 = vunpack.c.h.b16 %v3329
        %v6468 = vunpack.c.l.b16 %v3330
        %v6469 = vunpack.c.h.b16 %v3330
        %v6470 = vunpack.c.l.b16 %v3331
        %v6471 = vunpack.c.h.b16 %v3331
        %v6472 = vunpack.c.l.b16 %v3332
        %v6473 = vunpack.c.h.b16 %v3332
        %v6474 = vunpack.c.l.b16 %v3333
        %v6475 = vunpack.c.h.b16 %v3333
        %v6476 = vunpack.c.l.b16 %v3334
        %v6477 = vunpack.c.h.b16 %v3334
        %v6478 = vunpack.c.l.b16 %v3335
        %v6479 = vunpack.c.h.b16 %v3335
        %v6480 = vunpack.c.l.b16 %v3336
        %v6481 = vunpack.c.h.b16 %v3336
        %v6482 = vunpack.c.l.b16 %v3337
        %v6483 = vunpack.c.h.b16 %v3337
        %v6484 = vunpack.c.l.b16 %v3338
        %v6485 = vunpack.c.h.b16 %v3338
        %v6486 = vunpack.c.l.b16 %v3339
        %v6487 = vunpack.c.h.b16 %v3339
        %v6488 = vunpack.c.l.b16 %v3340
        %v6489 = vunpack.c.h.b16 %v3340
        %v6490 = vunpack.c.l.b16 %v3341
        %v6491 = vunpack.c.h.b16 %v3341
        %v6492 = vunpack.c.l.b16 %v3342
        %v6493 = vunpack.c.h.b16 %v3342
        %v6494 = vunpack.c.l.b16 %v3343
        %v6495 = vunpack.c.h.b16 %v3343
        %v6496 = vunpack.c.l.b16 %v3344
        %v6497 = vunpack.c.h.b16 %v3344
        %v6498 = vunpack.c.l.b16 %v3345
        %v6499 = vunpack.c.h.b16 %v3345
        %v6500 = vunpack.c.l.b16 %v3346
        %v6501 = vunpack.c.h.b16 %v3346
        %v6502 = vunpack.c.l.b16 %v3347
        %v6503 = vunpack.c.h.b16 %v3347
        %v6504 = vpack.c.b16 %v4472, %v4456
        %v6505 = vpack.c.b16 %v4473, %v4457
        %v6506 = vpack.c.b16 %v4474, %v4458
        %v6507 = vpack.c.b16 %v4475, %v4459
        %v6508 = vpack.c.b16 %v4476, %v4460
        %v6509 = vpack.c.b16 %v4477, %v4461
        %v6510 = vpack.c.b16 %v4478, %v4462
        %v6511 = vpack.c.b16 %v4479, %v4463
        %v6512 = vpack.c.b16 %v4480, %v4464
        %v6513 = vpack.c.b16 %v4481, %v4465
        %v6514 = vpack.c.b16 %v4482, %v4466
        %v6515 = vpack.c.b16 %v4483, %v4467
        %v6516 = vpack.c.b16 %v4484, %v4468
        %v6517 = vpack.c.b16 %v4485, %v4469
        %v6518 = vpack.c.b16 %v4486, %v4470
        %v6519 = vpack.c.b16 %v4487, %v4471
        %v6520 = vpack.c.b16 %v4504, %v4488
        %v6521 = vpack.c.b16 %v4505, %v4489
        %v6522 = vpack.c.b16 %v4506, %v4490
        %v6523 = vpack.c.b16 %v4507, %v4491
        %v6524 = vpack.c.b16 %v4508, %v4492
        %v6525 = vpack.c.b16 %v4509, %v4493
        %v6526 = vpack.c.b16 %v4510, %v4494
        %v6527 = vpack.c.b16 %v4511, %v4495
        %v6528 = vpack.c.b16 %v4512, %v4496
        %v6529 = vpack.c.b16 %v4513, %v4497
        %v6530 = vpack.c.b16 %v4514, %v4498
        %v6531 = vpack.c.b16 %v4515, %v4499
        %v6532 = vpack.c.b16 %v4516, %v4500
        %v6533 = vpack.c.b16 %v4517, %v4501
        %v6534 = vpack.c.b16 %v4518, %v4502
        %v6535 = vpack.c.b16 %v4519, %v4503
        %v6536 = vpack.c.b16 %v4536, %v4520
        %v6537 = vpack.c.b16 %v4537, %v4521
        %v6538 = vpack.c.b16 %v4538, %v4522
        %v6539 = vpack.c.b16 %v4539, %v4523
        %v6540 = vpack.c.b16 %v4540, %v4524
        %v6541 = vpack.c.b16 %v4541, %v4525
        %v6542 = vpack.c.b16 %v4542, %v4526
        %v6543 = vpack.c.b16 %v4543, %v4527
        %v6544 = vpack.c.b16 %v4544, %v4528
        %v6545 = vpack.c.b16 %v4545, %v4529
        %v6546 = vpack.c.b16 %v4546, %v4530
        %v6547 = vpack.c.b16 %v4547, %v4531
        %v6548 = vpack.c.b16 %v4548, %v4532
        %v6549 = vpack.c.b16 %v4549, %v4533
        %v6550 = vpack.c.b16 %v4550, %v4534
        %v6551 = vpack.c.b16 %v4551, %v4535
        %v6552 = vpack.c.b16 %v4568, %v4552
        %v6553 = vpack.c.b16 %v4569, %v4553
        %v6554 = vpack.c.b16 %v4570, %v4554
        %v6555 = vpack.c.b16 %v4571, %v4555
        %v6556 = vpack.c.b16 %v4572, %v4556
        %v6557 = vpack.c.b16 %v4573, %v4557
        %v6558 = vpack.c.b16 %v4574, %v4558
        %v6559 = vpack.c.b16 %v4575, %v4559
        %v6560 = vpack.c.b16 %v4576, %v4560
        %v6561 = vpack.c.b16 %v4577, %v4561
        %v6562 = vpack.c.b16 %v4578, %v4562
        %v6563 = vpack.c.b16 %v4579, %v4563
        %v6564 = vpack.c.b16 %v4580, %v4564
        %v6565 = vpack.c.b16 %v4581, %v4565
        %v6566 = vpack.c.b16 %v4582, %v4566
        %v6567 = vpack.c.b16 %v4583, %v4567
        %v6568 = vpack.c.b16 %v4600, %v4584
        %v6569 = vpack.c.b16 %v4601, %v4585
        %v6570 = vpack.c.b16 %v4602, %v4586
        %v6571 = vpack.c.b16 %v4603, %v4587
        %v6572 = vpack.c.b16 %v4604, %v4588
        %v6573 = vpack.c.b16 %v4605, %v4589
        %v6574 = vpack.c.b16 %v4606, %v4590
        %v6575 = vpack.c.b16 %v4607, %v4591
        %v6576 = vpack.c.b16 %v4608, %v4592
        %v6577 = vpack.c.b16 %v4609, %v4593
        %v6578 = vpack.c.b16 %v4610, %v4594
        %v6579 = vpack.c.b16 %v4611, %v4595
        %v6580 = vpack.c.b16 %v4612, %v4596
        %v6581 = vpack.c.b16 %v4613, %v4597
        %v6582 = vpack.c.b16 %v4614, %v4598
        %v6583 = vpack.c.b16 %v4615, %v4599
        %v6584 = vpack.c.b16 %v4632, %v4616
        %v6585 = vpack.c.b16 %v4633, %v4617
        %v6586 = vpack.c.b16 %v4634, %v4618
        %v6587 = vpack.c.b16 %v4635, %v4619
        %v6588 = vpack.c.b16 %v4636, %v4620
        %v6589 = vpack.c.b16 %v4637, %v4621
        %v6590 = vpack.c.b16 %v4638, %v4622
        %v6591 = vpack.c.b16 %v4639, %v4623
        %v6592 = vpack.c.b16 %v4640, %v4624
        %v6593 = vpack.c.b16 %v4641, %v4625
        %v6594 = vpack.c.b16 %v4642, %v4626
        %v6595 = vpack.c.b16 %v4643, %v4627
        %v6596 = vpack.c.b16 %v4644, %v4628
        %v6597 = vpack.c.b16 %v4645, %v4629
        %v6598 = vpack.c.b16 %v4646, %v4630
        %v6599 = vpack.c.b16 %v4647, %v4631
        %v6600 = vpack.c.b16 %v4664, %v4648
        %v6601 = vpack.c.b16 %v4665, %v4649
        %v6602 = vpack.c.b16 %v4666, %v4650
        %v6603 = vpack.c.b16 %v4667, %v4651
        %v6604 = vpack.c.b16 %v4668, %v4652
        %v6605 = vpack.c.b16 %v4669, %v4653
        %v6606 = vpack.c.b16 %v4670, %v4654
        %v6607 = vpack.c.b16 %v4671, %v4655
        %v6608 = vpack.c.b16 %v4672, %v4656
        %v6609 = vpack.c.b16 %v4673, %v4657
        %v6610 = vpack.c.b16 %v4674, %v4658
        %v6611 = vpack.c.b16 %v4675, %v4659
        %v6612 = vpack.c.b16 %v4676, %v4660
        %v6613 = vpack.c.b16 %v4677, %v4661
        %v6614 = vpack.c.b16 %v4678, %v4662
        %v6615 = vpack.c.b16 %v4679, %v4663
        %v6616 = vpack.c.b16 %v4696, %v4680
        %v6617 = vpack.c.b16 %v4697, %v4681
        %v6618 = vpack.c.b16 %v4698, %v4682
        %v6619 = vpack.c.b16 %v4699, %v4683
        %v6620 = vpack.c.b16 %v4700, %v4684
        %v6621 = vpack.c.b16 %v4701, %v4685
        %v6622 = vpack.c.b16 %v4702, %v4686
        %v6623 = vpack.c.b16 %v4703, %v4687
        %v6624 = vpack.c.b16 %v4704, %v4688
        %v6625 = vpack.c.b16 %v4705, %v4689
        %v6626 = vpack.c.b16 %v4706, %v4690
        %v6627 = vpack.c.b16 %v4707, %v4691
        %v6628 = vpack.c.b16 %v4708, %v4692
        %v6629 = vpack.c.b16 %v4709, %v4693
        %v6630 = vpack.c.b16 %v4710, %v4694
        %v6631 = vpack.c.b16 %v4711, %v4695
        %v6632 = vpack.c.b16 %v4728, %v4712
        %v6633 = vpack.c.b16 %v4729, %v4713
        %v6634 = vpack.c.b16 %v4730, %v4714
        %v6635 = vpack.c.b16 %v4731, %v4715
        %v6636 = vpack.c.b16 %v4732, %v4716
        %v6637 = vpack.c.b16 %v4733, %v4717
        %v6638 = vpack.c.b16 %v4734, %v4718
        %v6639 = vpack.c.b16 %v4735, %v4719
        %v6640 = vpack.c.b16 %v4736, %v4720
        %v6641 = vpack.c.b16 %v4737, %v4721
        %v6642 = vpack.c.b16 %v4738, %v4722
        %v6643 = vpack.c.b16 %v4739, %v4723
        %v6644 = vpack.c.b16 %v4740, %v4724
        %v6645 = vpack.c.b16 %v4741, %v4725
        %v6646 = vpack.c.b16 %v4742, %v4726
        %v6647 = vpack.c.b16 %v4743, %v4727
        %v6648 = vpack.c.b16 %v4760, %v4744
        %v6649 = vpack.c.b16 %v4761, %v4745
        %v6650 = vpack.c.b16 %v4762, %v4746
        %v6651 = vpack.c.b16 %v4763, %v4747
        %v6652 = vpack.c.b16 %v4764, %v4748
        %v6653 = vpack.c.b16 %v4765, %v4749
        %v6654 = vpack.c.b16 %v4766, %v4750
        %v6655 = vpack.c.b16 %v4767, %v4751
        %v6656 = vpack.c.b16 %v4768, %v4752
        %v6657 = vpack.c.b16 %v4769, %v4753
        %v6658 = vpack.c.b16 %v4770, %v4754
        %v6659 = vpack.c.b16 %v4771, %v4755
        %v6660 = vpack.c.b16 %v4772, %v4756
        %v6661 = vpack.c.b16 %v4773, %v4757
        %v6662 = vpack.c.b16 %v4774, %v4758
        %v6663 = vpack.c.b16 %v4775, %v4759
        %v6664 = vpack.c.b16 %v4792, %v4776
        %v6665 = vpack.c.b16 %v4793, %v4777
        %v6666 = vpack.c.b16 %v4794, %v4778
        %v6667 = vpack.c.b16 %v4795, %v4779
        %v6668 = vpack.c.b16 %v4796, %v4780
        %v6669 = vpack.c.b16 %v4797, %v4781
        %v6670 = vpack.c.b16 %v4798, %v4782
        %v6671 = vpack.c.b16 %v4799, %v4783
        %v6672 = vpack.c.b16 %v4800, %v4784
        %v6673 = vpack.c.b16 %v4801, %v4785
        %v6674 = vpack.c.b16 %v4802, %v4786
        %v6675 = vpack.c.b16 %v4803, %v4787
        %v6676 = vpack.c.b16 %v4804, %v4788
        %v6677 = vpack.c.b16 %v4805, %v4789
        %v6678 = vpack.c.b16 %v4806, %v4790
        %v6679 = vpack.c.b16 %v4807, %v4791
        %v6680 = vpack.c.b16 %v4824, %v4808
        %v6681 = vpack.c.b16 %v4825, %v4809
        %v6682 = vpack.c.b16 %v4826, %v4810
        %v6683 = vpack.c.b16 %v4827, %v4811
        %v6684 = vpack.c.b16 %v4828, %v4812
        %v6685 = vpack.c.b16 %v4829, %v4813
        %v6686 = vpack.c.b16 %v4830, %v4814
        %v6687 = vpack.c.b16 %v4831, %v4815
        %v6688 = vpack.c.b16 %v4832, %v4816
        %v6689 = vpack.c.b16 %v4833, %v4817
        %v6690 = vpack.c.b16 %v4834, %v4818
        %v6691 = vpack.c.b16 %v4835, %v4819
        %v6692 = vpack.c.b16 %v4836, %v4820
        %v6693 = vpack.c.b16 %v4837, %v4821
        %v6694 = vpack.c.b16 %v4838, %v4822
        %v6695 = vpack.c.b16 %v4839, %v4823
        %v6696 = vpack.c.b16 %v4856, %v4840
        %v6697 = vpack.c.b16 %v4857, %v4841
        %v6698 = vpack.c.b16 %v4858, %v4842
        %v6699 = vpack.c.b16 %v4859, %v4843
        %v6700 = vpack.c.b16 %v4860, %v4844
        %v6701 = vpack.c.b16 %v4861, %v4845
        %v6702 = vpack.c.b16 %v4862, %v4846
        %v6703 = vpack.c.b16 %v4863, %v4847
        %v6704 = vpack.c.b16 %v4864, %v4848
        %v6705 = vpack.c.b16 %v4865, %v4849
        %v6706 = vpack.c.b16 %v4866, %v4850
        %v6707 = vpack.c.b16 %v4867, %v4851
        %v6708 = vpack.c.b16 %v4868, %v4852
        %v6709 = vpack.c.b16 %v4869, %v4853
        %v6710 = vpack.c.b16 %v4870, %v4854
        %v6711 = vpack.c.b16 %v4871, %v4855
        %v6712 = vpack.c.b16 %v4888, %v4872
        %v6713 = vpack.c.b16 %v4889, %v4873
        %v6714 = vpack.c.b16 %v4890, %v4874
        %v6715 = vpack.c.b16 %v4891, %v4875
        %v6716 = vpack.c.b16 %v4892, %v4876
        %v6717 = vpack.c.b16 %v4893, %v4877
        %v6718 = vpack.c.b16 %v4894, %v4878
        %v6719 = vpack.c.b16 %v4895, %v4879
        %v6720 = vpack.c.b16 %v4896, %v4880
        %v6721 = vpack.c.b16 %v4897, %v4881
        %v6722 = vpack.c.b16 %v4898, %v4882
        %v6723 = vpack.c.b16 %v4899, %v4883
        %v6724 = vpack.c.b16 %v4900, %v4884
        %v6725 = vpack.c.b16 %v4901, %v4885
        %v6726 = vpack.c.b16 %v4902, %v4886
        %v6727 = vpack.c.b16 %v4903, %v4887
        %v6728 = vpack.c.b16 %v4920, %v4904
        %v6729 = vpack.c.b16 %v4921, %v4905
        %v6730 = vpack.c.b16 %v4922, %v4906
        %v6731 = vpack.c.b16 %v4923, %v4907
        %v6732 = vpack.c.b16 %v4924, %v4908
        %v6733 = vpack.c.b16 %v4925, %v4909
        %v6734 = vpack.c.b16 %v4926, %v4910
        %v6735 = vpack.c.b16 %v4927, %v4911
        %v6736 = vpack.c.b16 %v4928, %v4912
        %v6737 = vpack.c.b16 %v4929, %v4913
        %v6738 = vpack.c.b16 %v4930, %v4914
        %v6739 = vpack.c.b16 %v4931, %v4915
        %v6740 = vpack.c.b16 %v4932, %v4916
        %v6741 = vpack.c.b16 %v4933, %v4917
        %v6742 = vpack.c.b16 %v4934, %v4918
        %v6743 = vpack.c.b16 %v4935, %v4919
        %v6744 = vpack.c.b16 %v4952, %v4936
        %v6745 = vpack.c.b16 %v4953, %v4937
        %v6746 = vpack.c.b16 %v4954, %v4938
        %v6747 = vpack.c.b16 %v4955, %v4939
        %v6748 = vpack.c.b16 %v4956, %v4940
        %v6749 = vpack.c.b16 %v4957, %v4941
        %v6750 = vpack.c.b16 %v4958, %v4942
        %v6751 = vpack.c.b16 %v4959, %v4943
        %v6752 = vpack.c.b16 %v4960, %v4944
        %v6753 = vpack.c.b16 %v4961, %v4945
        %v6754 = vpack.c.b16 %v4962, %v4946
        %v6755 = vpack.c.b16 %v4963, %v4947
        %v6756 = vpack.c.b16 %v4964, %v4948
        %v6757 = vpack.c.b16 %v4965, %v4949
        %v6758 = vpack.c.b16 %v4966, %v4950
        %v6759 = vpack.c.b16 %v4967, %v4951
        %v6760 = vpack.c.b16 %v4984, %v4968
        %v6761 = vpack.c.b16 %v4985, %v4969
        %v6762 = vpack.c.b16 %v4986, %v4970
        %v6763 = vpack.c.b16 %v4987, %v4971
        %v6764 = vpack.c.b16 %v4988, %v4972
        %v6765 = vpack.c.b16 %v4989, %v4973
        %v6766 = vpack.c.b16 %v4990, %v4974
        %v6767 = vpack.c.b16 %v4991, %v4975
        %v6768 = vpack.c.b16 %v4992, %v4976
        %v6769 = vpack.c.b16 %v4993, %v4977
        %v6770 = vpack.c.b16 %v4994, %v4978
        %v6771 = vpack.c.b16 %v4995, %v4979
        %v6772 = vpack.c.b16 %v4996, %v4980
        %v6773 = vpack.c.b16 %v4997, %v4981
        %v6774 = vpack.c.b16 %v4998, %v4982
        %v6775 = vpack.c.b16 %v4999, %v4983
        %v6776 = vpack.c.b16 %v5016, %v5000
        %v6777 = vpack.c.b16 %v5017, %v5001
        %v6778 = vpack.c.b16 %v5018, %v5002
        %v6779 = vpack.c.b16 %v5019, %v5003
        %v6780 = vpack.c.b16 %v5020, %v5004
        %v6781 = vpack.c.b16 %v5021, %v5005
        %v6782 = vpack.c.b16 %v5022, %v5006
        %v6783 = vpack.c.b16 %v5023, %v5007
        %v6784 = vpack.c.b16 %v5024, %v5008
        %v6785 = vpack.c.b16 %v5025, %v5009
        %v6786 = vpack.c.b16 %v5026, %v5010
        %v6787 = vpack.c.b16 %v5027, %v5011
        %v6788 = vpack.c.b16 %v5028, %v5012
        %v6789 = vpack.c.b16 %v5029, %v5013
        %v6790 = vpack.c.b16 %v5030, %v5014
        %v6791 = vpack.c.b16 %v5031, %v5015
        %v6792 = vpack.c.b16 %v5048, %v5032
        %v6793 = vpack.c.b16 %v5049, %v5033
        %v6794 = vpack.c.b16 %v5050, %v5034
        %v6795 = vpack.c.b16 %v5051, %v5035
        %v6796 = vpack.c.b16 %v5052, %v5036
        %v6797 = vpack.c.b16 %v5053, %v5037
        %v6798 = vpack.c.b16 %v5054, %v5038
        %v6799 = vpack.c.b16 %v5055, %v5039
        %v6800 = vpack.c.b16 %v5056, %v5040
        %v6801 = vpack.c.b16 %v5057, %v5041
        %v6802 = vpack.c.b16 %v5058, %v5042
        %v6803 = vpack.c.b16 %v5059, %v5043
        %v6804 = vpack.c.b16 %v5060, %v5044
        %v6805 = vpack.c.b16 %v5061, %v5045
        %v6806 = vpack.c.b16 %v5062, %v5046
        %v6807 = vpack.c.b16 %v5063, %v5047
        %v6808 = vpack.c.b16 %v5080, %v5064
        %v6809 = vpack.c.b16 %v5081, %v5065
        %v6810 = vpack.c.b16 %v5082, %v5066
        %v6811 = vpack.c.b16 %v5083, %v5067
        %v6812 = vpack.c.b16 %v5084, %v5068
        %v6813 = vpack.c.b16 %v5085, %v5069
        %v6814 = vpack.c.b16 %v5086, %v5070
        %v6815 = vpack.c.b16 %v5087, %v5071
        %v6816 = vpack.c.b16 %v5088, %v5072
        %v6817 = vpack.c.b16 %v5089, %v5073
        %v6818 = vpack.c.b16 %v5090, %v5074
        %v6819 = vpack.c.b16 %v5091, %v5075
        %v6820 = vpack.c.b16 %v5092, %v5076
        %v6821 = vpack.c.b16 %v5093, %v5077
        %v6822 = vpack.c.b16 %v5094, %v5078
        %v6823 = vpack.c.b16 %v5095, %v5079
        %v6824 = vpack.c.b16 %v5112, %v5096
        %v6825 = vpack.c.b16 %v5113, %v5097
        %v6826 = vpack.c.b16 %v5114, %v5098
        %v6827 = vpack.c.b16 %v5115, %v5099
        %v6828 = vpack.c.b16 %v5116, %v5100
        %v6829 = vpack.c.b16 %v5117, %v5101
        %v6830 = vpack.c.b16 %v5118, %v5102
        %v6831 = vpack.c.b16 %v5119, %v5103
        %v6832 = vpack.c.b16 %v5120, %v5104
        %v6833 = vpack.c.b16 %v5121, %v5105
        %v6834 = vpack.c.b16 %v5122, %v5106
        %v6835 = vpack.c.b16 %v5123, %v5107
        %v6836 = vpack.c.b16 %v5124, %v5108
        %v6837 = vpack.c.b16 %v5125, %v5109
        %v6838 = vpack.c.b16 %v5126, %v5110
        %v6839 = vpack.c.b16 %v5127, %v5111
        %v6840 = vpack.c.b16 %v5144, %v5128
        %v6841 = vpack.c.b16 %v5145, %v5129
        %v6842 = vpack.c.b16 %v5146, %v5130
        %v6843 = vpack.c.b16 %v5147, %v5131
        %v6844 = vpack.c.b16 %v5148, %v5132
        %v6845 = vpack.c.b16 %v5149, %v5133
        %v6846 = vpack.c.b16 %v5150, %v5134
        %v6847 = vpack.c.b16 %v5151, %v5135
        %v6848 = vpack.c.b16 %v5152, %v5136
        %v6849 = vpack.c.b16 %v5153, %v5137
        %v6850 = vpack.c.b16 %v5154, %v5138
        %v6851 = vpack.c.b16 %v5155, %v5139
        %v6852 = vpack.c.b16 %v5156, %v5140
        %v6853 = vpack.c.b16 %v5157, %v5141
        %v6854 = vpack.c.b16 %v5158, %v5142
        %v6855 = vpack.c.b16 %v5159, %v5143
        %v6856 = vpack.c.b16 %v5176, %v5160
        %v6857 = vpack.c.b16 %v5177, %v5161
        %v6858 = vpack.c.b16 %v5178, %v5162
        %v6859 = vpack.c.b16 %v5179, %v5163
        %v6860 = vpack.c.b16 %v5180, %v5164
        %v6861 = vpack.c.b16 %v5181, %v5165
        %v6862 = vpack.c.b16 %v5182, %v5166
        %v6863 = vpack.c.b16 %v5183, %v5167
        %v6864 = vpack.c.b16 %v5184, %v5168
        %v6865 = vpack.c.b16 %v5185, %v5169
        %v6866 = vpack.c.b16 %v5186, %v5170
        %v6867 = vpack.c.b16 %v5187, %v5171
        %v6868 = vpack.c.b16 %v5188, %v5172
        %v6869 = vpack.c.b16 %v5189, %v5173
        %v6870 = vpack.c.b16 %v5190, %v5174
        %v6871 = vpack.c.b16 %v5191, %v5175
        %v6872 = vpack.c.b16 %v5208, %v5192
        %v6873 = vpack.c.b16 %v5209, %v5193
        %v6874 = vpack.c.b16 %v5210, %v5194
        %v6875 = vpack.c.b16 %v5211, %v5195
        %v6876 = vpack.c.b16 %v5212, %v5196
        %v6877 = vpack.c.b16 %v5213, %v5197
        %v6878 = vpack.c.b16 %v5214, %v5198
        %v6879 = vpack.c.b16 %v5215, %v5199
        %v6880 = vpack.c.b16 %v5216, %v5200
        %v6881 = vpack.c.b16 %v5217, %v5201
        %v6882 = vpack.c.b16 %v5218, %v5202
        %v6883 = vpack.c.b16 %v5219, %v5203
        %v6884 = vpack.c.b16 %v5220, %v5204
        %v6885 = vpack.c.b16 %v5221, %v5205
        %v6886 = vpack.c.b16 %v5222, %v5206
        %v6887 = vpack.c.b16 %v5223, %v5207
        %v6888 = vpack.c.b16 %v5240, %v5224
        %v6889 = vpack.c.b16 %v5241, %v5225
        %v6890 = vpack.c.b16 %v5242, %v5226
        %v6891 = vpack.c.b16 %v5243, %v5227
        %v6892 = vpack.c.b16 %v5244, %v5228
        %v6893 = vpack.c.b16 %v5245, %v5229
        %v6894 = vpack.c.b16 %v5246, %v5230
        %v6895 = vpack.c.b16 %v5247, %v5231
        %v6896 = vpack.c.b16 %v5248, %v5232
        %v6897 = vpack.c.b16 %v5249, %v5233
        %v6898 = vpack.c.b16 %v5250, %v5234
        %v6899 = vpack.c.b16 %v5251, %v5235
        %v6900 = vpack.c.b16 %v5252, %v5236
        %v6901 = vpack.c.b16 %v5253, %v5237
        %v6902 = vpack.c.b16 %v5254, %v5238
        %v6903 = vpack.c.b16 %v5255, %v5239
        %v6904 = vpack.c.b16 %v5272, %v5256
        %v6905 = vpack.c.b16 %v5273, %v5257
        %v6906 = vpack.c.b16 %v5274, %v5258
        %v6907 = vpack.c.b16 %v5275, %v5259
        %v6908 = vpack.c.b16 %v5276, %v5260
        %v6909 = vpack.c.b16 %v5277, %v5261
        %v6910 = vpack.c.b16 %v5278, %v5262
        %v6911 = vpack.c.b16 %v5279, %v5263
        %v6912 = vpack.c.b16 %v5280, %v5264
        %v6913 = vpack.c.b16 %v5281, %v5265
        %v6914 = vpack.c.b16 %v5282, %v5266
        %v6915 = vpack.c.b16 %v5283, %v5267
        %v6916 = vpack.c.b16 %v5284, %v5268
        %v6917 = vpack.c.b16 %v5285, %v5269
        %v6918 = vpack.c.b16 %v5286, %v5270
        %v6919 = vpack.c.b16 %v5287, %v5271
        %v6920 = vpack.c.b16 %v5304, %v5288
        %v6921 = vpack.c.b16 %v5305, %v5289
        %v6922 = vpack.c.b16 %v5306, %v5290
        %v6923 = vpack.c.b16 %v5307, %v5291
        %v6924 = vpack.c.b16 %v5308, %v5292
        %v6925 = vpack.c.b16 %v5309, %v5293
        %v6926 = vpack.c.b16 %v5310, %v5294
        %v6927 = vpack.c.b16 %v5311, %v5295
        %v6928 = vpack.c.b16 %v5312, %v5296
        %v6929 = vpack.c.b16 %v5313, %v5297
        %v6930 = vpack.c.b16 %v5314, %v5298
        %v6931 = vpack.c.b16 %v5315, %v5299
        %v6932 = vpack.c.b16 %v5316, %v5300
        %v6933 = vpack.c.b16 %v5317, %v5301
        %v6934 = vpack.c.b16 %v5318, %v5302
        %v6935 = vpack.c.b16 %v5319, %v5303
        %v6936 = vpack.c.b16 %v5336, %v5320
        %v6937 = vpack.c.b16 %v5337, %v5321
        %v6938 = vpack.c.b16 %v5338, %v5322
        %v6939 = vpack.c.b16 %v5339, %v5323
        %v6940 = vpack.c.b16 %v5340, %v5324
        %v6941 = vpack.c.b16 %v5341, %v5325
        %v6942 = vpack.c.b16 %v5342, %v5326
        %v6943 = vpack.c.b16 %v5343, %v5327
        %v6944 = vpack.c.b16 %v5344, %v5328
        %v6945 = vpack.c.b16 %v5345, %v5329
        %v6946 = vpack.c.b16 %v5346, %v5330
        %v6947 = vpack.c.b16 %v5347, %v5331
        %v6948 = vpack.c.b16 %v5348, %v5332
        %v6949 = vpack.c.b16 %v5349, %v5333
        %v6950 = vpack.c.b16 %v5350, %v5334
        %v6951 = vpack.c.b16 %v5351, %v5335
        %v6952 = vpack.c.b16 %v5368, %v5352
        %v6953 = vpack.c.b16 %v5369, %v5353
        %v6954 = vpack.c.b16 %v5370, %v5354
        %v6955 = vpack.c.b16 %v5371, %v5355
        %v6956 = vpack.c.b16 %v5372, %v5356
        %v6957 = vpack.c.b16 %v5373, %v5357
        %v6958 = vpack.c.b16 %v5374, %v5358
        %v6959 = vpack.c.b16 %v5375, %v5359
        %v6960 = vpack.c.b16 %v5376, %v5360
        %v6961 = vpack.c.b16 %v5377, %v5361
        %v6962 = vpack.c.b16 %v5378, %v5362
        %v6963 = vpack.c.b16 %v5379, %v5363
        %v6964 = vpack.c.b16 %v5380, %v5364
        %v6965 = vpack.c.b16 %v5381, %v5365
        %v6966 = vpack.c.b16 %v5382, %v5366
        %v6967 = vpack.c.b16 %v5383, %v5367
        %v6968 = vpack.c.b16 %v5400, %v5384
        %v6969 = vpack.c.b16 %v5401, %v5385
        %v6970 = vpack.c.b16 %v5402, %v5386
        %v6971 = vpack.c.b16 %v5403, %v5387
        %v6972 = vpack.c.b16 %v5404, %v5388
        %v6973 = vpack.c.b16 %v5405, %v5389
        %v6974 = vpack.c.b16 %v5406, %v5390
        %v6975 = vpack.c.b16 %v5407, %v5391
        %v6976 = vpack.c.b16 %v5408, %v5392
        %v6977 = vpack.c.b16 %v5409, %v5393
        %v6978 = vpack.c.b16 %v5410, %v5394
        %v6979 = vpack.c.b16 %v5411, %v5395
        %v6980 = vpack.c.b16 %v5412, %v5396
        %v6981 = vpack.c.b16 %v5413, %v5397
        %v6982 = vpack.c.b16 %v5414, %v5398
        %v6983 = vpack.c.b16 %v5415, %v5399
        %v6984 = vpack.c.b16 %v5432, %v5416
        %v6985 = vpack.c.b16 %v5433, %v5417
        %v6986 = vpack.c.b16 %v5434, %v5418
        %v6987 = vpack.c.b16 %v5435, %v5419
        %v6988 = vpack.c.b16 %v5436, %v5420
        %v6989 = vpack.c.b16 %v5437, %v5421
        %v6990 = vpack.c.b16 %v5438, %v5422
        %v6991 = vpack.c.b16 %v5439, %v5423
        %v6992 = vpack.c.b16 %v5440, %v5424
        %v6993 = vpack.c.b16 %v5441, %v5425
        %v6994 = vpack.c.b16 %v5442, %v5426
        %v6995 = vpack.c.b16 %v5443, %v5427
        %v6996 = vpack.c.b16 %v5444, %v5428
        %v6997 = vpack.c.b16 %v5445, %v5429
        %v6998 = vpack.c.b16 %v5446, %v5430
        %v6999 = vpack.c.b16 %v5447, %v5431
        %v7000 = vpack.c.b16 %v5464, %v5448
        %v7001 = vpack.c.b16 %v5465, %v5449
        %v7002 = vpack.c.b16 %v5466, %v5450
        %v7003 = vpack.c.b16 %v5467, %v5451
        %v7004 = vpack.c.b16 %v5468, %v5452
        %v7005 = vpack.c.b16 %v5469, %v5453
        %v7006 = vpack.c.b16 %v5470, %v5454
        %v7007 = vpack.c.b16 %v5471, %v5455
        %v7008 = vpack.c.b16 %v5472, %v5456
        %v7009 = vpack.c.b16 %v5473, %v5457
        %v7010 = vpack.c.b16 %v5474, %v5458
        %v7011 = vpack.c.b16 %v5475, %v5459
        %v7012 = vpack.c.b16 %v5476, %v5460
        %v7013 = vpack.c.b16 %v5477, %v5461
        %v7014 = vpack.c.b16 %v5478, %v5462
        %v7015 = vpack.c.b16 %v5479, %v5463
        %v7016 = vpack.c.b16 %v5496, %v5480
        %v7017 = vpack.c.b16 %v5497, %v5481
        %v7018 = vpack.c.b16 %v5498, %v5482
        %v7019 = vpack.c.b16 %v5499, %v5483
        %v7020 = vpack.c.b16 %v5500, %v5484
        %v7021 = vpack.c.b16 %v5501, %v5485
        %v7022 = vpack.c.b16 %v5502, %v5486
        %v7023 = vpack.c.b16 %v5503, %v5487
        %v7024 = vpack.c.b16 %v5504, %v5488
        %v7025 = vpack.c.b16 %v5505, %v5489
        %v7026 = vpack.c.b16 %v5506, %v5490
        %v7027 = vpack.c.b16 %v5507, %v5491
        %v7028 = vpack.c.b16 %v5508, %v5492
        %v7029 = vpack.c.b16 %v5509, %v5493
        %v7030 = vpack.c.b16 %v5510, %v5494
        %v7031 = vpack.c.b16 %v5511, %v5495
        %v7032 = vpack.c.b16 %v5528, %v5512
        %v7033 = vpack.c.b16 %v5529, %v5513
        %v7034 = vpack.c.b16 %v5530, %v5514
        %v7035 = vpack.c.b16 %v5531, %v5515
        %v7036 = vpack.c.b16 %v5532, %v5516
        %v7037 = vpack.c.b16 %v5533, %v5517
        %v7038 = vpack.c.b16 %v5534, %v5518
        %v7039 = vpack.c.b16 %v5535, %v5519
        %v7040 = vpack.c.b16 %v5536, %v5520
        %v7041 = vpack.c.b16 %v5537, %v5521
        %v7042 = vpack.c.b16 %v5538, %v5522
        %v7043 = vpack.c.b16 %v5539, %v5523
        %v7044 = vpack.c.b16 %v5540, %v5524
        %v7045 = vpack.c.b16 %v5541, %v5525
        %v7046 = vpack.c.b16 %v5542, %v5526
        %v7047 = vpack.c.b16 %v5543, %v5527
        %v7048 = vpack.c.b16 %v5560, %v5544
        %v7049 = vpack.c.b16 %v5561, %v5545
        %v7050 = vpack.c.b16 %v5562, %v5546
        %v7051 = vpack.c.b16 %v5563, %v5547
        %v7052 = vpack.c.b16 %v5564, %v5548
        %v7053 = vpack.c.b16 %v5565, %v5549
        %v7054 = vpack.c.b16 %v5566, %v5550
        %v7055 = vpack.c.b16 %v5567, %v5551
        %v7056 = vpack.c.b16 %v5568, %v5552
        %v7057 = vpack.c.b16 %v5569, %v5553
        %v7058 = vpack.c.b16 %v5570, %v5554
        %v7059 = vpack.c.b16 %v5571, %v5555
        %v7060 = vpack.c.b16 %v5572, %v5556
        %v7061 = vpack.c.b16 %v5573, %v5557
        %v7062 = vpack.c.b16 %v5574, %v5558
        %v7063 = vpack.c.b16 %v5575, %v5559
        %v7064 = vpack.c.b16 %v5592, %v5576
        %v7065 = vpack.c.b16 %v5593, %v5577
        %v7066 = vpack.c.b16 %v5594, %v5578
        %v7067 = vpack.c.b16 %v5595, %v5579
        %v7068 = vpack.c.b16 %v5596, %v5580
        %v7069 = vpack.c.b16 %v5597, %v5581
        %v7070 = vpack.c.b16 %v5598, %v5582
        %v7071 = vpack.c.b16 %v5599, %v5583
        %v7072 = vpack.c.b16 %v5600, %v5584
        %v7073 = vpack.c.b16 %v5601, %v5585
        %v7074 = vpack.c.b16 %v5602, %v5586
        %v7075 = vpack.c.b16 %v5603, %v5587
        %v7076 = vpack.c.b16 %v5604, %v5588
        %v7077 = vpack.c.b16 %v5605, %v5589
        %v7078 = vpack.c.b16 %v5606, %v5590
        %v7079 = vpack.c.b16 %v5607, %v5591
        %v7080 = vpack.c.b16 %v5624, %v5608
        %v7081 = vpack.c.b16 %v5625, %v5609
        %v7082 = vpack.c.b16 %v5626, %v5610
        %v7083 = vpack.c.b16 %v5627, %v5611
        %v7084 = vpack.c.b16 %v5628, %v5612
        %v7085 = vpack.c.b16 %v5629, %v5613
        %v7086 = vpack.c.b16 %v5630, %v5614
        %v7087 = vpack.c.b16 %v5631, %v5615
        %v7088 = vpack.c.b16 %v5632, %v5616
        %v7089 = vpack.c.b16 %v5633, %v5617
        %v7090 = vpack.c.b16 %v5634, %v5618
        %v7091 = vpack.c.b16 %v5635, %v5619
        %v7092 = vpack.c.b16 %v5636, %v5620
        %v7093 = vpack.c.b16 %v5637, %v5621
        %v7094 = vpack.c.b16 %v5638, %v5622
        %v7095 = vpack.c.b16 %v5639, %v5623
        %v7096 = vpack.c.b16 %v5656, %v5640
        %v7097 = vpack.c.b16 %v5657, %v5641
        %v7098 = vpack.c.b16 %v5658, %v5642
        %v7099 = vpack.c.b16 %v5659, %v5643
        %v7100 = vpack.c.b16 %v5660, %v5644
        %v7101 = vpack.c.b16 %v5661, %v5645
        %v7102 = vpack.c.b16 %v5662, %v5646
        %v7103 = vpack.c.b16 %v5663, %v5647
        %v7104 = vpack.c.b16 %v5664, %v5648
        %v7105 = vpack.c.b16 %v5665, %v5649
        %v7106 = vpack.c.b16 %v5666, %v5650
        %v7107 = vpack.c.b16 %v5667, %v5651
        %v7108 = vpack.c.b16 %v5668, %v5652
        %v7109 = vpack.c.b16 %v5669, %v5653
        %v7110 = vpack.c.b16 %v5670, %v5654
        %v7111 = vpack.c.b16 %v5671, %v5655
        %v7112 = vpack.c.b16 %v5688, %v5672
        %v7113 = vpack.c.b16 %v5689, %v5673
        %v7114 = vpack.c.b16 %v5690, %v5674
        %v7115 = vpack.c.b16 %v5691, %v5675
        %v7116 = vpack.c.b16 %v5692, %v5676
        %v7117 = vpack.c.b16 %v5693, %v5677
        %v7118 = vpack.c.b16 %v5694, %v5678
        %v7119 = vpack.c.b16 %v5695, %v5679
        %v7120 = vpack.c.b16 %v5696, %v5680
        %v7121 = vpack.c.b16 %v5697, %v5681
        %v7122 = vpack.c.b16 %v5698, %v5682
        %v7123 = vpack.c.b16 %v5699, %v5683
        %v7124 = vpack.c.b16 %v5700, %v5684
        %v7125 = vpack.c.b16 %v5701, %v5685
        %v7126 = vpack.c.b16 %v5702, %v5686
        %v7127 = vpack.c.b16 %v5703, %v5687
        %v7128 = vpack.c.b16 %v5720, %v5704
        %v7129 = vpack.c.b16 %v5721, %v5705
        %v7130 = vpack.c.b16 %v5722, %v5706
        %v7131 = vpack.c.b16 %v5723, %v5707
        %v7132 = vpack.c.b16 %v5724, %v5708
        %v7133 = vpack.c.b16 %v5725, %v5709
        %v7134 = vpack.c.b16 %v5726, %v5710
        %v7135 = vpack.c.b16 %v5727, %v5711
        %v7136 = vpack.c.b16 %v5728, %v5712
        %v7137 = vpack.c.b16 %v5729, %v5713
        %v7138 = vpack.c.b16 %v5730, %v5714
        %v7139 = vpack.c.b16 %v5731, %v5715
        %v7140 = vpack.c.b16 %v5732, %v5716
        %v7141 = vpack.c.b16 %v5733, %v5717
        %v7142 = vpack.c.b16 %v5734, %v5718
        %v7143 = vpack.c.b16 %v5735, %v5719
        %v7144 = vpack.c.b16 %v5752, %v5736
        %v7145 = vpack.c.b16 %v5753, %v5737
        %v7146 = vpack.c.b16 %v5754, %v5738
        %v7147 = vpack.c.b16 %v5755, %v5739
        %v7148 = vpack.c.b16 %v5756, %v5740
        %v7149 = vpack.c.b16 %v5757, %v5741
        %v7150 = vpack.c.b16 %v5758, %v5742
        %v7151 = vpack.c.b16 %v5759, %v5743
        %v7152 = vpack.c.b16 %v5760, %v5744
        %v7153 = vpack.c.b16 %v5761, %v5745
        %v7154 = vpack.c.b16 %v5762, %v5746
        %v7155 = vpack.c.b16 %v5763, %v5747
        %v7156 = vpack.c.b16 %v5764, %v5748
        %v7157 = vpack.c.b16 %v5765, %v5749
        %v7158 = vpack.c.b16 %v5766, %v5750
        %v7159 = vpack.c.b16 %v5767, %v5751
        %v7160 = vpack.c.b16 %v5784, %v5768
        %v7161 = vpack.c.b16 %v5785, %v5769
        %v7162 = vpack.c.b16 %v5786, %v5770
        %v7163 = vpack.c.b16 %v5787, %v5771
        %v7164 = vpack.c.b16 %v5788, %v5772
        %v7165 = vpack.c.b16 %v5789, %v5773
        %v7166 = vpack.c.b16 %v5790, %v5774
        %v7167 = vpack.c.b16 %v5791, %v5775
        %v7168 = vpack.c.b16 %v5792, %v5776
        %v7169 = vpack.c.b16 %v5793, %v5777
        %v7170 = vpack.c.b16 %v5794, %v5778
        %v7171 = vpack.c.b16 %v5795, %v5779
        %v7172 = vpack.c.b16 %v5796, %v5780
        %v7173 = vpack.c.b16 %v5797, %v5781
        %v7174 = vpack.c.b16 %v5798, %v5782
        %v7175 = vpack.c.b16 %v5799, %v5783
        %v7176 = vpack.c.b16 %v5816, %v5800
        %v7177 = vpack.c.b16 %v5817, %v5801
        %v7178 = vpack.c.b16 %v5818, %v5802
        %v7179 = vpack.c.b16 %v5819, %v5803
        %v7180 = vpack.c.b16 %v5820, %v5804
        %v7181 = vpack.c.b16 %v5821, %v5805
        %v7182 = vpack.c.b16 %v5822, %v5806
        %v7183 = vpack.c.b16 %v5823, %v5807
        %v7184 = vpack.c.b16 %v5824, %v5808
        %v7185 = vpack.c.b16 %v5825, %v5809
        %v7186 = vpack.c.b16 %v5826, %v5810
        %v7187 = vpack.c.b16 %v5827, %v5811
        %v7188 = vpack.c.b16 %v5828, %v5812
        %v7189 = vpack.c.b16 %v5829, %v5813
        %v7190 = vpack.c.b16 %v5830, %v5814
        %v7191 = vpack.c.b16 %v5831, %v5815
        %v7192 = vpack.c.b16 %v5848, %v5832
        %v7193 = vpack.c.b16 %v5849, %v5833
        %v7194 = vpack.c.b16 %v5850, %v5834
        %v7195 = vpack.c.b16 %v5851, %v5835
        %v7196 = vpack.c.b16 %v5852, %v5836
        %v7197 = vpack.c.b16 %v5853, %v5837
        %v7198 = vpack.c.b16 %v5854, %v5838
        %v7199 = vpack.c.b16 %v5855, %v5839
        %v7200 = vpack.c.b16 %v5856, %v5840
        %v7201 = vpack.c.b16 %v5857, %v5841
        %v7202 = vpack.c.b16 %v5858, %v5842
        %v7203 = vpack.c.b16 %v5859, %v5843
        %v7204 = vpack.c.b16 %v5860, %v5844
        %v7205 = vpack.c.b16 %v5861, %v5845
        %v7206 = vpack.c.b16 %v5862, %v5846
        %v7207 = vpack.c.b16 %v5863, %v5847
        %v7208 = vpack.c.b16 %v5880, %v5864
        %v7209 = vpack.c.b16 %v5881, %v5865
        %v7210 = vpack.c.b16 %v5882, %v5866
        %v7211 = vpack.c.b16 %v5883, %v5867
        %v7212 = vpack.c.b16 %v5884, %v5868
        %v7213 = vpack.c.b16 %v5885, %v5869
        %v7214 = vpack.c.b16 %v5886, %v5870
        %v7215 = vpack.c.b16 %v5887, %v5871
        %v7216 = vpack.c.b16 %v5888, %v5872
        %v7217 = vpack.c.b16 %v5889, %v5873
        %v7218 = vpack.c.b16 %v5890, %v5874
        %v7219 = vpack.c.b16 %v5891, %v5875
        %v7220 = vpack.c.b16 %v5892, %v5876
        %v7221 = vpack.c.b16 %v5893, %v5877
        %v7222 = vpack.c.b16 %v5894, %v5878
        %v7223 = vpack.c.b16 %v5895, %v5879
        %v7224 = vpack.c.b16 %v5912, %v5896
        %v7225 = vpack.c.b16 %v5913, %v5897
        %v7226 = vpack.c.b16 %v5914, %v5898
        %v7227 = vpack.c.b16 %v5915, %v5899
        %v7228 = vpack.c.b16 %v5916, %v5900
        %v7229 = vpack.c.b16 %v5917, %v5901
        %v7230 = vpack.c.b16 %v5918, %v5902
        %v7231 = vpack.c.b16 %v5919, %v5903
        %v7232 = vpack.c.b16 %v5920, %v5904
        %v7233 = vpack.c.b16 %v5921, %v5905
        %v7234 = vpack.c.b16 %v5922, %v5906
        %v7235 = vpack.c.b16 %v5923, %v5907
        %v7236 = vpack.c.b16 %v5924, %v5908
        %v7237 = vpack.c.b16 %v5925, %v5909
        %v7238 = vpack.c.b16 %v5926, %v5910
        %v7239 = vpack.c.b16 %v5927, %v5911
        %v7240 = vpack.c.b16 %v5944, %v5928
        %v7241 = vpack.c.b16 %v5945, %v5929
        %v7242 = vpack.c.b16 %v5946, %v5930
        %v7243 = vpack.c.b16 %v5947, %v5931
        %v7244 = vpack.c.b16 %v5948, %v5932
        %v7245 = vpack.c.b16 %v5949, %v5933
        %v7246 = vpack.c.b16 %v5950, %v5934
        %v7247 = vpack.c.b16 %v5951, %v5935
        %v7248 = vpack.c.b16 %v5952, %v5936
        %v7249 = vpack.c.b16 %v5953, %v5937
        %v7250 = vpack.c.b16 %v5954, %v5938
        %v7251 = vpack.c.b16 %v5955, %v5939
        %v7252 = vpack.c.b16 %v5956, %v5940
        %v7253 = vpack.c.b16 %v5957, %v5941
        %v7254 = vpack.c.b16 %v5958, %v5942
        %v7255 = vpack.c.b16 %v5959, %v5943
        %v7256 = vpack.c.b16 %v5976, %v5960
        %v7257 = vpack.c.b16 %v5977, %v5961
        %v7258 = vpack.c.b16 %v5978, %v5962
        %v7259 = vpack.c.b16 %v5979, %v5963
        %v7260 = vpack.c.b16 %v5980, %v5964
        %v7261 = vpack.c.b16 %v5981, %v5965
        %v7262 = vpack.c.b16 %v5982, %v5966
        %v7263 = vpack.c.b16 %v5983, %v5967
        %v7264 = vpack.c.b16 %v5984, %v5968
        %v7265 = vpack.c.b16 %v5985, %v5969
        %v7266 = vpack.c.b16 %v5986, %v5970
        %v7267 = vpack.c.b16 %v5987, %v5971
        %v7268 = vpack.c.b16 %v5988, %v5972
        %v7269 = vpack.c.b16 %v5989, %v5973
        %v7270 = vpack.c.b16 %v5990, %v5974
        %v7271 = vpack.c.b16 %v5991, %v5975
        %v7272 = vpack.c.b16 %v6008, %v5992
        %v7273 = vpack.c.b16 %v6009, %v5993
        %v7274 = vpack.c.b16 %v6010, %v5994
        %v7275 = vpack.c.b16 %v6011, %v5995
        %v7276 = vpack.c.b16 %v6012, %v5996
        %v7277 = vpack.c.b16 %v6013, %v5997
        %v7278 = vpack.c.b16 %v6014, %v5998
        %v7279 = vpack.c.b16 %v6015, %v5999
        %v7280 = vpack.c.b16 %v6016, %v6000
        %v7281 = vpack.c.b16 %v6017, %v6001
        %v7282 = vpack.c.b16 %v6018, %v6002
        %v7283 = vpack.c.b16 %v6019, %v6003
        %v7284 = vpack.c.b16 %v6020, %v6004
        %v7285 = vpack.c.b16 %v6021, %v6005
        %v7286 = vpack.c.b16 %v6022, %v6006
        %v7287 = vpack.c.b16 %v6023, %v6007
        %v7288 = vpack.c.b16 %v6040, %v6024
        %v7289 = vpack.c.b16 %v6041, %v6025
        %v7290 = vpack.c.b16 %v6042, %v6026
        %v7291 = vpack.c.b16 %v6043, %v6027
        %v7292 = vpack.c.b16 %v6044, %v6028
        %v7293 = vpack.c.b16 %v6045, %v6029
        %v7294 = vpack.c.b16 %v6046, %v6030
        %v7295 = vpack.c.b16 %v6047, %v6031
        %v7296 = vpack.c.b16 %v6048, %v6032
        %v7297 = vpack.c.b16 %v6049, %v6033
        %v7298 = vpack.c.b16 %v6050, %v6034
        %v7299 = vpack.c.b16 %v6051, %v6035
        %v7300 = vpack.c.b16 %v6052, %v6036
        %v7301 = vpack.c.b16 %v6053, %v6037
        %v7302 = vpack.c.b16 %v6054, %v6038
        %v7303 = vpack.c.b16 %v6055, %v6039
        %v7304 = vpack.c.b16 %v6072, %v6056
        %v7305 = vpack.c.b16 %v6073, %v6057
        %v7306 = vpack.c.b16 %v6074, %v6058
        %v7307 = vpack.c.b16 %v6075, %v6059
        %v7308 = vpack.c.b16 %v6076, %v6060
        %v7309 = vpack.c.b16 %v6077, %v6061
        %v7310 = vpack.c.b16 %v6078, %v6062
        %v7311 = vpack.c.b16 %v6079, %v6063
        %v7312 = vpack.c.b16 %v6080, %v6064
        %v7313 = vpack.c.b16 %v6081, %v6065
        %v7314 = vpack.c.b16 %v6082, %v6066
        %v7315 = vpack.c.b16 %v6083, %v6067
        %v7316 = vpack.c.b16 %v6084, %v6068
        %v7317 = vpack.c.b16 %v6085, %v6069
        %v7318 = vpack.c.b16 %v6086, %v6070
        %v7319 = vpack.c.b16 %v6087, %v6071
        %v7320 = vpack.c.b16 %v6104, %v6088
        %v7321 = vpack.c.b16 %v6105, %v6089
        %v7322 = vpack.c.b16 %v6106, %v6090
        %v7323 = vpack.c.b16 %v6107, %v6091
        %v7324 = vpack.c.b16 %v6108, %v6092
        %v7325 = vpack.c.b16 %v6109, %v6093
        %v7326 = vpack.c.b16 %v6110, %v6094
        %v7327 = vpack.c.b16 %v6111, %v6095
        %v7328 = vpack.c.b16 %v6112, %v6096
        %v7329 = vpack.c.b16 %v6113, %v6097
        %v7330 = vpack.c.b16 %v6114, %v6098
        %v7331 = vpack.c.b16 %v6115, %v6099
        %v7332 = vpack.c.b16 %v6116, %v6100
        %v7333 = vpack.c.b16 %v6117, %v6101
        %v7334 = vpack.c.b16 %v6118, %v6102
        %v7335 = vpack.c.b16 %v6119, %v6103
        %v7336 = vpack.c.b16 %v6136, %v6120
        %v7337 = vpack.c.b16 %v6137, %v6121
        %v7338 = vpack.c.b16 %v6138, %v6122
        %v7339 = vpack.c.b16 %v6139, %v6123
        %v7340 = vpack.c.b16 %v6140, %v6124
        %v7341 = vpack.c.b16 %v6141, %v6125
        %v7342 = vpack.c.b16 %v6142, %v6126
        %v7343 = vpack.c.b16 %v6143, %v6127
        %v7344 = vpack.c.b16 %v6144, %v6128
        %v7345 = vpack.c.b16 %v6145, %v6129
        %v7346 = vpack.c.b16 %v6146, %v6130
        %v7347 = vpack.c.b16 %v6147, %v6131
        %v7348 = vpack.c.b16 %v6148, %v6132
        %v7349 = vpack.c.b16 %v6149, %v6133
        %v7350 = vpack.c.b16 %v6150, %v6134
        %v7351 = vpack.c.b16 %v6151, %v6135
        %v7352 = vpack.c.b16 %v6168, %v6152
        %v7353 = vpack.c.b16 %v6169, %v6153
        %v7354 = vpack.c.b16 %v6170, %v6154
        %v7355 = vpack.c.b16 %v6171, %v6155
        %v7356 = vpack.c.b16 %v6172, %v6156
        %v7357 = vpack.c.b16 %v6173, %v6157
        %v7358 = vpack.c.b16 %v6174, %v6158
        %v7359 = vpack.c.b16 %v6175, %v6159
        %v7360 = vpack.c.b16 %v6176, %v6160
        %v7361 = vpack.c.b16 %v6177, %v6161
        %v7362 = vpack.c.b16 %v6178, %v6162
        %v7363 = vpack.c.b16 %v6179, %v6163
        %v7364 = vpack.c.b16 %v6180, %v6164
        %v7365 = vpack.c.b16 %v6181, %v6165
        %v7366 = vpack.c.b16 %v6182, %v6166
        %v7367 = vpack.c.b16 %v6183, %v6167
        %v7368 = vpack.c.b16 %v6200, %v6184
        %v7369 = vpack.c.b16 %v6201, %v6185
        %v7370 = vpack.c.b16 %v6202, %v6186
        %v7371 = vpack.c.b16 %v6203, %v6187
        %v7372 = vpack.c.b16 %v6204, %v6188
        %v7373 = vpack.c.b16 %v6205, %v6189
        %v7374 = vpack.c.b16 %v6206, %v6190
        %v7375 = vpack.c.b16 %v6207, %v6191
        %v7376 = vpack.c.b16 %v6208, %v6192
        %v7377 = vpack.c.b16 %v6209, %v6193
        %v7378 = vpack.c.b16 %v6210, %v6194
        %v7379 = vpack.c.b16 %v6211, %v6195
        %v7380 = vpack.c.b16 %v6212, %v6196
        %v7381 = vpack.c.b16 %v6213, %v6197
        %v7382 = vpack.c.b16 %v6214, %v6198
        %v7383 = vpack.c.b16 %v6215, %v6199
        %v7384 = vpack.c.b16 %v6232, %v6216
        %v7385 = vpack.c.b16 %v6233, %v6217
        %v7386 = vpack.c.b16 %v6234, %v6218
        %v7387 = vpack.c.b16 %v6235, %v6219
        %v7388 = vpack.c.b16 %v6236, %v6220
        %v7389 = vpack.c.b16 %v6237, %v6221
        %v7390 = vpack.c.b16 %v6238, %v6222
        %v7391 = vpack.c.b16 %v6239, %v6223
        %v7392 = vpack.c.b16 %v6240, %v6224
        %v7393 = vpack.c.b16 %v6241, %v6225
        %v7394 = vpack.c.b16 %v6242, %v6226
        %v7395 = vpack.c.b16 %v6243, %v6227
        %v7396 = vpack.c.b16 %v6244, %v6228
        %v7397 = vpack.c.b16 %v6245, %v6229
        %v7398 = vpack.c.b16 %v6246, %v6230
        %v7399 = vpack.c.b16 %v6247, %v6231
        %v7400 = vpack.c.b16 %v6264, %v6248
        %v7401 = vpack.c.b16 %v6265, %v6249
        %v7402 = vpack.c.b16 %v6266, %v6250
        %v7403 = vpack.c.b16 %v6267, %v6251
        %v7404 = vpack.c.b16 %v6268, %v6252
        %v7405 = vpack.c.b16 %v6269, %v6253
        %v7406 = vpack.c.b16 %v6270, %v6254
        %v7407 = vpack.c.b16 %v6271, %v6255
        %v7408 = vpack.c.b16 %v6272, %v6256
        %v7409 = vpack.c.b16 %v6273, %v6257
        %v7410 = vpack.c.b16 %v6274, %v6258
        %v7411 = vpack.c.b16 %v6275, %v6259
        %v7412 = vpack.c.b16 %v6276, %v6260
        %v7413 = vpack.c.b16 %v6277, %v6261
        %v7414 = vpack.c.b16 %v6278, %v6262
        %v7415 = vpack.c.b16 %v6279, %v6263
        %v7416 = vpack.c.b16 %v6296, %v6280
        %v7417 = vpack.c.b16 %v6297, %v6281
        %v7418 = vpack.c.b16 %v6298, %v6282
        %v7419 = vpack.c.b16 %v6299, %v6283
        %v7420 = vpack.c.b16 %v6300, %v6284
        %v7421 = vpack.c.b16 %v6301, %v6285
        %v7422 = vpack.c.b16 %v6302, %v6286
        %v7423 = vpack.c.b16 %v6303, %v6287
        %v7424 = vpack.c.b16 %v6304, %v6288
        %v7425 = vpack.c.b16 %v6305, %v6289
        %v7426 = vpack.c.b16 %v6306, %v6290
        %v7427 = vpack.c.b16 %v6307, %v6291
        %v7428 = vpack.c.b16 %v6308, %v6292
        %v7429 = vpack.c.b16 %v6309, %v6293
        %v7430 = vpack.c.b16 %v6310, %v6294
        %v7431 = vpack.c.b16 %v6311, %v6295
        %v7432 = vpack.c.b16 %v6328, %v6312
        %v7433 = vpack.c.b16 %v6329, %v6313
        %v7434 = vpack.c.b16 %v6330, %v6314
        %v7435 = vpack.c.b16 %v6331, %v6315
        %v7436 = vpack.c.b16 %v6332, %v6316
        %v7437 = vpack.c.b16 %v6333, %v6317
        %v7438 = vpack.c.b16 %v6334, %v6318
        %v7439 = vpack.c.b16 %v6335, %v6319
        %v7440 = vpack.c.b16 %v6336, %v6320
        %v7441 = vpack.c.b16 %v6337, %v6321
        %v7442 = vpack.c.b16 %v6338, %v6322
        %v7443 = vpack.c.b16 %v6339, %v6323
        %v7444 = vpack.c.b16 %v6340, %v6324
        %v7445 = vpack.c.b16 %v6341, %v6325
        %v7446 = vpack.c.b16 %v6342, %v6326
        %v7447 = vpack.c.b16 %v6343, %v6327
        %v7448 = vpack.c.b16 %v6360, %v6344
        %v7449 = vpack.c.b16 %v6361, %v6345
        %v7450 = vpack.c.b16 %v6362, %v6346
        %v7451 = vpack.c.b16 %v6363, %v6347
        %v7452 = vpack.c.b16 %v6364, %v6348
        %v7453 = vpack.c.b16 %v6365, %v6349
        %v7454 = vpack.c.b16 %v6366, %v6350
        %v7455 = vpack.c.b16 %v6367, %v6351
        %v7456 = vpack.c.b16 %v6368, %v6352
        %v7457 = vpack.c.b16 %v6369, %v6353
        %v7458 = vpack.c.b16 %v6370, %v6354
        %v7459 = vpack.c.b16 %v6371, %v6355
        %v7460 = vpack.c.b16 %v6372, %v6356
        %v7461 = vpack.c.b16 %v6373, %v6357
        %v7462 = vpack.c.b16 %v6374, %v6358
        %v7463 = vpack.c.b16 %v6375, %v6359
        %v7464 = vpack.c.b16 %v6392, %v6376
        %v7465 = vpack.c.b16 %v6393, %v6377
        %v7466 = vpack.c.b16 %v6394, %v6378
        %v7467 = vpack.c.b16 %v6395, %v6379
        %v7468 = vpack.c.b16 %v6396, %v6380
        %v7469 = vpack.c.b16 %v6397, %v6381
        %v7470 = vpack.c.b16 %v6398, %v6382
        %v7471 = vpack.c.b16 %v6399, %v6383
        %v7472 = vpack.c.b16 %v6400, %v6384
        %v7473 = vpack.c.b16 %v6401, %v6385
        %v7474 = vpack.c.b16 %v6402, %v6386
        %v7475 = vpack.c.b16 %v6403, %v6387
        %v7476 = vpack.c.b16 %v6404, %v6388
        %v7477 = vpack.c.b16 %v6405, %v6389
        %v7478 = vpack.c.b16 %v6406, %v6390
        %v7479 = vpack.c.b16 %v6407, %v6391
        %v7480 = vpack.c.b16 %v6424, %v6408
        %v7481 = vpack.c.b16 %v6425, %v6409
        %v7482 = vpack.c.b16 %v6426, %v6410
        %v7483 = vpack.c.b16 %v6427, %v6411
        %v7484 = vpack.c.b16 %v6428, %v6412
        %v7485 = vpack.c.b16 %v6429, %v6413
        %v7486 = vpack.c.b16 %v6430, %v6414
        %v7487 = vpack.c.b16 %v6431, %v6415
        %v7488 = vpack.c.b16 %v6432, %v6416
        %v7489 = vpack.c.b16 %v6433, %v6417
        %v7490 = vpack.c.b16 %v6434, %v6418
        %v7491 = vpack.c.b16 %v6435, %v6419
        %v7492 = vpack.c.b16 %v6436, %v6420
        %v7493 = vpack.c.b16 %v6437, %v6421
        %v7494 = vpack.c.b16 %v6438, %v6422
        %v7495 = vpack.c.b16 %v6439, %v6423
        %v7496 = vpack.c.b16 %v6456, %v6440
        %v7497 = vpack.c.b16 %v6457, %v6441
        %v7498 = vpack.c.b16 %v6458, %v6442
        %v7499 = vpack.c.b16 %v6459, %v6443
        %v7500 = vpack.c.b16 %v6460, %v6444
        %v7501 = vpack.c.b16 %v6461, %v6445
        %v7502 = vpack.c.b16 %v6462, %v6446
        %v7503 = vpack.c.b16 %v6463, %v6447
        %v7504 = vpack.c.b16 %v6464, %v6448
        %v7505 = vpack.c.b16 %v6465, %v6449
        %v7506 = vpack.c.b16 %v6466, %v6450
        %v7507 = vpack.c.b16 %v6467, %v6451
        %v7508 = vpack.c.b16 %v6468, %v6452
        %v7509 = vpack.c.b16 %v6469, %v6453
        %v7510 = vpack.c.b16 %v6470, %v6454
        %v7511 = vpack.c.b16 %v6471, %v6455
        %v7512 = vpack.c.b16 %v6488, %v6472
        %v7513 = vpack.c.b16 %v6489, %v6473
        %v7514 = vpack.c.b16 %v6490, %v6474
        %v7515 = vpack.c.b16 %v6491, %v6475
        %v7516 = vpack.c.b16 %v6492, %v6476
        %v7517 = vpack.c.b16 %v6493, %v6477
        %v7518 = vpack.c.b16 %v6494, %v6478
        %v7519 = vpack.c.b16 %v6495, %v6479
        %v7520 = vpack.c.b16 %v6496, %v6480
        %v7521 = vpack.c.b16 %v6497, %v6481
        %v7522 = vpack.c.b16 %v6498, %v6482
        %v7523 = vpack.c.b16 %v6499, %v6483
        %v7524 = vpack.c.b16 %v6500, %v6484
        %v7525 = vpack.c.b16 %v6501, %v6485
        %v7526 = vpack.c.b16 %v6502, %v6486
        %v7527 = vpack.c.b16 %v6503, %v6487
        %8552 = vmatprep.subr.bf16.mxu0 %v6617
        %8553 = vmatpush1.bf16.msra.mxu0 %v6616
        %8554 = vmatprep.subr.bf16.mxu0 %v6601
        %8555 = vmatpush1.bf16.msra.mxu0 %v6600
        %8556 = vmatprep.subr.bf16.mxu0 %v6585
        %8557 = vmatpush1.bf16.msra.mxu0 %v6584
        %8558 = vmatprep.subr.bf16.mxu0 %v6569
        %8559 = vmatpush1.bf16.msra.mxu0 %v6568
        %8560 = vmatprep.subr.bf16.mxu0 %v6553
        %8561 = vmatpush1.bf16.msra.mxu0 %v6552
        %8562 = vmatprep.subr.bf16.mxu0 %v6537
        %8563 = vmatpush1.bf16.msra.mxu0 %v6536
        %8564 = vmatprep.subr.bf16.mxu0 %v6521
        %8565 = vmatpush1.bf16.msra.mxu0 %v6520
        %8566 = vmatprep.subr.bf16.mxu0 %v6505
        %8567 = vmatpush1.bf16.msra.mxu0 %v6504
        %8568 = vmatprep.subr.bf16.mxu0 %v6745
        %8569 = vmatpush2.bf16.msra.mxu0 %v6744
        %8570 = vmatprep.subr.bf16.mxu0 %v6729
        %8571 = vmatpush2.bf16.msra.mxu0 %v6728
        %8572 = vmatprep.subr.bf16.mxu0 %v6713
        %8573 = vmatpush2.bf16.msra.mxu0 %v6712
        %8574 = vmatprep.subr.bf16.mxu0 %v6697
        %8575 = vmatpush2.bf16.msra.mxu0 %v6696
        %8576 = vmatprep.subr.bf16.mxu0 %v6681
        %8577 = vmatpush2.bf16.msra.mxu0 %v6680
        %8578 = vmatprep.subr.bf16.mxu0 %v6665
        %8579 = vmatpush2.bf16.msra.mxu0 %v6664
        %8580 = vmatprep.subr.bf16.mxu0 %v6649
        %8581 = vmatpush2.bf16.msra.mxu0 %v6648
        %8582 = vmatprep.subr.bf16.mxu0 %v6633
        %8583 = vmatpush2.bf16.msra.mxu0 %v6632
        %8584 = vmatprep.mubr.bf16.mxu0 %v2317
        %8585 = vmatmul.mubr.bf16.gmra.mxu0 %v2316
        %v8586 = vpop.f32.mrf.mxu0
        %v8587 = vadd.f32 %v3355, %v8586
        %v8588 = vpop.f32.mrf.mxu0
        %v8589 = vadd.f32 %v3359, %v8588
        %v8590 = vpop.f32.mrf.mxu0
        %v8591 = vpop.f32.mrf.mxu0
        %8592 = vdwg.mxu0
        %8593 = vmatprep.subr.bf16.mxu0 %v6873
        %8594 = vmatpush1.bf16.msra.mxu0 %v6872
        %8595 = vmatprep.subr.bf16.mxu0 %v6857
        %8596 = vmatpush1.bf16.msra.mxu0 %v6856
        %8597 = vmatprep.subr.bf16.mxu0 %v6841
        %8598 = vmatpush1.bf16.msra.mxu0 %v6840
        %8599 = vmatprep.subr.bf16.mxu0 %v6825
        %8600 = vmatpush1.bf16.msra.mxu0 %v6824
        %8601 = vmatprep.subr.bf16.mxu0 %v6809
        %8602 = vmatpush1.bf16.msra.mxu0 %v6808
        %8603 = vmatprep.subr.bf16.mxu0 %v6793
        %8604 = vmatpush1.bf16.msra.mxu0 %v6792
        %8605 = vmatprep.subr.bf16.mxu0 %v6777
        %8606 = vmatpush1.bf16.msra.mxu0 %v6776
        %8607 = vmatprep.subr.bf16.mxu0 %v6761
        %8608 = vmatpush1.bf16.msra.mxu0 %v6760
        %8609 = vmatprep.subr.bf16.mxu0 %v7001
        %8610 = vmatpush2.bf16.msra.mxu0 %v7000
        %8611 = vmatprep.subr.bf16.mxu0 %v6985
        %8612 = vmatpush2.bf16.msra.mxu0 %v6984
        %8613 = vmatprep.subr.bf16.mxu0 %v6969
        %8614 = vmatpush2.bf16.msra.mxu0 %v6968
        %8615 = vmatprep.subr.bf16.mxu0 %v6953
        %8616 = vmatpush2.bf16.msra.mxu0 %v6952
        %8617 = vmatprep.subr.bf16.mxu0 %v6937
        %8618 = vmatpush2.bf16.msra.mxu0 %v6936
        %8619 = vmatprep.subr.bf16.mxu0 %v6921
        %8620 = vmatpush2.bf16.msra.mxu0 %v6920
        %8621 = vmatprep.subr.bf16.mxu0 %v6905
        %8622 = vmatpush2.bf16.msra.mxu0 %v6904
        %8623 = vmatprep.subr.bf16.mxu0 %v6889
        %8624 = vmatpush2.bf16.msra.mxu0 %v6888
        %8625 = vmatprep.mubr.bf16.mxu0 %v2319
        %8626 = vmatmul.mubr.bf16.gmra.mxu0 %v2318
        %v8627 = vpop.f32.mrf.mxu0
        %v8628 = vadd.f32 %v8587, %v8627
        %v8629 = vpop.f32.mrf.mxu0
        %v8630 = vadd.f32 %v8589, %v8629
        %v8631 = vpop.f32.mrf.mxu0
        %v8632 = vpop.f32.mrf.mxu0
        %8633 = vdwg.mxu0
        %8634 = vmatprep.subr.bf16.mxu0 %v7129
        %8635 = vmatpush1.bf16.msra.mxu0 %v7128
        %8636 = vmatprep.subr.bf16.mxu0 %v7113
        %8637 = vmatpush1.bf16.msra.mxu0 %v7112
        %8638 = vmatprep.subr.bf16.mxu0 %v7097
        %8639 = vmatpush1.bf16.msra.mxu0 %v7096
        %8640 = vmatprep.subr.bf16.mxu0 %v7081
        %8641 = vmatpush1.bf16.msra.mxu0 %v7080
        %8642 = vmatprep.subr.bf16.mxu0 %v7065
        %8643 = vmatpush1.bf16.msra.mxu0 %v7064
        %8644 = vmatprep.subr.bf16.mxu0 %v7049
        %8645 = vmatpush1.bf16.msra.mxu0 %v7048
        %8646 = vmatprep.subr.bf16.mxu0 %v7033
        %8647 = vmatpush1.bf16.msra.mxu0 %v7032
        %8648 = vmatprep.subr.bf16.mxu0 %v7017
        %8649 = vmatpush1.bf16.msra.mxu0 %v7016
        %8650 = vmatprep.subr.bf16.mxu0 %v7257
        %8651 = vmatpush2.bf16.msra.mxu0 %v7256
        %8652 = vmatprep.subr.bf16.mxu0 %v7241
        %8653 = vmatpush2.bf16.msra.mxu0 %v7240
        %8654 = vmatprep.subr.bf16.mxu0 %v7225
        %8655 = vmatpush2.bf16.msra.mxu0 %v7224
        %8656 = vmatprep.subr.bf16.mxu0 %v7209
        %8657 = vmatpush2.bf16.msra.mxu0 %v7208
        %8658 = vmatprep.subr.bf16.mxu0 %v7193
        %8659 = vmatpush2.bf16.msra.mxu0 %v7192
        %8660 = vmatprep.subr.bf16.mxu0 %v7177
        %8661 = vmatpush2.bf16.msra.mxu0 %v7176
        %8662 = vmatprep.subr.bf16.mxu0 %v7161
        %8663 = vmatpush2.bf16.msra.mxu0 %v7160
        %8664 = vmatprep.subr.bf16.mxu0 %v7145
        %8665 = vmatpush2.bf16.msra.mxu0 %v7144
        %8666 = vmatprep.mubr.bf16.mxu0 %v2321
        %8667 = vmatmul.mubr.bf16.gmra.mxu0 %v2320
        %v8668 = vpop.f32.mrf.mxu0
        %v8669 = vadd.f32 %v8628, %v8668
        %v8670 = vpop.f32.mrf.mxu0
        %v8671 = vadd.f32 %v8630, %v8670
        %v8672 = vpop.f32.mrf.mxu0
        %v8673 = vpop.f32.mrf.mxu0
        %8674 = vdwg.mxu0
        %8675 = vmatprep.subr.bf16.mxu0 %v7385
        %8676 = vmatpush1.bf16.msra.mxu0 %v7384
        %8677 = vmatprep.subr.bf16.mxu0 %v7369
        %8678 = vmatpush1.bf16.msra.mxu0 %v7368
        %8679 = vmatprep.subr.bf16.mxu0 %v7353
        %8680 = vmatpush1.bf16.msra.mxu0 %v7352
        %8681 = vmatprep.subr.bf16.mxu0 %v7337
        %8682 = vmatpush1.bf16.msra.mxu0 %v7336
        %8683 = vmatprep.subr.bf16.mxu0 %v7321
        %8684 = vmatpush1.bf16.msra.mxu0 %v7320
        %8685 = vmatprep.subr.bf16.mxu0 %v7305
        %8686 = vmatpush1.bf16.msra.mxu0 %v7304
        %8687 = vmatprep.subr.bf16.mxu0 %v7289
        %8688 = vmatpush1.bf16.msra.mxu0 %v7288
        %8689 = vmatprep.subr.bf16.mxu0 %v7273
        %8690 = vmatpush1.bf16.msra.mxu0 %v7272
        %8691 = vmatprep.subr.bf16.mxu0 %v7513
        %8692 = vmatpush2.bf16.msra.mxu0 %v7512
        %8693 = vmatprep.subr.bf16.mxu0 %v7497
        %8694 = vmatpush2.bf16.msra.mxu0 %v7496
        %8695 = vmatprep.subr.bf16.mxu0 %v7481
        %8696 = vmatpush2.bf16.msra.mxu0 %v7480
        %8697 = vmatprep.subr.bf16.mxu0 %v7465
        %8698 = vmatpush2.bf16.msra.mxu0 %v7464
        %8699 = vmatprep.subr.bf16.mxu0 %v7449
        %8700 = vmatpush2.bf16.msra.mxu0 %v7448
        %8701 = vmatprep.subr.bf16.mxu0 %v7433
        %8702 = vmatpush2.bf16.msra.mxu0 %v7432
        %8703 = vmatprep.subr.bf16.mxu0 %v7417
        %8704 = vmatpush2.bf16.msra.mxu0 %v7416
        %8705 = vmatprep.subr.bf16.mxu0 %v7401
        %8706 = vmatpush2.bf16.msra.mxu0 %v7400
        %8707 = vmatprep.mubr.bf16.mxu0 %v2323
        %8708 = vmatmul.mubr.bf16.gmra.mxu0 %v2322
        %v8709 = vpop.f32.mrf.mxu0
        %v8710 = vadd.f32 %v8669, %v8709
        %v8711 = vpop.f32.mrf.mxu0
        %v8712 = vadd.f32 %v8671, %v8711
        %v8713 = vpop.f32.mrf.mxu0
        %v8714 = vpop.f32.mrf.mxu0
        %8715 = vdwg.mxu0
        %8716 = vmatprep.subr.bf16.mxu0 %v6619
        %8717 = vmatpush1.bf16.msra.mxu0 %v6618
        %8718 = vmatprep.subr.bf16.mxu0 %v6603
        %8719 = vmatpush1.bf16.msra.mxu0 %v6602
        %8720 = vmatprep.subr.bf16.mxu0 %v6587
        %8721 = vmatpush1.bf16.msra.mxu0 %v6586
        %8722 = vmatprep.subr.bf16.mxu0 %v6571
        %8723 = vmatpush1.bf16.msra.mxu0 %v6570
        %8724 = vmatprep.subr.bf16.mxu0 %v6555
        %8725 = vmatpush1.bf16.msra.mxu0 %v6554
        %8726 = vmatprep.subr.bf16.mxu0 %v6539
        %8727 = vmatpush1.bf16.msra.mxu0 %v6538
        %8728 = vmatprep.subr.bf16.mxu0 %v6523
        %8729 = vmatpush1.bf16.msra.mxu0 %v6522
        %8730 = vmatprep.subr.bf16.mxu0 %v6507
        %8731 = vmatpush1.bf16.msra.mxu0 %v6506
        %8732 = vmatprep.subr.bf16.mxu0 %v6747
        %8733 = vmatpush2.bf16.msra.mxu0 %v6746
        %8734 = vmatprep.subr.bf16.mxu0 %v6731
        %8735 = vmatpush2.bf16.msra.mxu0 %v6730
        %8736 = vmatprep.subr.bf16.mxu0 %v6715
        %8737 = vmatpush2.bf16.msra.mxu0 %v6714
        %8738 = vmatprep.subr.bf16.mxu0 %v6699
        %8739 = vmatpush2.bf16.msra.mxu0 %v6698
        %8740 = vmatprep.subr.bf16.mxu0 %v6683
        %8741 = vmatpush2.bf16.msra.mxu0 %v6682
        %8742 = vmatprep.subr.bf16.mxu0 %v6667
        %8743 = vmatpush2.bf16.msra.mxu0 %v6666
        %8744 = vmatprep.subr.bf16.mxu0 %v6651
        %8745 = vmatpush2.bf16.msra.mxu0 %v6650
        %8746 = vmatprep.subr.bf16.mxu0 %v6635
        %8747 = vmatpush2.bf16.msra.mxu0 %v6634
        %8748 = vmatprep.mubr.bf16.mxu0 %v2317
        %8749 = vmatmul.mubr.bf16.gmra.mxu0 %v2316
        %v8750 = vpop.f32.mrf.mxu0
        %v8751 = vadd.f32 %v3363, %v8750
        %v8752 = vpop.f32.mrf.mxu0
        %v8753 = vadd.f32 %v3367, %v8752
        %v8754 = vpop.f32.mrf.mxu0
        %v8755 = vpop.f32.mrf.mxu0
        %8756 = vdwg.mxu0
        %8757 = vmatprep.subr.bf16.mxu0 %v6875
        %8758 = vmatpush1.bf16.msra.mxu0 %v6874
        %8759 = vmatprep.subr.bf16.mxu0 %v6859
        %8760 = vmatpush1.bf16.msra.mxu0 %v6858
        %8761 = vmatprep.subr.bf16.mxu0 %v6843
        %8762 = vmatpush1.bf16.msra.mxu0 %v6842
        %8763 = vmatprep.subr.bf16.mxu0 %v6827
        %8764 = vmatpush1.bf16.msra.mxu0 %v6826
        %8765 = vmatprep.subr.bf16.mxu0 %v6811
        %8766 = vmatpush1.bf16.msra.mxu0 %v6810
        %8767 = vmatprep.subr.bf16.mxu0 %v6795
        %8768 = vmatpush1.bf16.msra.mxu0 %v6794
        %8769 = vmatprep.subr.bf16.mxu0 %v6779
        %8770 = vmatpush1.bf16.msra.mxu0 %v6778
        %8771 = vmatprep.subr.bf16.mxu0 %v6763
        %8772 = vmatpush1.bf16.msra.mxu0 %v6762
        %8773 = vmatprep.subr.bf16.mxu0 %v7003
        %8774 = vmatpush2.bf16.msra.mxu0 %v7002
        %8775 = vmatprep.subr.bf16.mxu0 %v6987
        %8776 = vmatpush2.bf16.msra.mxu0 %v6986
        %8777 = vmatprep.subr.bf16.mxu0 %v6971
        %8778 = vmatpush2.bf16.msra.mxu0 %v6970
        %8779 = vmatprep.subr.bf16.mxu0 %v6955
        %8780 = vmatpush2.bf16.msra.mxu0 %v6954
        %8781 = vmatprep.subr.bf16.mxu0 %v6939
        %8782 = vmatpush2.bf16.msra.mxu0 %v6938
        %8783 = vmatprep.subr.bf16.mxu0 %v6923
        %8784 = vmatpush2.bf16.msra.mxu0 %v6922
        %8785 = vmatprep.subr.bf16.mxu0 %v6907
        %8786 = vmatpush2.bf16.msra.mxu0 %v6906
        %8787 = vmatprep.subr.bf16.mxu0 %v6891
        %8788 = vmatpush2.bf16.msra.mxu0 %v6890
        %8789 = vmatprep.mubr.bf16.mxu0 %v2319
        %8790 = vmatmul.mubr.bf16.gmra.mxu0 %v2318
        %v8791 = vpop.f32.mrf.mxu0
        %v8792 = vadd.f32 %v8751, %v8791
        %v8793 = vpop.f32.mrf.mxu0
        %v8794 = vadd.f32 %v8753, %v8793
        %v8795 = vpop.f32.mrf.mxu0
        %v8796 = vpop.f32.mrf.mxu0
        %8797 = vdwg.mxu0
        %8798 = vmatprep.subr.bf16.mxu0 %v7131
        %8799 = vmatpush1.bf16.msra.mxu0 %v7130
        %8800 = vmatprep.subr.bf16.mxu0 %v7115
        %8801 = vmatpush1.bf16.msra.mxu0 %v7114
        %8802 = vmatprep.subr.bf16.mxu0 %v7099
        %8803 = vmatpush1.bf16.msra.mxu0 %v7098
        %8804 = vmatprep.subr.bf16.mxu0 %v7083
        %8805 = vmatpush1.bf16.msra.mxu0 %v7082
        %8806 = vmatprep.subr.bf16.mxu0 %v7067
        %8807 = vmatpush1.bf16.msra.mxu0 %v7066
        %8808 = vmatprep.subr.bf16.mxu0 %v7051
        %8809 = vmatpush1.bf16.msra.mxu0 %v7050
        %8810 = vmatprep.subr.bf16.mxu0 %v7035
        %8811 = vmatpush1.bf16.msra.mxu0 %v7034
        %8812 = vmatprep.subr.bf16.mxu0 %v7019
        %8813 = vmatpush1.bf16.msra.mxu0 %v7018
        %8814 = vmatprep.subr.bf16.mxu0 %v7259
        %8815 = vmatpush2.bf16.msra.mxu0 %v7258
        %8816 = vmatprep.subr.bf16.mxu0 %v7243
        %8817 = vmatpush2.bf16.msra.mxu0 %v7242
        %8818 = vmatprep.subr.bf16.mxu0 %v7227
        %8819 = vmatpush2.bf16.msra.mxu0 %v7226
        %8820 = vmatprep.subr.bf16.mxu0 %v7211
        %8821 = vmatpush2.bf16.msra.mxu0 %v7210
        %8822 = vmatprep.subr.bf16.mxu0 %v7195
        %8823 = vmatpush2.bf16.msra.mxu0 %v7194
        %8824 = vmatprep.subr.bf16.mxu0 %v7179
        %8825 = vmatpush2.bf16.msra.mxu0 %v7178
        %8826 = vmatprep.subr.bf16.mxu0 %v7163
        %8827 = vmatpush2.bf16.msra.mxu0 %v7162
        %8828 = vmatprep.subr.bf16.mxu0 %v7147
        %8829 = vmatpush2.bf16.msra.mxu0 %v7146
        %8830 = vmatprep.mubr.bf16.mxu0 %v2321
        %8831 = vmatmul.mubr.bf16.gmra.mxu0 %v2320
        %v8832 = vpop.f32.mrf.mxu0
        %v8833 = vadd.f32 %v8792, %v8832
        %v8834 = vpop.f32.mrf.mxu0
        %v8835 = vadd.f32 %v8794, %v8834
        %v8836 = vpop.f32.mrf.mxu0
        %v8837 = vpop.f32.mrf.mxu0
        %8838 = vdwg.mxu0
        %8839 = vmatprep.subr.bf16.mxu0 %v7387
        %8840 = vmatpush1.bf16.msra.mxu0 %v7386
        %8841 = vmatprep.subr.bf16.mxu0 %v7371
        %8842 = vmatpush1.bf16.msra.mxu0 %v7370
        %8843 = vmatprep.subr.bf16.mxu0 %v7355
        %8844 = vmatpush1.bf16.msra.mxu0 %v7354
        %8845 = vmatprep.subr.bf16.mxu0 %v7339
        %8846 = vmatpush1.bf16.msra.mxu0 %v7338
        %8847 = vmatprep.subr.bf16.mxu0 %v7323
        %8848 = vmatpush1.bf16.msra.mxu0 %v7322
        %8849 = vmatprep.subr.bf16.mxu0 %v7307
        %8850 = vmatpush1.bf16.msra.mxu0 %v7306
        %8851 = vmatprep.subr.bf16.mxu0 %v7291
        %8852 = vmatpush1.bf16.msra.mxu0 %v7290
        %8853 = vmatprep.subr.bf16.mxu0 %v7275
        %8854 = vmatpush1.bf16.msra.mxu0 %v7274
        %8855 = vmatprep.subr.bf16.mxu0 %v7515
        %8856 = vmatpush2.bf16.msra.mxu0 %v7514
        %8857 = vmatprep.subr.bf16.mxu0 %v7499
        %8858 = vmatpush2.bf16.msra.mxu0 %v7498
        %8859 = vmatprep.subr.bf16.mxu0 %v7483
        %8860 = vmatpush2.bf16.msra.mxu0 %v7482
        %8861 = vmatprep.subr.bf16.mxu0 %v7467
        %8862 = vmatpush2.bf16.msra.mxu0 %v7466
        %8863 = vmatprep.subr.bf16.mxu0 %v7451
        %8864 = vmatpush2.bf16.msra.mxu0 %v7450
        %8865 = vmatprep.subr.bf16.mxu0 %v7435
        %8866 = vmatpush2.bf16.msra.mxu0 %v7434
        %8867 = vmatprep.subr.bf16.mxu0 %v7419
        %8868 = vmatpush2.bf16.msra.mxu0 %v7418
        %8869 = vmatprep.subr.bf16.mxu0 %v7403
        %8870 = vmatpush2.bf16.msra.mxu0 %v7402
        %8871 = vmatprep.mubr.bf16.mxu0 %v2323
        %8872 = vmatmul.mubr.bf16.gmra.mxu0 %v2322
        %v8873 = vpop.f32.mrf.mxu0
        %v8874 = vadd.f32 %v8833, %v8873
        %v8875 = vpop.f32.mrf.mxu0
        %v8876 = vadd.f32 %v8835, %v8875
        %v8877 = vpop.f32.mrf.mxu0
        %v8878 = vpop.f32.mrf.mxu0
        %8879 = vdwg.mxu0
        %8880 = vmatprep.subr.bf16.mxu0 %v6621
        %8881 = vmatpush1.bf16.msra.mxu0 %v6620
        %8882 = vmatprep.subr.bf16.mxu0 %v6605
        %8883 = vmatpush1.bf16.msra.mxu0 %v6604
        %8884 = vmatprep.subr.bf16.mxu0 %v6589
        %8885 = vmatpush1.bf16.msra.mxu0 %v6588
        %8886 = vmatprep.subr.bf16.mxu0 %v6573
        %8887 = vmatpush1.bf16.msra.mxu0 %v6572
        %8888 = vmatprep.subr.bf16.mxu0 %v6557
        %8889 = vmatpush1.bf16.msra.mxu0 %v6556
        %8890 = vmatprep.subr.bf16.mxu0 %v6541
        %8891 = vmatpush1.bf16.msra.mxu0 %v6540
        %8892 = vmatprep.subr.bf16.mxu0 %v6525
        %8893 = vmatpush1.bf16.msra.mxu0 %v6524
        %8894 = vmatprep.subr.bf16.mxu0 %v6509
        %8895 = vmatpush1.bf16.msra.mxu0 %v6508
        %8896 = vmatprep.subr.bf16.mxu0 %v6749
        %8897 = vmatpush2.bf16.msra.mxu0 %v6748
        %8898 = vmatprep.subr.bf16.mxu0 %v6733
        %8899 = vmatpush2.bf16.msra.mxu0 %v6732
        %8900 = vmatprep.subr.bf16.mxu0 %v6717
        %8901 = vmatpush2.bf16.msra.mxu0 %v6716
        %8902 = vmatprep.subr.bf16.mxu0 %v6701
        %8903 = vmatpush2.bf16.msra.mxu0 %v6700
        %8904 = vmatprep.subr.bf16.mxu0 %v6685
        %8905 = vmatpush2.bf16.msra.mxu0 %v6684
        %8906 = vmatprep.subr.bf16.mxu0 %v6669
        %8907 = vmatpush2.bf16.msra.mxu0 %v6668
        %8908 = vmatprep.subr.bf16.mxu0 %v6653
        %8909 = vmatpush2.bf16.msra.mxu0 %v6652
        %8910 = vmatprep.subr.bf16.mxu0 %v6637
        %8911 = vmatpush2.bf16.msra.mxu0 %v6636
        %8912 = vmatprep.mubr.bf16.mxu0 %v2317
        %8913 = vmatmul.mubr.bf16.gmra.mxu0 %v2316
        %v8914 = vpop.f32.mrf.mxu0
        %v8915 = vadd.f32 %v3371, %v8914
        %v8916 = vpop.f32.mrf.mxu0
        %v8917 = vadd.f32 %v3375, %v8916
        %v8918 = vpop.f32.mrf.mxu0
        %v8919 = vpop.f32.mrf.mxu0
        %8920 = vdwg.mxu0
        %8921 = vmatprep.subr.bf16.mxu0 %v6877
        %8922 = vmatpush1.bf16.msra.mxu0 %v6876
        %8923 = vmatprep.subr.bf16.mxu0 %v6861
        %8924 = vmatpush1.bf16.msra.mxu0 %v6860
        %8925 = vmatprep.subr.bf16.mxu0 %v6845
        %8926 = vmatpush1.bf16.msra.mxu0 %v6844
        %8927 = vmatprep.subr.bf16.mxu0 %v6829
        %8928 = vmatpush1.bf16.msra.mxu0 %v6828
        %8929 = vmatprep.subr.bf16.mxu0 %v6813
        %8930 = vmatpush1.bf16.msra.mxu0 %v6812
        %8931 = vmatprep.subr.bf16.mxu0 %v6797
        %8932 = vmatpush1.bf16.msra.mxu0 %v6796
        %8933 = vmatprep.subr.bf16.mxu0 %v6781
        %8934 = vmatpush1.bf16.msra.mxu0 %v6780
        %8935 = vmatprep.subr.bf16.mxu0 %v6765
        %8936 = vmatpush1.bf16.msra.mxu0 %v6764
        %8937 = vmatprep.subr.bf16.mxu0 %v7005
        %8938 = vmatpush2.bf16.msra.mxu0 %v7004
        %8939 = vmatprep.subr.bf16.mxu0 %v6989
        %8940 = vmatpush2.bf16.msra.mxu0 %v6988
        %8941 = vmatprep.subr.bf16.mxu0 %v6973
        %8942 = vmatpush2.bf16.msra.mxu0 %v6972
        %8943 = vmatprep.subr.bf16.mxu0 %v6957
        %8944 = vmatpush2.bf16.msra.mxu0 %v6956
        %8945 = vmatprep.subr.bf16.mxu0 %v6941
        %8946 = vmatpush2.bf16.msra.mxu0 %v6940
        %8947 = vmatprep.subr.bf16.mxu0 %v6925
        %8948 = vmatpush2.bf16.msra.mxu0 %v6924
        %8949 = vmatprep.subr.bf16.mxu0 %v6909
        %8950 = vmatpush2.bf16.msra.mxu0 %v6908
        %8951 = vmatprep.subr.bf16.mxu0 %v6893
        %8952 = vmatpush2.bf16.msra.mxu0 %v6892
        %8953 = vmatprep.mubr.bf16.mxu0 %v2319
        %8954 = vmatmul.mubr.bf16.gmra.mxu0 %v2318
        %v8955 = vpop.f32.mrf.mxu0
        %v8956 = vadd.f32 %v8915, %v8955
        %v8957 = vpop.f32.mrf.mxu0
        %v8958 = vadd.f32 %v8917, %v8957
        %v8959 = vpop.f32.mrf.mxu0
        %v8960 = vpop.f32.mrf.mxu0
        %8961 = vdwg.mxu0
        %8962 = vmatprep.subr.bf16.mxu0 %v7133
        %8963 = vmatpush1.bf16.msra.mxu0 %v7132
        %8964 = vmatprep.subr.bf16.mxu0 %v7117
        %8965 = vmatpush1.bf16.msra.mxu0 %v7116
        %8966 = vmatprep.subr.bf16.mxu0 %v7101
        %8967 = vmatpush1.bf16.msra.mxu0 %v7100
        %8968 = vmatprep.subr.bf16.mxu0 %v7085
        %8969 = vmatpush1.bf16.msra.mxu0 %v7084
        %8970 = vmatprep.subr.bf16.mxu0 %v7069
        %8971 = vmatpush1.bf16.msra.mxu0 %v7068
        %8972 = vmatprep.subr.bf16.mxu0 %v7053
        %8973 = vmatpush1.bf16.msra.mxu0 %v7052
        %8974 = vmatprep.subr.bf16.mxu0 %v7037
        %8975 = vmatpush1.bf16.msra.mxu0 %v7036
        %8976 = vmatprep.subr.bf16.mxu0 %v7021
        %8977 = vmatpush1.bf16.msra.mxu0 %v7020
        %8978 = vmatprep.subr.bf16.mxu0 %v7261
        %8979 = vmatpush2.bf16.msra.mxu0 %v7260
        %8980 = vmatprep.subr.bf16.mxu0 %v7245
        %8981 = vmatpush2.bf16.msra.mxu0 %v7244
        %8982 = vmatprep.subr.bf16.mxu0 %v7229
        %8983 = vmatpush2.bf16.msra.mxu0 %v7228
        %8984 = vmatprep.subr.bf16.mxu0 %v7213
        %8985 = vmatpush2.bf16.msra.mxu0 %v7212
        %8986 = vmatprep.subr.bf16.mxu0 %v7197
        %8987 = vmatpush2.bf16.msra.mxu0 %v7196
        %8988 = vmatprep.subr.bf16.mxu0 %v7181
        %8989 = vmatpush2.bf16.msra.mxu0 %v7180
        %8990 = vmatprep.subr.bf16.mxu0 %v7165
        %8991 = vmatpush2.bf16.msra.mxu0 %v7164
        %8992 = vmatprep.subr.bf16.mxu0 %v7149
        %8993 = vmatpush2.bf16.msra.mxu0 %v7148
        %8994 = vmatprep.mubr.bf16.mxu0 %v2321
        %8995 = vmatmul.mubr.bf16.gmra.mxu0 %v2320
        %v8996 = vpop.f32.mrf.mxu0
        %v8997 = vadd.f32 %v8956, %v8996
        %v8998 = vpop.f32.mrf.mxu0
        %v8999 = vadd.f32 %v8958, %v8998
        %v9000 = vpop.f32.mrf.mxu0
        %v9001 = vpop.f32.mrf.mxu0
        %9002 = vdwg.mxu0
        %9003 = vmatprep.subr.bf16.mxu0 %v7389
        %9004 = vmatpush1.bf16.msra.mxu0 %v7388
        %9005 = vmatprep.subr.bf16.mxu0 %v7373
        %9006 = vmatpush1.bf16.msra.mxu0 %v7372
        %9007 = vmatprep.subr.bf16.mxu0 %v7357
        %9008 = vmatpush1.bf16.msra.mxu0 %v7356
        %9009 = vmatprep.subr.bf16.mxu0 %v7341
        %9010 = vmatpush1.bf16.msra.mxu0 %v7340
        %9011 = vmatprep.subr.bf16.mxu0 %v7325
        %9012 = vmatpush1.bf16.msra.mxu0 %v7324
        %9013 = vmatprep.subr.bf16.mxu0 %v7309
        %9014 = vmatpush1.bf16.msra.mxu0 %v7308
        %9015 = vmatprep.subr.bf16.mxu0 %v7293
        %9016 = vmatpush1.bf16.msra.mxu0 %v7292
        %9017 = vmatprep.subr.bf16.mxu0 %v7277
        %9018 = vmatpush1.bf16.msra.mxu0 %v7276
        %9019 = vmatprep.subr.bf16.mxu0 %v7517
        %9020 = vmatpush2.bf16.msra.mxu0 %v7516
        %9021 = vmatprep.subr.bf16.mxu0 %v7501
        %9022 = vmatpush2.bf16.msra.mxu0 %v7500
        %9023 = vmatprep.subr.bf16.mxu0 %v7485
        %9024 = vmatpush2.bf16.msra.mxu0 %v7484
        %9025 = vmatprep.subr.bf16.mxu0 %v7469
        %9026 = vmatpush2.bf16.msra.mxu0 %v7468
        %9027 = vmatprep.subr.bf16.mxu0 %v7453
        %9028 = vmatpush2.bf16.msra.mxu0 %v7452
        %9029 = vmatprep.subr.bf16.mxu0 %v7437
        %9030 = vmatpush2.bf16.msra.mxu0 %v7436
        %9031 = vmatprep.subr.bf16.mxu0 %v7421
        %9032 = vmatpush2.bf16.msra.mxu0 %v7420
        %9033 = vmatprep.subr.bf16.mxu0 %v7405
        %9034 = vmatpush2.bf16.msra.mxu0 %v7404
        %9035 = vmatprep.mubr.bf16.mxu0 %v2323
        %9036 = vmatmul.mubr.bf16.gmra.mxu0 %v2322
        %v9037 = vpop.f32.mrf.mxu0
        %v9038 = vadd.f32 %v8997, %v9037
        %v9039 = vpop.f32.mrf.mxu0
        %v9040 = vadd.f32 %v8999, %v9039
        %v9041 = vpop.f32.mrf.mxu0
        %v9042 = vpop.f32.mrf.mxu0
        %9043 = vdwg.mxu0
        %9044 = vmatprep.subr.bf16.mxu0 %v6623
        %9045 = vmatpush1.bf16.msra.mxu0 %v6622
        %9046 = vmatprep.subr.bf16.mxu0 %v6607
        %9047 = vmatpush1.bf16.msra.mxu0 %v6606
        %9048 = vmatprep.subr.bf16.mxu0 %v6591
        %9049 = vmatpush1.bf16.msra.mxu0 %v6590
        %9050 = vmatprep.subr.bf16.mxu0 %v6575
        %9051 = vmatpush1.bf16.msra.mxu0 %v6574
        %9052 = vmatprep.subr.bf16.mxu0 %v6559
        %9053 = vmatpush1.bf16.msra.mxu0 %v6558
        %9054 = vmatprep.subr.bf16.mxu0 %v6543
        %9055 = vmatpush1.bf16.msra.mxu0 %v6542
        %9056 = vmatprep.subr.bf16.mxu0 %v6527
        %9057 = vmatpush1.bf16.msra.mxu0 %v6526
        %9058 = vmatprep.subr.bf16.mxu0 %v6511
        %9059 = vmatpush1.bf16.msra.mxu0 %v6510
        %9060 = vmatprep.subr.bf16.mxu0 %v6751
        %9061 = vmatpush2.bf16.msra.mxu0 %v6750
        %9062 = vmatprep.subr.bf16.mxu0 %v6735
        %9063 = vmatpush2.bf16.msra.mxu0 %v6734
        %9064 = vmatprep.subr.bf16.mxu0 %v6719
        %9065 = vmatpush2.bf16.msra.mxu0 %v6718
        %9066 = vmatprep.subr.bf16.mxu0 %v6703
        %9067 = vmatpush2.bf16.msra.mxu0 %v6702
        %9068 = vmatprep.subr.bf16.mxu0 %v6687
        %9069 = vmatpush2.bf16.msra.mxu0 %v6686
        %9070 = vmatprep.subr.bf16.mxu0 %v6671
        %9071 = vmatpush2.bf16.msra.mxu0 %v6670
        %9072 = vmatprep.subr.bf16.mxu0 %v6655
        %9073 = vmatpush2.bf16.msra.mxu0 %v6654
        %9074 = vmatprep.subr.bf16.mxu0 %v6639
        %9075 = vmatpush2.bf16.msra.mxu0 %v6638
        %9076 = vmatprep.mubr.bf16.mxu0 %v2317
        %9077 = vmatmul.mubr.bf16.gmra.mxu0 %v2316
        %v9078 = vpop.f32.mrf.mxu0
        %v9079 = vadd.f32 %v3379, %v9078
        %v9080 = vpop.f32.mrf.mxu0
        %v9081 = vadd.f32 %v3383, %v9080
        %v9082 = vpop.f32.mrf.mxu0
        %v9083 = vpop.f32.mrf.mxu0
        %9084 = vdwg.mxu0
        %9085 = vmatprep.subr.bf16.mxu0 %v6879
        %9086 = vmatpush1.bf16.msra.mxu0 %v6878
        %9087 = vmatprep.subr.bf16.mxu0 %v6863
        %9088 = vmatpush1.bf16.msra.mxu0 %v6862
        %9089 = vmatprep.subr.bf16.mxu0 %v6847
        %9090 = vmatpush1.bf16.msra.mxu0 %v6846
        %9091 = vmatprep.subr.bf16.mxu0 %v6831
        %9092 = vmatpush1.bf16.msra.mxu0 %v6830
        %9093 = vmatprep.subr.bf16.mxu0 %v6815
        %9094 = vmatpush1.bf16.msra.mxu0 %v6814
        %9095 = vmatprep.subr.bf16.mxu0 %v6799
        %9096 = vmatpush1.bf16.msra.mxu0 %v6798
        %9097 = vmatprep.subr.bf16.mxu0 %v6783
        %9098 = vmatpush1.bf16.msra.mxu0 %v6782
        %9099 = vmatprep.subr.bf16.mxu0 %v6767
        %9100 = vmatpush1.bf16.msra.mxu0 %v6766
        %9101 = vmatprep.subr.bf16.mxu0 %v7007
        %9102 = vmatpush2.bf16.msra.mxu0 %v7006
        %9103 = vmatprep.subr.bf16.mxu0 %v6991
        %9104 = vmatpush2.bf16.msra.mxu0 %v6990
        %9105 = vmatprep.subr.bf16.mxu0 %v6975
        %9106 = vmatpush2.bf16.msra.mxu0 %v6974
        %9107 = vmatprep.subr.bf16.mxu0 %v6959
        %9108 = vmatpush2.bf16.msra.mxu0 %v6958
        %9109 = vmatprep.subr.bf16.mxu0 %v6943
        %9110 = vmatpush2.bf16.msra.mxu0 %v6942
        %9111 = vmatprep.subr.bf16.mxu0 %v6927
        %9112 = vmatpush2.bf16.msra.mxu0 %v6926
        %9113 = vmatprep.subr.bf16.mxu0 %v6911
        %9114 = vmatpush2.bf16.msra.mxu0 %v6910
        %9115 = vmatprep.subr.bf16.mxu0 %v6895
        %9116 = vmatpush2.bf16.msra.mxu0 %v6894
        %9117 = vmatprep.mubr.bf16.mxu0 %v2319
        %9118 = vmatmul.mubr.bf16.gmra.mxu0 %v2318
        %v9119 = vpop.f32.mrf.mxu0
        %v9120 = vadd.f32 %v9079, %v9119
        %v9121 = vpop.f32.mrf.mxu0
        %v9122 = vadd.f32 %v9081, %v9121
        %v9123 = vpop.f32.mrf.mxu0
        %v9124 = vpop.f32.mrf.mxu0
        %9125 = vdwg.mxu0
        %9126 = vmatprep.subr.bf16.mxu0 %v7135
        %9127 = vmatpush1.bf16.msra.mxu0 %v7134
        %9128 = vmatprep.subr.bf16.mxu0 %v7119
        %9129 = vmatpush1.bf16.msra.mxu0 %v7118
        %9130 = vmatprep.subr.bf16.mxu0 %v7103
        %9131 = vmatpush1.bf16.msra.mxu0 %v7102
        %9132 = vmatprep.subr.bf16.mxu0 %v7087
        %9133 = vmatpush1.bf16.msra.mxu0 %v7086
        %9134 = vmatprep.subr.bf16.mxu0 %v7071
        %9135 = vmatpush1.bf16.msra.mxu0 %v7070
        %9136 = vmatprep.subr.bf16.mxu0 %v7055
        %9137 = vmatpush1.bf16.msra.mxu0 %v7054
        %9138 = vmatprep.subr.bf16.mxu0 %v7039
        %9139 = vmatpush1.bf16.msra.mxu0 %v7038
        %9140 = vmatprep.subr.bf16.mxu0 %v7023
        %9141 = vmatpush1.bf16.msra.mxu0 %v7022
        %9142 = vmatprep.subr.bf16.mxu0 %v7263
        %9143 = vmatpush2.bf16.msra.mxu0 %v7262
        %9144 = vmatprep.subr.bf16.mxu0 %v7247
        %9145 = vmatpush2.bf16.msra.mxu0 %v7246
        %9146 = vmatprep.subr.bf16.mxu0 %v7231
        %9147 = vmatpush2.bf16.msra.mxu0 %v7230
        %9148 = vmatprep.subr.bf16.mxu0 %v7215
        %9149 = vmatpush2.bf16.msra.mxu0 %v7214
        %9150 = vmatprep.subr.bf16.mxu0 %v7199
        %9151 = vmatpush2.bf16.msra.mxu0 %v7198
        %9152 = vmatprep.subr.bf16.mxu0 %v7183
        %9153 = vmatpush2.bf16.msra.mxu0 %v7182
        %9154 = vmatprep.subr.bf16.mxu0 %v7167
        %9155 = vmatpush2.bf16.msra.mxu0 %v7166
        %9156 = vmatprep.subr.bf16.mxu0 %v7151
        %9157 = vmatpush2.bf16.msra.mxu0 %v7150
        %9158 = vmatprep.mubr.bf16.mxu0 %v2321
        %9159 = vmatmul.mubr.bf16.gmra.mxu0 %v2320
        %v9160 = vpop.f32.mrf.mxu0
        %v9161 = vadd.f32 %v9120, %v9160
        %v9162 = vpop.f32.mrf.mxu0
        %v9163 = vadd.f32 %v9122, %v9162
        %v9164 = vpop.f32.mrf.mxu0
        %v9165 = vpop.f32.mrf.mxu0
        %9166 = vdwg.mxu0
        %9167 = vmatprep.subr.bf16.mxu0 %v7391
        %9168 = vmatpush1.bf16.msra.mxu0 %v7390
        %9169 = vmatprep.subr.bf16.mxu0 %v7375
        %9170 = vmatpush1.bf16.msra.mxu0 %v7374
        %9171 = vmatprep.subr.bf16.mxu0 %v7359
        %9172 = vmatpush1.bf16.msra.mxu0 %v7358
        %9173 = vmatprep.subr.bf16.mxu0 %v7343
        %9174 = vmatpush1.bf16.msra.mxu0 %v7342
        %9175 = vmatprep.subr.bf16.mxu0 %v7327
        %9176 = vmatpush1.bf16.msra.mxu0 %v7326
        %9177 = vmatprep.subr.bf16.mxu0 %v7311
        %9178 = vmatpush1.bf16.msra.mxu0 %v7310
        %9179 = vmatprep.subr.bf16.mxu0 %v7295
        %9180 = vmatpush1.bf16.msra.mxu0 %v7294
        %9181 = vmatprep.subr.bf16.mxu0 %v7279
        %9182 = vmatpush1.bf16.msra.mxu0 %v7278
        %9183 = vmatprep.subr.bf16.mxu0 %v7519
        %9184 = vmatpush2.bf16.msra.mxu0 %v7518
        %9185 = vmatprep.subr.bf16.mxu0 %v7503
        %9186 = vmatpush2.bf16.msra.mxu0 %v7502
        %9187 = vmatprep.subr.bf16.mxu0 %v7487
        %9188 = vmatpush2.bf16.msra.mxu0 %v7486
        %9189 = vmatprep.subr.bf16.mxu0 %v7471
        %9190 = vmatpush2.bf16.msra.mxu0 %v7470
        %9191 = vmatprep.subr.bf16.mxu0 %v7455
        %9192 = vmatpush2.bf16.msra.mxu0 %v7454
        %9193 = vmatprep.subr.bf16.mxu0 %v7439
        %9194 = vmatpush2.bf16.msra.mxu0 %v7438
        %9195 = vmatprep.subr.bf16.mxu0 %v7423
        %9196 = vmatpush2.bf16.msra.mxu0 %v7422
        %9197 = vmatprep.subr.bf16.mxu0 %v7407
        %9198 = vmatpush2.bf16.msra.mxu0 %v7406
        %9199 = vmatprep.mubr.bf16.mxu0 %v2323
        %9200 = vmatmul.mubr.bf16.gmra.mxu0 %v2322
        %v9201 = vpop.f32.mrf.mxu0
        %v9202 = vadd.f32 %v9161, %v9201
        %v9203 = vpop.f32.mrf.mxu0
        %v9204 = vadd.f32 %v9163, %v9203
        %v9205 = vpop.f32.mrf.mxu0
        %v9206 = vpop.f32.mrf.mxu0
        %9207 = vdwg.mxu0
        %9208 = vmatprep.subr.bf16.mxu0 %v6625
        %9209 = vmatpush1.bf16.msra.mxu0 %v6624
        %9210 = vmatprep.subr.bf16.mxu0 %v6609
        %9211 = vmatpush1.bf16.msra.mxu0 %v6608
        %9212 = vmatprep.subr.bf16.mxu0 %v6593
        %9213 = vmatpush1.bf16.msra.mxu0 %v6592
        %9214 = vmatprep.subr.bf16.mxu0 %v6577
        %9215 = vmatpush1.bf16.msra.mxu0 %v6576
        %9216 = vmatprep.subr.bf16.mxu0 %v6561
        %9217 = vmatpush1.bf16.msra.mxu0 %v6560
        %9218 = vmatprep.subr.bf16.mxu0 %v6545
        %9219 = vmatpush1.bf16.msra.mxu0 %v6544
        %9220 = vmatprep.subr.bf16.mxu0 %v6529
        %9221 = vmatpush1.bf16.msra.mxu0 %v6528
        %9222 = vmatprep.subr.bf16.mxu0 %v6513
        %9223 = vmatpush1.bf16.msra.mxu0 %v6512
        %9224 = vmatprep.subr.bf16.mxu0 %v6753
        %9225 = vmatpush2.bf16.msra.mxu0 %v6752
        %9226 = vmatprep.subr.bf16.mxu0 %v6737
        %9227 = vmatpush2.bf16.msra.mxu0 %v6736
        %9228 = vmatprep.subr.bf16.mxu0 %v6721
        %9229 = vmatpush2.bf16.msra.mxu0 %v6720
        %9230 = vmatprep.subr.bf16.mxu0 %v6705
        %9231 = vmatpush2.bf16.msra.mxu0 %v6704
        %9232 = vmatprep.subr.bf16.mxu0 %v6689
        %9233 = vmatpush2.bf16.msra.mxu0 %v6688
        %9234 = vmatprep.subr.bf16.mxu0 %v6673
        %9235 = vmatpush2.bf16.msra.mxu0 %v6672
        %9236 = vmatprep.subr.bf16.mxu0 %v6657
        %9237 = vmatpush2.bf16.msra.mxu0 %v6656
        %9238 = vmatprep.subr.bf16.mxu0 %v6641
        %9239 = vmatpush2.bf16.msra.mxu0 %v6640
        %9240 = vmatprep.mubr.bf16.mxu0 %v2317
        %9241 = vmatmul.mubr.bf16.gmra.mxu0 %v2316
        %v9242 = vpop.f32.mrf.mxu0
        %v9243 = vadd.f32 %v3387, %v9242
        %v9244 = vpop.f32.mrf.mxu0
        %v9245 = vadd.f32 %v3391, %v9244
        %v9246 = vpop.f32.mrf.mxu0
        %v9247 = vpop.f32.mrf.mxu0
        %9248 = vdwg.mxu0
        %9249 = vmatprep.subr.bf16.mxu0 %v6881
        %9250 = vmatpush1.bf16.msra.mxu0 %v6880
        %9251 = vmatprep.subr.bf16.mxu0 %v6865
        %9252 = vmatpush1.bf16.msra.mxu0 %v6864
        %9253 = vmatprep.subr.bf16.mxu0 %v6849
        %9254 = vmatpush1.bf16.msra.mxu0 %v6848
        %9255 = vmatprep.subr.bf16.mxu0 %v6833
        %9256 = vmatpush1.bf16.msra.mxu0 %v6832
        %9257 = vmatprep.subr.bf16.mxu0 %v6817
        %9258 = vmatpush1.bf16.msra.mxu0 %v6816
        %9259 = vmatprep.subr.bf16.mxu0 %v6801
        %9260 = vmatpush1.bf16.msra.mxu0 %v6800
        %9261 = vmatprep.subr.bf16.mxu0 %v6785
        %9262 = vmatpush1.bf16.msra.mxu0 %v6784
        %9263 = vmatprep.subr.bf16.mxu0 %v6769
        %9264 = vmatpush1.bf16.msra.mxu0 %v6768
        %9265 = vmatprep.subr.bf16.mxu0 %v7009
        %9266 = vmatpush2.bf16.msra.mxu0 %v7008
        %9267 = vmatprep.subr.bf16.mxu0 %v6993
        %9268 = vmatpush2.bf16.msra.mxu0 %v6992
        %9269 = vmatprep.subr.bf16.mxu0 %v6977
        %9270 = vmatpush2.bf16.msra.mxu0 %v6976
        %9271 = vmatprep.subr.bf16.mxu0 %v6961
        %9272 = vmatpush2.bf16.msra.mxu0 %v6960
        %9273 = vmatprep.subr.bf16.mxu0 %v6945
        %9274 = vmatpush2.bf16.msra.mxu0 %v6944
        %9275 = vmatprep.subr.bf16.mxu0 %v6929
        %9276 = vmatpush2.bf16.msra.mxu0 %v6928
        %9277 = vmatprep.subr.bf16.mxu0 %v6913
        %9278 = vmatpush2.bf16.msra.mxu0 %v6912
        %9279 = vmatprep.subr.bf16.mxu0 %v6897
        %9280 = vmatpush2.bf16.msra.mxu0 %v6896
        %9281 = vmatprep.mubr.bf16.mxu0 %v2319
        %9282 = vmatmul.mubr.bf16.gmra.mxu0 %v2318
        %v9283 = vpop.f32.mrf.mxu0
        %v9284 = vadd.f32 %v9243, %v9283
        %v9285 = vpop.f32.mrf.mxu0
        %v9286 = vadd.f32 %v9245, %v9285
        %v9287 = vpop.f32.mrf.mxu0
        %v9288 = vpop.f32.mrf.mxu0
        %9289 = vdwg.mxu0
        %9290 = vmatprep.subr.bf16.mxu0 %v7137
        %9291 = vmatpush1.bf16.msra.mxu0 %v7136
        %9292 = vmatprep.subr.bf16.mxu0 %v7121
        %9293 = vmatpush1.bf16.msra.mxu0 %v7120
        %9294 = vmatprep.subr.bf16.mxu0 %v7105
        %9295 = vmatpush1.bf16.msra.mxu0 %v7104
        %9296 = vmatprep.subr.bf16.mxu0 %v7089
        %9297 = vmatpush1.bf16.msra.mxu0 %v7088
        %9298 = vmatprep.subr.bf16.mxu0 %v7073
        %9299 = vmatpush1.bf16.msra.mxu0 %v7072
        %9300 = vmatprep.subr.bf16.mxu0 %v7057
        %9301 = vmatpush1.bf16.msra.mxu0 %v7056
        %9302 = vmatprep.subr.bf16.mxu0 %v7041
        %9303 = vmatpush1.bf16.msra.mxu0 %v7040
        %9304 = vmatprep.subr.bf16.mxu0 %v7025
        %9305 = vmatpush1.bf16.msra.mxu0 %v7024
        %9306 = vmatprep.subr.bf16.mxu0 %v7265
        %9307 = vmatpush2.bf16.msra.mxu0 %v7264
        %9308 = vmatprep.subr.bf16.mxu0 %v7249
        %9309 = vmatpush2.bf16.msra.mxu0 %v7248
        %9310 = vmatprep.subr.bf16.mxu0 %v7233
        %9311 = vmatpush2.bf16.msra.mxu0 %v7232
        %9312 = vmatprep.subr.bf16.mxu0 %v7217
        %9313 = vmatpush2.bf16.msra.mxu0 %v7216
        %9314 = vmatprep.subr.bf16.mxu0 %v7201
        %9315 = vmatpush2.bf16.msra.mxu0 %v7200
        %9316 = vmatprep.subr.bf16.mxu0 %v7185
        %9317 = vmatpush2.bf16.msra.mxu0 %v7184
        %9318 = vmatprep.subr.bf16.mxu0 %v7169
        %9319 = vmatpush2.bf16.msra.mxu0 %v7168
        %9320 = vmatprep.subr.bf16.mxu0 %v7153
        %9321 = vmatpush2.bf16.msra.mxu0 %v7152
        %9322 = vmatprep.mubr.bf16.mxu0 %v2321
        %9323 = vmatmul.mubr.bf16.gmra.mxu0 %v2320
        %v9324 = vpop.f32.mrf.mxu0
        %v9325 = vadd.f32 %v9284, %v9324
        %v9326 = vpop.f32.mrf.mxu0
        %v9327 = vadd.f32 %v9286, %v9326
        %v9328 = vpop.f32.mrf.mxu0
        %v9329 = vpop.f32.mrf.mxu0
        %9330 = vdwg.mxu0
        %9331 = vmatprep.subr.bf16.mxu0 %v7393
        %9332 = vmatpush1.bf16.msra.mxu0 %v7392
        %9333 = vmatprep.subr.bf16.mxu0 %v7377
        %9334 = vmatpush1.bf16.msra.mxu0 %v7376
        %9335 = vmatprep.subr.bf16.mxu0 %v7361
        %9336 = vmatpush1.bf16.msra.mxu0 %v7360
        %9337 = vmatprep.subr.bf16.mxu0 %v7345
        %9338 = vmatpush1.bf16.msra.mxu0 %v7344
        %9339 = vmatprep.subr.bf16.mxu0 %v7329
        %9340 = vmatpush1.bf16.msra.mxu0 %v7328
        %9341 = vmatprep.subr.bf16.mxu0 %v7313
        %9342 = vmatpush1.bf16.msra.mxu0 %v7312
        %9343 = vmatprep.subr.bf16.mxu0 %v7297
        %9344 = vmatpush1.bf16.msra.mxu0 %v7296
        %9345 = vmatprep.subr.bf16.mxu0 %v7281
        %9346 = vmatpush1.bf16.msra.mxu0 %v7280
        %9347 = vmatprep.subr.bf16.mxu0 %v7521
        %9348 = vmatpush2.bf16.msra.mxu0 %v7520
        %9349 = vmatprep.subr.bf16.mxu0 %v7505
        %9350 = vmatpush2.bf16.msra.mxu0 %v7504
        %9351 = vmatprep.subr.bf16.mxu0 %v7489
        %9352 = vmatpush2.bf16.msra.mxu0 %v7488
        %9353 = vmatprep.subr.bf16.mxu0 %v7473
        %9354 = vmatpush2.bf16.msra.mxu0 %v7472
        %9355 = vmatprep.subr.bf16.mxu0 %v7457
        %9356 = vmatpush2.bf16.msra.mxu0 %v7456
        %9357 = vmatprep.subr.bf16.mxu0 %v7441
        %9358 = vmatpush2.bf16.msra.mxu0 %v7440
        %9359 = vmatprep.subr.bf16.mxu0 %v7425
        %9360 = vmatpush2.bf16.msra.mxu0 %v7424
        %9361 = vmatprep.subr.bf16.mxu0 %v7409
        %9362 = vmatpush2.bf16.msra.mxu0 %v7408
        %9363 = vmatprep.mubr.bf16.mxu0 %v2323
        %9364 = vmatmul.mubr.bf16.gmra.mxu0 %v2322
        %v9365 = vpop.f32.mrf.mxu0
        %v9366 = vadd.f32 %v9325, %v9365
        %v9367 = vpop.f32.mrf.mxu0
        %v9368 = vadd.f32 %v9327, %v9367
        %v9369 = vpop.f32.mrf.mxu0
        %v9370 = vpop.f32.mrf.mxu0
        %9371 = vdwg.mxu0
        %9372 = vmatprep.subr.bf16.mxu0 %v6627
        %9373 = vmatpush1.bf16.msra.mxu0 %v6626
        %9374 = vmatprep.subr.bf16.mxu0 %v6611
        %9375 = vmatpush1.bf16.msra.mxu0 %v6610
        %9376 = vmatprep.subr.bf16.mxu0 %v6595
        %9377 = vmatpush1.bf16.msra.mxu0 %v6594
        %9378 = vmatprep.subr.bf16.mxu0 %v6579
        %9379 = vmatpush1.bf16.msra.mxu0 %v6578
        %9380 = vmatprep.subr.bf16.mxu0 %v6563
        %9381 = vmatpush1.bf16.msra.mxu0 %v6562
        %9382 = vmatprep.subr.bf16.mxu0 %v6547
        %9383 = vmatpush1.bf16.msra.mxu0 %v6546
        %9384 = vmatprep.subr.bf16.mxu0 %v6531
        %9385 = vmatpush1.bf16.msra.mxu0 %v6530
        %9386 = vmatprep.subr.bf16.mxu0 %v6515
        %9387 = vmatpush1.bf16.msra.mxu0 %v6514
        %9388 = vmatprep.subr.bf16.mxu0 %v6755
        %9389 = vmatpush2.bf16.msra.mxu0 %v6754
        %9390 = vmatprep.subr.bf16.mxu0 %v6739
        %9391 = vmatpush2.bf16.msra.mxu0 %v6738
        %9392 = vmatprep.subr.bf16.mxu0 %v6723
        %9393 = vmatpush2.bf16.msra.mxu0 %v6722
        %9394 = vmatprep.subr.bf16.mxu0 %v6707
        %9395 = vmatpush2.bf16.msra.mxu0 %v6706
        %9396 = vmatprep.subr.bf16.mxu0 %v6691
        %9397 = vmatpush2.bf16.msra.mxu0 %v6690
        %9398 = vmatprep.subr.bf16.mxu0 %v6675
        %9399 = vmatpush2.bf16.msra.mxu0 %v6674
        %9400 = vmatprep.subr.bf16.mxu0 %v6659
        %9401 = vmatpush2.bf16.msra.mxu0 %v6658
        %9402 = vmatprep.subr.bf16.mxu0 %v6643
        %9403 = vmatpush2.bf16.msra.mxu0 %v6642
        %9404 = vmatprep.mubr.bf16.mxu0 %v2317
        %9405 = vmatmul.mubr.bf16.gmra.mxu0 %v2316
        %v9406 = vpop.f32.mrf.mxu0
        %v9407 = vadd.f32 %v3395, %v9406
        %v9408 = vpop.f32.mrf.mxu0
        %v9409 = vadd.f32 %v3399, %v9408
        %v9410 = vpop.f32.mrf.mxu0
        %v9411 = vpop.f32.mrf.mxu0
        %9412 = vdwg.mxu0
        %9413 = vmatprep.subr.bf16.mxu0 %v6883
        %9414 = vmatpush1.bf16.msra.mxu0 %v6882
        %9415 = vmatprep.subr.bf16.mxu0 %v6867
        %9416 = vmatpush1.bf16.msra.mxu0 %v6866
        %9417 = vmatprep.subr.bf16.mxu0 %v6851
        %9418 = vmatpush1.bf16.msra.mxu0 %v6850
        %9419 = vmatprep.subr.bf16.mxu0 %v6835
        %9420 = vmatpush1.bf16.msra.mxu0 %v6834
        %9421 = vmatprep.subr.bf16.mxu0 %v6819
        %9422 = vmatpush1.bf16.msra.mxu0 %v6818
        %9423 = vmatprep.subr.bf16.mxu0 %v6803
        %9424 = vmatpush1.bf16.msra.mxu0 %v6802
        %9425 = vmatprep.subr.bf16.mxu0 %v6787
        %9426 = vmatpush1.bf16.msra.mxu0 %v6786
        %9427 = vmatprep.subr.bf16.mxu0 %v6771
        %9428 = vmatpush1.bf16.msra.mxu0 %v6770
        %9429 = vmatprep.subr.bf16.mxu0 %v7011
        %9430 = vmatpush2.bf16.msra.mxu0 %v7010
        %9431 = vmatprep.subr.bf16.mxu0 %v6995
        %9432 = vmatpush2.bf16.msra.mxu0 %v6994
        %9433 = vmatprep.subr.bf16.mxu0 %v6979
        %9434 = vmatpush2.bf16.msra.mxu0 %v6978
        %9435 = vmatprep.subr.bf16.mxu0 %v6963
        %9436 = vmatpush2.bf16.msra.mxu0 %v6962
        %9437 = vmatprep.subr.bf16.mxu0 %v6947
        %9438 = vmatpush2.bf16.msra.mxu0 %v6946
        %9439 = vmatprep.subr.bf16.mxu0 %v6931
        %9440 = vmatpush2.bf16.msra.mxu0 %v6930
        %9441 = vmatprep.subr.bf16.mxu0 %v6915
        %9442 = vmatpush2.bf16.msra.mxu0 %v6914
        %9443 = vmatprep.subr.bf16.mxu0 %v6899
        %9444 = vmatpush2.bf16.msra.mxu0 %v6898
        %9445 = vmatprep.mubr.bf16.mxu0 %v2319
        %9446 = vmatmul.mubr.bf16.gmra.mxu0 %v2318
        %v9447 = vpop.f32.mrf.mxu0
        %v9448 = vadd.f32 %v9407, %v9447
        %v9449 = vpop.f32.mrf.mxu0
        %v9450 = vadd.f32 %v9409, %v9449
        %v9451 = vpop.f32.mrf.mxu0
        %v9452 = vpop.f32.mrf.mxu0
        %9453 = vdwg.mxu0
        %9454 = vmatprep.subr.bf16.mxu0 %v7139
        %9455 = vmatpush1.bf16.msra.mxu0 %v7138
        %9456 = vmatprep.subr.bf16.mxu0 %v7123
        %9457 = vmatpush1.bf16.msra.mxu0 %v7122
        %9458 = vmatprep.subr.bf16.mxu0 %v7107
        %9459 = vmatpush1.bf16.msra.mxu0 %v7106
        %9460 = vmatprep.subr.bf16.mxu0 %v7091
        %9461 = vmatpush1.bf16.msra.mxu0 %v7090
        %9462 = vmatprep.subr.bf16.mxu0 %v7075
        %9463 = vmatpush1.bf16.msra.mxu0 %v7074
        %9464 = vmatprep.subr.bf16.mxu0 %v7059
        %9465 = vmatpush1.bf16.msra.mxu0 %v7058
        %9466 = vmatprep.subr.bf16.mxu0 %v7043
        %9467 = vmatpush1.bf16.msra.mxu0 %v7042
        %9468 = vmatprep.subr.bf16.mxu0 %v7027
        %9469 = vmatpush1.bf16.msra.mxu0 %v7026
        %9470 = vmatprep.subr.bf16.mxu0 %v7267
        %9471 = vmatpush2.bf16.msra.mxu0 %v7266
        %9472 = vmatprep.subr.bf16.mxu0 %v7251
        %9473 = vmatpush2.bf16.msra.mxu0 %v7250
        %9474 = vmatprep.subr.bf16.mxu0 %v7235
        %9475 = vmatpush2.bf16.msra.mxu0 %v7234
        %9476 = vmatprep.subr.bf16.mxu0 %v7219
        %9477 = vmatpush2.bf16.msra.mxu0 %v7218
        %9478 = vmatprep.subr.bf16.mxu0 %v7203
        %9479 = vmatpush2.bf16.msra.mxu0 %v7202
        %9480 = vmatprep.subr.bf16.mxu0 %v7187
        %9481 = vmatpush2.bf16.msra.mxu0 %v7186
        %9482 = vmatprep.subr.bf16.mxu0 %v7171
        %9483 = vmatpush2.bf16.msra.mxu0 %v7170
        %9484 = vmatprep.subr.bf16.mxu0 %v7155
        %9485 = vmatpush2.bf16.msra.mxu0 %v7154
        %9486 = vmatprep.mubr.bf16.mxu0 %v2321
        %9487 = vmatmul.mubr.bf16.gmra.mxu0 %v2320
        %v9488 = vpop.f32.mrf.mxu0
        %v9489 = vadd.f32 %v9448, %v9488
        %v9490 = vpop.f32.mrf.mxu0
        %v9491 = vadd.f32 %v9450, %v9490
        %v9492 = vpop.f32.mrf.mxu0
        %v9493 = vpop.f32.mrf.mxu0
        %9494 = vdwg.mxu0
        %9495 = vmatprep.subr.bf16.mxu0 %v7395
        %9496 = vmatpush1.bf16.msra.mxu0 %v7394
        %9497 = vmatprep.subr.bf16.mxu0 %v7379
        %9498 = vmatpush1.bf16.msra.mxu0 %v7378
        %9499 = vmatprep.subr.bf16.mxu0 %v7363
        %9500 = vmatpush1.bf16.msra.mxu0 %v7362
        %9501 = vmatprep.subr.bf16.mxu0 %v7347
        %9502 = vmatpush1.bf16.msra.mxu0 %v7346
        %9503 = vmatprep.subr.bf16.mxu0 %v7331
        %9504 = vmatpush1.bf16.msra.mxu0 %v7330
        %9505 = vmatprep.subr.bf16.mxu0 %v7315
        %9506 = vmatpush1.bf16.msra.mxu0 %v7314
        %9507 = vmatprep.subr.bf16.mxu0 %v7299
        %9508 = vmatpush1.bf16.msra.mxu0 %v7298
        %9509 = vmatprep.subr.bf16.mxu0 %v7283
        %9510 = vmatpush1.bf16.msra.mxu0 %v7282
        %9511 = vmatprep.subr.bf16.mxu0 %v7523
        %9512 = vmatpush2.bf16.msra.mxu0 %v7522
        %9513 = vmatprep.subr.bf16.mxu0 %v7507
        %9514 = vmatpush2.bf16.msra.mxu0 %v7506
        %9515 = vmatprep.subr.bf16.mxu0 %v7491
        %9516 = vmatpush2.bf16.msra.mxu0 %v7490
        %9517 = vmatprep.subr.bf16.mxu0 %v7475
        %9518 = vmatpush2.bf16.msra.mxu0 %v7474
        %9519 = vmatprep.subr.bf16.mxu0 %v7459
        %9520 = vmatpush2.bf16.msra.mxu0 %v7458
        %9521 = vmatprep.subr.bf16.mxu0 %v7443
        %9522 = vmatpush2.bf16.msra.mxu0 %v7442
        %9523 = vmatprep.subr.bf16.mxu0 %v7427
        %9524 = vmatpush2.bf16.msra.mxu0 %v7426
        %9525 = vmatprep.subr.bf16.mxu0 %v7411
        %9526 = vmatpush2.bf16.msra.mxu0 %v7410
        %9527 = vmatprep.mubr.bf16.mxu0 %v2323
        %9528 = vmatmul.mubr.bf16.gmra.mxu0 %v2322
        %v9529 = vpop.f32.mrf.mxu0
        %v9530 = vadd.f32 %v9489, %v9529
        %v9531 = vpop.f32.mrf.mxu0
        %v9532 = vadd.f32 %v9491, %v9531
        %v9533 = vpop.f32.mrf.mxu0
        %v9534 = vpop.f32.mrf.mxu0
        %9535 = vdwg.mxu0
        %9536 = vmatprep.subr.bf16.mxu0 %v6629
        %9537 = vmatpush1.bf16.msra.mxu0 %v6628
        %9538 = vmatprep.subr.bf16.mxu0 %v6613
        %9539 = vmatpush1.bf16.msra.mxu0 %v6612
        %9540 = vmatprep.subr.bf16.mxu0 %v6597
        %9541 = vmatpush1.bf16.msra.mxu0 %v6596
        %9542 = vmatprep.subr.bf16.mxu0 %v6581
        %9543 = vmatpush1.bf16.msra.mxu0 %v6580
        %9544 = vmatprep.subr.bf16.mxu0 %v6565
        %9545 = vmatpush1.bf16.msra.mxu0 %v6564
        %9546 = vmatprep.subr.bf16.mxu0 %v6549
        %9547 = vmatpush1.bf16.msra.mxu0 %v6548
        %9548 = vmatprep.subr.bf16.mxu0 %v6533
        %9549 = vmatpush1.bf16.msra.mxu0 %v6532
        %9550 = vmatprep.subr.bf16.mxu0 %v6517
        %9551 = vmatpush1.bf16.msra.mxu0 %v6516
        %9552 = vmatprep.subr.bf16.mxu0 %v6757
        %9553 = vmatpush2.bf16.msra.mxu0 %v6756
        %9554 = vmatprep.subr.bf16.mxu0 %v6741
        %9555 = vmatpush2.bf16.msra.mxu0 %v6740
        %9556 = vmatprep.subr.bf16.mxu0 %v6725
        %9557 = vmatpush2.bf16.msra.mxu0 %v6724
        %9558 = vmatprep.subr.bf16.mxu0 %v6709
        %9559 = vmatpush2.bf16.msra.mxu0 %v6708
        %9560 = vmatprep.subr.bf16.mxu0 %v6693
        %9561 = vmatpush2.bf16.msra.mxu0 %v6692
        %9562 = vmatprep.subr.bf16.mxu0 %v6677
        %9563 = vmatpush2.bf16.msra.mxu0 %v6676
        %9564 = vmatprep.subr.bf16.mxu0 %v6661
        %9565 = vmatpush2.bf16.msra.mxu0 %v6660
        %9566 = vmatprep.subr.bf16.mxu0 %v6645
        %9567 = vmatpush2.bf16.msra.mxu0 %v6644
        %9568 = vmatprep.mubr.bf16.mxu0 %v2317
        %9569 = vmatmul.mubr.bf16.gmra.mxu0 %v2316
        %v9570 = vpop.f32.mrf.mxu0
        %v9571 = vadd.f32 %v3403, %v9570
        %v9572 = vpop.f32.mrf.mxu0
        %v9573 = vadd.f32 %v3407, %v9572
        %v9574 = vpop.f32.mrf.mxu0
        %v9575 = vpop.f32.mrf.mxu0
        %9576 = vdwg.mxu0
        %9577 = vmatprep.subr.bf16.mxu0 %v6885
        %9578 = vmatpush1.bf16.msra.mxu0 %v6884
        %9579 = vmatprep.subr.bf16.mxu0 %v6869
        %9580 = vmatpush1.bf16.msra.mxu0 %v6868
        %9581 = vmatprep.subr.bf16.mxu0 %v6853
        %9582 = vmatpush1.bf16.msra.mxu0 %v6852
        %9583 = vmatprep.subr.bf16.mxu0 %v6837
        %9584 = vmatpush1.bf16.msra.mxu0 %v6836
        %9585 = vmatprep.subr.bf16.mxu0 %v6821
        %9586 = vmatpush1.bf16.msra.mxu0 %v6820
        %9587 = vmatprep.subr.bf16.mxu0 %v6805
        %9588 = vmatpush1.bf16.msra.mxu0 %v6804
        %9589 = vmatprep.subr.bf16.mxu0 %v6789
        %9590 = vmatpush1.bf16.msra.mxu0 %v6788
        %9591 = vmatprep.subr.bf16.mxu0 %v6773
        %9592 = vmatpush1.bf16.msra.mxu0 %v6772
        %9593 = vmatprep.subr.bf16.mxu0 %v7013
        %9594 = vmatpush2.bf16.msra.mxu0 %v7012
        %9595 = vmatprep.subr.bf16.mxu0 %v6997
        %9596 = vmatpush2.bf16.msra.mxu0 %v6996
        %9597 = vmatprep.subr.bf16.mxu0 %v6981
        %9598 = vmatpush2.bf16.msra.mxu0 %v6980
        %9599 = vmatprep.subr.bf16.mxu0 %v6965
        %9600 = vmatpush2.bf16.msra.mxu0 %v6964
        %9601 = vmatprep.subr.bf16.mxu0 %v6949
        %9602 = vmatpush2.bf16.msra.mxu0 %v6948
        %9603 = vmatprep.subr.bf16.mxu0 %v6933
        %9604 = vmatpush2.bf16.msra.mxu0 %v6932
        %9605 = vmatprep.subr.bf16.mxu0 %v6917
        %9606 = vmatpush2.bf16.msra.mxu0 %v6916
        %9607 = vmatprep.subr.bf16.mxu0 %v6901
        %9608 = vmatpush2.bf16.msra.mxu0 %v6900
        %9609 = vmatprep.mubr.bf16.mxu0 %v2319
        %9610 = vmatmul.mubr.bf16.gmra.mxu0 %v2318
        %v9611 = vpop.f32.mrf.mxu0
        %v9612 = vadd.f32 %v9571, %v9611
        %v9613 = vpop.f32.mrf.mxu0
        %v9614 = vadd.f32 %v9573, %v9613
        %v9615 = vpop.f32.mrf.mxu0
        %v9616 = vpop.f32.mrf.mxu0
        %9617 = vdwg.mxu0
        %9618 = vmatprep.subr.bf16.mxu0 %v7141
        %9619 = vmatpush1.bf16.msra.mxu0 %v7140
        %9620 = vmatprep.subr.bf16.mxu0 %v7125
        %9621 = vmatpush1.bf16.msra.mxu0 %v7124
        %9622 = vmatprep.subr.bf16.mxu0 %v7109
        %9623 = vmatpush1.bf16.msra.mxu0 %v7108
        %9624 = vmatprep.subr.bf16.mxu0 %v7093
        %9625 = vmatpush1.bf16.msra.mxu0 %v7092
        %9626 = vmatprep.subr.bf16.mxu0 %v7077
        %9627 = vmatpush1.bf16.msra.mxu0 %v7076
        %9628 = vmatprep.subr.bf16.mxu0 %v7061
        %9629 = vmatpush1.bf16.msra.mxu0 %v7060
        %9630 = vmatprep.subr.bf16.mxu0 %v7045
        %9631 = vmatpush1.bf16.msra.mxu0 %v7044
        %9632 = vmatprep.subr.bf16.mxu0 %v7029
        %9633 = vmatpush1.bf16.msra.mxu0 %v7028
        %9634 = vmatprep.subr.bf16.mxu0 %v7269
        %9635 = vmatpush2.bf16.msra.mxu0 %v7268
        %9636 = vmatprep.subr.bf16.mxu0 %v7253
        %9637 = vmatpush2.bf16.msra.mxu0 %v7252
        %9638 = vmatprep.subr.bf16.mxu0 %v7237
        %9639 = vmatpush2.bf16.msra.mxu0 %v7236
        %9640 = vmatprep.subr.bf16.mxu0 %v7221
        %9641 = vmatpush2.bf16.msra.mxu0 %v7220
        %9642 = vmatprep.subr.bf16.mxu0 %v7205
        %9643 = vmatpush2.bf16.msra.mxu0 %v7204
        %9644 = vmatprep.subr.bf16.mxu0 %v7189
        %9645 = vmatpush2.bf16.msra.mxu0 %v7188
        %9646 = vmatprep.subr.bf16.mxu0 %v7173
        %9647 = vmatpush2.bf16.msra.mxu0 %v7172
        %9648 = vmatprep.subr.bf16.mxu0 %v7157
        %9649 = vmatpush2.bf16.msra.mxu0 %v7156
        %9650 = vmatprep.mubr.bf16.mxu0 %v2321
        %9651 = vmatmul.mubr.bf16.gmra.mxu0 %v2320
        %v9652 = vpop.f32.mrf.mxu0
        %v9653 = vadd.f32 %v9612, %v9652
        %v9654 = vpop.f32.mrf.mxu0
        %v9655 = vadd.f32 %v9614, %v9654
        %v9656 = vpop.f32.mrf.mxu0
        %v9657 = vpop.f32.mrf.mxu0
        %9658 = vdwg.mxu0
        %9659 = vmatprep.subr.bf16.mxu0 %v7397
        %9660 = vmatpush1.bf16.msra.mxu0 %v7396
        %9661 = vmatprep.subr.bf16.mxu0 %v7381
        %9662 = vmatpush1.bf16.msra.mxu0 %v7380
        %9663 = vmatprep.subr.bf16.mxu0 %v7365
        %9664 = vmatpush1.bf16.msra.mxu0 %v7364
        %9665 = vmatprep.subr.bf16.mxu0 %v7349
        %9666 = vmatpush1.bf16.msra.mxu0 %v7348
        %9667 = vmatprep.subr.bf16.mxu0 %v7333
        %9668 = vmatpush1.bf16.msra.mxu0 %v7332
        %9669 = vmatprep.subr.bf16.mxu0 %v7317
        %9670 = vmatpush1.bf16.msra.mxu0 %v7316
        %9671 = vmatprep.subr.bf16.mxu0 %v7301
        %9672 = vmatpush1.bf16.msra.mxu0 %v7300
        %9673 = vmatprep.subr.bf16.mxu0 %v7285
        %9674 = vmatpush1.bf16.msra.mxu0 %v7284
        %9675 = vmatprep.subr.bf16.mxu0 %v7525
        %9676 = vmatpush2.bf16.msra.mxu0 %v7524
        %9677 = vmatprep.subr.bf16.mxu0 %v7509
        %9678 = vmatpush2.bf16.msra.mxu0 %v7508
        %9679 = vmatprep.subr.bf16.mxu0 %v7493
        %9680 = vmatpush2.bf16.msra.mxu0 %v7492
        %9681 = vmatprep.subr.bf16.mxu0 %v7477
        %9682 = vmatpush2.bf16.msra.mxu0 %v7476
        %9683 = vmatprep.subr.bf16.mxu0 %v7461
        %9684 = vmatpush2.bf16.msra.mxu0 %v7460
        %9685 = vmatprep.subr.bf16.mxu0 %v7445
        %9686 = vmatpush2.bf16.msra.mxu0 %v7444
        %9687 = vmatprep.subr.bf16.mxu0 %v7429
        %9688 = vmatpush2.bf16.msra.mxu0 %v7428
        %9689 = vmatprep.subr.bf16.mxu0 %v7413
        %9690 = vmatpush2.bf16.msra.mxu0 %v7412
        %9691 = vmatprep.mubr.bf16.mxu0 %v2323
        %9692 = vmatmul.mubr.bf16.gmra.mxu0 %v2322
        %v9693 = vpop.f32.mrf.mxu0
        %v9694 = vadd.f32 %v9653, %v9693
        %v9695 = vpop.f32.mrf.mxu0
        %v9696 = vadd.f32 %v9655, %v9695
        %v9697 = vpop.f32.mrf.mxu0
        %v9698 = vpop.f32.mrf.mxu0
        %9699 = vdwg.mxu0
        %9700 = vmatprep.subr.bf16.mxu0 %v6631
        %9701 = vmatpush1.bf16.msra.mxu0 %v6630
        %9702 = vmatprep.subr.bf16.mxu0 %v6615
        %9703 = vmatpush1.bf16.msra.mxu0 %v6614
        %9704 = vmatprep.subr.bf16.mxu0 %v6599
        %9705 = vmatpush1.bf16.msra.mxu0 %v6598
        %9706 = vmatprep.subr.bf16.mxu0 %v6583
        %9707 = vmatpush1.bf16.msra.mxu0 %v6582
        %9708 = vmatprep.subr.bf16.mxu0 %v6567
        %9709 = vmatpush1.bf16.msra.mxu0 %v6566
        %9710 = vmatprep.subr.bf16.mxu0 %v6551
        %9711 = vmatpush1.bf16.msra.mxu0 %v6550
        %9712 = vmatprep.subr.bf16.mxu0 %v6535
        %9713 = vmatpush1.bf16.msra.mxu0 %v6534
        %9714 = vmatprep.subr.bf16.mxu0 %v6519
        %9715 = vmatpush1.bf16.msra.mxu0 %v6518
        %9716 = vmatprep.subr.bf16.mxu0 %v6759
        %9717 = vmatpush2.bf16.msra.mxu0 %v6758
        %9718 = vmatprep.subr.bf16.mxu0 %v6743
        %9719 = vmatpush2.bf16.msra.mxu0 %v6742
        %9720 = vmatprep.subr.bf16.mxu0 %v6727
        %9721 = vmatpush2.bf16.msra.mxu0 %v6726
        %9722 = vmatprep.subr.bf16.mxu0 %v6711
        %9723 = vmatpush2.bf16.msra.mxu0 %v6710
        %9724 = vmatprep.subr.bf16.mxu0 %v6695
        %9725 = vmatpush2.bf16.msra.mxu0 %v6694
        %9726 = vmatprep.subr.bf16.mxu0 %v6679
        %9727 = vmatpush2.bf16.msra.mxu0 %v6678
        %9728 = vmatprep.subr.bf16.mxu0 %v6663
        %9729 = vmatpush2.bf16.msra.mxu0 %v6662
        %9730 = vmatprep.subr.bf16.mxu0 %v6647
        %9731 = vmatpush2.bf16.msra.mxu0 %v6646
        %9732 = vmatprep.mubr.bf16.mxu0 %v2317
        %9733 = vmatmul.mubr.bf16.gmra.mxu0 %v2316
        %v9734 = vpop.f32.mrf.mxu0
        %v9735 = vadd.f32 %v3411, %v9734
        %v9736 = vpop.f32.mrf.mxu0
        %v9737 = vadd.f32 %v3415, %v9736
        %v9738 = vpop.f32.mrf.mxu0
        %v9739 = vpop.f32.mrf.mxu0
        %9740 = vdwg.mxu0
        %9741 = vmatprep.subr.bf16.mxu0 %v6887
        %9742 = vmatpush1.bf16.msra.mxu0 %v6886
        %9743 = vmatprep.subr.bf16.mxu0 %v6871
        %9744 = vmatpush1.bf16.msra.mxu0 %v6870
        %9745 = vmatprep.subr.bf16.mxu0 %v6855
        %9746 = vmatpush1.bf16.msra.mxu0 %v6854
        %9747 = vmatprep.subr.bf16.mxu0 %v6839
        %9748 = vmatpush1.bf16.msra.mxu0 %v6838
        %9749 = vmatprep.subr.bf16.mxu0 %v6823
        %9750 = vmatpush1.bf16.msra.mxu0 %v6822
        %9751 = vmatprep.subr.bf16.mxu0 %v6807
        %9752 = vmatpush1.bf16.msra.mxu0 %v6806
        %9753 = vmatprep.subr.bf16.mxu0 %v6791
        %9754 = vmatpush1.bf16.msra.mxu0 %v6790
        %9755 = vmatprep.subr.bf16.mxu0 %v6775
        %9756 = vmatpush1.bf16.msra.mxu0 %v6774
        %9757 = vmatprep.subr.bf16.mxu0 %v7015
        %9758 = vmatpush2.bf16.msra.mxu0 %v7014
        %9759 = vmatprep.subr.bf16.mxu0 %v6999
        %9760 = vmatpush2.bf16.msra.mxu0 %v6998
        %9761 = vmatprep.subr.bf16.mxu0 %v6983
        %9762 = vmatpush2.bf16.msra.mxu0 %v6982
        %9763 = vmatprep.subr.bf16.mxu0 %v6967
        %9764 = vmatpush2.bf16.msra.mxu0 %v6966
        %9765 = vmatprep.subr.bf16.mxu0 %v6951
        %9766 = vmatpush2.bf16.msra.mxu0 %v6950
        %9767 = vmatprep.subr.bf16.mxu0 %v6935
        %9768 = vmatpush2.bf16.msra.mxu0 %v6934
        %9769 = vmatprep.subr.bf16.mxu0 %v6919
        %9770 = vmatpush2.bf16.msra.mxu0 %v6918
        %9771 = vmatprep.subr.bf16.mxu0 %v6903
        %9772 = vmatpush2.bf16.msra.mxu0 %v6902
        %9773 = vmatprep.mubr.bf16.mxu0 %v2319
        %9774 = vmatmul.mubr.bf16.gmra.mxu0 %v2318
        %v9775 = vpop.f32.mrf.mxu0
        %v9776 = vadd.f32 %v9735, %v9775
        %v9777 = vpop.f32.mrf.mxu0
        %v9778 = vadd.f32 %v9737, %v9777
        %v9779 = vpop.f32.mrf.mxu0
        %v9780 = vpop.f32.mrf.mxu0
        %9781 = vdwg.mxu0
        %9782 = vmatprep.subr.bf16.mxu0 %v7143
        %9783 = vmatpush1.bf16.msra.mxu0 %v7142
        %9784 = vmatprep.subr.bf16.mxu0 %v7127
        %9785 = vmatpush1.bf16.msra.mxu0 %v7126
        %9786 = vmatprep.subr.bf16.mxu0 %v7111
        %9787 = vmatpush1.bf16.msra.mxu0 %v7110
        %9788 = vmatprep.subr.bf16.mxu0 %v7095
        %9789 = vmatpush1.bf16.msra.mxu0 %v7094
        %9790 = vmatprep.subr.bf16.mxu0 %v7079
        %9791 = vmatpush1.bf16.msra.mxu0 %v7078
        %9792 = vmatprep.subr.bf16.mxu0 %v7063
        %9793 = vmatpush1.bf16.msra.mxu0 %v7062
        %9794 = vmatprep.subr.bf16.mxu0 %v7047
        %9795 = vmatpush1.bf16.msra.mxu0 %v7046
        %9796 = vmatprep.subr.bf16.mxu0 %v7031
        %9797 = vmatpush1.bf16.msra.mxu0 %v7030
        %9798 = vmatprep.subr.bf16.mxu0 %v7271
        %9799 = vmatpush2.bf16.msra.mxu0 %v7270
        %9800 = vmatprep.subr.bf16.mxu0 %v7255
        %9801 = vmatpush2.bf16.msra.mxu0 %v7254
        %9802 = vmatprep.subr.bf16.mxu0 %v7239
        %9803 = vmatpush2.bf16.msra.mxu0 %v7238
        %9804 = vmatprep.subr.bf16.mxu0 %v7223
        %9805 = vmatpush2.bf16.msra.mxu0 %v7222
        %9806 = vmatprep.subr.bf16.mxu0 %v7207
        %9807 = vmatpush2.bf16.msra.mxu0 %v7206
        %9808 = vmatprep.subr.bf16.mxu0 %v7191
        %9809 = vmatpush2.bf16.msra.mxu0 %v7190
        %9810 = vmatprep.subr.bf16.mxu0 %v7175
        %9811 = vmatpush2.bf16.msra.mxu0 %v7174
        %9812 = vmatprep.subr.bf16.mxu0 %v7159
        %9813 = vmatpush2.bf16.msra.mxu0 %v7158
        %9814 = vmatprep.mubr.bf16.mxu0 %v2321
        %9815 = vmatmul.mubr.bf16.gmra.mxu0 %v2320
        %v9816 = vpop.f32.mrf.mxu0
        %v9817 = vadd.f32 %v9776, %v9816
        %v9818 = vpop.f32.mrf.mxu0
        %v9819 = vadd.f32 %v9778, %v9818
        %v9820 = vpop.f32.mrf.mxu0
        %v9821 = vpop.f32.mrf.mxu0
        %9822 = vdwg.mxu0
        %9823 = vmatprep.subr.bf16.mxu0 %v7399
        %9824 = vmatpush1.bf16.msra.mxu0 %v7398
        %9825 = vmatprep.subr.bf16.mxu0 %v7383
        %9826 = vmatpush1.bf16.msra.mxu0 %v7382
        %9827 = vmatprep.subr.bf16.mxu0 %v7367
        %9828 = vmatpush1.bf16.msra.mxu0 %v7366
        %9829 = vmatprep.subr.bf16.mxu0 %v7351
        %9830 = vmatpush1.bf16.msra.mxu0 %v7350
        %9831 = vmatprep.subr.bf16.mxu0 %v7335
        %9832 = vmatpush1.bf16.msra.mxu0 %v7334
        %9833 = vmatprep.subr.bf16.mxu0 %v7319
        %9834 = vmatpush1.bf16.msra.mxu0 %v7318
        %9835 = vmatprep.subr.bf16.mxu0 %v7303
        %9836 = vmatpush1.bf16.msra.mxu0 %v7302
        %9837 = vmatprep.subr.bf16.mxu0 %v7287
        %9838 = vmatpush1.bf16.msra.mxu0 %v7286
        %9839 = vmatprep.subr.bf16.mxu0 %v7527
        %9840 = vmatpush2.bf16.msra.mxu0 %v7526
        %9841 = vmatprep.subr.bf16.mxu0 %v7511
        %9842 = vmatpush2.bf16.msra.mxu0 %v7510
        %9843 = vmatprep.subr.bf16.mxu0 %v7495
        %9844 = vmatpush2.bf16.msra.mxu0 %v7494
        %9845 = vmatprep.subr.bf16.mxu0 %v7479
        %9846 = vmatpush2.bf16.msra.mxu0 %v7478
        %9847 = vmatprep.subr.bf16.mxu0 %v7463
        %9848 = vmatpush2.bf16.msra.mxu0 %v7462
        %9849 = vmatprep.subr.bf16.mxu0 %v7447
        %9850 = vmatpush2.bf16.msra.mxu0 %v7446
        %9851 = vmatprep.subr.bf16.mxu0 %v7431
        %9852 = vmatpush2.bf16.msra.mxu0 %v7430
        %9853 = vmatprep.subr.bf16.mxu0 %v7415
        %9854 = vmatpush2.bf16.msra.mxu0 %v7414
        %9855 = vmatprep.mubr.bf16.mxu0 %v2323
        %9856 = vmatmul.mubr.bf16.gmra.mxu0 %v2322
        %v9857 = vpop.f32.mrf.mxu0
        %v9858 = vadd.f32 %v9817, %v9857
        %v9859 = vpop.f32.mrf.mxu0
        %v9860 = vadd.f32 %v9819, %v9859
        %v9861 = vpop.f32.mrf.mxu0
        %v9862 = vpop.f32.mrf.mxu0
        %9863 = vdwg.mxu0
        %v9864 = vpack.c.bf16 %v8710, %v8710
        %v9865 = vpack.c.bf16 %v8712, %v8712
        %v9866 = vpack.c.bf16 %v8874, %v8874
        %v9867 = vpack.c.bf16 %v8876, %v8876
        %v9868 = vpack.c.bf16 %v9038, %v9038
        %v9869 = vpack.c.bf16 %v9040, %v9040
        %v9870 = vpack.c.bf16 %v9202, %v9202
        %v9871 = vpack.c.bf16 %v9204, %v9204
        %v9872 = vpack.c.bf16 %v9366, %v9366
        %v9873 = vpack.c.bf16 %v9368, %v9368
        %v9874 = vpack.c.bf16 %v9530, %v9530
        %v9875 = vpack.c.bf16 %v9532, %v9532
        %v9876 = vpack.c.bf16 %v9694, %v9694
        %v9877 = vpack.c.bf16 %v9696, %v9696
        %v9878 = vpack.c.bf16 %v9858, %v9858
        %v9879 = vpack.c.bf16 %v9860, %v9860
        %v9880 = vld [vmem:[%s354] sm:$0xff]
        %v9881 = vld [vmem:[%s354 + $0x8] sm:$0xff]
        %v9882 = vld [vmem:[%s354 + $0x10] sm:$0xff]
        %v9883 = vld [vmem:[%s354 + $0x18] sm:$0xff]
        %v9884 = vld [vmem:[%s354 + $0x20] sm:$0xff]
        %v9885 = vld [vmem:[%s354 + $0x28] sm:$0xff]
        %v9886 = vld [vmem:[%s354 + $0x30] sm:$0xff]
        %v9887 = vld [vmem:[%s354 + $0x38] sm:$0xff]
        %v9888 = vld [vmem:[%s354 + $0x40] sm:$0xff]
        %v9889 = vld [vmem:[%s354 + $0x48] sm:$0xff]
        %v9890 = vld [vmem:[%s354 + $0x50] sm:$0xff]
        %v9891 = vld [vmem:[%s354 + $0x58] sm:$0xff]
        %v9892 = vld [vmem:[%s354 + $0x60] sm:$0xff]
        %v9893 = vld [vmem:[%s354 + $0x68] sm:$0xff]
        %v9894 = vld [vmem:[%s354 + $0x70] sm:$0xff]
        %v9895 = vld [vmem:[%s354 + $0x78] sm:$0xff]
        %v9896 = vld [vmem:[%s354 + $0x80] sm:$0xff]
        %v9897 = vld [vmem:[%s354 + $0x88] sm:$0xff]
        %v9898 = vld [vmem:[%s354 + $0x90] sm:$0xff]
        %v9899 = vld [vmem:[%s354 + $0x98] sm:$0xff]
        %v9900 = vld [vmem:[%s354 + $0xa0] sm:$0xff]
        %v9901 = vld [vmem:[%s354 + $0xa8] sm:$0xff]
        %v9902 = vld [vmem:[%s354 + $0xb0] sm:$0xff]
        %v9903 = vld [vmem:[%s354 + $0xb8] sm:$0xff]
        %v9904 = vld [vmem:[%s354 + $0xc0] sm:$0xff]
        %v9905 = vld [vmem:[%s354 + $0xc8] sm:$0xff]
        %v9906 = vld [vmem:[%s354 + $0xd0] sm:$0xff]
        %v9907 = vld [vmem:[%s354 + $0xd8] sm:$0xff]
        %v9908 = vld [vmem:[%s354 + $0xe0] sm:$0xff]
        %v9909 = vld [vmem:[%s354 + $0xe8] sm:$0xff]
        %v9910 = vld [vmem:[%s354 + $0xf0] sm:$0xff]
        %v9911 = vld [vmem:[%s354 + $0xf8] sm:$0xff]
        %v9912 = vld [vmem:[%s354 + $0x100] sm:$0xff]
        %v9913 = vld [vmem:[%s354 + $0x108] sm:$0xff]
        %v9914 = vld [vmem:[%s354 + $0x110] sm:$0xff]
        %v9915 = vld [vmem:[%s354 + $0x118] sm:$0xff]
        %v9916 = vld [vmem:[%s354 + $0x120] sm:$0xff]
        %v9917 = vld [vmem:[%s354 + $0x128] sm:$0xff]
        %v9918 = vld [vmem:[%s354 + $0x130] sm:$0xff]
        %v9919 = vld [vmem:[%s354 + $0x138] sm:$0xff]
        %v9920 = vld [vmem:[%s354 + $0x140] sm:$0xff]
        %v9921 = vld [vmem:[%s354 + $0x148] sm:$0xff]
        %v9922 = vld [vmem:[%s354 + $0x150] sm:$0xff]
        %v9923 = vld [vmem:[%s354 + $0x158] sm:$0xff]
        %v9924 = vld [vmem:[%s354 + $0x160] sm:$0xff]
        %v9925 = vld [vmem:[%s354 + $0x168] sm:$0xff]
        %v9926 = vld [vmem:[%s354 + $0x170] sm:$0xff]
        %v9927 = vld [vmem:[%s354 + $0x178] sm:$0xff]
        %v9928 = vld [vmem:[%s354 + $0x180] sm:$0xff]
        %v9929 = vld [vmem:[%s354 + $0x188] sm:$0xff]
        %v9930 = vld [vmem:[%s354 + $0x190] sm:$0xff]
        %v9931 = vld [vmem:[%s354 + $0x198] sm:$0xff]
        %v9932 = vld [vmem:[%s354 + $0x1a0] sm:$0xff]
        %v9933 = vld [vmem:[%s354 + $0x1a8] sm:$0xff]
        %v9934 = vld [vmem:[%s354 + $0x1b0] sm:$0xff]
        %v9935 = vld [vmem:[%s354 + $0x1b8] sm:$0xff]
        %v9936 = vld [vmem:[%s354 + $0x1c0] sm:$0xff]
        %v9937 = vld [vmem:[%s354 + $0x1c8] sm:$0xff]
        %v9938 = vld [vmem:[%s354 + $0x1d0] sm:$0xff]
        %v9939 = vld [vmem:[%s354 + $0x1d8] sm:$0xff]
        %v9940 = vld [vmem:[%s354 + $0x1e0] sm:$0xff]
        %v9941 = vld [vmem:[%s354 + $0x1e8] sm:$0xff]
        %v9942 = vld [vmem:[%s354 + $0x1f0] sm:$0xff]
        %v9943 = vld [vmem:[%s354 + $0x1f8] sm:$0xff]
        %v9944 = vld [vmem:[%s354 + $0x200] sm:$0xff]
        %v9945 = vld [vmem:[%s354 + $0x208] sm:$0xff]
        %v9946 = vld [vmem:[%s354 + $0x210] sm:$0xff]
        %v9947 = vld [vmem:[%s354 + $0x218] sm:$0xff]
        %v9948 = vld [vmem:[%s354 + $0x220] sm:$0xff]
        %v9949 = vld [vmem:[%s354 + $0x228] sm:$0xff]
        %v9950 = vld [vmem:[%s354 + $0x230] sm:$0xff]
        %v9951 = vld [vmem:[%s354 + $0x238] sm:$0xff]
        %v9952 = vld [vmem:[%s354 + $0x240] sm:$0xff]
        %v9953 = vld [vmem:[%s354 + $0x248] sm:$0xff]
        %v9954 = vld [vmem:[%s354 + $0x250] sm:$0xff]
        %v9955 = vld [vmem:[%s354 + $0x258] sm:$0xff]
        %v9956 = vld [vmem:[%s354 + $0x260] sm:$0xff]
        %v9957 = vld [vmem:[%s354 + $0x268] sm:$0xff]
        %v9958 = vld [vmem:[%s354 + $0x270] sm:$0xff]
        %v9959 = vld [vmem:[%s354 + $0x278] sm:$0xff]
        %v9960 = vld [vmem:[%s354 + $0x280] sm:$0xff]
        %v9961 = vld [vmem:[%s354 + $0x288] sm:$0xff]
        %v9962 = vld [vmem:[%s354 + $0x290] sm:$0xff]
        %v9963 = vld [vmem:[%s354 + $0x298] sm:$0xff]
        %v9964 = vld [vmem:[%s354 + $0x2a0] sm:$0xff]
        %v9965 = vld [vmem:[%s354 + $0x2a8] sm:$0xff]
        %v9966 = vld [vmem:[%s354 + $0x2b0] sm:$0xff]
        %v9967 = vld [vmem:[%s354 + $0x2b8] sm:$0xff]
        %v9968 = vld [vmem:[%s354 + $0x2c0] sm:$0xff]
        %v9969 = vld [vmem:[%s354 + $0x2c8] sm:$0xff]
        %v9970 = vld [vmem:[%s354 + $0x2d0] sm:$0xff]
        %v9971 = vld [vmem:[%s354 + $0x2d8] sm:$0xff]
        %v9972 = vld [vmem:[%s354 + $0x2e0] sm:$0xff]
        %v9973 = vld [vmem:[%s354 + $0x2e8] sm:$0xff]
        %v9974 = vld [vmem:[%s354 + $0x2f0] sm:$0xff]
        %v9975 = vld [vmem:[%s354 + $0x2f8] sm:$0xff]
        %v9976 = vld [vmem:[%s354 + $0x300] sm:$0xff]
        %v9977 = vld [vmem:[%s354 + $0x308] sm:$0xff]
        %v9978 = vld [vmem:[%s354 + $0x310] sm:$0xff]
        %v9979 = vld [vmem:[%s354 + $0x318] sm:$0xff]
        %v9980 = vld [vmem:[%s354 + $0x320] sm:$0xff]
        %v9981 = vld [vmem:[%s354 + $0x328] sm:$0xff]
        %v9982 = vld [vmem:[%s354 + $0x330] sm:$0xff]
        %v9983 = vld [vmem:[%s354 + $0x338] sm:$0xff]
        %v9984 = vld [vmem:[%s354 + $0x340] sm:$0xff]
        %v9985 = vld [vmem:[%s354 + $0x348] sm:$0xff]
        %v9986 = vld [vmem:[%s354 + $0x350] sm:$0xff]
        %v9987 = vld [vmem:[%s354 + $0x358] sm:$0xff]
        %v9988 = vld [vmem:[%s354 + $0x360] sm:$0xff]
        %v9989 = vld [vmem:[%s354 + $0x368] sm:$0xff]
        %v9990 = vld [vmem:[%s354 + $0x370] sm:$0xff]
        %v9991 = vld [vmem:[%s354 + $0x378] sm:$0xff]
        %v9992 = vld [vmem:[%s354 + $0x380] sm:$0xff]
        %v9993 = vld [vmem:[%s354 + $0x388] sm:$0xff]
        %v9994 = vld [vmem:[%s354 + $0x390] sm:$0xff]
        %v9995 = vld [vmem:[%s354 + $0x398] sm:$0xff]
        %v9996 = vld [vmem:[%s354 + $0x3a0] sm:$0xff]
        %v9997 = vld [vmem:[%s354 + $0x3a8] sm:$0xff]
        %v9998 = vld [vmem:[%s354 + $0x3b0] sm:$0xff]
        %v9999 = vld [vmem:[%s354 + $0x3b8] sm:$0xff]
        %v10000 = vld [vmem:[%s354 + $0x3c0] sm:$0xff]
        %v10001 = vld [vmem:[%s354 + $0x3c8] sm:$0xff]
        %v10002 = vld [vmem:[%s354 + $0x3d0] sm:$0xff]
        %v10003 = vld [vmem:[%s354 + $0x3d8] sm:$0xff]
        %v10004 = vld [vmem:[%s354 + $0x3e0] sm:$0xff]
        %v10005 = vld [vmem:[%s354 + $0x3e8] sm:$0xff]
        %v10006 = vld [vmem:[%s354 + $0x3f0] sm:$0xff]
        %v10007 = vld [vmem:[%s354 + $0x3f8] sm:$0xff]
        %v10008 = vld [vmem:[%s354 + $0x400] sm:$0xff]
        %v10009 = vld [vmem:[%s354 + $0x408] sm:$0xff]
        %v10010 = vld [vmem:[%s354 + $0x410] sm:$0xff]
        %v10011 = vld [vmem:[%s354 + $0x418] sm:$0xff]
        %v10012 = vld [vmem:[%s354 + $0x420] sm:$0xff]
        %v10013 = vld [vmem:[%s354 + $0x428] sm:$0xff]
        %v10014 = vld [vmem:[%s354 + $0x430] sm:$0xff]
        %v10015 = vld [vmem:[%s354 + $0x438] sm:$0xff]
        %v10016 = vld [vmem:[%s354 + $0x440] sm:$0xff]
        %v10017 = vld [vmem:[%s354 + $0x448] sm:$0xff]
        %v10018 = vld [vmem:[%s354 + $0x450] sm:$0xff]
        %v10019 = vld [vmem:[%s354 + $0x458] sm:$0xff]
        %v10020 = vld [vmem:[%s354 + $0x460] sm:$0xff]
        %v10021 = vld [vmem:[%s354 + $0x468] sm:$0xff]
        %v10022 = vld [vmem:[%s354 + $0x470] sm:$0xff]
        %v10023 = vld [vmem:[%s354 + $0x478] sm:$0xff]
        %v10024 = vld [vmem:[%s354 + $0x480] sm:$0xff]
        %v10025 = vld [vmem:[%s354 + $0x488] sm:$0xff]
        %v10026 = vld [vmem:[%s354 + $0x490] sm:$0xff]
        %v10027 = vld [vmem:[%s354 + $0x498] sm:$0xff]
        %v10028 = vld [vmem:[%s354 + $0x4a0] sm:$0xff]
        %v10029 = vld [vmem:[%s354 + $0x4a8] sm:$0xff]
        %v10030 = vld [vmem:[%s354 + $0x4b0] sm:$0xff]
        %v10031 = vld [vmem:[%s354 + $0x4b8] sm:$0xff]
        %v10032 = vld [vmem:[%s354 + $0x4c0] sm:$0xff]
        %v10033 = vld [vmem:[%s354 + $0x4c8] sm:$0xff]
        %v10034 = vld [vmem:[%s354 + $0x4d0] sm:$0xff]
        %v10035 = vld [vmem:[%s354 + $0x4d8] sm:$0xff]
        %v10036 = vld [vmem:[%s354 + $0x4e0] sm:$0xff]
        %v10037 = vld [vmem:[%s354 + $0x4e8] sm:$0xff]
        %v10038 = vld [vmem:[%s354 + $0x4f0] sm:$0xff]
        %v10039 = vld [vmem:[%s354 + $0x4f8] sm:$0xff]
        %v10040 = vld [vmem:[%s354 + $0x500] sm:$0xff]
        %v10041 = vld [vmem:[%s354 + $0x508] sm:$0xff]
        %v10042 = vld [vmem:[%s354 + $0x510] sm:$0xff]
        %v10043 = vld [vmem:[%s354 + $0x518] sm:$0xff]
        %v10044 = vld [vmem:[%s354 + $0x520] sm:$0xff]
        %v10045 = vld [vmem:[%s354 + $0x528] sm:$0xff]
        %v10046 = vld [vmem:[%s354 + $0x530] sm:$0xff]
        %v10047 = vld [vmem:[%s354 + $0x538] sm:$0xff]
        %v10048 = vld [vmem:[%s354 + $0x540] sm:$0xff]
        %v10049 = vld [vmem:[%s354 + $0x548] sm:$0xff]
        %v10050 = vld [vmem:[%s354 + $0x550] sm:$0xff]
        %v10051 = vld [vmem:[%s354 + $0x558] sm:$0xff]
        %v10052 = vld [vmem:[%s354 + $0x560] sm:$0xff]
        %v10053 = vld [vmem:[%s354 + $0x568] sm:$0xff]
        %v10054 = vld [vmem:[%s354 + $0x570] sm:$0xff]
        %v10055 = vld [vmem:[%s354 + $0x578] sm:$0xff]
        %v10056 = vld [vmem:[%s354 + $0x580] sm:$0xff]
        %v10057 = vld [vmem:[%s354 + $0x588] sm:$0xff]
        %v10058 = vld [vmem:[%s354 + $0x590] sm:$0xff]
        %v10059 = vld [vmem:[%s354 + $0x598] sm:$0xff]
        %v10060 = vld [vmem:[%s354 + $0x5a0] sm:$0xff]
        %v10061 = vld [vmem:[%s354 + $0x5a8] sm:$0xff]
        %v10062 = vld [vmem:[%s354 + $0x5b0] sm:$0xff]
        %v10063 = vld [vmem:[%s354 + $0x5b8] sm:$0xff]
        %v10064 = vld [vmem:[%s354 + $0x5c0] sm:$0xff]
        %v10065 = vld [vmem:[%s354 + $0x5c8] sm:$0xff]
        %v10066 = vld [vmem:[%s354 + $0x5d0] sm:$0xff]
        %v10067 = vld [vmem:[%s354 + $0x5d8] sm:$0xff]
        %v10068 = vld [vmem:[%s354 + $0x5e0] sm:$0xff]
        %v10069 = vld [vmem:[%s354 + $0x5e8] sm:$0xff]
        %v10070 = vld [vmem:[%s354 + $0x5f0] sm:$0xff]
        %v10071 = vld [vmem:[%s354 + $0x5f8] sm:$0xff]
        %v10072 = vld [vmem:[%s354 + $0x600] sm:$0xff]
        %v10073 = vld [vmem:[%s354 + $0x608] sm:$0xff]
        %v10074 = vld [vmem:[%s354 + $0x610] sm:$0xff]
        %v10075 = vld [vmem:[%s354 + $0x618] sm:$0xff]
        %v10076 = vld [vmem:[%s354 + $0x620] sm:$0xff]
        %v10077 = vld [vmem:[%s354 + $0x628] sm:$0xff]
        %v10078 = vld [vmem:[%s354 + $0x630] sm:$0xff]
        %v10079 = vld [vmem:[%s354 + $0x638] sm:$0xff]
        %v10080 = vld [vmem:[%s354 + $0x640] sm:$0xff]
        %v10081 = vld [vmem:[%s354 + $0x648] sm:$0xff]
        %v10082 = vld [vmem:[%s354 + $0x650] sm:$0xff]
        %v10083 = vld [vmem:[%s354 + $0x658] sm:$0xff]
        %v10084 = vld [vmem:[%s354 + $0x660] sm:$0xff]
        %v10085 = vld [vmem:[%s354 + $0x668] sm:$0xff]
        %v10086 = vld [vmem:[%s354 + $0x670] sm:$0xff]
        %v10087 = vld [vmem:[%s354 + $0x678] sm:$0xff]
        %v10088 = vld [vmem:[%s354 + $0x680] sm:$0xff]
        %v10089 = vld [vmem:[%s354 + $0x688] sm:$0xff]
        %v10090 = vld [vmem:[%s354 + $0x690] sm:$0xff]
        %v10091 = vld [vmem:[%s354 + $0x698] sm:$0xff]
        %v10092 = vld [vmem:[%s354 + $0x6a0] sm:$0xff]
        %v10093 = vld [vmem:[%s354 + $0x6a8] sm:$0xff]
        %v10094 = vld [vmem:[%s354 + $0x6b0] sm:$0xff]
        %v10095 = vld [vmem:[%s354 + $0x6b8] sm:$0xff]
        %v10096 = vld [vmem:[%s354 + $0x6c0] sm:$0xff]
        %v10097 = vld [vmem:[%s354 + $0x6c8] sm:$0xff]
        %v10098 = vld [vmem:[%s354 + $0x6d0] sm:$0xff]
        %v10099 = vld [vmem:[%s354 + $0x6d8] sm:$0xff]
        %v10100 = vld [vmem:[%s354 + $0x6e0] sm:$0xff]
        %v10101 = vld [vmem:[%s354 + $0x6e8] sm:$0xff]
        %v10102 = vld [vmem:[%s354 + $0x6f0] sm:$0xff]
        %v10103 = vld [vmem:[%s354 + $0x6f8] sm:$0xff]
        %v10104 = vld [vmem:[%s354 + $0x700] sm:$0xff]
        %v10105 = vld [vmem:[%s354 + $0x708] sm:$0xff]
        %v10106 = vld [vmem:[%s354 + $0x710] sm:$0xff]
        %v10107 = vld [vmem:[%s354 + $0x718] sm:$0xff]
        %v10108 = vld [vmem:[%s354 + $0x720] sm:$0xff]
        %v10109 = vld [vmem:[%s354 + $0x728] sm:$0xff]
        %v10110 = vld [vmem:[%s354 + $0x730] sm:$0xff]
        %v10111 = vld [vmem:[%s354 + $0x738] sm:$0xff]
        %v10112 = vld [vmem:[%s354 + $0x740] sm:$0xff]
        %v10113 = vld [vmem:[%s354 + $0x748] sm:$0xff]
        %v10114 = vld [vmem:[%s354 + $0x750] sm:$0xff]
        %v10115 = vld [vmem:[%s354 + $0x758] sm:$0xff]
        %v10116 = vld [vmem:[%s354 + $0x760] sm:$0xff]
        %v10117 = vld [vmem:[%s354 + $0x768] sm:$0xff]
        %v10118 = vld [vmem:[%s354 + $0x770] sm:$0xff]
        %v10119 = vld [vmem:[%s354 + $0x778] sm:$0xff]
        %v10120 = vld [vmem:[%s354 + $0x780] sm:$0xff]
        %v10121 = vld [vmem:[%s354 + $0x788] sm:$0xff]
        %v10122 = vld [vmem:[%s354 + $0x790] sm:$0xff]
        %v10123 = vld [vmem:[%s354 + $0x798] sm:$0xff]
        %v10124 = vld [vmem:[%s354 + $0x7a0] sm:$0xff]
        %v10125 = vld [vmem:[%s354 + $0x7a8] sm:$0xff]
        %v10126 = vld [vmem:[%s354 + $0x7b0] sm:$0xff]
        %v10127 = vld [vmem:[%s354 + $0x7b8] sm:$0xff]
        %v10128 = vld [vmem:[%s354 + $0x7c0] sm:$0xff]
        %v10129 = vld [vmem:[%s354 + $0x7c8] sm:$0xff]
        %v10130 = vld [vmem:[%s354 + $0x7d0] sm:$0xff]
        %v10131 = vld [vmem:[%s354 + $0x7d8] sm:$0xff]
        %v10132 = vld [vmem:[%s354 + $0x7e0] sm:$0xff]
        %v10133 = vld [vmem:[%s354 + $0x7e8] sm:$0xff]
        %v10134 = vld [vmem:[%s354 + $0x7f0] sm:$0xff]
        %v10135 = vld [vmem:[%s354 + $0x7f8] sm:$0xff]
        %v10136 = vld [vmem:[%s363] sm:$0x3]
        %v10138 = vlaneseq
        %v10139 = vshrl.u32 %v10138, 7
        %v10140 = vsub.s32 0, %v10139
        %v10141 = vrot.slane %v10136, %v10140
        %v10142 = vlaneseq
        %v10143 = vshrl.u32 %v10142, 7
        %v10144 = vsub.s32 1, %v10143
        %v10145 = vrot.slane %v10136, %v10144
        %v10404 = vunpack.c.l.b16 %v9880
        %v10405 = vunpack.c.h.b16 %v9880
        %v10406 = vunpack.c.l.b16 %v9881
        %v10407 = vunpack.c.h.b16 %v9881
        %v10408 = vunpack.c.l.b16 %v9882
        %v10409 = vunpack.c.h.b16 %v9882
        %v10410 = vunpack.c.l.b16 %v9883
        %v10411 = vunpack.c.h.b16 %v9883
        %v10412 = vunpack.c.l.b16 %v9884
        %v10413 = vunpack.c.h.b16 %v9884
        %v10414 = vunpack.c.l.b16 %v9885
        %v10415 = vunpack.c.h.b16 %v9885
        %v10416 = vunpack.c.l.b16 %v9886
        %v10417 = vunpack.c.h.b16 %v9886
        %v10418 = vunpack.c.l.b16 %v9887
        %v10419 = vunpack.c.h.b16 %v9887
        %v10420 = vunpack.c.l.b16 %v9888
        %v10421 = vunpack.c.h.b16 %v9888
        %v10422 = vunpack.c.l.b16 %v9889
        %v10423 = vunpack.c.h.b16 %v9889
        %v10424 = vunpack.c.l.b16 %v9890
        %v10425 = vunpack.c.h.b16 %v9890
        %v10426 = vunpack.c.l.b16 %v9891
        %v10427 = vunpack.c.h.b16 %v9891
        %v10428 = vunpack.c.l.b16 %v9892
        %v10429 = vunpack.c.h.b16 %v9892
        %v10430 = vunpack.c.l.b16 %v9893
        %v10431 = vunpack.c.h.b16 %v9893
        %v10432 = vunpack.c.l.b16 %v9894
        %v10433 = vunpack.c.h.b16 %v9894
        %v10434 = vunpack.c.l.b16 %v9895
        %v10435 = vunpack.c.h.b16 %v9895
        %v10436 = vunpack.c.l.b16 %v9896
        %v10437 = vunpack.c.h.b16 %v9896
        %v10438 = vunpack.c.l.b16 %v9897
        %v10439 = vunpack.c.h.b16 %v9897
        %v10440 = vunpack.c.l.b16 %v9898
        %v10441 = vunpack.c.h.b16 %v9898
        %v10442 = vunpack.c.l.b16 %v9899
        %v10443 = vunpack.c.h.b16 %v9899
        %v10444 = vunpack.c.l.b16 %v9900
        %v10445 = vunpack.c.h.b16 %v9900
        %v10446 = vunpack.c.l.b16 %v9901
        %v10447 = vunpack.c.h.b16 %v9901
        %v10448 = vunpack.c.l.b16 %v9902
        %v10449 = vunpack.c.h.b16 %v9902
        %v10450 = vunpack.c.l.b16 %v9903
        %v10451 = vunpack.c.h.b16 %v9903
        %v10452 = vunpack.c.l.b16 %v9904
        %v10453 = vunpack.c.h.b16 %v9904
        %v10454 = vunpack.c.l.b16 %v9905
        %v10455 = vunpack.c.h.b16 %v9905
        %v10456 = vunpack.c.l.b16 %v9906
        %v10457 = vunpack.c.h.b16 %v9906
        %v10458 = vunpack.c.l.b16 %v9907
        %v10459 = vunpack.c.h.b16 %v9907
        %v10460 = vunpack.c.l.b16 %v9908
        %v10461 = vunpack.c.h.b16 %v9908
        %v10462 = vunpack.c.l.b16 %v9909
        %v10463 = vunpack.c.h.b16 %v9909
        %v10464 = vunpack.c.l.b16 %v9910
        %v10465 = vunpack.c.h.b16 %v9910
        %v10466 = vunpack.c.l.b16 %v9911
        %v10467 = vunpack.c.h.b16 %v9911
        %v10468 = vunpack.c.l.b16 %v9912
        %v10469 = vunpack.c.h.b16 %v9912
        %v10470 = vunpack.c.l.b16 %v9913
        %v10471 = vunpack.c.h.b16 %v9913
        %v10472 = vunpack.c.l.b16 %v9914
        %v10473 = vunpack.c.h.b16 %v9914
        %v10474 = vunpack.c.l.b16 %v9915
        %v10475 = vunpack.c.h.b16 %v9915
        %v10476 = vunpack.c.l.b16 %v9916
        %v10477 = vunpack.c.h.b16 %v9916
        %v10478 = vunpack.c.l.b16 %v9917
        %v10479 = vunpack.c.h.b16 %v9917
        %v10480 = vunpack.c.l.b16 %v9918
        %v10481 = vunpack.c.h.b16 %v9918
        %v10482 = vunpack.c.l.b16 %v9919
        %v10483 = vunpack.c.h.b16 %v9919
        %v10484 = vunpack.c.l.b16 %v9920
        %v10485 = vunpack.c.h.b16 %v9920
        %v10486 = vunpack.c.l.b16 %v9921
        %v10487 = vunpack.c.h.b16 %v9921
        %v10488 = vunpack.c.l.b16 %v9922
        %v10489 = vunpack.c.h.b16 %v9922
        %v10490 = vunpack.c.l.b16 %v9923
        %v10491 = vunpack.c.h.b16 %v9923
        %v10492 = vunpack.c.l.b16 %v9924
        %v10493 = vunpack.c.h.b16 %v9924
        %v10494 = vunpack.c.l.b16 %v9925
        %v10495 = vunpack.c.h.b16 %v9925
        %v10496 = vunpack.c.l.b16 %v9926
        %v10497 = vunpack.c.h.b16 %v9926
        %v10498 = vunpack.c.l.b16 %v9927
        %v10499 = vunpack.c.h.b16 %v9927
        %v10500 = vunpack.c.l.b16 %v9928
        %v10501 = vunpack.c.h.b16 %v9928
        %v10502 = vunpack.c.l.b16 %v9929
        %v10503 = vunpack.c.h.b16 %v9929
        %v10504 = vunpack.c.l.b16 %v9930
        %v10505 = vunpack.c.h.b16 %v9930
        %v10506 = vunpack.c.l.b16 %v9931
        %v10507 = vunpack.c.h.b16 %v9931
        %v10508 = vunpack.c.l.b16 %v9932
        %v10509 = vunpack.c.h.b16 %v9932
        %v10510 = vunpack.c.l.b16 %v9933
        %v10511 = vunpack.c.h.b16 %v9933
        %v10512 = vunpack.c.l.b16 %v9934
        %v10513 = vunpack.c.h.b16 %v9934
        %v10514 = vunpack.c.l.b16 %v9935
        %v10515 = vunpack.c.h.b16 %v9935
        %v10516 = vunpack.c.l.b16 %v9936
        %v10517 = vunpack.c.h.b16 %v9936
        %v10518 = vunpack.c.l.b16 %v9937
        %v10519 = vunpack.c.h.b16 %v9937
        %v10520 = vunpack.c.l.b16 %v9938
        %v10521 = vunpack.c.h.b16 %v9938
        %v10522 = vunpack.c.l.b16 %v9939
        %v10523 = vunpack.c.h.b16 %v9939
        %v10524 = vunpack.c.l.b16 %v9940
        %v10525 = vunpack.c.h.b16 %v9940
        %v10526 = vunpack.c.l.b16 %v9941
        %v10527 = vunpack.c.h.b16 %v9941
        %v10528 = vunpack.c.l.b16 %v9942
        %v10529 = vunpack.c.h.b16 %v9942
        %v10530 = vunpack.c.l.b16 %v9943
        %v10531 = vunpack.c.h.b16 %v9943
        %v10532 = vunpack.c.l.b16 %v9944
        %v10533 = vunpack.c.h.b16 %v9944
        %v10534 = vunpack.c.l.b16 %v9945
        %v10535 = vunpack.c.h.b16 %v9945
        %v10536 = vunpack.c.l.b16 %v9946
        %v10537 = vunpack.c.h.b16 %v9946
        %v10538 = vunpack.c.l.b16 %v9947
        %v10539 = vunpack.c.h.b16 %v9947
        %v10540 = vunpack.c.l.b16 %v9948
        %v10541 = vunpack.c.h.b16 %v9948
        %v10542 = vunpack.c.l.b16 %v9949
        %v10543 = vunpack.c.h.b16 %v9949
        %v10544 = vunpack.c.l.b16 %v9950
        %v10545 = vunpack.c.h.b16 %v9950
        %v10546 = vunpack.c.l.b16 %v9951
        %v10547 = vunpack.c.h.b16 %v9951
        %v10548 = vunpack.c.l.b16 %v9952
        %v10549 = vunpack.c.h.b16 %v9952
        %v10550 = vunpack.c.l.b16 %v9953
        %v10551 = vunpack.c.h.b16 %v9953
        %v10552 = vunpack.c.l.b16 %v9954
        %v10553 = vunpack.c.h.b16 %v9954
        %v10554 = vunpack.c.l.b16 %v9955
        %v10555 = vunpack.c.h.b16 %v9955
        %v10556 = vunpack.c.l.b16 %v9956
        %v10557 = vunpack.c.h.b16 %v9956
        %v10558 = vunpack.c.l.b16 %v9957
        %v10559 = vunpack.c.h.b16 %v9957
        %v10560 = vunpack.c.l.b16 %v9958
        %v10561 = vunpack.c.h.b16 %v9958
        %v10562 = vunpack.c.l.b16 %v9959
        %v10563 = vunpack.c.h.b16 %v9959
        %v10564 = vunpack.c.l.b16 %v9960
        %v10565 = vunpack.c.h.b16 %v9960
        %v10566 = vunpack.c.l.b16 %v9961
        %v10567 = vunpack.c.h.b16 %v9961
        %v10568 = vunpack.c.l.b16 %v9962
        %v10569 = vunpack.c.h.b16 %v9962
        %v10570 = vunpack.c.l.b16 %v9963
        %v10571 = vunpack.c.h.b16 %v9963
        %v10572 = vunpack.c.l.b16 %v9964
        %v10573 = vunpack.c.h.b16 %v9964
        %v10574 = vunpack.c.l.b16 %v9965
        %v10575 = vunpack.c.h.b16 %v9965
        %v10576 = vunpack.c.l.b16 %v9966
        %v10577 = vunpack.c.h.b16 %v9966
        %v10578 = vunpack.c.l.b16 %v9967
        %v10579 = vunpack.c.h.b16 %v9967
        %v10580 = vunpack.c.l.b16 %v9968
        %v10581 = vunpack.c.h.b16 %v9968
        %v10582 = vunpack.c.l.b16 %v9969
        %v10583 = vunpack.c.h.b16 %v9969
        %v10584 = vunpack.c.l.b16 %v9970
        %v10585 = vunpack.c.h.b16 %v9970
        %v10586 = vunpack.c.l.b16 %v9971
        %v10587 = vunpack.c.h.b16 %v9971
        %v10588 = vunpack.c.l.b16 %v9972
        %v10589 = vunpack.c.h.b16 %v9972
        %v10590 = vunpack.c.l.b16 %v9973
        %v10591 = vunpack.c.h.b16 %v9973
        %v10592 = vunpack.c.l.b16 %v9974
        %v10593 = vunpack.c.h.b16 %v9974
        %v10594 = vunpack.c.l.b16 %v9975
        %v10595 = vunpack.c.h.b16 %v9975
        %v10596 = vunpack.c.l.b16 %v9976
        %v10597 = vunpack.c.h.b16 %v9976
        %v10598 = vunpack.c.l.b16 %v9977
        %v10599 = vunpack.c.h.b16 %v9977
        %v10600 = vunpack.c.l.b16 %v9978
        %v10601 = vunpack.c.h.b16 %v9978
        %v10602 = vunpack.c.l.b16 %v9979
        %v10603 = vunpack.c.h.b16 %v9979
        %v10604 = vunpack.c.l.b16 %v9980
        %v10605 = vunpack.c.h.b16 %v9980
        %v10606 = vunpack.c.l.b16 %v9981
        %v10607 = vunpack.c.h.b16 %v9981
        %v10608 = vunpack.c.l.b16 %v9982
        %v10609 = vunpack.c.h.b16 %v9982
        %v10610 = vunpack.c.l.b16 %v9983
        %v10611 = vunpack.c.h.b16 %v9983
        %v10612 = vunpack.c.l.b16 %v9984
        %v10613 = vunpack.c.h.b16 %v9984
        %v10614 = vunpack.c.l.b16 %v9985
        %v10615 = vunpack.c.h.b16 %v9985
        %v10616 = vunpack.c.l.b16 %v9986
        %v10617 = vunpack.c.h.b16 %v9986
        %v10618 = vunpack.c.l.b16 %v9987
        %v10619 = vunpack.c.h.b16 %v9987
        %v10620 = vunpack.c.l.b16 %v9988
        %v10621 = vunpack.c.h.b16 %v9988
        %v10622 = vunpack.c.l.b16 %v9989
        %v10623 = vunpack.c.h.b16 %v9989
        %v10624 = vunpack.c.l.b16 %v9990
        %v10625 = vunpack.c.h.b16 %v9990
        %v10626 = vunpack.c.l.b16 %v9991
        %v10627 = vunpack.c.h.b16 %v9991
        %v10628 = vunpack.c.l.b16 %v9992
        %v10629 = vunpack.c.h.b16 %v9992
        %v10630 = vunpack.c.l.b16 %v9993
        %v10631 = vunpack.c.h.b16 %v9993
        %v10632 = vunpack.c.l.b16 %v9994
        %v10633 = vunpack.c.h.b16 %v9994
        %v10634 = vunpack.c.l.b16 %v9995
        %v10635 = vunpack.c.h.b16 %v9995
        %v10636 = vunpack.c.l.b16 %v9996
        %v10637 = vunpack.c.h.b16 %v9996
        %v10638 = vunpack.c.l.b16 %v9997
        %v10639 = vunpack.c.h.b16 %v9997
        %v10640 = vunpack.c.l.b16 %v9998
        %v10641 = vunpack.c.h.b16 %v9998
        %v10642 = vunpack.c.l.b16 %v9999
        %v10643 = vunpack.c.h.b16 %v9999
        %v10644 = vunpack.c.l.b16 %v10000
        %v10645 = vunpack.c.h.b16 %v10000
        %v10646 = vunpack.c.l.b16 %v10001
        %v10647 = vunpack.c.h.b16 %v10001
        %v10648 = vunpack.c.l.b16 %v10002
        %v10649 = vunpack.c.h.b16 %v10002
        %v10650 = vunpack.c.l.b16 %v10003
        %v10651 = vunpack.c.h.b16 %v10003
        %v10652 = vunpack.c.l.b16 %v10004
        %v10653 = vunpack.c.h.b16 %v10004
        %v10654 = vunpack.c.l.b16 %v10005
        %v10655 = vunpack.c.h.b16 %v10005
        %v10656 = vunpack.c.l.b16 %v10006
        %v10657 = vunpack.c.h.b16 %v10006
        %v10658 = vunpack.c.l.b16 %v10007
        %v10659 = vunpack.c.h.b16 %v10007
        %v10660 = vunpack.c.l.b16 %v10008
        %v10661 = vunpack.c.h.b16 %v10008
        %v10662 = vunpack.c.l.b16 %v10009
        %v10663 = vunpack.c.h.b16 %v10009
        %v10664 = vunpack.c.l.b16 %v10010
        %v10665 = vunpack.c.h.b16 %v10010
        %v10666 = vunpack.c.l.b16 %v10011
        %v10667 = vunpack.c.h.b16 %v10011
        %v10668 = vunpack.c.l.b16 %v10012
        %v10669 = vunpack.c.h.b16 %v10012
        %v10670 = vunpack.c.l.b16 %v10013
        %v10671 = vunpack.c.h.b16 %v10013
        %v10672 = vunpack.c.l.b16 %v10014
        %v10673 = vunpack.c.h.b16 %v10014
        %v10674 = vunpack.c.l.b16 %v10015
        %v10675 = vunpack.c.h.b16 %v10015
        %v10676 = vunpack.c.l.b16 %v10016
        %v10677 = vunpack.c.h.b16 %v10016
        %v10678 = vunpack.c.l.b16 %v10017
        %v10679 = vunpack.c.h.b16 %v10017
        %v10680 = vunpack.c.l.b16 %v10018
        %v10681 = vunpack.c.h.b16 %v10018
        %v10682 = vunpack.c.l.b16 %v10019
        %v10683 = vunpack.c.h.b16 %v10019
        %v10684 = vunpack.c.l.b16 %v10020
        %v10685 = vunpack.c.h.b16 %v10020
        %v10686 = vunpack.c.l.b16 %v10021
        %v10687 = vunpack.c.h.b16 %v10021
        %v10688 = vunpack.c.l.b16 %v10022
        %v10689 = vunpack.c.h.b16 %v10022
        %v10690 = vunpack.c.l.b16 %v10023
        %v10691 = vunpack.c.h.b16 %v10023
        %v10692 = vunpack.c.l.b16 %v10024
        %v10693 = vunpack.c.h.b16 %v10024
        %v10694 = vunpack.c.l.b16 %v10025
        %v10695 = vunpack.c.h.b16 %v10025
        %v10696 = vunpack.c.l.b16 %v10026
        %v10697 = vunpack.c.h.b16 %v10026
        %v10698 = vunpack.c.l.b16 %v10027
        %v10699 = vunpack.c.h.b16 %v10027
        %v10700 = vunpack.c.l.b16 %v10028
        %v10701 = vunpack.c.h.b16 %v10028
        %v10702 = vunpack.c.l.b16 %v10029
        %v10703 = vunpack.c.h.b16 %v10029
        %v10704 = vunpack.c.l.b16 %v10030
        %v10705 = vunpack.c.h.b16 %v10030
        %v10706 = vunpack.c.l.b16 %v10031
        %v10707 = vunpack.c.h.b16 %v10031
        %v10708 = vunpack.c.l.b16 %v10032
        %v10709 = vunpack.c.h.b16 %v10032
        %v10710 = vunpack.c.l.b16 %v10033
        %v10711 = vunpack.c.h.b16 %v10033
        %v10712 = vunpack.c.l.b16 %v10034
        %v10713 = vunpack.c.h.b16 %v10034
        %v10714 = vunpack.c.l.b16 %v10035
        %v10715 = vunpack.c.h.b16 %v10035
        %v10716 = vunpack.c.l.b16 %v10036
        %v10717 = vunpack.c.h.b16 %v10036
        %v10718 = vunpack.c.l.b16 %v10037
        %v10719 = vunpack.c.h.b16 %v10037
        %v10720 = vunpack.c.l.b16 %v10038
        %v10721 = vunpack.c.h.b16 %v10038
        %v10722 = vunpack.c.l.b16 %v10039
        %v10723 = vunpack.c.h.b16 %v10039
        %v10724 = vunpack.c.l.b16 %v10040
        %v10725 = vunpack.c.h.b16 %v10040
        %v10726 = vunpack.c.l.b16 %v10041
        %v10727 = vunpack.c.h.b16 %v10041
        %v10728 = vunpack.c.l.b16 %v10042
        %v10729 = vunpack.c.h.b16 %v10042
        %v10730 = vunpack.c.l.b16 %v10043
        %v10731 = vunpack.c.h.b16 %v10043
        %v10732 = vunpack.c.l.b16 %v10044
        %v10733 = vunpack.c.h.b16 %v10044
        %v10734 = vunpack.c.l.b16 %v10045
        %v10735 = vunpack.c.h.b16 %v10045
        %v10736 = vunpack.c.l.b16 %v10046
        %v10737 = vunpack.c.h.b16 %v10046
        %v10738 = vunpack.c.l.b16 %v10047
        %v10739 = vunpack.c.h.b16 %v10047
        %v10740 = vunpack.c.l.b16 %v10048
        %v10741 = vunpack.c.h.b16 %v10048
        %v10742 = vunpack.c.l.b16 %v10049
        %v10743 = vunpack.c.h.b16 %v10049
        %v10744 = vunpack.c.l.b16 %v10050
        %v10745 = vunpack.c.h.b16 %v10050
        %v10746 = vunpack.c.l.b16 %v10051
        %v10747 = vunpack.c.h.b16 %v10051
        %v10748 = vunpack.c.l.b16 %v10052
        %v10749 = vunpack.c.h.b16 %v10052
        %v10750 = vunpack.c.l.b16 %v10053
        %v10751 = vunpack.c.h.b16 %v10053
        %v10752 = vunpack.c.l.b16 %v10054
        %v10753 = vunpack.c.h.b16 %v10054
        %v10754 = vunpack.c.l.b16 %v10055
        %v10755 = vunpack.c.h.b16 %v10055
        %v10756 = vunpack.c.l.b16 %v10056
        %v10757 = vunpack.c.h.b16 %v10056
        %v10758 = vunpack.c.l.b16 %v10057
        %v10759 = vunpack.c.h.b16 %v10057
        %v10760 = vunpack.c.l.b16 %v10058
        %v10761 = vunpack.c.h.b16 %v10058
        %v10762 = vunpack.c.l.b16 %v10059
        %v10763 = vunpack.c.h.b16 %v10059
        %v10764 = vunpack.c.l.b16 %v10060
        %v10765 = vunpack.c.h.b16 %v10060
        %v10766 = vunpack.c.l.b16 %v10061
        %v10767 = vunpack.c.h.b16 %v10061
        %v10768 = vunpack.c.l.b16 %v10062
        %v10769 = vunpack.c.h.b16 %v10062
        %v10770 = vunpack.c.l.b16 %v10063
        %v10771 = vunpack.c.h.b16 %v10063
        %v10772 = vunpack.c.l.b16 %v10064
        %v10773 = vunpack.c.h.b16 %v10064
        %v10774 = vunpack.c.l.b16 %v10065
        %v10775 = vunpack.c.h.b16 %v10065
        %v10776 = vunpack.c.l.b16 %v10066
        %v10777 = vunpack.c.h.b16 %v10066
        %v10778 = vunpack.c.l.b16 %v10067
        %v10779 = vunpack.c.h.b16 %v10067
        %v10780 = vunpack.c.l.b16 %v10068
        %v10781 = vunpack.c.h.b16 %v10068
        %v10782 = vunpack.c.l.b16 %v10069
        %v10783 = vunpack.c.h.b16 %v10069
        %v10784 = vunpack.c.l.b16 %v10070
        %v10785 = vunpack.c.h.b16 %v10070
        %v10786 = vunpack.c.l.b16 %v10071
        %v10787 = vunpack.c.h.b16 %v10071
        %v10788 = vunpack.c.l.b16 %v10072
        %v10789 = vunpack.c.h.b16 %v10072
        %v10790 = vunpack.c.l.b16 %v10073
        %v10791 = vunpack.c.h.b16 %v10073
        %v10792 = vunpack.c.l.b16 %v10074
        %v10793 = vunpack.c.h.b16 %v10074
        %v10794 = vunpack.c.l.b16 %v10075
        %v10795 = vunpack.c.h.b16 %v10075
        %v10796 = vunpack.c.l.b16 %v10076
        %v10797 = vunpack.c.h.b16 %v10076
        %v10798 = vunpack.c.l.b16 %v10077
        %v10799 = vunpack.c.h.b16 %v10077
        %v10800 = vunpack.c.l.b16 %v10078
        %v10801 = vunpack.c.h.b16 %v10078
        %v10802 = vunpack.c.l.b16 %v10079
        %v10803 = vunpack.c.h.b16 %v10079
        %v10804 = vunpack.c.l.b16 %v10080
        %v10805 = vunpack.c.h.b16 %v10080
        %v10806 = vunpack.c.l.b16 %v10081
        %v10807 = vunpack.c.h.b16 %v10081
        %v10808 = vunpack.c.l.b16 %v10082
        %v10809 = vunpack.c.h.b16 %v10082
        %v10810 = vunpack.c.l.b16 %v10083
        %v10811 = vunpack.c.h.b16 %v10083
        %v10812 = vunpack.c.l.b16 %v10084
        %v10813 = vunpack.c.h.b16 %v10084
        %v10814 = vunpack.c.l.b16 %v10085
        %v10815 = vunpack.c.h.b16 %v10085
        %v10816 = vunpack.c.l.b16 %v10086
        %v10817 = vunpack.c.h.b16 %v10086
        %v10818 = vunpack.c.l.b16 %v10087
        %v10819 = vunpack.c.h.b16 %v10087
        %v10820 = vunpack.c.l.b16 %v10088
        %v10821 = vunpack.c.h.b16 %v10088
        %v10822 = vunpack.c.l.b16 %v10089
        %v10823 = vunpack.c.h.b16 %v10089
        %v10824 = vunpack.c.l.b16 %v10090
        %v10825 = vunpack.c.h.b16 %v10090
        %v10826 = vunpack.c.l.b16 %v10091
        %v10827 = vunpack.c.h.b16 %v10091
        %v10828 = vunpack.c.l.b16 %v10092
        %v10829 = vunpack.c.h.b16 %v10092
        %v10830 = vunpack.c.l.b16 %v10093
        %v10831 = vunpack.c.h.b16 %v10093
        %v10832 = vunpack.c.l.b16 %v10094
        %v10833 = vunpack.c.h.b16 %v10094
        %v10834 = vunpack.c.l.b16 %v10095
        %v10835 = vunpack.c.h.b16 %v10095
        %v10836 = vunpack.c.l.b16 %v10096
        %v10837 = vunpack.c.h.b16 %v10096
        %v10838 = vunpack.c.l.b16 %v10097
        %v10839 = vunpack.c.h.b16 %v10097
        %v10840 = vunpack.c.l.b16 %v10098
        %v10841 = vunpack.c.h.b16 %v10098
        %v10842 = vunpack.c.l.b16 %v10099
        %v10843 = vunpack.c.h.b16 %v10099
        %v10844 = vunpack.c.l.b16 %v10100
        %v10845 = vunpack.c.h.b16 %v10100
        %v10846 = vunpack.c.l.b16 %v10101
        %v10847 = vunpack.c.h.b16 %v10101
        %v10848 = vunpack.c.l.b16 %v10102
        %v10849 = vunpack.c.h.b16 %v10102
        %v10850 = vunpack.c.l.b16 %v10103
        %v10851 = vunpack.c.h.b16 %v10103
        %v10852 = vunpack.c.l.b16 %v10104
        %v10853 = vunpack.c.h.b16 %v10104
        %v10854 = vunpack.c.l.b16 %v10105
        %v10855 = vunpack.c.h.b16 %v10105
        %v10856 = vunpack.c.l.b16 %v10106
        %v10857 = vunpack.c.h.b16 %v10106
        %v10858 = vunpack.c.l.b16 %v10107
        %v10859 = vunpack.c.h.b16 %v10107
        %v10860 = vunpack.c.l.b16 %v10108
        %v10861 = vunpack.c.h.b16 %v10108
        %v10862 = vunpack.c.l.b16 %v10109
        %v10863 = vunpack.c.h.b16 %v10109
        %v10864 = vunpack.c.l.b16 %v10110
        %v10865 = vunpack.c.h.b16 %v10110
        %v10866 = vunpack.c.l.b16 %v10111
        %v10867 = vunpack.c.h.b16 %v10111
        %v10868 = vunpack.c.l.b16 %v10112
        %v10869 = vunpack.c.h.b16 %v10112
        %v10870 = vunpack.c.l.b16 %v10113
        %v10871 = vunpack.c.h.b16 %v10113
        %v10872 = vunpack.c.l.b16 %v10114
        %v10873 = vunpack.c.h.b16 %v10114
        %v10874 = vunpack.c.l.b16 %v10115
        %v10875 = vunpack.c.h.b16 %v10115
        %v10876 = vunpack.c.l.b16 %v10116
        %v10877 = vunpack.c.h.b16 %v10116
        %v10878 = vunpack.c.l.b16 %v10117
        %v10879 = vunpack.c.h.b16 %v10117
        %v10880 = vunpack.c.l.b16 %v10118
        %v10881 = vunpack.c.h.b16 %v10118
        %v10882 = vunpack.c.l.b16 %v10119
        %v10883 = vunpack.c.h.b16 %v10119
        %v10884 = vunpack.c.l.b16 %v10120
        %v10885 = vunpack.c.h.b16 %v10120
        %v10886 = vunpack.c.l.b16 %v10121
        %v10887 = vunpack.c.h.b16 %v10121
        %v10888 = vunpack.c.l.b16 %v10122
        %v10889 = vunpack.c.h.b16 %v10122
        %v10890 = vunpack.c.l.b16 %v10123
        %v10891 = vunpack.c.h.b16 %v10123
        %v10892 = vunpack.c.l.b16 %v10124
        %v10893 = vunpack.c.h.b16 %v10124
        %v10894 = vunpack.c.l.b16 %v10125
        %v10895 = vunpack.c.h.b16 %v10125
        %v10896 = vunpack.c.l.b16 %v10126
        %v10897 = vunpack.c.h.b16 %v10126
        %v10898 = vunpack.c.l.b16 %v10127
        %v10899 = vunpack.c.h.b16 %v10127
        %v10900 = vunpack.c.l.b16 %v10128
        %v10901 = vunpack.c.h.b16 %v10128
        %v10902 = vunpack.c.l.b16 %v10129
        %v10903 = vunpack.c.h.b16 %v10129
        %v10904 = vunpack.c.l.b16 %v10130
        %v10905 = vunpack.c.h.b16 %v10130
        %v10906 = vunpack.c.l.b16 %v10131
        %v10907 = vunpack.c.h.b16 %v10131
        %v10908 = vunpack.c.l.b16 %v10132
        %v10909 = vunpack.c.h.b16 %v10132
        %v10910 = vunpack.c.l.b16 %v10133
        %v10911 = vunpack.c.h.b16 %v10133
        %v10912 = vunpack.c.l.b16 %v10134
        %v10913 = vunpack.c.h.b16 %v10134
        %v10914 = vunpack.c.l.b16 %v10135
        %v10915 = vunpack.c.h.b16 %v10135
        %v10916 = vpack.c.b16 %v10406, %v10404
        %v10917 = vpack.c.b16 %v10407, %v10405
        %v10918 = vpack.c.b16 %v10410, %v10408
        %v10919 = vpack.c.b16 %v10411, %v10409
        %v10920 = vpack.c.b16 %v10414, %v10412
        %v10921 = vpack.c.b16 %v10415, %v10413
        %v10922 = vpack.c.b16 %v10418, %v10416
        %v10923 = vpack.c.b16 %v10419, %v10417
        %v10924 = vpack.c.b16 %v10422, %v10420
        %v10925 = vpack.c.b16 %v10423, %v10421
        %v10926 = vpack.c.b16 %v10426, %v10424
        %v10927 = vpack.c.b16 %v10427, %v10425
        %v10928 = vpack.c.b16 %v10430, %v10428
        %v10929 = vpack.c.b16 %v10431, %v10429
        %v10930 = vpack.c.b16 %v10434, %v10432
        %v10931 = vpack.c.b16 %v10435, %v10433
        %v10932 = vpack.c.b16 %v10438, %v10436
        %v10933 = vpack.c.b16 %v10439, %v10437
        %v10934 = vpack.c.b16 %v10442, %v10440
        %v10935 = vpack.c.b16 %v10443, %v10441
        %v10936 = vpack.c.b16 %v10446, %v10444
        %v10937 = vpack.c.b16 %v10447, %v10445
        %v10938 = vpack.c.b16 %v10450, %v10448
        %v10939 = vpack.c.b16 %v10451, %v10449
        %v10940 = vpack.c.b16 %v10454, %v10452
        %v10941 = vpack.c.b16 %v10455, %v10453
        %v10942 = vpack.c.b16 %v10458, %v10456
        %v10943 = vpack.c.b16 %v10459, %v10457
        %v10944 = vpack.c.b16 %v10462, %v10460
        %v10945 = vpack.c.b16 %v10463, %v10461
        %v10946 = vpack.c.b16 %v10466, %v10464
        %v10947 = vpack.c.b16 %v10467, %v10465
        %v10948 = vpack.c.b16 %v10470, %v10468
        %v10949 = vpack.c.b16 %v10471, %v10469
        %v10950 = vpack.c.b16 %v10474, %v10472
        %v10951 = vpack.c.b16 %v10475, %v10473
        %v10952 = vpack.c.b16 %v10478, %v10476
        %v10953 = vpack.c.b16 %v10479, %v10477
        %v10954 = vpack.c.b16 %v10482, %v10480
        %v10955 = vpack.c.b16 %v10483, %v10481
        %v10956 = vpack.c.b16 %v10486, %v10484
        %v10957 = vpack.c.b16 %v10487, %v10485
        %v10958 = vpack.c.b16 %v10490, %v10488
        %v10959 = vpack.c.b16 %v10491, %v10489
        %v10960 = vpack.c.b16 %v10494, %v10492
        %v10961 = vpack.c.b16 %v10495, %v10493
        %v10962 = vpack.c.b16 %v10498, %v10496
        %v10963 = vpack.c.b16 %v10499, %v10497
        %v10964 = vpack.c.b16 %v10502, %v10500
        %v10965 = vpack.c.b16 %v10503, %v10501
        %v10966 = vpack.c.b16 %v10506, %v10504
        %v10967 = vpack.c.b16 %v10507, %v10505
        %v10968 = vpack.c.b16 %v10510, %v10508
        %v10969 = vpack.c.b16 %v10511, %v10509
        %v10970 = vpack.c.b16 %v10514, %v10512
        %v10971 = vpack.c.b16 %v10515, %v10513
        %v10972 = vpack.c.b16 %v10518, %v10516
        %v10973 = vpack.c.b16 %v10519, %v10517
        %v10974 = vpack.c.b16 %v10522, %v10520
        %v10975 = vpack.c.b16 %v10523, %v10521
        %v10976 = vpack.c.b16 %v10526, %v10524
        %v10977 = vpack.c.b16 %v10527, %v10525
        %v10978 = vpack.c.b16 %v10530, %v10528
        %v10979 = vpack.c.b16 %v10531, %v10529
        %v10980 = vpack.c.b16 %v10534, %v10532
        %v10981 = vpack.c.b16 %v10535, %v10533
        %v10982 = vpack.c.b16 %v10538, %v10536
        %v10983 = vpack.c.b16 %v10539, %v10537
        %v10984 = vpack.c.b16 %v10542, %v10540
        %v10985 = vpack.c.b16 %v10543, %v10541
        %v10986 = vpack.c.b16 %v10546, %v10544
        %v10987 = vpack.c.b16 %v10547, %v10545
        %v10988 = vpack.c.b16 %v10550, %v10548
        %v10989 = vpack.c.b16 %v10551, %v10549
        %v10990 = vpack.c.b16 %v10554, %v10552
        %v10991 = vpack.c.b16 %v10555, %v10553
        %v10992 = vpack.c.b16 %v10558, %v10556
        %v10993 = vpack.c.b16 %v10559, %v10557
        %v10994 = vpack.c.b16 %v10562, %v10560
        %v10995 = vpack.c.b16 %v10563, %v10561
        %v10996 = vpack.c.b16 %v10566, %v10564
        %v10997 = vpack.c.b16 %v10567, %v10565
        %v10998 = vpack.c.b16 %v10570, %v10568
        %v10999 = vpack.c.b16 %v10571, %v10569
        %v11000 = vpack.c.b16 %v10574, %v10572
        %v11001 = vpack.c.b16 %v10575, %v10573
        %v11002 = vpack.c.b16 %v10578, %v10576
        %v11003 = vpack.c.b16 %v10579, %v10577
        %v11004 = vpack.c.b16 %v10582, %v10580
        %v11005 = vpack.c.b16 %v10583, %v10581
        %v11006 = vpack.c.b16 %v10586, %v10584
        %v11007 = vpack.c.b16 %v10587, %v10585
        %v11008 = vpack.c.b16 %v10590, %v10588
        %v11009 = vpack.c.b16 %v10591, %v10589
        %v11010 = vpack.c.b16 %v10594, %v10592
        %v11011 = vpack.c.b16 %v10595, %v10593
        %v11012 = vpack.c.b16 %v10598, %v10596
        %v11013 = vpack.c.b16 %v10599, %v10597
        %v11014 = vpack.c.b16 %v10602, %v10600
        %v11015 = vpack.c.b16 %v10603, %v10601
        %v11016 = vpack.c.b16 %v10606, %v10604
        %v11017 = vpack.c.b16 %v10607, %v10605
        %v11018 = vpack.c.b16 %v10610, %v10608
        %v11019 = vpack.c.b16 %v10611, %v10609
        %v11020 = vpack.c.b16 %v10614, %v10612
        %v11021 = vpack.c.b16 %v10615, %v10613
        %v11022 = vpack.c.b16 %v10618, %v10616
        %v11023 = vpack.c.b16 %v10619, %v10617
        %v11024 = vpack.c.b16 %v10622, %v10620
        %v11025 = vpack.c.b16 %v10623, %v10621
        %v11026 = vpack.c.b16 %v10626, %v10624
        %v11027 = vpack.c.b16 %v10627, %v10625
        %v11028 = vpack.c.b16 %v10630, %v10628
        %v11029 = vpack.c.b16 %v10631, %v10629
        %v11030 = vpack.c.b16 %v10634, %v10632
        %v11031 = vpack.c.b16 %v10635, %v10633
        %v11032 = vpack.c.b16 %v10638, %v10636
        %v11033 = vpack.c.b16 %v10639, %v10637
        %v11034 = vpack.c.b16 %v10642, %v10640
        %v11035 = vpack.c.b16 %v10643, %v10641
        %v11036 = vpack.c.b16 %v10646, %v10644
        %v11037 = vpack.c.b16 %v10647, %v10645
        %v11038 = vpack.c.b16 %v10650, %v10648
        %v11039 = vpack.c.b16 %v10651, %v10649
        %v11040 = vpack.c.b16 %v10654, %v10652
        %v11041 = vpack.c.b16 %v10655, %v10653
        %v11042 = vpack.c.b16 %v10658, %v10656
        %v11043 = vpack.c.b16 %v10659, %v10657
        %v11044 = vpack.c.b16 %v10662, %v10660
        %v11045 = vpack.c.b16 %v10663, %v10661
        %v11046 = vpack.c.b16 %v10666, %v10664
        %v11047 = vpack.c.b16 %v10667, %v10665
        %v11048 = vpack.c.b16 %v10670, %v10668
        %v11049 = vpack.c.b16 %v10671, %v10669
        %v11050 = vpack.c.b16 %v10674, %v10672
        %v11051 = vpack.c.b16 %v10675, %v10673
        %v11052 = vpack.c.b16 %v10678, %v10676
        %v11053 = vpack.c.b16 %v10679, %v10677
        %v11054 = vpack.c.b16 %v10682, %v10680
        %v11055 = vpack.c.b16 %v10683, %v10681
        %v11056 = vpack.c.b16 %v10686, %v10684
        %v11057 = vpack.c.b16 %v10687, %v10685
        %v11058 = vpack.c.b16 %v10690, %v10688
        %v11059 = vpack.c.b16 %v10691, %v10689
        %v11060 = vpack.c.b16 %v10694, %v10692
        %v11061 = vpack.c.b16 %v10695, %v10693
        %v11062 = vpack.c.b16 %v10698, %v10696
        %v11063 = vpack.c.b16 %v10699, %v10697
        %v11064 = vpack.c.b16 %v10702, %v10700
        %v11065 = vpack.c.b16 %v10703, %v10701
        %v11066 = vpack.c.b16 %v10706, %v10704
        %v11067 = vpack.c.b16 %v10707, %v10705
        %v11068 = vpack.c.b16 %v10710, %v10708
        %v11069 = vpack.c.b16 %v10711, %v10709
        %v11070 = vpack.c.b16 %v10714, %v10712
        %v11071 = vpack.c.b16 %v10715, %v10713
        %v11072 = vpack.c.b16 %v10718, %v10716
        %v11073 = vpack.c.b16 %v10719, %v10717
        %v11074 = vpack.c.b16 %v10722, %v10720
        %v11075 = vpack.c.b16 %v10723, %v10721
        %v11076 = vpack.c.b16 %v10726, %v10724
        %v11077 = vpack.c.b16 %v10727, %v10725
        %v11078 = vpack.c.b16 %v10730, %v10728
        %v11079 = vpack.c.b16 %v10731, %v10729
        %v11080 = vpack.c.b16 %v10734, %v10732
        %v11081 = vpack.c.b16 %v10735, %v10733
        %v11082 = vpack.c.b16 %v10738, %v10736
        %v11083 = vpack.c.b16 %v10739, %v10737
        %v11084 = vpack.c.b16 %v10742, %v10740
        %v11085 = vpack.c.b16 %v10743, %v10741
        %v11086 = vpack.c.b16 %v10746, %v10744
        %v11087 = vpack.c.b16 %v10747, %v10745
        %v11088 = vpack.c.b16 %v10750, %v10748
        %v11089 = vpack.c.b16 %v10751, %v10749
        %v11090 = vpack.c.b16 %v10754, %v10752
        %v11091 = vpack.c.b16 %v10755, %v10753
        %v11092 = vpack.c.b16 %v10758, %v10756
        %v11093 = vpack.c.b16 %v10759, %v10757
        %v11094 = vpack.c.b16 %v10762, %v10760
        %v11095 = vpack.c.b16 %v10763, %v10761
        %v11096 = vpack.c.b16 %v10766, %v10764
        %v11097 = vpack.c.b16 %v10767, %v10765
        %v11098 = vpack.c.b16 %v10770, %v10768
        %v11099 = vpack.c.b16 %v10771, %v10769
        %v11100 = vpack.c.b16 %v10774, %v10772
        %v11101 = vpack.c.b16 %v10775, %v10773
        %v11102 = vpack.c.b16 %v10778, %v10776
        %v11103 = vpack.c.b16 %v10779, %v10777
        %v11104 = vpack.c.b16 %v10782, %v10780
        %v11105 = vpack.c.b16 %v10783, %v10781
        %v11106 = vpack.c.b16 %v10786, %v10784
        %v11107 = vpack.c.b16 %v10787, %v10785
        %v11108 = vpack.c.b16 %v10790, %v10788
        %v11109 = vpack.c.b16 %v10791, %v10789
        %v11110 = vpack.c.b16 %v10794, %v10792
        %v11111 = vpack.c.b16 %v10795, %v10793
        %v11112 = vpack.c.b16 %v10798, %v10796
        %v11113 = vpack.c.b16 %v10799, %v10797
        %v11114 = vpack.c.b16 %v10802, %v10800
        %v11115 = vpack.c.b16 %v10803, %v10801
        %v11116 = vpack.c.b16 %v10806, %v10804
        %v11117 = vpack.c.b16 %v10807, %v10805
        %v11118 = vpack.c.b16 %v10810, %v10808
        %v11119 = vpack.c.b16 %v10811, %v10809
        %v11120 = vpack.c.b16 %v10814, %v10812
        %v11121 = vpack.c.b16 %v10815, %v10813
        %v11122 = vpack.c.b16 %v10818, %v10816
        %v11123 = vpack.c.b16 %v10819, %v10817
        %v11124 = vpack.c.b16 %v10822, %v10820
        %v11125 = vpack.c.b16 %v10823, %v10821
        %v11126 = vpack.c.b16 %v10826, %v10824
        %v11127 = vpack.c.b16 %v10827, %v10825
        %v11128 = vpack.c.b16 %v10830, %v10828
        %v11129 = vpack.c.b16 %v10831, %v10829
        %v11130 = vpack.c.b16 %v10834, %v10832
        %v11131 = vpack.c.b16 %v10835, %v10833
        %v11132 = vpack.c.b16 %v10838, %v10836
        %v11133 = vpack.c.b16 %v10839, %v10837
        %v11134 = vpack.c.b16 %v10842, %v10840
        %v11135 = vpack.c.b16 %v10843, %v10841
        %v11136 = vpack.c.b16 %v10846, %v10844
        %v11137 = vpack.c.b16 %v10847, %v10845
        %v11138 = vpack.c.b16 %v10850, %v10848
        %v11139 = vpack.c.b16 %v10851, %v10849
        %v11140 = vpack.c.b16 %v10854, %v10852
        %v11141 = vpack.c.b16 %v10855, %v10853
        %v11142 = vpack.c.b16 %v10858, %v10856
        %v11143 = vpack.c.b16 %v10859, %v10857
        %v11144 = vpack.c.b16 %v10862, %v10860
        %v11145 = vpack.c.b16 %v10863, %v10861
        %v11146 = vpack.c.b16 %v10866, %v10864
        %v11147 = vpack.c.b16 %v10867, %v10865
        %v11148 = vpack.c.b16 %v10870, %v10868
        %v11149 = vpack.c.b16 %v10871, %v10869
        %v11150 = vpack.c.b16 %v10874, %v10872
        %v11151 = vpack.c.b16 %v10875, %v10873
        %v11152 = vpack.c.b16 %v10878, %v10876
        %v11153 = vpack.c.b16 %v10879, %v10877
        %v11154 = vpack.c.b16 %v10882, %v10880
        %v11155 = vpack.c.b16 %v10883, %v10881
        %v11156 = vpack.c.b16 %v10886, %v10884
        %v11157 = vpack.c.b16 %v10887, %v10885
        %v11158 = vpack.c.b16 %v10890, %v10888
        %v11159 = vpack.c.b16 %v10891, %v10889
        %v11160 = vpack.c.b16 %v10894, %v10892
        %v11161 = vpack.c.b16 %v10895, %v10893
        %v11162 = vpack.c.b16 %v10898, %v10896
        %v11163 = vpack.c.b16 %v10899, %v10897
        %v11164 = vpack.c.b16 %v10902, %v10900
        %v11165 = vpack.c.b16 %v10903, %v10901
        %v11166 = vpack.c.b16 %v10906, %v10904
        %v11167 = vpack.c.b16 %v10907, %v10905
        %v11168 = vpack.c.b16 %v10910, %v10908
        %v11169 = vpack.c.b16 %v10911, %v10909
        %v11170 = vpack.c.b16 %v10914, %v10912
        %v11171 = vpack.c.b16 %v10915, %v10913
        %11428 = vmatprep.subr.bf16.mxu0 %v10931
        %11429 = vmatpush1.bf16.msra.mxu0 %v10930
        %11430 = vmatprep.subr.bf16.mxu0 %v10929
        %11431 = vmatpush1.bf16.msra.mxu0 %v10928
        %11432 = vmatprep.subr.bf16.mxu0 %v10927
        %11433 = vmatpush1.bf16.msra.mxu0 %v10926
        %11434 = vmatprep.subr.bf16.mxu0 %v10925
        %11435 = vmatpush1.bf16.msra.mxu0 %v10924
        %11436 = vmatprep.subr.bf16.mxu0 %v10923
        %11437 = vmatpush1.bf16.msra.mxu0 %v10922
        %11438 = vmatprep.subr.bf16.mxu0 %v10921
        %11439 = vmatpush1.bf16.msra.mxu0 %v10920
        %11440 = vmatprep.subr.bf16.mxu0 %v10919
        %11441 = vmatpush1.bf16.msra.mxu0 %v10918
        %11442 = vmatprep.subr.bf16.mxu0 %v10917
        %11443 = vmatpush1.bf16.msra.mxu0 %v10916
        %11444 = vmatprep.subr.bf16.mxu0 %v10947
        %11445 = vmatpush2.bf16.msra.mxu0 %v10946
        %11446 = vmatprep.subr.bf16.mxu0 %v10945
        %11447 = vmatpush2.bf16.msra.mxu0 %v10944
        %11448 = vmatprep.subr.bf16.mxu0 %v10943
        %11449 = vmatpush2.bf16.msra.mxu0 %v10942
        %11450 = vmatprep.subr.bf16.mxu0 %v10941
        %11451 = vmatpush2.bf16.msra.mxu0 %v10940
        %11452 = vmatprep.subr.bf16.mxu0 %v10939
        %11453 = vmatpush2.bf16.msra.mxu0 %v10938
        %11454 = vmatprep.subr.bf16.mxu0 %v10937
        %11455 = vmatpush2.bf16.msra.mxu0 %v10936
        %11456 = vmatprep.subr.bf16.mxu0 %v10935
        %11457 = vmatpush2.bf16.msra.mxu0 %v10934
        %11458 = vmatprep.subr.bf16.mxu0 %v10933
        %11459 = vmatpush2.bf16.msra.mxu0 %v10932
        %11460 = vmatprep.mubr.bf16.mxu0 %v9865
        %11461 = vmatmul.mubr.bf16.gmra.mxu0 %v9864
        %v11462 = vpop.f32.mrf.mxu0
        %v11463 = vadd.f32 %v10141, %v11462
        %v11464 = vpop.f32.mrf.mxu0
        %v11465 = vadd.f32 %v10145, %v11464
        %v11466 = vpop.f32.mrf.mxu0
        %v11467 = vpop.f32.mrf.mxu0
        %11468 = vdwg.mxu0
        %11469 = vmatprep.subr.bf16.mxu0 %v10963
        %11470 = vmatpush1.bf16.msra.mxu0 %v10962
        %11471 = vmatprep.subr.bf16.mxu0 %v10961
        %11472 = vmatpush1.bf16.msra.mxu0 %v10960
        %11473 = vmatprep.subr.bf16.mxu0 %v10959
        %11474 = vmatpush1.bf16.msra.mxu0 %v10958
        %11475 = vmatprep.subr.bf16.mxu0 %v10957
        %11476 = vmatpush1.bf16.msra.mxu0 %v10956
        %11477 = vmatprep.subr.bf16.mxu0 %v10955
        %11478 = vmatpush1.bf16.msra.mxu0 %v10954
        %11479 = vmatprep.subr.bf16.mxu0 %v10953
        %11480 = vmatpush1.bf16.msra.mxu0 %v10952
        %11481 = vmatprep.subr.bf16.mxu0 %v10951
        %11482 = vmatpush1.bf16.msra.mxu0 %v10950
        %11483 = vmatprep.subr.bf16.mxu0 %v10949
        %11484 = vmatpush1.bf16.msra.mxu0 %v10948
        %11485 = vmatprep.subr.bf16.mxu0 %v10979
        %11486 = vmatpush2.bf16.msra.mxu0 %v10978
        %11487 = vmatprep.subr.bf16.mxu0 %v10977
        %11488 = vmatpush2.bf16.msra.mxu0 %v10976
        %11489 = vmatprep.subr.bf16.mxu0 %v10975
        %11490 = vmatpush2.bf16.msra.mxu0 %v10974
        %11491 = vmatprep.subr.bf16.mxu0 %v10973
        %11492 = vmatpush2.bf16.msra.mxu0 %v10972
        %11493 = vmatprep.subr.bf16.mxu0 %v10971
        %11494 = vmatpush2.bf16.msra.mxu0 %v10970
        %11495 = vmatprep.subr.bf16.mxu0 %v10969
        %11496 = vmatpush2.bf16.msra.mxu0 %v10968
        %11497 = vmatprep.subr.bf16.mxu0 %v10967
        %11498 = vmatpush2.bf16.msra.mxu0 %v10966
        %11499 = vmatprep.subr.bf16.mxu0 %v10965
        %11500 = vmatpush2.bf16.msra.mxu0 %v10964
        %11501 = vmatprep.mubr.bf16.mxu0 %v9867
        %11502 = vmatmul.mubr.bf16.gmra.mxu0 %v9866
        %v11503 = vpop.f32.mrf.mxu0
        %v11504 = vadd.f32 %v11463, %v11503
        %v11505 = vpop.f32.mrf.mxu0
        %v11506 = vadd.f32 %v11465, %v11505
        %v11507 = vpop.f32.mrf.mxu0
        %v11508 = vpop.f32.mrf.mxu0
        %11509 = vdwg.mxu0
        %11510 = vmatprep.subr.bf16.mxu0 %v10995
        %11511 = vmatpush1.bf16.msra.mxu0 %v10994
        %11512 = vmatprep.subr.bf16.mxu0 %v10993
        %11513 = vmatpush1.bf16.msra.mxu0 %v10992
        %11514 = vmatprep.subr.bf16.mxu0 %v10991
        %11515 = vmatpush1.bf16.msra.mxu0 %v10990
        %11516 = vmatprep.subr.bf16.mxu0 %v10989
        %11517 = vmatpush1.bf16.msra.mxu0 %v10988
        %11518 = vmatprep.subr.bf16.mxu0 %v10987
        %11519 = vmatpush1.bf16.msra.mxu0 %v10986
        %11520 = vmatprep.subr.bf16.mxu0 %v10985
        %11521 = vmatpush1.bf16.msra.mxu0 %v10984
        %11522 = vmatprep.subr.bf16.mxu0 %v10983
        %11523 = vmatpush1.bf16.msra.mxu0 %v10982
        %11524 = vmatprep.subr.bf16.mxu0 %v10981
        %11525 = vmatpush1.bf16.msra.mxu0 %v10980
        %11526 = vmatprep.subr.bf16.mxu0 %v11011
        %11527 = vmatpush2.bf16.msra.mxu0 %v11010
        %11528 = vmatprep.subr.bf16.mxu0 %v11009
        %11529 = vmatpush2.bf16.msra.mxu0 %v11008
        %11530 = vmatprep.subr.bf16.mxu0 %v11007
        %11531 = vmatpush2.bf16.msra.mxu0 %v11006
        %11532 = vmatprep.subr.bf16.mxu0 %v11005
        %11533 = vmatpush2.bf16.msra.mxu0 %v11004
        %11534 = vmatprep.subr.bf16.mxu0 %v11003
        %11535 = vmatpush2.bf16.msra.mxu0 %v11002
        %11536 = vmatprep.subr.bf16.mxu0 %v11001
        %11537 = vmatpush2.bf16.msra.mxu0 %v11000
        %11538 = vmatprep.subr.bf16.mxu0 %v10999
        %11539 = vmatpush2.bf16.msra.mxu0 %v10998
        %11540 = vmatprep.subr.bf16.mxu0 %v10997
        %11541 = vmatpush2.bf16.msra.mxu0 %v10996
        %11542 = vmatprep.mubr.bf16.mxu0 %v9869
        %11543 = vmatmul.mubr.bf16.gmra.mxu0 %v9868
        %v11544 = vpop.f32.mrf.mxu0
        %v11545 = vadd.f32 %v11504, %v11544
        %v11546 = vpop.f32.mrf.mxu0
        %v11547 = vadd.f32 %v11506, %v11546
        %v11548 = vpop.f32.mrf.mxu0
        %v11549 = vpop.f32.mrf.mxu0
        %11550 = vdwg.mxu0
        %11551 = vmatprep.subr.bf16.mxu0 %v11027
        %11552 = vmatpush1.bf16.msra.mxu0 %v11026
        %11553 = vmatprep.subr.bf16.mxu0 %v11025
        %11554 = vmatpush1.bf16.msra.mxu0 %v11024
        %11555 = vmatprep.subr.bf16.mxu0 %v11023
        %11556 = vmatpush1.bf16.msra.mxu0 %v11022
        %11557 = vmatprep.subr.bf16.mxu0 %v11021
        %11558 = vmatpush1.bf16.msra.mxu0 %v11020
        %11559 = vmatprep.subr.bf16.mxu0 %v11019
        %11560 = vmatpush1.bf16.msra.mxu0 %v11018
        %11561 = vmatprep.subr.bf16.mxu0 %v11017
        %11562 = vmatpush1.bf16.msra.mxu0 %v11016
        %11563 = vmatprep.subr.bf16.mxu0 %v11015
        %11564 = vmatpush1.bf16.msra.mxu0 %v11014
        %11565 = vmatprep.subr.bf16.mxu0 %v11013
        %11566 = vmatpush1.bf16.msra.mxu0 %v11012
        %11567 = vmatprep.subr.bf16.mxu0 %v11043
        %11568 = vmatpush2.bf16.msra.mxu0 %v11042
        %11569 = vmatprep.subr.bf16.mxu0 %v11041
        %11570 = vmatpush2.bf16.msra.mxu0 %v11040
        %11571 = vmatprep.subr.bf16.mxu0 %v11039
        %11572 = vmatpush2.bf16.msra.mxu0 %v11038
        %11573 = vmatprep.subr.bf16.mxu0 %v11037
        %11574 = vmatpush2.bf16.msra.mxu0 %v11036
        %11575 = vmatprep.subr.bf16.mxu0 %v11035
        %11576 = vmatpush2.bf16.msra.mxu0 %v11034
        %11577 = vmatprep.subr.bf16.mxu0 %v11033
        %11578 = vmatpush2.bf16.msra.mxu0 %v11032
        %11579 = vmatprep.subr.bf16.mxu0 %v11031
        %11580 = vmatpush2.bf16.msra.mxu0 %v11030
        %11581 = vmatprep.subr.bf16.mxu0 %v11029
        %11582 = vmatpush2.bf16.msra.mxu0 %v11028
        %11583 = vmatprep.mubr.bf16.mxu0 %v9871
        %11584 = vmatmul.mubr.bf16.gmra.mxu0 %v9870
        %v11585 = vpop.f32.mrf.mxu0
        %v11586 = vadd.f32 %v11545, %v11585
        %v11587 = vpop.f32.mrf.mxu0
        %v11588 = vadd.f32 %v11547, %v11587
        %v11589 = vpop.f32.mrf.mxu0
        %v11590 = vpop.f32.mrf.mxu0
        %11591 = vdwg.mxu0
        %11592 = vmatprep.subr.bf16.mxu0 %v11059
        %11593 = vmatpush1.bf16.msra.mxu0 %v11058
        %11594 = vmatprep.subr.bf16.mxu0 %v11057
        %11595 = vmatpush1.bf16.msra.mxu0 %v11056
        %11596 = vmatprep.subr.bf16.mxu0 %v11055
        %11597 = vmatpush1.bf16.msra.mxu0 %v11054
        %11598 = vmatprep.subr.bf16.mxu0 %v11053
        %11599 = vmatpush1.bf16.msra.mxu0 %v11052
        %11600 = vmatprep.subr.bf16.mxu0 %v11051
        %11601 = vmatpush1.bf16.msra.mxu0 %v11050
        %11602 = vmatprep.subr.bf16.mxu0 %v11049
        %11603 = vmatpush1.bf16.msra.mxu0 %v11048
        %11604 = vmatprep.subr.bf16.mxu0 %v11047
        %11605 = vmatpush1.bf16.msra.mxu0 %v11046
        %11606 = vmatprep.subr.bf16.mxu0 %v11045
        %11607 = vmatpush1.bf16.msra.mxu0 %v11044
        %11608 = vmatprep.subr.bf16.mxu0 %v11075
        %11609 = vmatpush2.bf16.msra.mxu0 %v11074
        %11610 = vmatprep.subr.bf16.mxu0 %v11073
        %11611 = vmatpush2.bf16.msra.mxu0 %v11072
        %11612 = vmatprep.subr.bf16.mxu0 %v11071
        %11613 = vmatpush2.bf16.msra.mxu0 %v11070
        %11614 = vmatprep.subr.bf16.mxu0 %v11069
        %11615 = vmatpush2.bf16.msra.mxu0 %v11068
        %11616 = vmatprep.subr.bf16.mxu0 %v11067
        %11617 = vmatpush2.bf16.msra.mxu0 %v11066
        %11618 = vmatprep.subr.bf16.mxu0 %v11065
        %11619 = vmatpush2.bf16.msra.mxu0 %v11064
        %11620 = vmatprep.subr.bf16.mxu0 %v11063
        %11621 = vmatpush2.bf16.msra.mxu0 %v11062
        %11622 = vmatprep.subr.bf16.mxu0 %v11061
        %11623 = vmatpush2.bf16.msra.mxu0 %v11060
        %11624 = vmatprep.mubr.bf16.mxu0 %v9873
        %11625 = vmatmul.mubr.bf16.gmra.mxu0 %v9872
        %v11626 = vpop.f32.mrf.mxu0
        %v11627 = vadd.f32 %v11586, %v11626
        %v11628 = vpop.f32.mrf.mxu0
        %v11629 = vadd.f32 %v11588, %v11628
        %v11630 = vpop.f32.mrf.mxu0
        %v11631 = vpop.f32.mrf.mxu0
        %11632 = vdwg.mxu0
        %11633 = vmatprep.subr.bf16.mxu0 %v11091
        %11634 = vmatpush1.bf16.msra.mxu0 %v11090
        %11635 = vmatprep.subr.bf16.mxu0 %v11089
        %11636 = vmatpush1.bf16.msra.mxu0 %v11088
        %11637 = vmatprep.subr.bf16.mxu0 %v11087
        %11638 = vmatpush1.bf16.msra.mxu0 %v11086
        %11639 = vmatprep.subr.bf16.mxu0 %v11085
        %11640 = vmatpush1.bf16.msra.mxu0 %v11084
        %11641 = vmatprep.subr.bf16.mxu0 %v11083
        %11642 = vmatpush1.bf16.msra.mxu0 %v11082
        %11643 = vmatprep.subr.bf16.mxu0 %v11081
        %11644 = vmatpush1.bf16.msra.mxu0 %v11080
        %11645 = vmatprep.subr.bf16.mxu0 %v11079
        %11646 = vmatpush1.bf16.msra.mxu0 %v11078
        %11647 = vmatprep.subr.bf16.mxu0 %v11077
        %11648 = vmatpush1.bf16.msra.mxu0 %v11076
        %11649 = vmatprep.subr.bf16.mxu0 %v11107
        %11650 = vmatpush2.bf16.msra.mxu0 %v11106
        %11651 = vmatprep.subr.bf16.mxu0 %v11105
        %11652 = vmatpush2.bf16.msra.mxu0 %v11104
        %11653 = vmatprep.subr.bf16.mxu0 %v11103
        %11654 = vmatpush2.bf16.msra.mxu0 %v11102
        %11655 = vmatprep.subr.bf16.mxu0 %v11101
        %11656 = vmatpush2.bf16.msra.mxu0 %v11100
        %11657 = vmatprep.subr.bf16.mxu0 %v11099
        %11658 = vmatpush2.bf16.msra.mxu0 %v11098
        %11659 = vmatprep.subr.bf16.mxu0 %v11097
        %11660 = vmatpush2.bf16.msra.mxu0 %v11096
        %11661 = vmatprep.subr.bf16.mxu0 %v11095
        %11662 = vmatpush2.bf16.msra.mxu0 %v11094
        %11663 = vmatprep.subr.bf16.mxu0 %v11093
        %11664 = vmatpush2.bf16.msra.mxu0 %v11092
        %11665 = vmatprep.mubr.bf16.mxu0 %v9875
        %11666 = vmatmul.mubr.bf16.gmra.mxu0 %v9874
        %v11667 = vpop.f32.mrf.mxu0
        %v11668 = vadd.f32 %v11627, %v11667
        %v11669 = vpop.f32.mrf.mxu0
        %v11670 = vadd.f32 %v11629, %v11669
        %v11671 = vpop.f32.mrf.mxu0
        %v11672 = vpop.f32.mrf.mxu0
        %11673 = vdwg.mxu0
        %11674 = vmatprep.subr.bf16.mxu0 %v11123
        %11675 = vmatpush1.bf16.msra.mxu0 %v11122
        %11676 = vmatprep.subr.bf16.mxu0 %v11121
        %11677 = vmatpush1.bf16.msra.mxu0 %v11120
        %11678 = vmatprep.subr.bf16.mxu0 %v11119
        %11679 = vmatpush1.bf16.msra.mxu0 %v11118
        %11680 = vmatprep.subr.bf16.mxu0 %v11117
        %11681 = vmatpush1.bf16.msra.mxu0 %v11116
        %11682 = vmatprep.subr.bf16.mxu0 %v11115
        %11683 = vmatpush1.bf16.msra.mxu0 %v11114
        %11684 = vmatprep.subr.bf16.mxu0 %v11113
        %11685 = vmatpush1.bf16.msra.mxu0 %v11112
        %11686 = vmatprep.subr.bf16.mxu0 %v11111
        %11687 = vmatpush1.bf16.msra.mxu0 %v11110
        %11688 = vmatprep.subr.bf16.mxu0 %v11109
        %11689 = vmatpush1.bf16.msra.mxu0 %v11108
        %11690 = vmatprep.subr.bf16.mxu0 %v11139
        %11691 = vmatpush2.bf16.msra.mxu0 %v11138
        %11692 = vmatprep.subr.bf16.mxu0 %v11137
        %11693 = vmatpush2.bf16.msra.mxu0 %v11136
        %11694 = vmatprep.subr.bf16.mxu0 %v11135
        %11695 = vmatpush2.bf16.msra.mxu0 %v11134
        %11696 = vmatprep.subr.bf16.mxu0 %v11133
        %11697 = vmatpush2.bf16.msra.mxu0 %v11132
        %11698 = vmatprep.subr.bf16.mxu0 %v11131
        %11699 = vmatpush2.bf16.msra.mxu0 %v11130
        %11700 = vmatprep.subr.bf16.mxu0 %v11129
        %11701 = vmatpush2.bf16.msra.mxu0 %v11128
        %11702 = vmatprep.subr.bf16.mxu0 %v11127
        %11703 = vmatpush2.bf16.msra.mxu0 %v11126
        %11704 = vmatprep.subr.bf16.mxu0 %v11125
        %11705 = vmatpush2.bf16.msra.mxu0 %v11124
        %11706 = vmatprep.mubr.bf16.mxu0 %v9877
        %11707 = vmatmul.mubr.bf16.gmra.mxu0 %v9876
        %v11708 = vpop.f32.mrf.mxu0
        %v11709 = vadd.f32 %v11668, %v11708
        %v11710 = vpop.f32.mrf.mxu0
        %v11711 = vadd.f32 %v11670, %v11710
        %v11712 = vpop.f32.mrf.mxu0
        %v11713 = vpop.f32.mrf.mxu0
        %11714 = vdwg.mxu0
        %11715 = vmatprep.subr.bf16.mxu0 %v11155
        %11716 = vmatpush1.bf16.msra.mxu0 %v11154
        %11717 = vmatprep.subr.bf16.mxu0 %v11153
        %11718 = vmatpush1.bf16.msra.mxu0 %v11152
        %11719 = vmatprep.subr.bf16.mxu0 %v11151
        %11720 = vmatpush1.bf16.msra.mxu0 %v11150
        %11721 = vmatprep.subr.bf16.mxu0 %v11149
        %11722 = vmatpush1.bf16.msra.mxu0 %v11148
        %11723 = vmatprep.subr.bf16.mxu0 %v11147
        %11724 = vmatpush1.bf16.msra.mxu0 %v11146
        %11725 = vmatprep.subr.bf16.mxu0 %v11145
        %11726 = vmatpush1.bf16.msra.mxu0 %v11144
        %11727 = vmatprep.subr.bf16.mxu0 %v11143
        %11728 = vmatpush1.bf16.msra.mxu0 %v11142
        %11729 = vmatprep.subr.bf16.mxu0 %v11141
        %11730 = vmatpush1.bf16.msra.mxu0 %v11140
        %11731 = vmatprep.subr.bf16.mxu0 %v11171
        %11732 = vmatpush2.bf16.msra.mxu0 %v11170
        %11733 = vmatprep.subr.bf16.mxu0 %v11169
        %11734 = vmatpush2.bf16.msra.mxu0 %v11168
        %11735 = vmatprep.subr.bf16.mxu0 %v11167
        %11736 = vmatpush2.bf16.msra.mxu0 %v11166
        %11737 = vmatprep.subr.bf16.mxu0 %v11165
        %11738 = vmatpush2.bf16.msra.mxu0 %v11164
        %11739 = vmatprep.subr.bf16.mxu0 %v11163
        %11740 = vmatpush2.bf16.msra.mxu0 %v11162
        %11741 = vmatprep.subr.bf16.mxu0 %v11161
        %11742 = vmatpush2.bf16.msra.mxu0 %v11160
        %11743 = vmatprep.subr.bf16.mxu0 %v11159
        %11744 = vmatpush2.bf16.msra.mxu0 %v11158
        %11745 = vmatprep.subr.bf16.mxu0 %v11157
        %11746 = vmatpush2.bf16.msra.mxu0 %v11156
        %11747 = vmatprep.mubr.bf16.mxu0 %v9879
        %11748 = vmatmul.mubr.bf16.gmra.mxu0 %v9878
        %v11749 = vpop.f32.mrf.mxu0
        %v11750 = vadd.f32 %v11709, %v11749
        %v11751 = vpop.f32.mrf.mxu0
        %v11752 = vadd.f32 %v11711, %v11751
        %v11753 = vpop.f32.mrf.mxu0
        %v11754 = vpop.f32.mrf.mxu0
        %11755 = vdwg.mxu0
        %11756 = vst [vmem:[%s398] sm:$0xff] %v11750
        %11757 = vst [vmem:[%s398 + $0x8] sm:$0xff] %v11752
        %s11758 = sand.u32 %s192, 1
        %s11759 = scalar_lea.sflag [#allocation4], %s11758
        %s11760 = sand.u32 %s192, 1
        %s11761 = smul.addr %s11760, 16
        %s11762 = scalar_lea.vmem [#allocation14], %s11761
        // Predicated region
        $region77: #{tpu_custom_call.1} parent=47 // pred_check
          %p11763 = pneg %p202
        $region78: #{tpu_custom_call.1} parent=47 // pred_check_branch
          %11765 = sbr.rel (%p11763) target = $region80
        $region79: #{tpu_custom_call.1} parent=47 // pred_region
          %s11766 = smul.u32 2, %s27
          %s11768 = ssub.s32 256, 256
          %11769 = vsyncadd %s11759, %s11768
          %s11770 = smul.addr %s11766, 128
          %s11771 = scalar_lea.hbm %s7, %s11770
          %s11773 = sshll.u32 %s11762, 4
          %s11774 = int_to_ptr.vmem [resolvable:$true] %s11773
          %11776 = dma.vmem_to_hbm [thread:$0]  %s11774, 256, %s11771, %s11759
        $region80: #{tpu_custom_call.1} parent=47 // pred_fallthru
          _
      $region48: #{tpu_custom_call.1} parent=5 // pred_fallthru
        _
      %p11777 = scmp.le.s32.totalorder 2, %s22
      // Predicated region
      $region81: #{tpu_custom_call.1} parent=5 // pred_check
        %p11778 = pneg %p11777
      $region82: #{tpu_custom_call.1} parent=5 // pred_check_branch
        %11780 = sbr.rel (%p11778) target = $region84
      $region83: #{tpu_custom_call.1} parent=5 // pred_region
        %s11781 = ssub.s32 %s22, 2
        // Predicated region
        $region85: #{tpu_custom_call.1} parent=83 // pred_check
          %p11782 = pneg %p208
        $region86: #{tpu_custom_call.1} parent=83 // pred_check_branch
          %11784 = sbr.rel (%p11782) target = $region88
        $region87: #{tpu_custom_call.1} parent=83 // pred_region
          %s11785 = sand.u32 %s193, 1
          %s11786 = scalar_lea.sflag [#allocation4], %s11785
          %s11787 = sand.u32 %s193, 1
          %s11788 = smul.addr %s11787, 16
          %s11789 = scalar_lea.vmem [#allocation14], %s11788
          %11790 = dma.done %s11786, 256
        $region88: #{tpu_custom_call.1} parent=83 // pred_fallthru
          _
      $region84: #{tpu_custom_call.1} parent=5 // pred_fallthru
        _
    $region6: #{tpu_custom_call.1} parent=1 // loop_footer
      %s26 = sadd.s32 1, %s22
    $region7: #{tpu_custom_call.1} parent=1 // loop_footer_branch
      %21 = sbr.rel target = $region3
    $region8: #{tpu_custom_call.1} parent=1 // loop_exit
      _
    %11791 = vsyncpa [#allocation3], 1
    %s11792 = scalar_lea.sflag [#allocation3], 1
    %11793 = vsyncpa %s11792, 1
    %11794 = vsyncpa [#allocation6], 1
    %11795 = vsyncpa [#allocation9], 1
    %11796 = vsyncpa [#allocation12], 1
    %s11797 = scalar_lea.sflag [#allocation12], 1
    %11798 = vsyncpa %s11797, 1
    %11799 = vsyncpa [#allocation4], 1
    %s11800 = scalar_lea.sflag [#allocation4], 1
    %11801 = vsyncpa %s11800, 1

</llo_original>
